<compile_context>
chip_gen: v6e
topology: v6e:2x2x1
jax: 0.10.0
libtpu: 0.0.40
codegen_flags: <defaults>
</compile_context>

<pallas_src>
import functools
import math

import jax
import jax.numpy as jnp
from jax.experimental import pallas as pl
from jax.experimental.pallas import tpu as pltpu


def _aspp_kernel(x_ref, w_ref, b_ref, o_ref, *, W, TH, Cin, Cout_p, rates,
                 pmax, row_align):
    # x_ref: (Hp_pad, Wp, Cin)   padded input frame for this batch element
    # w_ref: (R*9*Cin, Cout_p)   packed (rate, ky, kx, cin)-major weights
    # b_ref: (1, Cout_p)         summed biases, f32
    # o_ref: (TH*W, Cout_p)      flattened, lane-dense output tile
    row0 = pl.multiple_of(pl.program_id(1) * TH, row_align)
    kc = 9 * Cin

    acc = None
    for ri, r in enumerate(rates):            # static python loops -> unrolled
        pieces = []
        for ky in range(3):
            dy = (ky - 1) * r + pmax
            for kx in range(3):
                dx = (kx - 1) * r + pmax
                pieces.append(x_ref[pl.ds(row0 + dy, TH), pl.ds(dx, W), :])
        # One (TH*W, 9*Cin) im2col chunk per rate: keeps K MXU-deep while the
        # chunk VMEM / copy traffic is ~R x smaller than a fully fused slab.
        chunk = jnp.concatenate(pieces, axis=-1).reshape(TH * W, kc)
        part = jnp.dot(chunk, w_ref[pl.ds(ri * kc, kc), :],
                       preferred_element_type=jnp.float32)
        acc = part if acc is None else acc + part

    acc = acc + b_ref[...].astype(jnp.float32)        # (1, Cout_p) broadcast
    o_ref[...] = acc.astype(o_ref.dtype)


def _round_up(x, m):
    return ((x + m - 1) // m) * m


def _pick_tile_h(H, W, requested):
    """TH such that TH*W >= ~256 (fills the 256-wide MXU) and TH*W % 8 == 0."""
    if requested is not None:
        th = max(1, int(requested))
    else:
        th = max(1, -(-256 // W))                 # ceil(256 / W)
        th = min(th, max(1, H))
    # Grow TH until the flattened tile rows are sublane-aligned.  Always
    # terminates (TH == 8 works for any W).  TH may exceed H; the wrapper pads
    # H up to a multiple of TH and slices the extra rows off again.
    while (th * W) % 8 != 0:
        th += 1
    return th


def _vmem_limit_bytes(needed):
    cap = 64 * 1024 * 1024
    try:
        cap = int(pltpu.get_tpu_info().vmem_capacity_bytes)
    except Exception:
        pass
    return int(min(max(needed, 32 * 1024 * 1024), int(cap * 0.75)))


def aspp_forward(x_nchw, weights, biases, rates, *, tile_h=None,
                 compute_dtype=jnp.bfloat16):
    """weights: list of (Cout, Cin, 3, 3) arrays (PyTorch OIHW); biases: list of (Cout,)."""
    B, Cin, H, W = x_nchw.shape
    Cout = weights[0].shape[0]
    rates = tuple(int(r) for r in rates)
    R = len(rates)
    pmax = max(rates)

    TH = _pick_tile_h(H, W, tile_h)
    Hpad = _round_up(max(H, TH), TH)
    nH = Hpad // TH
    Hp_pad, Wp = Hpad + 2 * pmax, W + 2 * pmax
    K = R * 9 * Cin

    # Lane-dense output channels, unless padding would inflate HBM writeback
    # by more than 2x (tiny-Cout path keeps exact Cout; block == full dim).
    Cout_p = _round_up(Cout, 128)
    if Cout_p > 2 * Cout:
        Cout_p = Cout

    # NCHW -> NHWC (channels on lanes); zero-pad pmax on every spatial edge
    # plus (Hpad - H) extra bottom rows so the last H tile stays in bounds.
    x = jnp.transpose(x_nchw, (0, 2, 3, 1))
    xp = jnp.pad(x, ((0, 0), (pmax, pmax + Hpad - H), (pmax, pmax), (0, 0)))
    xp = xp.astype(compute_dtype)

    # Pack weights to match the im2col chunk lane order (rate, ky, kx, cin):
    # (R, Cout, Cin, 3, 3) -> (R, kh, kw, Cin, Cout) -> (K, Cout[_p]).
    w = jnp.stack(weights, axis=0)
    w = jnp.transpose(w, (0, 3, 4, 2, 1)).reshape(K, Cout)
    w = jnp.pad(w, ((0, 0), (0, Cout_p - Cout))).astype(compute_dtype)

    # Sum of stages => per-stage biases simply add up; keep f32.
    bsum = jnp.sum(jnp.stack(biases, 0), axis=0).astype(jnp.float32)
    bsum = jnp.pad(bsum, (0, Cout_p - Cout)).reshape(1, Cout_p)

    kernel = functools.partial(_aspp_kernel, W=W, TH=TH, Cin=Cin,
                               Cout_p=Cout_p, rates=rates, pmax=pmax,
                               row_align=math.gcd(TH, 8))

    itemsize = jnp.dtype(compute_dtype).itemsize
    out_itemsize = jnp.dtype(x_nchw.dtype).itemsize
    needed = (2 * Hp_pad * Wp * Cin * itemsize       # input frame (2 bufs)
              + K * Cout_p * itemsize                # weights (1 buf)
              + Cout_p * 4                           # bias (1 buf)
              + 2 * TH * W * Cout_p * out_itemsize   # output tiles (2 bufs)
              + TH * W * 9 * Cin * itemsize          # per-rate im2col chunk
              + TH * W * Cout_p * 4)                 # f32 accumulator
    vmem_limit = _vmem_limit_bytes(int(needed * 1.5))

    def _call(single_buffer_consts):
        if single_buffer_consts:
            # Constant index maps -> loaded once; single-buffer to save VMEM.
            w_spec = pl.BlockSpec((K, Cout_p), lambda b, h: (0, 0),
                                  pipeline_mode=pl.Buffered(1))
            b_spec = pl.BlockSpec((1, Cout_p), lambda b, h: (0, 0),
                                  pipeline_mode=pl.Buffered(1))
        else:
            w_spec = pl.BlockSpec((K, Cout_p), lambda b, h: (0, 0))
            b_spec = pl.BlockSpec((1, Cout_p), lambda b, h: (0, 0))
        return pl.pallas_call(
            kernel,
            out_shape=jax.ShapeDtypeStruct((B, Hpad * W, Cout_p),
                                           x_nchw.dtype),
            grid=(B, nH),
            in_specs=[
                # Full padded frame; index map constant over h -> DMA'd once
                # per batch element, resident across the H tiles.
                pl.BlockSpec((None, Hp_pad, Wp, Cin),
                             lambda b, h: (b, 0, 0, 0)),
                w_spec,
                b_spec,
            ],
            out_specs=pl.BlockSpec((None, TH * W, Cout_p),
                                   lambda b, h: (b, h, 0)),
            compiler_params=pltpu.CompilerParams(
                # b and h each write disjoint output blocks -> both parallel
                # (lets v7x's 2 TensorCores split h even when B is 1/odd).
                dimension_semantics=("parallel", "parallel"),
                vmem_limit_bytes=vmem_limit,
            ),
        )(xp, w, bsum)

    try:
        out_flat = _call(True)
    except Exception:
        # pl.Buffered(1) is a pure VMEM-footprint optimization; fall back to
        # default double buffering if this jax build rejects it.
        out_flat = _call(False)

    out = out_flat.reshape(B, Hpad, W, Cout_p)[:, :H, :, :Cout]
    return jnp.transpose(out, (0, 3, 1, 2))            # back to NCHW


def aspp_reference(x_nchw, weights, biases, rates):
    out = None
    for wt, b, r in zip(weights, biases, rates):
        y = jax.lax.conv_general_dilated(
            x_nchw, wt, (1, 1),
            padding=((r, r), (r, r)),
            rhs_dilation=(r, r),
            dimension_numbers=("NCHW", "OIHW", "NCHW"))
        y = y + b.reshape(1, -1, 1, 1)
        out = y if out is None else out + y
    return out


if __name__ == "__main__":
    # Small shapes consistent with the module's forward.
    B, Cin, Cout, H, W = 2, 4, 8, 16, 16
    rates = (1, 2, 4)

    key = jax.random.PRNGKey(0)
    key_x, *key_ws = jax.random.split(key, 1 + len(rates))
    x = jax.random.normal(key_x, (B, Cin, H, W), jnp.float32)

    # nn.init.normal_(weight, mean=0, std=0.01); bias = 0
    weights = [0.01 * jax.random.normal(kw, (Cout, Cin, 3, 3), jnp.float32)
               for kw in key_ws]
    biases = [jnp.zeros((Cout,), jnp.float32) for _ in rates]

    ref = aspp_reference(x, weights, biases, rates)

    # f32 compute, default TH (TH=16 -> M=256, single H tile): exactness.
    out_f32 = jax.block_until_ready(
        aspp_forward(x, weights, biases, rates, compute_dtype=jnp.float32))
    assert out_f32.shape == (B, Cout, H, W)
    err_f32 = float(jnp.max(jnp.abs(out_f32 - ref)))
    assert jnp.allclose(out_f32, ref, atol=1e-4, rtol=1e-4), err_f32

    # f32 compute, TH=12: Hpad=24 > H exercises H padding + row masking and
    # the multi-tile h axis (nH=2).
    out_f32_t = jax.block_until_ready(
        aspp_forward(x, weights, biases, rates, tile_h=12,
                     compute_dtype=jnp.float32))
    err_t = float(jnp.max(jnp.abs(out_f32_t - ref)))
    assert jnp.allclose(out_f32_t, ref, atol=1e-4, rtol=1e-4), err_t

    # bf16 compute (MXU-friendly default): looser tolerance.
    out_bf16 = jax.block_until_ready(
        aspp_forward(x, weights, biases, rates))
    err_bf16 = float(jnp.max(jnp.abs(out_bf16 - ref)))
    assert jnp.allclose(out_bf16, ref, atol=2e-2, rtol=2e-2), err_bf16

    print("KERNEL_OK")
</pallas_src>

<mosaic_0001>
module attributes {stable_mosaic.version = 11 : i64} {
  func.func @_aspp_kernel(%arg0: i32, %arg1: i32, %arg2: memref<1x24x24x4xf32, #tpu.memory_space<vmem>>, %arg3: memref<108x8xf32, #tpu.memory_space<vmem>>, %arg4: memref<1x8xf32, #tpu.memory_space<vmem>>, %arg5: memref<1x256x8xf32, #tpu.memory_space<vmem>>) attributes {dimension_semantics = [#tpu.dimension_semantics<parallel>, #tpu.dimension_semantics<parallel>], iteration_bounds = array<i64: 2, 1>, scalar_prefetch = 0 : i64, scratch_operands = 0 : i64, tpu.core_type = #tpu.core_type<tc>, window_params = [{transform_indices = @transform_0, window_bounds = array<i64: 1, 24, 24, 4>}, {pipeline_mode = #tpu.pipeline_mode<synchronous>, transform_indices = @transform_1, window_bounds = array<i64: 108, 8>}, {pipeline_mode = #tpu.pipeline_mode<synchronous>, transform_indices = @transform_2, window_bounds = array<i64: 1, 8>}, {transform_indices = @transform_3, window_bounds = array<i64: 1, 256, 8>}]} {
    %c16_i32 = arith.constant 16 : i32
    %0 = arith.muli %arg1, %c16_i32 : i32
    %1 = tpu.assume_multiple %0, 8 : i32
    %c3_i32 = arith.constant 3 : i32
    %2 = arith.addi %1, %c3_i32 : i32
    %c0 = arith.constant 0 : index
    %3 = arith.index_cast %2 : i32 to index
    %c3 = arith.constant 3 : index
    %c0_0 = arith.constant 0 : index
    %4 = vector.load %arg2[%c0, %3, %c3, %c0_0] : memref<1x24x24x4xf32, #tpu.memory_space<vmem>>, vector<1x16x16x4xf32>
    %5 = vector.shape_cast %4 : vector<1x16x16x4xf32> to vector<16x16x4xf32>
    %c3_i32_1 = arith.constant 3 : i32
    %6 = arith.addi %1, %c3_i32_1 : i32
    %c0_2 = arith.constant 0 : index
    %7 = arith.index_cast %6 : i32 to index
    %c4 = arith.constant 4 : index
    %c0_3 = arith.constant 0 : index
    %8 = vector.load %arg2[%c0_2, %7, %c4, %c0_3] : memref<1x24x24x4xf32, #tpu.memory_space<vmem>>, vector<1x16x16x4xf32>
    %9 = vector.shape_cast %8 : vector<1x16x16x4xf32> to vector<16x16x4xf32>
    %c3_i32_4 = arith.constant 3 : i32
    %10 = arith.addi %1, %c3_i32_4 : i32
    %c0_5 = arith.constant 0 : index
    %11 = arith.index_cast %10 : i32 to index
    %c5 = arith.constant 5 : index
    %c0_6 = arith.constant 0 : index
    %12 = vector.load %arg2[%c0_5, %11, %c5, %c0_6] : memref<1x24x24x4xf32, #tpu.memory_space<vmem>>, vector<1x16x16x4xf32>
    %13 = vector.shape_cast %12 : vector<1x16x16x4xf32> to vector<16x16x4xf32>
    %c4_i32 = arith.constant 4 : i32
    %14 = arith.addi %1, %c4_i32 : i32
    %c0_7 = arith.constant 0 : index
    %15 = arith.index_cast %14 : i32 to index
    %c3_8 = arith.constant 3 : index
    %c0_9 = arith.constant 0 : index
    %16 = vector.load %arg2[%c0_7, %15, %c3_8, %c0_9] : memref<1x24x24x4xf32, #tpu.memory_space<vmem>>, vector<1x16x16x4xf32>
    %17 = vector.shape_cast %16 : vector<1x16x16x4xf32> to vector<16x16x4xf32>
    %c4_i32_10 = arith.constant 4 : i32
    %18 = arith.addi %1, %c4_i32_10 : i32
    %c0_11 = arith.constant 0 : index
    %19 = arith.index_cast %18 : i32 to index
    %c4_12 = arith.constant 4 : index
    %c0_13 = arith.constant 0 : index
    %20 = vector.load %arg2[%c0_11, %19, %c4_12, %c0_13] : memref<1x24x24x4xf32, #tpu.memory_space<vmem>>, vector<1x16x16x4xf32>
    %21 = vector.shape_cast %20 : vector<1x16x16x4xf32> to vector<16x16x4xf32>
    %c4_i32_14 = arith.constant 4 : i32
    %22 = arith.addi %1, %c4_i32_14 : i32
    %c0_15 = arith.constant 0 : index
    %23 = arith.index_cast %22 : i32 to index
    %c5_16 = arith.constant 5 : index
    %c0_17 = arith.constant 0 : index
    %24 = vector.load %arg2[%c0_15, %23, %c5_16, %c0_17] : memref<1x24x24x4xf32, #tpu.memory_space<vmem>>, vector<1x16x16x4xf32>
    %25 = vector.shape_cast %24 : vector<1x16x16x4xf32> to vector<16x16x4xf32>
    %c5_i32 = arith.constant 5 : i32
    %26 = arith.addi %1, %c5_i32 : i32
    %c0_18 = arith.constant 0 : index
    %27 = arith.index_cast %26 : i32 to index
    %c3_19 = arith.constant 3 : index
    %c0_20 = arith.constant 0 : index
    %28 = vector.load %arg2[%c0_18, %27, %c3_19, %c0_20] : memref<1x24x24x4xf32, #tpu.memory_space<vmem>>, vector<1x16x16x4xf32>
    %29 = vector.shape_cast %28 : vector<1x16x16x4xf32> to vector<16x16x4xf32>
    %c5_i32_21 = arith.constant 5 : i32
    %30 = arith.addi %1, %c5_i32_21 : i32
    %c0_22 = arith.constant 0 : index
    %31 = arith.index_cast %30 : i32 to index
    %c4_23 = arith.constant 4 : index
    %c0_24 = arith.constant 0 : index
    %32 = vector.load %arg2[%c0_22, %31, %c4_23, %c0_24] : memref<1x24x24x4xf32, #tpu.memory_space<vmem>>, vector<1x16x16x4xf32>
    %33 = vector.shape_cast %32 : vector<1x16x16x4xf32> to vector<16x16x4xf32>
    %c5_i32_25 = arith.constant 5 : i32
    %34 = arith.addi %1, %c5_i32_25 : i32
    %c0_26 = arith.constant 0 : index
    %35 = arith.index_cast %34 : i32 to index
    %c5_27 = arith.constant 5 : index
    %c0_28 = arith.constant 0 : index
    %36 = vector.load %arg2[%c0_26, %35, %c5_27, %c0_28] : memref<1x24x24x4xf32, #tpu.memory_space<vmem>>, vector<1x16x16x4xf32>
    %37 = vector.shape_cast %36 : vector<1x16x16x4xf32> to vector<16x16x4xf32>
    %38 = tpu.concatenate %5, %9, %13, %17, %21, %25, %29, %33, %37 in 2 : vector<16x16x4xf32>, vector<16x16x4xf32>, vector<16x16x4xf32>, vector<16x16x4xf32>, vector<16x16x4xf32>, vector<16x16x4xf32>, vector<16x16x4xf32>, vector<16x16x4xf32>, vector<16x16x4xf32> -> vector<16x16x36xf32>
    %39 = vector.shape_cast %38 : vector<16x16x36xf32> to vector<256x36xf32>
    %c0_29 = arith.constant 0 : index
    %c0_30 = arith.constant 0 : index
    %40 = vector.load %arg3[%c0_29, %c0_30] : memref<108x8xf32, #tpu.memory_space<vmem>>, vector<36x8xf32>
    %cst = arith.constant dense<0.000000e+00> : vector<256x8xf32>
    %41 = tpu.matmul %39, %40, %cst {dimension_numbers = #tpu.dot_dimension_numbers<[1], [0], [0], [1], [0, 0, 1, 1], [], []>} : vector<256x36xf32>, vector<36x8xf32>, vector<256x8xf32> -> vector<256x8xf32>
    %c2_i32 = arith.constant 2 : i32
    %42 = arith.addi %1, %c2_i32 : i32
    %c0_31 = arith.constant 0 : index
    %43 = arith.index_cast %42 : i32 to index
    %c2 = arith.constant 2 : index
    %c0_32 = arith.constant 0 : index
    %44 = vector.load %arg2[%c0_31, %43, %c2, %c0_32] : memref<1x24x24x4xf32, #tpu.memory_space<vmem>>, vector<1x16x16x4xf32>
    %45 = vector.shape_cast %44 : vector<1x16x16x4xf32> to vector<16x16x4xf32>
    %c2_i32_33 = arith.constant 2 : i32
    %46 = arith.addi %1, %c2_i32_33 : i32
    %c0_34 = arith.constant 0 : index
    %47 = arith.index_cast %46 : i32 to index
    %c4_35 = arith.constant 4 : index
    %c0_36 = arith.constant 0 : index
    %48 = vector.load %arg2[%c0_34, %47, %c4_35, %c0_36] : memref<1x24x24x4xf32, #tpu.memory_space<vmem>>, vector<1x16x16x4xf32>
    %49 = vector.shape_cast %48 : vector<1x16x16x4xf32> to vector<16x16x4xf32>
    %c2_i32_37 = arith.constant 2 : i32
    %50 = arith.addi %1, %c2_i32_37 : i32
    %c0_38 = arith.constant 0 : index
    %51 = arith.index_cast %50 : i32 to index
    %c6 = arith.constant 6 : index
    %c0_39 = arith.constant 0 : index
    %52 = vector.load %arg2[%c0_38, %51, %c6, %c0_39] : memref<1x24x24x4xf32, #tpu.memory_space<vmem>>, vector<1x16x16x4xf32>
    %53 = vector.shape_cast %52 : vector<1x16x16x4xf32> to vector<16x16x4xf32>
    %c4_i32_40 = arith.constant 4 : i32
    %54 = arith.addi %1, %c4_i32_40 : i32
    %c0_41 = arith.constant 0 : index
    %55 = arith.index_cast %54 : i32 to index
    %c2_42 = arith.constant 2 : index
    %c0_43 = arith.constant 0 : index
    %56 = vector.load %arg2[%c0_41, %55, %c2_42, %c0_43] : memref<1x24x24x4xf32, #tpu.memory_space<vmem>>, vector<1x16x16x4xf32>
    %57 = vector.shape_cast %56 : vector<1x16x16x4xf32> to vector<16x16x4xf32>
    %c4_i32_44 = arith.constant 4 : i32
    %58 = arith.addi %1, %c4_i32_44 : i32
    %c0_45 = arith.constant 0 : index
    %59 = arith.index_cast %58 : i32 to index
    %c4_46 = arith.constant 4 : index
    %c0_47 = arith.constant 0 : index
    %60 = vector.load %arg2[%c0_45, %59, %c4_46, %c0_47] : memref<1x24x24x4xf32, #tpu.memory_space<vmem>>, vector<1x16x16x4xf32>
    %61 = vector.shape_cast %60 : vector<1x16x16x4xf32> to vector<16x16x4xf32>
    %c4_i32_48 = arith.constant 4 : i32
    %62 = arith.addi %1, %c4_i32_48 : i32
    %c0_49 = arith.constant 0 : index
    %63 = arith.index_cast %62 : i32 to index
    %c6_50 = arith.constant 6 : index
    %c0_51 = arith.constant 0 : index
    %64 = vector.load %arg2[%c0_49, %63, %c6_50, %c0_51] : memref<1x24x24x4xf32, #tpu.memory_space<vmem>>, vector<1x16x16x4xf32>
    %65 = vector.shape_cast %64 : vector<1x16x16x4xf32> to vector<16x16x4xf32>
    %c6_i32 = arith.constant 6 : i32
    %66 = arith.addi %1, %c6_i32 : i32
    %c0_52 = arith.constant 0 : index
    %67 = arith.index_cast %66 : i32 to index
    %c2_53 = arith.constant 2 : index
    %c0_54 = arith.constant 0 : index
    %68 = vector.load %arg2[%c0_52, %67, %c2_53, %c0_54] : memref<1x24x24x4xf32, #tpu.memory_space<vmem>>, vector<1x16x16x4xf32>
    %69 = vector.shape_cast %68 : vector<1x16x16x4xf32> to vector<16x16x4xf32>
    %c6_i32_55 = arith.constant 6 : i32
    %70 = arith.addi %1, %c6_i32_55 : i32
    %c0_56 = arith.constant 0 : index
    %71 = arith.index_cast %70 : i32 to index
    %c4_57 = arith.constant 4 : index
    %c0_58 = arith.constant 0 : index
    %72 = vector.load %arg2[%c0_56, %71, %c4_57, %c0_58] : memref<1x24x24x4xf32, #tpu.memory_space<vmem>>, vector<1x16x16x4xf32>
    %73 = vector.shape_cast %72 : vector<1x16x16x4xf32> to vector<16x16x4xf32>
    %c6_i32_59 = arith.constant 6 : i32
    %74 = arith.addi %1, %c6_i32_59 : i32
    %c0_60 = arith.constant 0 : index
    %75 = arith.index_cast %74 : i32 to index
    %c6_61 = arith.constant 6 : index
    %c0_62 = arith.constant 0 : index
    %76 = vector.load %arg2[%c0_60, %75, %c6_61, %c0_62] : memref<1x24x24x4xf32, #tpu.memory_space<vmem>>, vector<1x16x16x4xf32>
    %77 = vector.shape_cast %76 : vector<1x16x16x4xf32> to vector<16x16x4xf32>
    %78 = tpu.concatenate %45, %49, %53, %57, %61, %65, %69, %73, %77 in 2 : vector<16x16x4xf32>, vector<16x16x4xf32>, vector<16x16x4xf32>, vector<16x16x4xf32>, vector<16x16x4xf32>, vector<16x16x4xf32>, vector<16x16x4xf32>, vector<16x16x4xf32>, vector<16x16x4xf32> -> vector<16x16x36xf32>
    %79 = vector.shape_cast %78 : vector<16x16x36xf32> to vector<256x36xf32>
    %c36 = arith.constant 36 : index
    %c0_63 = arith.constant 0 : index
    %80 = vector.load %arg3[%c36, %c0_63] : memref<108x8xf32, #tpu.memory_space<vmem>>, vector<36x8xf32>
    %cst_64 = arith.constant dense<0.000000e+00> : vector<256x8xf32>
    %81 = tpu.matmul %79, %80, %cst_64 {dimension_numbers = #tpu.dot_dimension_numbers<[1], [0], [0], [1], [0, 0, 1, 1], [], []>} : vector<256x36xf32>, vector<36x8xf32>, vector<256x8xf32> -> vector<256x8xf32>
    %82 = arith.addf %41, %81 : vector<256x8xf32>
    %c0_i32 = arith.constant 0 : i32
    %83 = arith.addi %1, %c0_i32 : i32
    %c0_65 = arith.constant 0 : index
    %84 = arith.index_cast %83 : i32 to index
    %c0_66 = arith.constant 0 : index
    %c0_67 = arith.constant 0 : index
    %85 = vector.load %arg2[%c0_65, %84, %c0_66, %c0_67] : memref<1x24x24x4xf32, #tpu.memory_space<vmem>>, vector<1x16x16x4xf32>
    %86 = vector.shape_cast %85 : vector<1x16x16x4xf32> to vector<16x16x4xf32>
    %c0_i32_68 = arith.constant 0 : i32
    %87 = arith.addi %1, %c0_i32_68 : i32
    %c0_69 = arith.constant 0 : index
    %88 = arith.index_cast %87 : i32 to index
    %c4_70 = arith.constant 4 : index
    %c0_71 = arith.constant 0 : index
    %89 = vector.load %arg2[%c0_69, %88, %c4_70, %c0_71] : memref<1x24x24x4xf32, #tpu.memory_space<vmem>>, vector<1x16x16x4xf32>
    %90 = vector.shape_cast %89 : vector<1x16x16x4xf32> to vector<16x16x4xf32>
    %c0_i32_72 = arith.constant 0 : i32
    %91 = arith.addi %1, %c0_i32_72 : i32
    %c0_73 = arith.constant 0 : index
    %92 = arith.index_cast %91 : i32 to index
    %c8 = arith.constant 8 : index
    %c0_74 = arith.constant 0 : index
    %93 = vector.load %arg2[%c0_73, %92, %c8, %c0_74] : memref<1x24x24x4xf32, #tpu.memory_space<vmem>>, vector<1x16x16x4xf32>
    %94 = vector.shape_cast %93 : vector<1x16x16x4xf32> to vector<16x16x4xf32>
    %c4_i32_75 = arith.constant 4 : i32
    %95 = arith.addi %1, %c4_i32_75 : i32
    %c0_76 = arith.constant 0 : index
    %96 = arith.index_cast %95 : i32 to index
    %c0_77 = arith.constant 0 : index
    %c0_78 = arith.constant 0 : index
    %97 = vector.load %arg2[%c0_76, %96, %c0_77, %c0_78] : memref<1x24x24x4xf32, #tpu.memory_space<vmem>>, vector<1x16x16x4xf32>
    %98 = vector.shape_cast %97 : vector<1x16x16x4xf32> to vector<16x16x4xf32>
    %c4_i32_79 = arith.constant 4 : i32
    %99 = arith.addi %1, %c4_i32_79 : i32
    %c0_80 = arith.constant 0 : index
    %100 = arith.index_cast %99 : i32 to index
    %c4_81 = arith.constant 4 : index
    %c0_82 = arith.constant 0 : index
    %101 = vector.load %arg2[%c0_80, %100, %c4_81, %c0_82] : memref<1x24x24x4xf32, #tpu.memory_space<vmem>>, vector<1x16x16x4xf32>
    %102 = vector.shape_cast %101 : vector<1x16x16x4xf32> to vector<16x16x4xf32>
    %c4_i32_83 = arith.constant 4 : i32
    %103 = arith.addi %1, %c4_i32_83 : i32
    %c0_84 = arith.constant 0 : index
    %104 = arith.index_cast %103 : i32 to index
    %c8_85 = arith.constant 8 : index
    %c0_86 = arith.constant 0 : index
    %105 = vector.load %arg2[%c0_84, %104, %c8_85, %c0_86] : memref<1x24x24x4xf32, #tpu.memory_space<vmem>>, vector<1x16x16x4xf32>
    %106 = vector.shape_cast %105 : vector<1x16x16x4xf32> to vector<16x16x4xf32>
    %c8_i32 = arith.constant 8 : i32
    %107 = arith.addi %1, %c8_i32 : i32
    %c0_87 = arith.constant 0 : index
    %108 = arith.index_cast %107 : i32 to index
    %c0_88 = arith.constant 0 : index
    %c0_89 = arith.constant 0 : index
    %109 = vector.load %arg2[%c0_87, %108, %c0_88, %c0_89] : memref<1x24x24x4xf32, #tpu.memory_space<vmem>>, vector<1x16x16x4xf32>
    %110 = vector.shape_cast %109 : vector<1x16x16x4xf32> to vector<16x16x4xf32>
    %c8_i32_90 = arith.constant 8 : i32
    %111 = arith.addi %1, %c8_i32_90 : i32
    %c0_91 = arith.constant 0 : index
    %112 = arith.index_cast %111 : i32 to index
    %c4_92 = arith.constant 4 : index
    %c0_93 = arith.constant 0 : index
    %113 = vector.load %arg2[%c0_91, %112, %c4_92, %c0_93] : memref<1x24x24x4xf32, #tpu.memory_space<vmem>>, vector<1x16x16x4xf32>
    %114 = vector.shape_cast %113 : vector<1x16x16x4xf32> to vector<16x16x4xf32>
    %c8_i32_94 = arith.constant 8 : i32
    %115 = arith.addi %1, %c8_i32_94 : i32
    %c0_95 = arith.constant 0 : index
    %116 = arith.index_cast %115 : i32 to index
    %c8_96 = arith.constant 8 : index
    %c0_97 = arith.constant 0 : index
    %117 = vector.load %arg2[%c0_95, %116, %c8_96, %c0_97] : memref<1x24x24x4xf32, #tpu.memory_space<vmem>>, vector<1x16x16x4xf32>
    %118 = vector.shape_cast %117 : vector<1x16x16x4xf32> to vector<16x16x4xf32>
    %119 = tpu.concatenate %86, %90, %94, %98, %102, %106, %110, %114, %118 in 2 : vector<16x16x4xf32>, vector<16x16x4xf32>, vector<16x16x4xf32>, vector<16x16x4xf32>, vector<16x16x4xf32>, vector<16x16x4xf32>, vector<16x16x4xf32>, vector<16x16x4xf32>, vector<16x16x4xf32> -> vector<16x16x36xf32>
    %120 = vector.shape_cast %119 : vector<16x16x36xf32> to vector<256x36xf32>
    %c72 = arith.constant 72 : index
    %c0_98 = arith.constant 0 : index
    %121 = vector.load %arg3[%c72, %c0_98] : memref<108x8xf32, #tpu.memory_space<vmem>>, vector<36x8xf32>
    %cst_99 = arith.constant dense<0.000000e+00> : vector<256x8xf32>
    %122 = tpu.matmul %120, %121, %cst_99 {dimension_numbers = #tpu.dot_dimension_numbers<[1], [0], [0], [1], [0, 0, 1, 1], [], []>} : vector<256x36xf32>, vector<36x8xf32>, vector<256x8xf32> -> vector<256x8xf32>
    %123 = arith.addf %82, %122 : vector<256x8xf32>
    %c0_100 = arith.constant 0 : index
    %c0_101 = arith.constant 0 : index
    %124 = vector.load %arg4[%c0_100, %c0_101] : memref<1x8xf32, #tpu.memory_space<vmem>>, vector<1x8xf32>
    %125 = vector.broadcast %124 : vector<1x8xf32> to vector<256x8xf32>
    %126 = arith.addf %123, %125 : vector<256x8xf32>
    %c0_102 = arith.constant 0 : index
    %c0_103 = arith.constant 0 : index
    %c0_104 = arith.constant 0 : index
    %127 = vector.load %arg5[%c0_102, %c0_103, %c0_104] : memref<1x256x8xf32, #tpu.memory_space<vmem>>, vector<1x256x8xf32>
    %128 = vector.shape_cast %127 : vector<1x256x8xf32> to vector<256x8xf32>
    %129 = vector.shape_cast %126 : vector<256x8xf32> to vector<1x256x8xf32>
    tpu.vector_store %arg5[%c0_102, %c0_103, %c0_104], %129 {strides = array<i32>} : memref<1x256x8xf32, #tpu.memory_space<vmem>>, vector<1x256x8xf32>,
    return
  }
  func.func @transform_0(%arg0: i32, %arg1: i32) -> (i32, i32, i32, i32) {
    %c0_i32 = arith.constant 0 : i32
    %c0_i32_0 = arith.constant 0 : i32
    %c0_i32_1 = arith.constant 0 : i32
    %c0_i32_2 = arith.constant 0 : i32
    return %arg0, %c0_i32, %c0_i32_0, %c0_i32_1 : i32, i32, i32, i32
  }
  func.func @transform_1(%arg0: i32, %arg1: i32) -> (i32, i32) {
    %c0_i32 = arith.constant 0 : i32
    %c0_i32_0 = arith.constant 0 : i32
    %c0_i32_1 = arith.constant 0 : i32
    return %c0_i32, %c0_i32_0 : i32, i32
  }
  func.func @transform_2(%arg0: i32, %arg1: i32) -> (i32, i32) {
    %c0_i32 = arith.constant 0 : i32
    %c0_i32_0 = arith.constant 0 : i32
    %c0_i32_1 = arith.constant 0 : i32
    return %c0_i32, %c0_i32_0 : i32, i32
  }
  func.func @transform_3(%arg0: i32, %arg1: i32) -> (i32, i32, i32) {
    %c0_i32 = arith.constant 0 : i32
    %c0_i32_0 = arith.constant 0 : i32
    return %arg0, %arg1, %c0_i32 : i32, i32, i32
  }
}

module attributes {stable_mosaic.version = 11 : i64} {
  func.func @_aspp_kernel(%arg0: i32, %arg1: i32, %arg2: memref<1x24x24x4xf32, #tpu.memory_space<vmem>>, %arg3: memref<108x8xf32, #tpu.memory_space<vmem>>, %arg4: memref<1x8xf32, #tpu.memory_space<vmem>>, %arg5: memref<1x256x8xf32, #tpu.memory_space<vmem>>) attributes {dimension_semantics = [#tpu.dimension_semantics<parallel>, #tpu.dimension_semantics<parallel>], iteration_bounds = array<i64: 2, 1>, scalar_prefetch = 0 : i64, scratch_operands = 0 : i64, tpu.core_type = #tpu.core_type<tc>, window_params = [{transform_indices = @transform_0, window_bounds = array<i64: 1, 24, 24, 4>}, {pipeline_mode = #tpu.pipeline_mode<synchronous>, transform_indices = @transform_1, window_bounds = array<i64: 108, 8>}, {pipeline_mode = #tpu.pipeline_mode<synchronous>, transform_indices = @transform_2, window_bounds = array<i64: 1, 8>}, {transform_indices = @transform_3, window_bounds = array<i64: 1, 256, 8>}]} {
    %c16_i32 = arith.constant 16 : i32
    %0 = arith.muli %arg1, %c16_i32 : i32
    %1 = tpu.assume_multiple %0, 8 : i32
    %c3_i32 = arith.constant 3 : i32
    %2 = arith.addi %1, %c3_i32 : i32
    %c0 = arith.constant 0 : index
    %3 = arith.index_cast %2 : i32 to index
    %c3 = arith.constant 3 : index
    %c0_0 = arith.constant 0 : index
    %4 = vector.load %arg2[%c0, %3, %c3, %c0_0] : memref<1x24x24x4xf32, #tpu.memory_space<vmem>>, vector<1x16x16x4xf32>
    %5 = vector.shape_cast %4 : vector<1x16x16x4xf32> to vector<16x16x4xf32>
    %c3_i32_1 = arith.constant 3 : i32
    %6 = arith.addi %1, %c3_i32_1 : i32
    %c0_2 = arith.constant 0 : index
    %7 = arith.index_cast %6 : i32 to index
    %c4 = arith.constant 4 : index
    %c0_3 = arith.constant 0 : index
    %8 = vector.load %arg2[%c0_2, %7, %c4, %c0_3] : memref<1x24x24x4xf32, #tpu.memory_space<vmem>>, vector<1x16x16x4xf32>
    %9 = vector.shape_cast %8 : vector<1x16x16x4xf32> to vector<16x16x4xf32>
    %c3_i32_4 = arith.constant 3 : i32
    %10 = arith.addi %1, %c3_i32_4 : i32
    %c0_5 = arith.constant 0 : index
    %11 = arith.index_cast %10 : i32 to index
    %c5 = arith.constant 5 : index
    %c0_6 = arith.constant 0 : index
    %12 = vector.load %arg2[%c0_5, %11, %c5, %c0_6] : memref<1x24x24x4xf32, #tpu.memory_space<vmem>>, vector<1x16x16x4xf32>
    %13 = vector.shape_cast %12 : vector<1x16x16x4xf32> to vector<16x16x4xf32>
    %c4_i32 = arith.constant 4 : i32
    %14 = arith.addi %1, %c4_i32 : i32
    %c0_7 = arith.constant 0 : index
    %15 = arith.index_cast %14 : i32 to index
    %c3_8 = arith.constant 3 : index
    %c0_9 = arith.constant 0 : index
    %16 = vector.load %arg2[%c0_7, %15, %c3_8, %c0_9] : memref<1x24x24x4xf32, #tpu.memory_space<vmem>>, vector<1x16x16x4xf32>
    %17 = vector.shape_cast %16 : vector<1x16x16x4xf32> to vector<16x16x4xf32>
    %c4_i32_10 = arith.constant 4 : i32
    %18 = arith.addi %1, %c4_i32_10 : i32
    %c0_11 = arith.constant 0 : index
    %19 = arith.index_cast %18 : i32 to index
    %c4_12 = arith.constant 4 : index
    %c0_13 = arith.constant 0 : index
    %20 = vector.load %arg2[%c0_11, %19, %c4_12, %c0_13] : memref<1x24x24x4xf32, #tpu.memory_space<vmem>>, vector<1x16x16x4xf32>
    %21 = vector.shape_cast %20 : vector<1x16x16x4xf32> to vector<16x16x4xf32>
    %c4_i32_14 = arith.constant 4 : i32
    %22 = arith.addi %1, %c4_i32_14 : i32
    %c0_15 = arith.constant 0 : index
    %23 = arith.index_cast %22 : i32 to index
    %c5_16 = arith.constant 5 : index
    %c0_17 = arith.constant 0 : index
    %24 = vector.load %arg2[%c0_15, %23, %c5_16, %c0_17] : memref<1x24x24x4xf32, #tpu.memory_space<vmem>>, vector<1x16x16x4xf32>
    %25 = vector.shape_cast %24 : vector<1x16x16x4xf32> to vector<16x16x4xf32>
    %c5_i32 = arith.constant 5 : i32
    %26 = arith.addi %1, %c5_i32 : i32
    %c0_18 = arith.constant 0 : index
    %27 = arith.index_cast %26 : i32 to index
    %c3_19 = arith.constant 3 : index
    %c0_20 = arith.constant 0 : index
    %28 = vector.load %arg2[%c0_18, %27, %c3_19, %c0_20] : memref<1x24x24x4xf32, #tpu.memory_space<vmem>>, vector<1x16x16x4xf32>
    %29 = vector.shape_cast %28 : vector<1x16x16x4xf32> to vector<16x16x4xf32>
    %c5_i32_21 = arith.constant 5 : i32
    %30 = arith.addi %1, %c5_i32_21 : i32
    %c0_22 = arith.constant 0 : index
    %31 = arith.index_cast %30 : i32 to index
    %c4_23 = arith.constant 4 : index
    %c0_24 = arith.constant 0 : index
    %32 = vector.load %arg2[%c0_22, %31, %c4_23, %c0_24] : memref<1x24x24x4xf32, #tpu.memory_space<vmem>>, vector<1x16x16x4xf32>
    %33 = vector.shape_cast %32 : vector<1x16x16x4xf32> to vector<16x16x4xf32>
    %c5_i32_25 = arith.constant 5 : i32
    %34 = arith.addi %1, %c5_i32_25 : i32
    %c0_26 = arith.constant 0 : index
    %35 = arith.index_cast %34 : i32 to index
    %c5_27 = arith.constant 5 : index
    %c0_28 = arith.constant 0 : index
    %36 = vector.load %arg2[%c0_26, %35, %c5_27, %c0_28] : memref<1x24x24x4xf32, #tpu.memory_space<vmem>>, vector<1x16x16x4xf32>
    %37 = vector.shape_cast %36 : vector<1x16x16x4xf32> to vector<16x16x4xf32>
    %38 = tpu.concatenate %5, %9, %13, %17, %21, %25, %29, %33, %37 in 2 : vector<16x16x4xf32>, vector<16x16x4xf32>, vector<16x16x4xf32>, vector<16x16x4xf32>, vector<16x16x4xf32>, vector<16x16x4xf32>, vector<16x16x4xf32>, vector<16x16x4xf32>, vector<16x16x4xf32> -> vector<16x16x36xf32>
    %39 = vector.shape_cast %38 : vector<16x16x36xf32> to vector<256x36xf32>
    %c0_29 = arith.constant 0 : index
    %c0_30 = arith.constant 0 : index
    %40 = vector.load %arg3[%c0_29, %c0_30] : memref<108x8xf32, #tpu.memory_space<vmem>>, vector<36x8xf32>
    %cst = arith.constant dense<0.000000e+00> : vector<256x8xf32>
    %41 = tpu.matmul %39, %40, %cst {dimension_numbers = #tpu.dot_dimension_numbers<[1], [0], [0], [1], [0, 0, 1, 1], [], []>} : vector<256x36xf32>, vector<36x8xf32>, vector<256x8xf32> -> vector<256x8xf32>
    %c2_i32 = arith.constant 2 : i32
    %42 = arith.addi %1, %c2_i32 : i32
    %c0_31 = arith.constant 0 : index
    %43 = arith.index_cast %42 : i32 to index
    %c2 = arith.constant 2 : index
    %c0_32 = arith.constant 0 : index
    %44 = vector.load %arg2[%c0_31, %43, %c2, %c0_32] : memref<1x24x24x4xf32, #tpu.memory_space<vmem>>, vector<1x16x16x4xf32>
    %45 = vector.shape_cast %44 : vector<1x16x16x4xf32> to vector<16x16x4xf32>
    %c2_i32_33 = arith.constant 2 : i32
    %46 = arith.addi %1, %c2_i32_33 : i32
    %c0_34 = arith.constant 0 : index
    %47 = arith.index_cast %46 : i32 to index
    %c4_35 = arith.constant 4 : index
    %c0_36 = arith.constant 0 : index
    %48 = vector.load %arg2[%c0_34, %47, %c4_35, %c0_36] : memref<1x24x24x4xf32, #tpu.memory_space<vmem>>, vector<1x16x16x4xf32>
    %49 = vector.shape_cast %48 : vector<1x16x16x4xf32> to vector<16x16x4xf32>
    %c2_i32_37 = arith.constant 2 : i32
    %50 = arith.addi %1, %c2_i32_37 : i32
    %c0_38 = arith.constant 0 : index
    %51 = arith.index_cast %50 : i32 to index
    %c6 = arith.constant 6 : index
    %c0_39 = arith.constant 0 : index
    %52 = vector.load %arg2[%c0_38, %51, %c6, %c0_39] : memref<1x24x24x4xf32, #tpu.memory_space<vmem>>, vector<1x16x16x4xf32>
    %53 = vector.shape_cast %52 : vector<1x16x16x4xf32> to vector<16x16x4xf32>
    %c4_i32_40 = arith.constant 4 : i32
    %54 = arith.addi %1, %c4_i32_40 : i32
    %c0_41 = arith.constant 0 : index
    %55 = arith.index_cast %54 : i32 to index
    %c2_42 = arith.constant 2 : index
    %c0_43 = arith.constant 0 : index
    %56 = vector.load %arg2[%c0_41, %55, %c2_42, %c0_43] : memref<1x24x24x4xf32, #tpu.memory_space<vmem>>, vector<1x16x16x4xf32>
    %57 = vector.shape_cast %56 : vector<1x16x16x4xf32> to vector<16x16x4xf32>
    %c4_i32_44 = arith.constant 4 : i32
    %58 = arith.addi %1, %c4_i32_44 : i32
    %c0_45 = arith.constant 0 : index
    %59 = arith.index_cast %58 : i32 to index
    %c4_46 = arith.constant 4 : index
    %c0_47 = arith.constant 0 : index
    %60 = vector.load %arg2[%c0_45, %59, %c4_46, %c0_47] : memref<1x24x24x4xf32, #tpu.memory_space<vmem>>, vector<1x16x16x4xf32>
    %61 = vector.shape_cast %60 : vector<1x16x16x4xf32> to vector<16x16x4xf32>
    %c4_i32_48 = arith.constant 4 : i32
    %62 = arith.addi %1, %c4_i32_48 : i32
    %c0_49 = arith.constant 0 : index
    %63 = arith.index_cast %62 : i32 to index
    %c6_50 = arith.constant 6 : index
    %c0_51 = arith.constant 0 : index
    %64 = vector.load %arg2[%c0_49, %63, %c6_50, %c0_51] : memref<1x24x24x4xf32, #tpu.memory_space<vmem>>, vector<1x16x16x4xf32>
    %65 = vector.shape_cast %64 : vector<1x16x16x4xf32> to vector<16x16x4xf32>
    %c6_i32 = arith.constant 6 : i32
    %66 = arith.addi %1, %c6_i32 : i32
    %c0_52 = arith.constant 0 : index
    %67 = arith.index_cast %66 : i32 to index
    %c2_53 = arith.constant 2 : index
    %c0_54 = arith.constant 0 : index
    %68 = vector.load %arg2[%c0_52, %67, %c2_53, %c0_54] : memref<1x24x24x4xf32, #tpu.memory_space<vmem>>, vector<1x16x16x4xf32>
    %69 = vector.shape_cast %68 : vector<1x16x16x4xf32> to vector<16x16x4xf32>
    %c6_i32_55 = arith.constant 6 : i32
    %70 = arith.addi %1, %c6_i32_55 : i32
    %c0_56 = arith.constant 0 : index
    %71 = arith.index_cast %70 : i32 to index
    %c4_57 = arith.constant 4 : index
    %c0_58 = arith.constant 0 : index
    %72 = vector.load %arg2[%c0_56, %71, %c4_57, %c0_58] : memref<1x24x24x4xf32, #tpu.memory_space<vmem>>, vector<1x16x16x4xf32>
    %73 = vector.shape_cast %72 : vector<1x16x16x4xf32> to vector<16x16x4xf32>
    %c6_i32_59 = arith.constant 6 : i32
    %74 = arith.addi %1, %c6_i32_59 : i32
    %c0_60 = arith.constant 0 : index
    %75 = arith.index_cast %74 : i32 to index
    %c6_61 = arith.constant 6 : index
    %c0_62 = arith.constant 0 : index
    %76 = vector.load %arg2[%c0_60, %75, %c6_61, %c0_62] : memref<1x24x24x4xf32, #tpu.memory_space<vmem>>, vector<1x16x16x4xf32>
    %77 = vector.shape_cast %76 : vector<1x16x16x4xf32> to vector<16x16x4xf32>
    %78 = tpu.concatenate %45, %49, %53, %57, %61, %65, %69, %73, %77 in 2 : vector<16x16x4xf32>, vector<16x16x4xf32>, vector<16x16x4xf32>, vector<16x16x4xf32>, vector<16x16x4xf32>, vector<16x16x4xf32>, vector<16x16x4xf32>, vector<16x16x4xf32>, vector<16x16x4xf32> -> vector<16x16x36xf32>
    %79 = vector.shape_cast %78 : vector<16x16x36xf32> to vector<256x36xf32>
    %c36 = arith.constant 36 : index
    %c0_63 = arith.constant 0 : index
    %80 = vector.load %arg3[%c36, %c0_63] : memref<108x8xf32, #tpu.memory_space<vmem>>, vector<36x8xf32>
    %cst_64 = arith.constant dense<0.000000e+00> : vector<256x8xf32>
    %81 = tpu.matmul %79, %80, %cst_64 {dimension_numbers = #tpu.dot_dimension_numbers<[1], [0], [0], [1], [0, 0, 1, 1], [], []>} : vector<256x36xf32>, vector<36x8xf32>, vector<256x8xf32> -> vector<256x8xf32>
    %82 = arith.addf %41, %81 : vector<256x8xf32>
    %c0_i32 = arith.constant 0 : i32
    %83 = arith.addi %1, %c0_i32 : i32
    %c0_65 = arith.constant 0 : index
    %84 = arith.index_cast %83 : i32 to index
    %c0_66 = arith.constant 0 : index
    %c0_67 = arith.constant 0 : index
    %85 = vector.load %arg2[%c0_65, %84, %c0_66, %c0_67] : memref<1x24x24x4xf32, #tpu.memory_space<vmem>>, vector<1x16x16x4xf32>
    %86 = vector.shape_cast %85 : vector<1x16x16x4xf32> to vector<16x16x4xf32>
    %c0_i32_68 = arith.constant 0 : i32
    %87 = arith.addi %1, %c0_i32_68 : i32
    %c0_69 = arith.constant 0 : index
    %88 = arith.index_cast %87 : i32 to index
    %c4_70 = arith.constant 4 : index
    %c0_71 = arith.constant 0 : index
    %89 = vector.load %arg2[%c0_69, %88, %c4_70, %c0_71] : memref<1x24x24x4xf32, #tpu.memory_space<vmem>>, vector<1x16x16x4xf32>
    %90 = vector.shape_cast %89 : vector<1x16x16x4xf32> to vector<16x16x4xf32>
    %c0_i32_72 = arith.constant 0 : i32
    %91 = arith.addi %1, %c0_i32_72 : i32
    %c0_73 = arith.constant 0 : index
    %92 = arith.index_cast %91 : i32 to index
    %c8 = arith.constant 8 : index
    %c0_74 = arith.constant 0 : index
    %93 = vector.load %arg2[%c0_73, %92, %c8, %c0_74] : memref<1x24x24x4xf32, #tpu.memory_space<vmem>>, vector<1x16x16x4xf32>
    %94 = vector.shape_cast %93 : vector<1x16x16x4xf32> to vector<16x16x4xf32>
    %c4_i32_75 = arith.constant 4 : i32
    %95 = arith.addi %1, %c4_i32_75 : i32
    %c0_76 = arith.constant 0 : index
    %96 = arith.index_cast %95 : i32 to index
    %c0_77 = arith.constant 0 : index
    %c0_78 = arith.constant 0 : index
    %97 = vector.load %arg2[%c0_76, %96, %c0_77, %c0_78] : memref<1x24x24x4xf32, #tpu.memory_space<vmem>>, vector<1x16x16x4xf32>
    %98 = vector.shape_cast %97 : vector<1x16x16x4xf32> to vector<16x16x4xf32>
    %c4_i32_79 = arith.constant 4 : i32
    %99 = arith.addi %1, %c4_i32_79 : i32
    %c0_80 = arith.constant 0 : index
    %100 = arith.index_cast %99 : i32 to index
    %c4_81 = arith.constant 4 : index
    %c0_82 = arith.constant 0 : index
    %101 = vector.load %arg2[%c0_80, %100, %c4_81, %c0_82] : memref<1x24x24x4xf32, #tpu.memory_space<vmem>>, vector<1x16x16x4xf32>
    %102 = vector.shape_cast %101 : vector<1x16x16x4xf32> to vector<16x16x4xf32>
    %c4_i32_83 = arith.constant 4 : i32
    %103 = arith.addi %1, %c4_i32_83 : i32
    %c0_84 = arith.constant 0 : index
    %104 = arith.index_cast %103 : i32 to index
    %c8_85 = arith.constant 8 : index
    %c0_86 = arith.constant 0 : index
    %105 = vector.load %arg2[%c0_84, %104, %c8_85, %c0_86] : memref<1x24x24x4xf32, #tpu.memory_space<vmem>>, vector<1x16x16x4xf32>
    %106 = vector.shape_cast %105 : vector<1x16x16x4xf32> to vector<16x16x4xf32>
    %c8_i32 = arith.constant 8 : i32
    %107 = arith.addi %1, %c8_i32 : i32
    %c0_87 = arith.constant 0 : index
    %108 = arith.index_cast %107 : i32 to index
    %c0_88 = arith.constant 0 : index
    %c0_89 = arith.constant 0 : index
    %109 = vector.load %arg2[%c0_87, %108, %c0_88, %c0_89] : memref<1x24x24x4xf32, #tpu.memory_space<vmem>>, vector<1x16x16x4xf32>
    %110 = vector.shape_cast %109 : vector<1x16x16x4xf32> to vector<16x16x4xf32>
    %c8_i32_90 = arith.constant 8 : i32
    %111 = arith.addi %1, %c8_i32_90 : i32
    %c0_91 = arith.constant 0 : index
    %112 = arith.index_cast %111 : i32 to index
    %c4_92 = arith.constant 4 : index
    %c0_93 = arith.constant 0 : index
    %113 = vector.load %arg2[%c0_91, %112, %c4_92, %c0_93] : memref<1x24x24x4xf32, #tpu.memory_space<vmem>>, vector<1x16x16x4xf32>
    %114 = vector.shape_cast %113 : vector<1x16x16x4xf32> to vector<16x16x4xf32>
    %c8_i32_94 = arith.constant 8 : i32
    %115 = arith.addi %1, %c8_i32_94 : i32
    %c0_95 = arith.constant 0 : index
    %116 = arith.index_cast %115 : i32 to index
    %c8_96 = arith.constant 8 : index
    %c0_97 = arith.constant 0 : index
    %117 = vector.load %arg2[%c0_95, %116, %c8_96, %c0_97] : memref<1x24x24x4xf32, #tpu.memory_space<vmem>>, vector<1x16x16x4xf32>
    %118 = vector.shape_cast %117 : vector<1x16x16x4xf32> to vector<16x16x4xf32>
    %119 = tpu.concatenate %86, %90, %94, %98, %102, %106, %110, %114, %118 in 2 : vector<16x16x4xf32>, vector<16x16x4xf32>, vector<16x16x4xf32>, vector<16x16x4xf32>, vector<16x16x4xf32>, vector<16x16x4xf32>, vector<16x16x4xf32>, vector<16x16x4xf32>, vector<16x16x4xf32> -> vector<16x16x36xf32>
    %120 = vector.shape_cast %119 : vector<16x16x36xf32> to vector<256x36xf32>
    %c72 = arith.constant 72 : index
    %c0_98 = arith.constant 0 : index
    %121 = vector.load %arg3[%c72, %c0_98] : memref<108x8xf32, #tpu.memory_space<vmem>>, vector<36x8xf32>
    %cst_99 = arith.constant dense<0.000000e+00> : vector<256x8xf32>
    %122 = tpu.matmul %120, %121, %cst_99 {dimension_numbers = #tpu.dot_dimension_numbers<[1], [0], [0], [1], [0, 0, 1, 1], [], []>} : vector<256x36xf32>, vector<36x8xf32>, vector<256x8xf32> -> vector<256x8xf32>
    %123 = arith.addf %82, %122 : vector<256x8xf32>
    %c0_100 = arith.constant 0 : index
    %c0_101 = arith.constant 0 : index
    %124 = vector.load %arg4[%c0_100, %c0_101] : memref<1x8xf32, #tpu.memory_space<vmem>>, vector<1x8xf32>
    %125 = vector.broadcast %124 : vector<1x8xf32> to vector<256x8xf32>
    %126 = arith.addf %123, %125 : vector<256x8xf32>
    %c0_102 = arith.constant 0 : index
    %c0_103 = arith.constant 0 : index
    %c0_104 = arith.constant 0 : index
    %127 = vector.load %arg5[%c0_102, %c0_103, %c0_104] : memref<1x256x8xf32, #tpu.memory_space<vmem>>, vector<1x256x8xf32>
    %128 = vector.shape_cast %127 : vector<1x256x8xf32> to vector<256x8xf32>
    %129 = vector.shape_cast %126 : vector<256x8xf32> to vector<1x256x8xf32>
    tpu.vector_store %arg5[%c0_102, %c0_103, %c0_104], %129 {strides = array<i32>} : memref<1x256x8xf32, #tpu.memory_space<vmem>>, vector<1x256x8xf32>,
    return
  }
  func.func @transform_0(%arg0: i32, %arg1: i32) -> (i32, i32, i32, i32) {
    %c0_i32 = arith.constant 0 : i32
    %c0_i32_0 = arith.constant 0 : i32
    %c0_i32_1 = arith.constant 0 : i32
    %c0_i32_2 = arith.constant 0 : i32
    return %arg0, %c0_i32, %c0_i32_0, %c0_i32_1 : i32, i32, i32, i32
  }
  func.func @transform_1(%arg0: i32, %arg1: i32) -> (i32, i32) {
    %c0_i32 = arith.constant 0 : i32
    %c0_i32_0 = arith.constant 0 : i32
    %c0_i32_1 = arith.constant 0 : i32
    return %c0_i32, %c0_i32_0 : i32, i32
  }
  func.func @transform_2(%arg0: i32, %arg1: i32) -> (i32, i32) {
    %c0_i32 = arith.constant 0 : i32
    %c0_i32_0 = arith.constant 0 : i32
    %c0_i32_1 = arith.constant 0 : i32
    return %c0_i32, %c0_i32_0 : i32, i32
  }
  func.func @transform_3(%arg0: i32, %arg1: i32) -> (i32, i32, i32) {
    %c0_i32 = arith.constant 0 : i32
    %c0_i32_0 = arith.constant 0 : i32
    return %arg0, %arg1, %c0_i32 : i32, i32, i32
  }
}

</mosaic_0001>

<llo_original>
// kernel: tpu_custom_call.1
$region0: #{tpu_custom_call.1}
  #allocation0 [shape = 'u32[]', space=smem, size = 0x4, offset = 0x4, fixed_abs, tag = 'smem constant byte address 0x4 - core index']
  #allocation1 [shape = 'u32[144,128]{1,0:T(1,128)}', space=vmem, size = 0x12000, scoped, tag = 'internal scratch']
  %s0 = inlined_call_operand.vmem [shape: f32[2,24,24,4], index: 0, kind: input, shape index: {}]
  %s1 = inlined_call_operand.vmem [shape: f32[108,8], index: 1, kind: input, shape index: {}]
  %s2 = inlined_call_operand.vmem [shape: f32[1,8], index: 2, kind: input, shape index: {}]
  %s3 = inlined_call_operand.vmem [shape: f32[2,256,8], index: 3, kind: output, shape index: {}]
  %s4 = sld [smem:[#allocation0]]
  $region45: #{tpu_custom_call.1} parent=0
    _
  %s6 = ssub.s32 1, %s4
  %s7 = scalar_select 0, %s6, %s4
  loop: start=0, step=1, limit=4
  $region2: #{tpu_custom_call.1} parent=0 // loop_pre_header
    _
  $region3: #{tpu_custom_call.1} parent=0 // loop_header
    %s9 = sphi 0, %s13
    %p10 = scmp.ge.s32.totalorder %s9, 4
    %s16 = sphi 0, %s28
    %s17 = sphi 0, %s24
    %s18 = sphi 0, %s16
    %s19 = sphi 0, %s17
    %s20 = sphi 0, %s18
    %s21 = sphi 0, %s19
    %s31 = sphi 0, %s33
    %s34 = sphi 0, %s31
    %s35 = sphi 0, %s34
    %s51 = sphi 0, %s35
    %s55 = sphi 0, %s55
    %s57 = sphi 0, %s55
    %s58 = sphi 0, %s57
    %s72 = sphi 0, %s58
    %s76 = sphi 0, %s76
    %s78 = sphi 0, %s76
    %s79 = sphi 0, %s78
    %s93 = sphi 0, %s79
    %s101 = sphi 0, %s103
    %s104 = sphi 0, %s101
    %s105 = sphi 0, %s104
    %s121 = sphi 0, %s105
  $region4: #{tpu_custom_call.1} parent=0 // loop_header_branch
    %12 = sbr.rel (%p10) target = $region8
  $region5: #{tpu_custom_call.1} parent=0 // loop_body
    %s14 = ssub.s32 %s9, 1
    %s15 = ssub.s32 %s9, 2
    %s22 = sadd.s32 1, %s17
    %p23 = scmp.ge.s32.totalorder %s22, 1
    %s24 = scalar_select %p23, 0, %s22
    %s25 = sadd.s32 1, %s16
    %s26 = scalar_select %p23, %s25, %s16
    %p27 = scmp.ge.s32.totalorder %s26, 2
    %s28 = scalar_select %p27, 0, %s26
    %s29 = ssub.s32 %s16, %s28
    %p30 = scmp.eq.s32.totalorder %s29, 0
    %s32 = sadd.s32 %s31, 1
    %s33 = scalar_select %p30, %s31, %s32
    %p36 = pneg %p30
    %p37 = scmp.eq.s32.totalorder %s9, 1
    %p38 = por %p36, %p37
    %p39 = scmp.ne.s32.totalorder %s31, %s34
    %p40 = scmp.eq.s32.totalorder %s9, 0
    %p41 = por %p39, %p40
    %p42 = scmp.ne.s32.totalorder %s31, %s34
    %p43 = scmp.eq.s32.totalorder %s14, 1
    %p44 = por %p42, %p43
    %p45 = scmp.ne.s32.totalorder %s34, %s35
    %p46 = scmp.eq.s32.totalorder %s14, 0
    %p47 = por %p45, %p46
    %p48 = scmp.ne.s32.totalorder %s34, %s35
    %p49 = scmp.eq.s32.totalorder %s15, 1
    %p50 = por %p48, %p49
    %p52 = scmp.ne.s32.totalorder %s35, %s51
    %p53 = scmp.eq.s32.totalorder %s15, 0
    %p54 = por %p52, %p53
    %s56 = sadd.s32 %s55, 1
    %p59 = scmp.eq.s32.totalorder %s9, 1
    %p60 = scmp.ne.s32.totalorder %s55, %s57
    %p61 = scmp.eq.s32.totalorder %s9, 0
    %p62 = por %p60, %p61
    %p63 = scmp.ne.s32.totalorder %s55, %s57
    %p64 = scmp.eq.s32.totalorder %s14, 1
    %p65 = por %p63, %p64
    %p66 = scmp.ne.s32.totalorder %s57, %s58
    %p67 = scmp.eq.s32.totalorder %s14, 0
    %p68 = por %p66, %p67
    %p69 = scmp.ne.s32.totalorder %s57, %s58
    %p70 = scmp.eq.s32.totalorder %s15, 1
    %p71 = por %p69, %p70
    %p73 = scmp.ne.s32.totalorder %s58, %s72
    %p74 = scmp.eq.s32.totalorder %s15, 0
    %p75 = por %p73, %p74
    %s77 = sadd.s32 %s76, 1
    %p80 = scmp.eq.s32.totalorder %s9, 1
    %p81 = scmp.ne.s32.totalorder %s76, %s78
    %p82 = scmp.eq.s32.totalorder %s9, 0
    %p83 = por %p81, %p82
    %p84 = scmp.ne.s32.totalorder %s76, %s78
    %p85 = scmp.eq.s32.totalorder %s14, 1
    %p86 = por %p84, %p85
    %p87 = scmp.ne.s32.totalorder %s78, %s79
    %p88 = scmp.eq.s32.totalorder %s14, 0
    %p89 = por %p87, %p88
    %p90 = scmp.ne.s32.totalorder %s78, %s79
    %p91 = scmp.eq.s32.totalorder %s15, 1
    %p92 = por %p90, %p91
    %p94 = scmp.ne.s32.totalorder %s79, %s93
    %p95 = scmp.eq.s32.totalorder %s15, 0
    %p96 = por %p94, %p95
    %s97 = ssub.s32 %s16, %s28
    %s98 = ssub.s32 %s17, %s24
    %s99 = sor.u32 %s97, %s98
    %p100 = scmp.eq.s32.totalorder %s99, 0
    %s102 = sadd.s32 %s101, 1
    %s103 = scalar_select %p100, %s101, %s102
    %p106 = pneg %p100
    %p107 = scmp.eq.s32.totalorder %s9, 1
    %p108 = por %p106, %p107
    %p109 = scmp.ne.s32.totalorder %s101, %s104
    %p110 = scmp.eq.s32.totalorder %s9, 0
    %p111 = por %p109, %p110
    %p112 = scmp.ne.s32.totalorder %s101, %s104
    %p113 = scmp.eq.s32.totalorder %s14, 1
    %p114 = por %p112, %p113
    %p115 = scmp.ne.s32.totalorder %s104, %s105
    %p116 = scmp.eq.s32.totalorder %s14, 0
    %p117 = por %p115, %p116
    %p118 = scmp.ne.s32.totalorder %s104, %s105
    %p119 = scmp.eq.s32.totalorder %s15, 1
    %p120 = por %p118, %p119
    %p122 = scmp.ne.s32.totalorder %s105, %s121
    %p123 = scmp.eq.s32.totalorder %s15, 0
    %p124 = por %p122, %p123
    %p125 = scmp.le.s32.totalorder 1, %s9
    %p126 = scmp.lt.s32.totalorder %s9, 3
    %p127 = pnand %p125, %p126
    %p128 = pneg %p127
    // Predicated region
    $region9: #{tpu_custom_call.1} parent=5 // pred_check
      _
    $region10: #{tpu_custom_call.1} parent=5 // pred_check_branch
      %130 = sbr.rel (%p127) target = $region12
    $region11: #{tpu_custom_call.1} parent=5 // pred_region
      %s131 = ssub.s32 %s9, 1
      // Predicated region
      $region13: #{tpu_custom_call.1} parent=11 // pred_check
        %p132 = pneg %p68
      $region14: #{tpu_custom_call.1} parent=11 // pred_check_branch
        %134 = sbr.rel (%p132) target = $region16
      $region15: #{tpu_custom_call.1} parent=11 // pred_region
        _
      $region16: #{tpu_custom_call.1} parent=11 // pred_fallthru
        _
      // Predicated region
      $region17: #{tpu_custom_call.1} parent=11 // pred_check
        %p135 = pneg %p89
      $region18: #{tpu_custom_call.1} parent=11 // pred_check_branch
        %137 = sbr.rel (%p135) target = $region20
      $region19: #{tpu_custom_call.1} parent=11 // pred_region
        _
      $region20: #{tpu_custom_call.1} parent=11 // pred_fallthru
        _
    $region12: #{tpu_custom_call.1} parent=5 // pred_fallthru
      _
    %p138 = scmp.lt.s32.totalorder %s9, 2
    // Predicated region
    $region21: #{tpu_custom_call.1} parent=5 // pred_check
      %p139 = pneg %p138
    $region22: #{tpu_custom_call.1} parent=5 // pred_check_branch
      %141 = sbr.rel (%p139) target = $region24
    $region23: #{tpu_custom_call.1} parent=5 // pred_region
      // Predicated region
      $region25: #{tpu_custom_call.1} parent=23 // pred_check
        %p142 = pneg %p41
      $region26: #{tpu_custom_call.1} parent=23 // pred_check_branch
        %144 = sbr.rel (%p142) target = $region28
      $region27: #{tpu_custom_call.1} parent=23 // pred_region
        %p145 = scmp.lt.s32.totalorder %s16, 1
        %s146 = scalar_select %p145, %s16, 1
        %s147 = smul.addr %s146, 72
        %s148 = smul.addr %s147, 8
        %s149 = scalar_lea.vmem %s0, %s148
      $region28: #{tpu_custom_call.1} parent=23 // pred_fallthru
        _
    $region24: #{tpu_custom_call.1} parent=5 // pred_fallthru
      _
    %p150 = scmp.le.s32.totalorder 1, %s9
    %p151 = scmp.lt.s32.totalorder %s9, 3
    %p152 = pnand %p150, %p151
    %p153 = pneg %p152
    // Predicated region
    $region29: #{tpu_custom_call.1} parent=5 // pred_check
      _
    $region30: #{tpu_custom_call.1} parent=5 // pred_check_branch
      %155 = sbr.rel (%p152) target = $region32
    $region31: #{tpu_custom_call.1} parent=5 // pred_region
      %s156 = ssub.s32 %s9, 1
      %p157 = scmp.lt.s32.totalorder %s18, 1
      %s158 = scalar_select %p157, %s18, 1
      %s159 = smul.addr %s158, 72
      %s160 = smul.addr %s159, 8
      %s161 = scalar_lea.vmem %s0, %s160
      %p162 = pneg %p47
      %p163 = pneg %p44
      %p164 = pneg %p68
      %p165 = pneg %p65
      %p166 = pneg %p89
      %p167 = pneg %p86
      %p168 = pneg %p117
      %p169 = pneg %p114
      %s170 = smul.u32 32, %s19
      %p171 = scmp.lt.s32.totalorder %s18, 1
      %s172 = scalar_select %p171, %s18, 1
      %p173 = scmp.lt.s32.totalorder %s170, 31
      %s174 = scalar_select %p173, %s170, 31
      %s175 = smul.addr %s172, 32
      %s176 = sadd.s32 %s174, %s175
      %s177 = smul.addr %s176, 8
      %s178 = scalar_lea.vmem %s3, %s177
      %p179 = scmp.lt.s32.totalorder %s18, 1
      %s180 = scalar_select %p179, %s18, 1
      %s181 = smul.addr %s180, 72
      %s182 = smul.addr %s181, 8
      %s183 = scalar_lea.vmem %s0, %s182
      %s184 = smul.u32 32, %s19
      %p185 = scmp.lt.s32.totalorder %s18, 1
      %s186 = scalar_select %p185, %s18, 1
      %p187 = scmp.lt.s32.totalorder %s184, 31
      %s188 = scalar_select %p187, %s184, 31
      %s189 = smul.addr %s186, 32
      %s190 = sadd.s32 %s188, %s189
      %s191 = smul.addr %s190, 8
      %s192 = scalar_lea.vmem %s3, %s191
      %s193 = smul.u32 32, %s19
      %s194 = smul.u32 %s19, 16
      %s195 = sadd.s32 %s194, 3
      %s196 = smul.u32 %s195, 24
      %s197 = scalar_lea.vmem %s183, %s196
      %v198 = vld [vmem:[%s197 + $0x3] sm:$0xff]
      %v199 = vld [vmem:[%s197 + $0xb] sm:$0xff]
      %v200 = vld [vmem:[%s197 + $0x1b] sm:$0xff]
      %v201 = vld [vmem:[%s197 + $0x23] sm:$0xff]
      %v202 = vld [vmem:[%s197 + $0x33] sm:$0xff]
      %v203 = vld [vmem:[%s197 + $0x3b] sm:$0xff]
      %v204 = vld [vmem:[%s197 + $0x4b] sm:$0xff]
      %v205 = vld [vmem:[%s197 + $0x53] sm:$0xff]
      %v206 = vld [vmem:[%s197 + $0x63] sm:$0xff]
      %v207 = vld [vmem:[%s197 + $0x6b] sm:$0xff]
      %v208 = vld [vmem:[%s197 + $0x7b] sm:$0xff]
      %v209 = vld [vmem:[%s197 + $0x83] sm:$0xff]
      %v210 = vld [vmem:[%s197 + $0x93] sm:$0xff]
      %v211 = vld [vmem:[%s197 + $0x9b] sm:$0xff]
      %v212 = vld [vmem:[%s197 + $0xab] sm:$0xff]
      %v213 = vld [vmem:[%s197 + $0xb3] sm:$0xff]
      %v214 = vld [vmem:[%s197 + $0xc3] sm:$0xff]
      %v215 = vld [vmem:[%s197 + $0xcb] sm:$0xff]
      %v216 = vld [vmem:[%s197 + $0xdb] sm:$0xff]
      %v217 = vld [vmem:[%s197 + $0xe3] sm:$0xff]
      %v218 = vld [vmem:[%s197 + $0xf3] sm:$0xff]
      %v219 = vld [vmem:[%s197 + $0xfb] sm:$0xff]
      %v220 = vld [vmem:[%s197 + $0x10b] sm:$0xff]
      %v221 = vld [vmem:[%s197 + $0x113] sm:$0xff]
      %v222 = vld [vmem:[%s197 + $0x123] sm:$0xff]
      %v223 = vld [vmem:[%s197 + $0x12b] sm:$0xff]
      %v224 = vld [vmem:[%s197 + $0x13b] sm:$0xff]
      %v225 = vld [vmem:[%s197 + $0x143] sm:$0xff]
      %v226 = vld [vmem:[%s197 + $0x153] sm:$0xff]
      %v227 = vld [vmem:[%s197 + $0x15b] sm:$0xff]
      %v228 = vld [vmem:[%s197 + $0x16b] sm:$0xff]
      %v229 = vld [vmem:[%s197 + $0x173] sm:$0xff]
      %v230 = vld [vmem:[%s197 + $0x4] sm:$0xff]
      %v231 = vld [vmem:[%s197 + $0xc] sm:$0xff]
      %v232 = vld [vmem:[%s197 + $0x1c] sm:$0xff]
      %v233 = vld [vmem:[%s197 + $0x24] sm:$0xff]
      %v234 = vld [vmem:[%s197 + $0x34] sm:$0xff]
      %v235 = vld [vmem:[%s197 + $0x3c] sm:$0xff]
      %v236 = vld [vmem:[%s197 + $0x4c] sm:$0xff]
      %v237 = vld [vmem:[%s197 + $0x54] sm:$0xff]
      %v238 = vld [vmem:[%s197 + $0x64] sm:$0xff]
      %v239 = vld [vmem:[%s197 + $0x6c] sm:$0xff]
      %v240 = vld [vmem:[%s197 + $0x7c] sm:$0xff]
      %v241 = vld [vmem:[%s197 + $0x84] sm:$0xff]
      %v242 = vld [vmem:[%s197 + $0x94] sm:$0xff]
      %v243 = vld [vmem:[%s197 + $0x9c] sm:$0xff]
      %v244 = vld [vmem:[%s197 + $0xac] sm:$0xff]
      %v245 = vld [vmem:[%s197 + $0xb4] sm:$0xff]
      %v246 = vld [vmem:[%s197 + $0xc4] sm:$0xff]
      %v247 = vld [vmem:[%s197 + $0xcc] sm:$0xff]
      %v248 = vld [vmem:[%s197 + $0xdc] sm:$0xff]
      %v249 = vld [vmem:[%s197 + $0xe4] sm:$0xff]
      %v250 = vld [vmem:[%s197 + $0xf4] sm:$0xff]
      %v251 = vld [vmem:[%s197 + $0xfc] sm:$0xff]
      %v252 = vld [vmem:[%s197 + $0x10c] sm:$0xff]
      %v253 = vld [vmem:[%s197 + $0x114] sm:$0xff]
      %v254 = vld [vmem:[%s197 + $0x124] sm:$0xff]
      %v255 = vld [vmem:[%s197 + $0x12c] sm:$0xff]
      %v256 = vld [vmem:[%s197 + $0x13c] sm:$0xff]
      %v257 = vld [vmem:[%s197 + $0x144] sm:$0xff]
      %v258 = vld [vmem:[%s197 + $0x154] sm:$0xff]
      %v259 = vld [vmem:[%s197 + $0x15c] sm:$0xff]
      %v260 = vld [vmem:[%s197 + $0x16c] sm:$0xff]
      %v261 = vld [vmem:[%s197 + $0x174] sm:$0xff]
      %v262 = vld [vmem:[%s197 + $0x5] sm:$0xff]
      %v263 = vld [vmem:[%s197 + $0xd] sm:$0xff]
      %v264 = vld [vmem:[%s197 + $0x1d] sm:$0xff]
      %v265 = vld [vmem:[%s197 + $0x25] sm:$0xff]
      %v266 = vld [vmem:[%s197 + $0x35] sm:$0xff]
      %v267 = vld [vmem:[%s197 + $0x3d] sm:$0xff]
      %v268 = vld [vmem:[%s197 + $0x4d] sm:$0xff]
      %v269 = vld [vmem:[%s197 + $0x55] sm:$0xff]
      %v270 = vld [vmem:[%s197 + $0x65] sm:$0xff]
      %v271 = vld [vmem:[%s197 + $0x6d] sm:$0xff]
      %v272 = vld [vmem:[%s197 + $0x7d] sm:$0xff]
      %v273 = vld [vmem:[%s197 + $0x85] sm:$0xff]
      %v274 = vld [vmem:[%s197 + $0x95] sm:$0xff]
      %v275 = vld [vmem:[%s197 + $0x9d] sm:$0xff]
      %v276 = vld [vmem:[%s197 + $0xad] sm:$0xff]
      %v277 = vld [vmem:[%s197 + $0xb5] sm:$0xff]
      %v278 = vld [vmem:[%s197 + $0xc5] sm:$0xff]
      %v279 = vld [vmem:[%s197 + $0xcd] sm:$0xff]
      %v280 = vld [vmem:[%s197 + $0xdd] sm:$0xff]
      %v281 = vld [vmem:[%s197 + $0xe5] sm:$0xff]
      %v282 = vld [vmem:[%s197 + $0xf5] sm:$0xff]
      %v283 = vld [vmem:[%s197 + $0xfd] sm:$0xff]
      %v284 = vld [vmem:[%s197 + $0x10d] sm:$0xff]
      %v285 = vld [vmem:[%s197 + $0x115] sm:$0xff]
      %v286 = vld [vmem:[%s197 + $0x125] sm:$0xff]
      %v287 = vld [vmem:[%s197 + $0x12d] sm:$0xff]
      %v288 = vld [vmem:[%s197 + $0x13d] sm:$0xff]
      %v289 = vld [vmem:[%s197 + $0x145] sm:$0xff]
      %v290 = vld [vmem:[%s197 + $0x155] sm:$0xff]
      %v291 = vld [vmem:[%s197 + $0x15d] sm:$0xff]
      %v292 = vld [vmem:[%s197 + $0x16d] sm:$0xff]
      %v293 = vld [vmem:[%s197 + $0x175] sm:$0xff]
      %s294 = sadd.s32 %s194, 4
      %s295 = smul.u32 %s294, 24
      %s296 = scalar_lea.vmem %s183, %s295
      %v297 = vld [vmem:[%s296 + $0x3] sm:$0xff]
      %v298 = vld [vmem:[%s296 + $0xb] sm:$0xff]
      %v299 = vld [vmem:[%s296 + $0x1b] sm:$0xff]
      %v300 = vld [vmem:[%s296 + $0x23] sm:$0xff]
      %v301 = vld [vmem:[%s296 + $0x33] sm:$0xff]
      %v302 = vld [vmem:[%s296 + $0x3b] sm:$0xff]
      %v303 = vld [vmem:[%s296 + $0x4b] sm:$0xff]
      %v304 = vld [vmem:[%s296 + $0x53] sm:$0xff]
      %v305 = vld [vmem:[%s296 + $0x63] sm:$0xff]
      %v306 = vld [vmem:[%s296 + $0x6b] sm:$0xff]
      %v307 = vld [vmem:[%s296 + $0x7b] sm:$0xff]
      %v308 = vld [vmem:[%s296 + $0x83] sm:$0xff]
      %v309 = vld [vmem:[%s296 + $0x93] sm:$0xff]
      %v310 = vld [vmem:[%s296 + $0x9b] sm:$0xff]
      %v311 = vld [vmem:[%s296 + $0xab] sm:$0xff]
      %v312 = vld [vmem:[%s296 + $0xb3] sm:$0xff]
      %v313 = vld [vmem:[%s296 + $0xc3] sm:$0xff]
      %v314 = vld [vmem:[%s296 + $0xcb] sm:$0xff]
      %v315 = vld [vmem:[%s296 + $0xdb] sm:$0xff]
      %v316 = vld [vmem:[%s296 + $0xe3] sm:$0xff]
      %v317 = vld [vmem:[%s296 + $0xf3] sm:$0xff]
      %v318 = vld [vmem:[%s296 + $0xfb] sm:$0xff]
      %v319 = vld [vmem:[%s296 + $0x10b] sm:$0xff]
      %v320 = vld [vmem:[%s296 + $0x113] sm:$0xff]
      %v321 = vld [vmem:[%s296 + $0x123] sm:$0xff]
      %v322 = vld [vmem:[%s296 + $0x12b] sm:$0xff]
      %v323 = vld [vmem:[%s296 + $0x13b] sm:$0xff]
      %v324 = vld [vmem:[%s296 + $0x143] sm:$0xff]
      %v325 = vld [vmem:[%s296 + $0x153] sm:$0xff]
      %v326 = vld [vmem:[%s296 + $0x15b] sm:$0xff]
      %v327 = vld [vmem:[%s296 + $0x16b] sm:$0xff]
      %v328 = vld [vmem:[%s296 + $0x173] sm:$0xff]
      %v329 = vld [vmem:[%s296 + $0x4] sm:$0xff]
      %v330 = vld [vmem:[%s296 + $0xc] sm:$0xff]
      %v331 = vld [vmem:[%s296 + $0x1c] sm:$0xff]
      %v332 = vld [vmem:[%s296 + $0x24] sm:$0xff]
      %v333 = vld [vmem:[%s296 + $0x34] sm:$0xff]
      %v334 = vld [vmem:[%s296 + $0x3c] sm:$0xff]
      %v335 = vld [vmem:[%s296 + $0x4c] sm:$0xff]
      %v336 = vld [vmem:[%s296 + $0x54] sm:$0xff]
      %v337 = vld [vmem:[%s296 + $0x64] sm:$0xff]
      %v338 = vld [vmem:[%s296 + $0x6c] sm:$0xff]
      %v339 = vld [vmem:[%s296 + $0x7c] sm:$0xff]
      %v340 = vld [vmem:[%s296 + $0x84] sm:$0xff]
      %v341 = vld [vmem:[%s296 + $0x94] sm:$0xff]
      %v342 = vld [vmem:[%s296 + $0x9c] sm:$0xff]
      %v343 = vld [vmem:[%s296 + $0xac] sm:$0xff]
      %v344 = vld [vmem:[%s296 + $0xb4] sm:$0xff]
      %v345 = vld [vmem:[%s296 + $0xc4] sm:$0xff]
      %v346 = vld [vmem:[%s296 + $0xcc] sm:$0xff]
      %v347 = vld [vmem:[%s296 + $0xdc] sm:$0xff]
      %v348 = vld [vmem:[%s296 + $0xe4] sm:$0xff]
      %v349 = vld [vmem:[%s296 + $0xf4] sm:$0xff]
      %v350 = vld [vmem:[%s296 + $0xfc] sm:$0xff]
      %v351 = vld [vmem:[%s296 + $0x10c] sm:$0xff]
      %v352 = vld [vmem:[%s296 + $0x114] sm:$0xff]
      %v353 = vld [vmem:[%s296 + $0x124] sm:$0xff]
      %v354 = vld [vmem:[%s296 + $0x12c] sm:$0xff]
      %v355 = vld [vmem:[%s296 + $0x13c] sm:$0xff]
      %v356 = vld [vmem:[%s296 + $0x144] sm:$0xff]
      %v357 = vld [vmem:[%s296 + $0x154] sm:$0xff]
      %v358 = vld [vmem:[%s296 + $0x15c] sm:$0xff]
      %v359 = vld [vmem:[%s296 + $0x16c] sm:$0xff]
      %v360 = vld [vmem:[%s296 + $0x174] sm:$0xff]
      %v361 = vld [vmem:[%s296 + $0x5] sm:$0xff]
      %v362 = vld [vmem:[%s296 + $0xd] sm:$0xff]
      %v363 = vld [vmem:[%s296 + $0x1d] sm:$0xff]
      %v364 = vld [vmem:[%s296 + $0x25] sm:$0xff]
      %v365 = vld [vmem:[%s296 + $0x35] sm:$0xff]
      %v366 = vld [vmem:[%s296 + $0x3d] sm:$0xff]
      %v367 = vld [vmem:[%s296 + $0x4d] sm:$0xff]
      %v368 = vld [vmem:[%s296 + $0x55] sm:$0xff]
      %v369 = vld [vmem:[%s296 + $0x65] sm:$0xff]
      %v370 = vld [vmem:[%s296 + $0x6d] sm:$0xff]
      %v371 = vld [vmem:[%s296 + $0x7d] sm:$0xff]
      %v372 = vld [vmem:[%s296 + $0x85] sm:$0xff]
      %v373 = vld [vmem:[%s296 + $0x95] sm:$0xff]
      %v374 = vld [vmem:[%s296 + $0x9d] sm:$0xff]
      %v375 = vld [vmem:[%s296 + $0xad] sm:$0xff]
      %v376 = vld [vmem:[%s296 + $0xb5] sm:$0xff]
      %v377 = vld [vmem:[%s296 + $0xc5] sm:$0xff]
      %v378 = vld [vmem:[%s296 + $0xcd] sm:$0xff]
      %v379 = vld [vmem:[%s296 + $0xdd] sm:$0xff]
      %v380 = vld [vmem:[%s296 + $0xe5] sm:$0xff]
      %v381 = vld [vmem:[%s296 + $0xf5] sm:$0xff]
      %v382 = vld [vmem:[%s296 + $0xfd] sm:$0xff]
      %v383 = vld [vmem:[%s296 + $0x10d] sm:$0xff]
      %v384 = vld [vmem:[%s296 + $0x115] sm:$0xff]
      %v385 = vld [vmem:[%s296 + $0x125] sm:$0xff]
      %v386 = vld [vmem:[%s296 + $0x12d] sm:$0xff]
      %v387 = vld [vmem:[%s296 + $0x13d] sm:$0xff]
      %v388 = vld [vmem:[%s296 + $0x145] sm:$0xff]
      %v389 = vld [vmem:[%s296 + $0x155] sm:$0xff]
      %v390 = vld [vmem:[%s296 + $0x15d] sm:$0xff]
      %v391 = vld [vmem:[%s296 + $0x16d] sm:$0xff]
      %v392 = vld [vmem:[%s296 + $0x175] sm:$0xff]
      %s393 = sadd.s32 %s194, 5
      %s394 = smul.u32 %s393, 24
      %s395 = scalar_lea.vmem %s183, %s394
      %v396 = vld [vmem:[%s395 + $0x3] sm:$0xff]
      %v397 = vld [vmem:[%s395 + $0xb] sm:$0xff]
      %v398 = vld [vmem:[%s395 + $0x1b] sm:$0xff]
      %v399 = vld [vmem:[%s395 + $0x23] sm:$0xff]
      %v400 = vld [vmem:[%s395 + $0x33] sm:$0xff]
      %v401 = vld [vmem:[%s395 + $0x3b] sm:$0xff]
      %v402 = vld [vmem:[%s395 + $0x4b] sm:$0xff]
      %v403 = vld [vmem:[%s395 + $0x53] sm:$0xff]
      %v404 = vld [vmem:[%s395 + $0x63] sm:$0xff]
      %v405 = vld [vmem:[%s395 + $0x6b] sm:$0xff]
      %v406 = vld [vmem:[%s395 + $0x7b] sm:$0xff]
      %v407 = vld [vmem:[%s395 + $0x83] sm:$0xff]
      %v408 = vld [vmem:[%s395 + $0x93] sm:$0xff]
      %v409 = vld [vmem:[%s395 + $0x9b] sm:$0xff]
      %v410 = vld [vmem:[%s395 + $0xab] sm:$0xff]
      %v411 = vld [vmem:[%s395 + $0xb3] sm:$0xff]
      %v412 = vld [vmem:[%s395 + $0xc3] sm:$0xff]
      %v413 = vld [vmem:[%s395 + $0xcb] sm:$0xff]
      %v414 = vld [vmem:[%s395 + $0xdb] sm:$0xff]
      %v415 = vld [vmem:[%s395 + $0xe3] sm:$0xff]
      %v416 = vld [vmem:[%s395 + $0xf3] sm:$0xff]
      %v417 = vld [vmem:[%s395 + $0xfb] sm:$0xff]
      %v418 = vld [vmem:[%s395 + $0x10b] sm:$0xff]
      %v419 = vld [vmem:[%s395 + $0x113] sm:$0xff]
      %v420 = vld [vmem:[%s395 + $0x123] sm:$0xff]
      %v421 = vld [vmem:[%s395 + $0x12b] sm:$0xff]
      %v422 = vld [vmem:[%s395 + $0x13b] sm:$0xff]
      %v423 = vld [vmem:[%s395 + $0x143] sm:$0xff]
      %v424 = vld [vmem:[%s395 + $0x153] sm:$0xff]
      %v425 = vld [vmem:[%s395 + $0x15b] sm:$0xff]
      %v426 = vld [vmem:[%s395 + $0x16b] sm:$0xff]
      %v427 = vld [vmem:[%s395 + $0x173] sm:$0xff]
      %v428 = vld [vmem:[%s395 + $0x4] sm:$0xff]
      %v429 = vld [vmem:[%s395 + $0xc] sm:$0xff]
      %v430 = vld [vmem:[%s395 + $0x1c] sm:$0xff]
      %v431 = vld [vmem:[%s395 + $0x24] sm:$0xff]
      %v432 = vld [vmem:[%s395 + $0x34] sm:$0xff]
      %v433 = vld [vmem:[%s395 + $0x3c] sm:$0xff]
      %v434 = vld [vmem:[%s395 + $0x4c] sm:$0xff]
      %v435 = vld [vmem:[%s395 + $0x54] sm:$0xff]
      %v436 = vld [vmem:[%s395 + $0x64] sm:$0xff]
      %v437 = vld [vmem:[%s395 + $0x6c] sm:$0xff]
      %v438 = vld [vmem:[%s395 + $0x7c] sm:$0xff]
      %v439 = vld [vmem:[%s395 + $0x84] sm:$0xff]
      %v440 = vld [vmem:[%s395 + $0x94] sm:$0xff]
      %v441 = vld [vmem:[%s395 + $0x9c] sm:$0xff]
      %v442 = vld [vmem:[%s395 + $0xac] sm:$0xff]
      %v443 = vld [vmem:[%s395 + $0xb4] sm:$0xff]
      %v444 = vld [vmem:[%s395 + $0xc4] sm:$0xff]
      %v445 = vld [vmem:[%s395 + $0xcc] sm:$0xff]
      %v446 = vld [vmem:[%s395 + $0xdc] sm:$0xff]
      %v447 = vld [vmem:[%s395 + $0xe4] sm:$0xff]
      %v448 = vld [vmem:[%s395 + $0xf4] sm:$0xff]
      %v449 = vld [vmem:[%s395 + $0xfc] sm:$0xff]
      %v450 = vld [vmem:[%s395 + $0x10c] sm:$0xff]
      %v451 = vld [vmem:[%s395 + $0x114] sm:$0xff]
      %v452 = vld [vmem:[%s395 + $0x124] sm:$0xff]
      %v453 = vld [vmem:[%s395 + $0x12c] sm:$0xff]
      %v454 = vld [vmem:[%s395 + $0x13c] sm:$0xff]
      %v455 = vld [vmem:[%s395 + $0x144] sm:$0xff]
      %v456 = vld [vmem:[%s395 + $0x154] sm:$0xff]
      %v457 = vld [vmem:[%s395 + $0x15c] sm:$0xff]
      %v458 = vld [vmem:[%s395 + $0x16c] sm:$0xff]
      %v459 = vld [vmem:[%s395 + $0x174] sm:$0xff]
      %v460 = vld [vmem:[%s395 + $0x5] sm:$0xff]
      %v461 = vld [vmem:[%s395 + $0xd] sm:$0xff]
      %v462 = vld [vmem:[%s395 + $0x1d] sm:$0xff]
      %v463 = vld [vmem:[%s395 + $0x25] sm:$0xff]
      %v464 = vld [vmem:[%s395 + $0x35] sm:$0xff]
      %v465 = vld [vmem:[%s395 + $0x3d] sm:$0xff]
      %v466 = vld [vmem:[%s395 + $0x4d] sm:$0xff]
      %v467 = vld [vmem:[%s395 + $0x55] sm:$0xff]
      %v468 = vld [vmem:[%s395 + $0x65] sm:$0xff]
      %v469 = vld [vmem:[%s395 + $0x6d] sm:$0xff]
      %v470 = vld [vmem:[%s395 + $0x7d] sm:$0xff]
      %v471 = vld [vmem:[%s395 + $0x85] sm:$0xff]
      %v472 = vld [vmem:[%s395 + $0x95] sm:$0xff]
      %v473 = vld [vmem:[%s395 + $0x9d] sm:$0xff]
      %v474 = vld [vmem:[%s395 + $0xad] sm:$0xff]
      %v475 = vld [vmem:[%s395 + $0xb5] sm:$0xff]
      %v476 = vld [vmem:[%s395 + $0xc5] sm:$0xff]
      %v477 = vld [vmem:[%s395 + $0xcd] sm:$0xff]
      %v478 = vld [vmem:[%s395 + $0xdd] sm:$0xff]
      %v479 = vld [vmem:[%s395 + $0xe5] sm:$0xff]
      %v480 = vld [vmem:[%s395 + $0xf5] sm:$0xff]
      %v481 = vld [vmem:[%s395 + $0xfd] sm:$0xff]
      %v482 = vld [vmem:[%s395 + $0x10d] sm:$0xff]
      %v483 = vld [vmem:[%s395 + $0x115] sm:$0xff]
      %v484 = vld [vmem:[%s395 + $0x125] sm:$0xff]
      %v485 = vld [vmem:[%s395 + $0x12d] sm:$0xff]
      %v486 = vld [vmem:[%s395 + $0x13d] sm:$0xff]
      %v487 = vld [vmem:[%s395 + $0x145] sm:$0xff]
      %v488 = vld [vmem:[%s395 + $0x155] sm:$0xff]
      %v489 = vld [vmem:[%s395 + $0x15d] sm:$0xff]
      %v490 = vld [vmem:[%s395 + $0x16d] sm:$0xff]
      %v491 = vld [vmem:[%s395 + $0x175] sm:$0xff]
      %524 = vrot.lane.b32.xlu0 %v230, 4
      %v525 = vpop.permute.xlu0 %524
      %526 = vrot.lane.b32.xlu0 %v231, 4
      %v527 = vpop.permute.xlu0 %526
      %528 = vrot.lane.b32.xlu0 %v232, 4
      %v529 = vpop.permute.xlu0 %528
      %530 = vrot.lane.b32.xlu0 %v233, 4
      %v531 = vpop.permute.xlu0 %530
      %532 = vrot.lane.b32.xlu0 %v234, 4
      %v533 = vpop.permute.xlu0 %532
      %534 = vrot.lane.b32.xlu0 %v235, 4
      %v535 = vpop.permute.xlu0 %534
      %536 = vrot.lane.b32.xlu0 %v236, 4
      %v537 = vpop.permute.xlu0 %536
      %538 = vrot.lane.b32.xlu0 %v237, 4
      %v539 = vpop.permute.xlu0 %538
      %540 = vrot.lane.b32.xlu0 %v238, 4
      %v541 = vpop.permute.xlu0 %540
      %542 = vrot.lane.b32.xlu0 %v239, 4
      %v543 = vpop.permute.xlu0 %542
      %544 = vrot.lane.b32.xlu0 %v240, 4
      %v545 = vpop.permute.xlu0 %544
      %546 = vrot.lane.b32.xlu0 %v241, 4
      %v547 = vpop.permute.xlu0 %546
      %548 = vrot.lane.b32.xlu0 %v242, 4
      %v549 = vpop.permute.xlu0 %548
      %550 = vrot.lane.b32.xlu0 %v243, 4
      %v551 = vpop.permute.xlu0 %550
      %552 = vrot.lane.b32.xlu0 %v244, 4
      %v553 = vpop.permute.xlu0 %552
      %554 = vrot.lane.b32.xlu0 %v245, 4
      %v555 = vpop.permute.xlu0 %554
      %556 = vrot.lane.b32.xlu0 %v246, 4
      %v557 = vpop.permute.xlu0 %556
      %558 = vrot.lane.b32.xlu0 %v247, 4
      %v559 = vpop.permute.xlu0 %558
      %560 = vrot.lane.b32.xlu0 %v248, 4
      %v561 = vpop.permute.xlu0 %560
      %562 = vrot.lane.b32.xlu0 %v249, 4
      %v563 = vpop.permute.xlu0 %562
      %564 = vrot.lane.b32.xlu0 %v250, 4
      %v565 = vpop.permute.xlu0 %564
      %566 = vrot.lane.b32.xlu0 %v251, 4
      %v567 = vpop.permute.xlu0 %566
      %568 = vrot.lane.b32.xlu0 %v252, 4
      %v569 = vpop.permute.xlu0 %568
      %570 = vrot.lane.b32.xlu0 %v253, 4
      %v571 = vpop.permute.xlu0 %570
      %572 = vrot.lane.b32.xlu0 %v254, 4
      %v573 = vpop.permute.xlu0 %572
      %574 = vrot.lane.b32.xlu0 %v255, 4
      %v575 = vpop.permute.xlu0 %574
      %576 = vrot.lane.b32.xlu0 %v256, 4
      %v577 = vpop.permute.xlu0 %576
      %578 = vrot.lane.b32.xlu0 %v257, 4
      %v579 = vpop.permute.xlu0 %578
      %580 = vrot.lane.b32.xlu0 %v258, 4
      %v581 = vpop.permute.xlu0 %580
      %582 = vrot.lane.b32.xlu0 %v259, 4
      %v583 = vpop.permute.xlu0 %582
      %584 = vrot.lane.b32.xlu0 %v260, 4
      %v585 = vpop.permute.xlu0 %584
      %586 = vrot.lane.b32.xlu0 %v261, 4
      %v587 = vpop.permute.xlu0 %586
      %652 = vrot.lane.b32.xlu0 %v262, 8
      %v653 = vpop.permute.xlu0 %652
      %654 = vrot.lane.b32.xlu0 %v263, 8
      %v655 = vpop.permute.xlu0 %654
      %656 = vrot.lane.b32.xlu0 %v264, 8
      %v657 = vpop.permute.xlu0 %656
      %658 = vrot.lane.b32.xlu0 %v265, 8
      %v659 = vpop.permute.xlu0 %658
      %660 = vrot.lane.b32.xlu0 %v266, 8
      %v661 = vpop.permute.xlu0 %660
      %662 = vrot.lane.b32.xlu0 %v267, 8
      %v663 = vpop.permute.xlu0 %662
      %664 = vrot.lane.b32.xlu0 %v268, 8
      %v665 = vpop.permute.xlu0 %664
      %666 = vrot.lane.b32.xlu0 %v269, 8
      %v667 = vpop.permute.xlu0 %666
      %668 = vrot.lane.b32.xlu0 %v270, 8
      %v669 = vpop.permute.xlu0 %668
      %670 = vrot.lane.b32.xlu0 %v271, 8
      %v671 = vpop.permute.xlu0 %670
      %672 = vrot.lane.b32.xlu0 %v272, 8
      %v673 = vpop.permute.xlu0 %672
      %674 = vrot.lane.b32.xlu0 %v273, 8
      %v675 = vpop.permute.xlu0 %674
      %676 = vrot.lane.b32.xlu0 %v274, 8
      %v677 = vpop.permute.xlu0 %676
      %678 = vrot.lane.b32.xlu0 %v275, 8
      %v679 = vpop.permute.xlu0 %678
      %680 = vrot.lane.b32.xlu0 %v276, 8
      %v681 = vpop.permute.xlu0 %680
      %682 = vrot.lane.b32.xlu0 %v277, 8
      %v683 = vpop.permute.xlu0 %682
      %684 = vrot.lane.b32.xlu0 %v278, 8
      %v685 = vpop.permute.xlu0 %684
      %686 = vrot.lane.b32.xlu0 %v279, 8
      %v687 = vpop.permute.xlu0 %686
      %688 = vrot.lane.b32.xlu0 %v280, 8
      %v689 = vpop.permute.xlu0 %688
      %690 = vrot.lane.b32.xlu0 %v281, 8
      %v691 = vpop.permute.xlu0 %690
      %692 = vrot.lane.b32.xlu0 %v282, 8
      %v693 = vpop.permute.xlu0 %692
      %694 = vrot.lane.b32.xlu0 %v283, 8
      %v695 = vpop.permute.xlu0 %694
      %696 = vrot.lane.b32.xlu0 %v284, 8
      %v697 = vpop.permute.xlu0 %696
      %698 = vrot.lane.b32.xlu0 %v285, 8
      %v699 = vpop.permute.xlu0 %698
      %700 = vrot.lane.b32.xlu0 %v286, 8
      %v701 = vpop.permute.xlu0 %700
      %702 = vrot.lane.b32.xlu0 %v287, 8
      %v703 = vpop.permute.xlu0 %702
      %704 = vrot.lane.b32.xlu0 %v288, 8
      %v705 = vpop.permute.xlu0 %704
      %706 = vrot.lane.b32.xlu0 %v289, 8
      %v707 = vpop.permute.xlu0 %706
      %708 = vrot.lane.b32.xlu0 %v290, 8
      %v709 = vpop.permute.xlu0 %708
      %710 = vrot.lane.b32.xlu0 %v291, 8
      %v711 = vpop.permute.xlu0 %710
      %712 = vrot.lane.b32.xlu0 %v292, 8
      %v713 = vpop.permute.xlu0 %712
      %714 = vrot.lane.b32.xlu0 %v293, 8
      %v715 = vpop.permute.xlu0 %714
      %780 = vrot.lane.b32.xlu0 %v297, 12
      %v781 = vpop.permute.xlu0 %780
      %782 = vrot.lane.b32.xlu0 %v298, 12
      %v783 = vpop.permute.xlu0 %782
      %784 = vrot.lane.b32.xlu0 %v299, 12
      %v785 = vpop.permute.xlu0 %784
      %786 = vrot.lane.b32.xlu0 %v300, 12
      %v787 = vpop.permute.xlu0 %786
      %788 = vrot.lane.b32.xlu0 %v301, 12
      %v789 = vpop.permute.xlu0 %788
      %790 = vrot.lane.b32.xlu0 %v302, 12
      %v791 = vpop.permute.xlu0 %790
      %792 = vrot.lane.b32.xlu0 %v303, 12
      %v793 = vpop.permute.xlu0 %792
      %794 = vrot.lane.b32.xlu0 %v304, 12
      %v795 = vpop.permute.xlu0 %794
      %796 = vrot.lane.b32.xlu0 %v305, 12
      %v797 = vpop.permute.xlu0 %796
      %798 = vrot.lane.b32.xlu0 %v306, 12
      %v799 = vpop.permute.xlu0 %798
      %800 = vrot.lane.b32.xlu0 %v307, 12
      %v801 = vpop.permute.xlu0 %800
      %802 = vrot.lane.b32.xlu0 %v308, 12
      %v803 = vpop.permute.xlu0 %802
      %804 = vrot.lane.b32.xlu0 %v309, 12
      %v805 = vpop.permute.xlu0 %804
      %806 = vrot.lane.b32.xlu0 %v310, 12
      %v807 = vpop.permute.xlu0 %806
      %808 = vrot.lane.b32.xlu0 %v311, 12
      %v809 = vpop.permute.xlu0 %808
      %810 = vrot.lane.b32.xlu0 %v312, 12
      %v811 = vpop.permute.xlu0 %810
      %812 = vrot.lane.b32.xlu0 %v313, 12
      %v813 = vpop.permute.xlu0 %812
      %814 = vrot.lane.b32.xlu0 %v314, 12
      %v815 = vpop.permute.xlu0 %814
      %816 = vrot.lane.b32.xlu0 %v315, 12
      %v817 = vpop.permute.xlu0 %816
      %818 = vrot.lane.b32.xlu0 %v316, 12
      %v819 = vpop.permute.xlu0 %818
      %820 = vrot.lane.b32.xlu0 %v317, 12
      %v821 = vpop.permute.xlu0 %820
      %822 = vrot.lane.b32.xlu0 %v318, 12
      %v823 = vpop.permute.xlu0 %822
      %824 = vrot.lane.b32.xlu0 %v319, 12
      %v825 = vpop.permute.xlu0 %824
      %826 = vrot.lane.b32.xlu0 %v320, 12
      %v827 = vpop.permute.xlu0 %826
      %828 = vrot.lane.b32.xlu0 %v321, 12
      %v829 = vpop.permute.xlu0 %828
      %830 = vrot.lane.b32.xlu0 %v322, 12
      %v831 = vpop.permute.xlu0 %830
      %832 = vrot.lane.b32.xlu0 %v323, 12
      %v833 = vpop.permute.xlu0 %832
      %834 = vrot.lane.b32.xlu0 %v324, 12
      %v835 = vpop.permute.xlu0 %834
      %836 = vrot.lane.b32.xlu0 %v325, 12
      %v837 = vpop.permute.xlu0 %836
      %838 = vrot.lane.b32.xlu0 %v326, 12
      %v839 = vpop.permute.xlu0 %838
      %840 = vrot.lane.b32.xlu0 %v327, 12
      %v841 = vpop.permute.xlu0 %840
      %842 = vrot.lane.b32.xlu0 %v328, 12
      %v843 = vpop.permute.xlu0 %842
      %908 = vrot.lane.b32.xlu0 %v329, 16
      %v909 = vpop.permute.xlu0 %908
      %910 = vrot.lane.b32.xlu0 %v330, 16
      %v911 = vpop.permute.xlu0 %910
      %912 = vrot.lane.b32.xlu0 %v331, 16
      %v913 = vpop.permute.xlu0 %912
      %914 = vrot.lane.b32.xlu0 %v332, 16
      %v915 = vpop.permute.xlu0 %914
      %916 = vrot.lane.b32.xlu0 %v333, 16
      %v917 = vpop.permute.xlu0 %916
      %918 = vrot.lane.b32.xlu0 %v334, 16
      %v919 = vpop.permute.xlu0 %918
      %920 = vrot.lane.b32.xlu0 %v335, 16
      %v921 = vpop.permute.xlu0 %920
      %922 = vrot.lane.b32.xlu0 %v336, 16
      %v923 = vpop.permute.xlu0 %922
      %924 = vrot.lane.b32.xlu0 %v337, 16
      %v925 = vpop.permute.xlu0 %924
      %926 = vrot.lane.b32.xlu0 %v338, 16
      %v927 = vpop.permute.xlu0 %926
      %928 = vrot.lane.b32.xlu0 %v339, 16
      %v929 = vpop.permute.xlu0 %928
      %930 = vrot.lane.b32.xlu0 %v340, 16
      %v931 = vpop.permute.xlu0 %930
      %932 = vrot.lane.b32.xlu0 %v341, 16
      %v933 = vpop.permute.xlu0 %932
      %934 = vrot.lane.b32.xlu0 %v342, 16
      %v935 = vpop.permute.xlu0 %934
      %936 = vrot.lane.b32.xlu0 %v343, 16
      %v937 = vpop.permute.xlu0 %936
      %938 = vrot.lane.b32.xlu0 %v344, 16
      %v939 = vpop.permute.xlu0 %938
      %940 = vrot.lane.b32.xlu0 %v345, 16
      %v941 = vpop.permute.xlu0 %940
      %942 = vrot.lane.b32.xlu0 %v346, 16
      %v943 = vpop.permute.xlu0 %942
      %944 = vrot.lane.b32.xlu0 %v347, 16
      %v945 = vpop.permute.xlu0 %944
      %946 = vrot.lane.b32.xlu0 %v348, 16
      %v947 = vpop.permute.xlu0 %946
      %948 = vrot.lane.b32.xlu0 %v349, 16
      %v949 = vpop.permute.xlu0 %948
      %950 = vrot.lane.b32.xlu0 %v350, 16
      %v951 = vpop.permute.xlu0 %950
      %952 = vrot.lane.b32.xlu0 %v351, 16
      %v953 = vpop.permute.xlu0 %952
      %954 = vrot.lane.b32.xlu0 %v352, 16
      %v955 = vpop.permute.xlu0 %954
      %956 = vrot.lane.b32.xlu0 %v353, 16
      %v957 = vpop.permute.xlu0 %956
      %958 = vrot.lane.b32.xlu0 %v354, 16
      %v959 = vpop.permute.xlu0 %958
      %960 = vrot.lane.b32.xlu0 %v355, 16
      %v961 = vpop.permute.xlu0 %960
      %962 = vrot.lane.b32.xlu0 %v356, 16
      %v963 = vpop.permute.xlu0 %962
      %964 = vrot.lane.b32.xlu0 %v357, 16
      %v965 = vpop.permute.xlu0 %964
      %966 = vrot.lane.b32.xlu0 %v358, 16
      %v967 = vpop.permute.xlu0 %966
      %968 = vrot.lane.b32.xlu0 %v359, 16
      %v969 = vpop.permute.xlu0 %968
      %970 = vrot.lane.b32.xlu0 %v360, 16
      %v971 = vpop.permute.xlu0 %970
      %1036 = vrot.lane.b32.xlu0 %v361, 20
      %v1037 = vpop.permute.xlu0 %1036
      %1038 = vrot.lane.b32.xlu0 %v362, 20
      %v1039 = vpop.permute.xlu0 %1038
      %1040 = vrot.lane.b32.xlu0 %v363, 20
      %v1041 = vpop.permute.xlu0 %1040
      %1042 = vrot.lane.b32.xlu0 %v364, 20
      %v1043 = vpop.permute.xlu0 %1042
      %1044 = vrot.lane.b32.xlu0 %v365, 20
      %v1045 = vpop.permute.xlu0 %1044
      %1046 = vrot.lane.b32.xlu0 %v366, 20
      %v1047 = vpop.permute.xlu0 %1046
      %1048 = vrot.lane.b32.xlu0 %v367, 20
      %v1049 = vpop.permute.xlu0 %1048
      %1050 = vrot.lane.b32.xlu0 %v368, 20
      %v1051 = vpop.permute.xlu0 %1050
      %1052 = vrot.lane.b32.xlu0 %v369, 20
      %v1053 = vpop.permute.xlu0 %1052
      %1054 = vrot.lane.b32.xlu0 %v370, 20
      %v1055 = vpop.permute.xlu0 %1054
      %1056 = vrot.lane.b32.xlu0 %v371, 20
      %v1057 = vpop.permute.xlu0 %1056
      %1058 = vrot.lane.b32.xlu0 %v372, 20
      %v1059 = vpop.permute.xlu0 %1058
      %1060 = vrot.lane.b32.xlu0 %v373, 20
      %v1061 = vpop.permute.xlu0 %1060
      %1062 = vrot.lane.b32.xlu0 %v374, 20
      %v1063 = vpop.permute.xlu0 %1062
      %1064 = vrot.lane.b32.xlu0 %v375, 20
      %v1065 = vpop.permute.xlu0 %1064
      %1066 = vrot.lane.b32.xlu0 %v376, 20
      %v1067 = vpop.permute.xlu0 %1066
      %1068 = vrot.lane.b32.xlu0 %v377, 20
      %v1069 = vpop.permute.xlu0 %1068
      %1070 = vrot.lane.b32.xlu0 %v378, 20
      %v1071 = vpop.permute.xlu0 %1070
      %1072 = vrot.lane.b32.xlu0 %v379, 20
      %v1073 = vpop.permute.xlu0 %1072
      %1074 = vrot.lane.b32.xlu0 %v380, 20
      %v1075 = vpop.permute.xlu0 %1074
      %1076 = vrot.lane.b32.xlu0 %v381, 20
      %v1077 = vpop.permute.xlu0 %1076
      %1078 = vrot.lane.b32.xlu0 %v382, 20
      %v1079 = vpop.permute.xlu0 %1078
      %1080 = vrot.lane.b32.xlu0 %v383, 20
      %v1081 = vpop.permute.xlu0 %1080
      %1082 = vrot.lane.b32.xlu0 %v384, 20
      %v1083 = vpop.permute.xlu0 %1082
      %1084 = vrot.lane.b32.xlu0 %v385, 20
      %v1085 = vpop.permute.xlu0 %1084
      %1086 = vrot.lane.b32.xlu0 %v386, 20
      %v1087 = vpop.permute.xlu0 %1086
      %1088 = vrot.lane.b32.xlu0 %v387, 20
      %v1089 = vpop.permute.xlu0 %1088
      %1090 = vrot.lane.b32.xlu0 %v388, 20
      %v1091 = vpop.permute.xlu0 %1090
      %1092 = vrot.lane.b32.xlu0 %v389, 20
      %v1093 = vpop.permute.xlu0 %1092
      %1094 = vrot.lane.b32.xlu0 %v390, 20
      %v1095 = vpop.permute.xlu0 %1094
      %1096 = vrot.lane.b32.xlu0 %v391, 20
      %v1097 = vpop.permute.xlu0 %1096
      %1098 = vrot.lane.b32.xlu0 %v392, 20
      %v1099 = vpop.permute.xlu0 %1098
      %1164 = vrot.lane.b32.xlu0 %v396, 24
      %v1165 = vpop.permute.xlu0 %1164
      %1166 = vrot.lane.b32.xlu0 %v397, 24
      %v1167 = vpop.permute.xlu0 %1166
      %1168 = vrot.lane.b32.xlu0 %v398, 24
      %v1169 = vpop.permute.xlu0 %1168
      %1170 = vrot.lane.b32.xlu0 %v399, 24
      %v1171 = vpop.permute.xlu0 %1170
      %1172 = vrot.lane.b32.xlu0 %v400, 24
      %v1173 = vpop.permute.xlu0 %1172
      %1174 = vrot.lane.b32.xlu0 %v401, 24
      %v1175 = vpop.permute.xlu0 %1174
      %1176 = vrot.lane.b32.xlu0 %v402, 24
      %v1177 = vpop.permute.xlu0 %1176
      %1178 = vrot.lane.b32.xlu0 %v403, 24
      %v1179 = vpop.permute.xlu0 %1178
      %1180 = vrot.lane.b32.xlu0 %v404, 24
      %v1181 = vpop.permute.xlu0 %1180
      %1182 = vrot.lane.b32.xlu0 %v405, 24
      %v1183 = vpop.permute.xlu0 %1182
      %1184 = vrot.lane.b32.xlu0 %v406, 24
      %v1185 = vpop.permute.xlu0 %1184
      %1186 = vrot.lane.b32.xlu0 %v407, 24
      %v1187 = vpop.permute.xlu0 %1186
      %1188 = vrot.lane.b32.xlu0 %v408, 24
      %v1189 = vpop.permute.xlu0 %1188
      %1190 = vrot.lane.b32.xlu0 %v409, 24
      %v1191 = vpop.permute.xlu0 %1190
      %1192 = vrot.lane.b32.xlu0 %v410, 24
      %v1193 = vpop.permute.xlu0 %1192
      %1194 = vrot.lane.b32.xlu0 %v411, 24
      %v1195 = vpop.permute.xlu0 %1194
      %1196 = vrot.lane.b32.xlu0 %v412, 24
      %v1197 = vpop.permute.xlu0 %1196
      %1198 = vrot.lane.b32.xlu0 %v413, 24
      %v1199 = vpop.permute.xlu0 %1198
      %1200 = vrot.lane.b32.xlu0 %v414, 24
      %v1201 = vpop.permute.xlu0 %1200
      %1202 = vrot.lane.b32.xlu0 %v415, 24
      %v1203 = vpop.permute.xlu0 %1202
      %1204 = vrot.lane.b32.xlu0 %v416, 24
      %v1205 = vpop.permute.xlu0 %1204
      %1206 = vrot.lane.b32.xlu0 %v417, 24
      %v1207 = vpop.permute.xlu0 %1206
      %1208 = vrot.lane.b32.xlu0 %v418, 24
      %v1209 = vpop.permute.xlu0 %1208
      %1210 = vrot.lane.b32.xlu0 %v419, 24
      %v1211 = vpop.permute.xlu0 %1210
      %1212 = vrot.lane.b32.xlu0 %v420, 24
      %v1213 = vpop.permute.xlu0 %1212
      %1214 = vrot.lane.b32.xlu0 %v421, 24
      %v1215 = vpop.permute.xlu0 %1214
      %1216 = vrot.lane.b32.xlu0 %v422, 24
      %v1217 = vpop.permute.xlu0 %1216
      %1218 = vrot.lane.b32.xlu0 %v423, 24
      %v1219 = vpop.permute.xlu0 %1218
      %1220 = vrot.lane.b32.xlu0 %v424, 24
      %v1221 = vpop.permute.xlu0 %1220
      %1222 = vrot.lane.b32.xlu0 %v425, 24
      %v1223 = vpop.permute.xlu0 %1222
      %1224 = vrot.lane.b32.xlu0 %v426, 24
      %v1225 = vpop.permute.xlu0 %1224
      %1226 = vrot.lane.b32.xlu0 %v427, 24
      %v1227 = vpop.permute.xlu0 %1226
      %1292 = vrot.lane.b32.xlu0 %v428, 28
      %v1293 = vpop.permute.xlu0 %1292
      %1294 = vrot.lane.b32.xlu0 %v429, 28
      %v1295 = vpop.permute.xlu0 %1294
      %1296 = vrot.lane.b32.xlu0 %v430, 28
      %v1297 = vpop.permute.xlu0 %1296
      %1298 = vrot.lane.b32.xlu0 %v431, 28
      %v1299 = vpop.permute.xlu0 %1298
      %1300 = vrot.lane.b32.xlu0 %v432, 28
      %v1301 = vpop.permute.xlu0 %1300
      %1302 = vrot.lane.b32.xlu0 %v433, 28
      %v1303 = vpop.permute.xlu0 %1302
      %1304 = vrot.lane.b32.xlu0 %v434, 28
      %v1305 = vpop.permute.xlu0 %1304
      %1306 = vrot.lane.b32.xlu0 %v435, 28
      %v1307 = vpop.permute.xlu0 %1306
      %1308 = vrot.lane.b32.xlu0 %v436, 28
      %v1309 = vpop.permute.xlu0 %1308
      %1310 = vrot.lane.b32.xlu0 %v437, 28
      %v1311 = vpop.permute.xlu0 %1310
      %1312 = vrot.lane.b32.xlu0 %v438, 28
      %v1313 = vpop.permute.xlu0 %1312
      %1314 = vrot.lane.b32.xlu0 %v439, 28
      %v1315 = vpop.permute.xlu0 %1314
      %1316 = vrot.lane.b32.xlu0 %v440, 28
      %v1317 = vpop.permute.xlu0 %1316
      %1318 = vrot.lane.b32.xlu0 %v441, 28
      %v1319 = vpop.permute.xlu0 %1318
      %1320 = vrot.lane.b32.xlu0 %v442, 28
      %v1321 = vpop.permute.xlu0 %1320
      %1322 = vrot.lane.b32.xlu0 %v443, 28
      %v1323 = vpop.permute.xlu0 %1322
      %1324 = vrot.lane.b32.xlu0 %v444, 28
      %v1325 = vpop.permute.xlu0 %1324
      %1326 = vrot.lane.b32.xlu0 %v445, 28
      %v1327 = vpop.permute.xlu0 %1326
      %1328 = vrot.lane.b32.xlu0 %v446, 28
      %v1329 = vpop.permute.xlu0 %1328
      %1330 = vrot.lane.b32.xlu0 %v447, 28
      %v1331 = vpop.permute.xlu0 %1330
      %1332 = vrot.lane.b32.xlu0 %v448, 28
      %v1333 = vpop.permute.xlu0 %1332
      %1334 = vrot.lane.b32.xlu0 %v449, 28
      %v1335 = vpop.permute.xlu0 %1334
      %1336 = vrot.lane.b32.xlu0 %v450, 28
      %v1337 = vpop.permute.xlu0 %1336
      %1338 = vrot.lane.b32.xlu0 %v451, 28
      %v1339 = vpop.permute.xlu0 %1338
      %1340 = vrot.lane.b32.xlu0 %v452, 28
      %v1341 = vpop.permute.xlu0 %1340
      %1342 = vrot.lane.b32.xlu0 %v453, 28
      %v1343 = vpop.permute.xlu0 %1342
      %1344 = vrot.lane.b32.xlu0 %v454, 28
      %v1345 = vpop.permute.xlu0 %1344
      %1346 = vrot.lane.b32.xlu0 %v455, 28
      %v1347 = vpop.permute.xlu0 %1346
      %1348 = vrot.lane.b32.xlu0 %v456, 28
      %v1349 = vpop.permute.xlu0 %1348
      %1350 = vrot.lane.b32.xlu0 %v457, 28
      %v1351 = vpop.permute.xlu0 %1350
      %1352 = vrot.lane.b32.xlu0 %v458, 28
      %v1353 = vpop.permute.xlu0 %1352
      %1354 = vrot.lane.b32.xlu0 %v459, 28
      %v1355 = vpop.permute.xlu0 %1354
      %1420 = vrot.lane.b32.xlu0 %v460, 32
      %v1421 = vpop.permute.xlu0 %1420
      %1422 = vrot.lane.b32.xlu0 %v461, 32
      %v1423 = vpop.permute.xlu0 %1422
      %1424 = vrot.lane.b32.xlu0 %v462, 32
      %v1425 = vpop.permute.xlu0 %1424
      %1426 = vrot.lane.b32.xlu0 %v463, 32
      %v1427 = vpop.permute.xlu0 %1426
      %1428 = vrot.lane.b32.xlu0 %v464, 32
      %v1429 = vpop.permute.xlu0 %1428
      %1430 = vrot.lane.b32.xlu0 %v465, 32
      %v1431 = vpop.permute.xlu0 %1430
      %1432 = vrot.lane.b32.xlu0 %v466, 32
      %v1433 = vpop.permute.xlu0 %1432
      %1434 = vrot.lane.b32.xlu0 %v467, 32
      %v1435 = vpop.permute.xlu0 %1434
      %1436 = vrot.lane.b32.xlu0 %v468, 32
      %v1437 = vpop.permute.xlu0 %1436
      %1438 = vrot.lane.b32.xlu0 %v469, 32
      %v1439 = vpop.permute.xlu0 %1438
      %1440 = vrot.lane.b32.xlu0 %v470, 32
      %v1441 = vpop.permute.xlu0 %1440
      %1442 = vrot.lane.b32.xlu0 %v471, 32
      %v1443 = vpop.permute.xlu0 %1442
      %1444 = vrot.lane.b32.xlu0 %v472, 32
      %v1445 = vpop.permute.xlu0 %1444
      %1446 = vrot.lane.b32.xlu0 %v473, 32
      %v1447 = vpop.permute.xlu0 %1446
      %1448 = vrot.lane.b32.xlu0 %v474, 32
      %v1449 = vpop.permute.xlu0 %1448
      %1450 = vrot.lane.b32.xlu0 %v475, 32
      %v1451 = vpop.permute.xlu0 %1450
      %1452 = vrot.lane.b32.xlu0 %v476, 32
      %v1453 = vpop.permute.xlu0 %1452
      %1454 = vrot.lane.b32.xlu0 %v477, 32
      %v1455 = vpop.permute.xlu0 %1454
      %1456 = vrot.lane.b32.xlu0 %v478, 32
      %v1457 = vpop.permute.xlu0 %1456
      %1458 = vrot.lane.b32.xlu0 %v479, 32
      %v1459 = vpop.permute.xlu0 %1458
      %1460 = vrot.lane.b32.xlu0 %v480, 32
      %v1461 = vpop.permute.xlu0 %1460
      %1462 = vrot.lane.b32.xlu0 %v481, 32
      %v1463 = vpop.permute.xlu0 %1462
      %1464 = vrot.lane.b32.xlu0 %v482, 32
      %v1465 = vpop.permute.xlu0 %1464
      %1466 = vrot.lane.b32.xlu0 %v483, 32
      %v1467 = vpop.permute.xlu0 %1466
      %1468 = vrot.lane.b32.xlu0 %v484, 32
      %v1469 = vpop.permute.xlu0 %1468
      %1470 = vrot.lane.b32.xlu0 %v485, 32
      %v1471 = vpop.permute.xlu0 %1470
      %1472 = vrot.lane.b32.xlu0 %v486, 32
      %v1473 = vpop.permute.xlu0 %1472
      %1474 = vrot.lane.b32.xlu0 %v487, 32
      %v1475 = vpop.permute.xlu0 %1474
      %1476 = vrot.lane.b32.xlu0 %v488, 32
      %v1477 = vpop.permute.xlu0 %1476
      %1478 = vrot.lane.b32.xlu0 %v489, 32
      %v1479 = vpop.permute.xlu0 %1478
      %1480 = vrot.lane.b32.xlu0 %v490, 32
      %v1481 = vpop.permute.xlu0 %1480
      %1482 = vrot.lane.b32.xlu0 %v491, 32
      %v1483 = vpop.permute.xlu0 %1482
      %vm1516 = vcmask 31744
      %v1517 = vsel %vm1516, %v198, %v525
      %v1518 = vsel %vm1516, %v199, %v527
      %v1519 = vsel %vm1516, %v200, %v529
      %v1520 = vsel %vm1516, %v201, %v531
      %v1521 = vsel %vm1516, %v202, %v533
      %v1522 = vsel %vm1516, %v203, %v535
      %v1523 = vsel %vm1516, %v204, %v537
      %v1524 = vsel %vm1516, %v205, %v539
      %v1525 = vsel %vm1516, %v206, %v541
      %v1526 = vsel %vm1516, %v207, %v543
      %v1527 = vsel %vm1516, %v208, %v545
      %v1528 = vsel %vm1516, %v209, %v547
      %v1529 = vsel %vm1516, %v210, %v549
      %v1530 = vsel %vm1516, %v211, %v551
      %v1531 = vsel %vm1516, %v212, %v553
      %v1532 = vsel %vm1516, %v213, %v555
      %v1533 = vsel %vm1516, %v214, %v557
      %v1534 = vsel %vm1516, %v215, %v559
      %v1535 = vsel %vm1516, %v216, %v561
      %v1536 = vsel %vm1516, %v217, %v563
      %v1537 = vsel %vm1516, %v218, %v565
      %v1538 = vsel %vm1516, %v219, %v567
      %v1539 = vsel %vm1516, %v220, %v569
      %v1540 = vsel %vm1516, %v221, %v571
      %v1541 = vsel %vm1516, %v222, %v573
      %v1542 = vsel %vm1516, %v223, %v575
      %v1543 = vsel %vm1516, %v224, %v577
      %v1544 = vsel %vm1516, %v225, %v579
      %v1545 = vsel %vm1516, %v226, %v581
      %v1546 = vsel %vm1516, %v227, %v583
      %v1547 = vsel %vm1516, %v228, %v585
      %v1548 = vsel %vm1516, %v229, %v587
      %vm1549 = vcmask 64512
      %v1550 = vsel %vm1549, %v1517, %v653
      %v1551 = vsel %vm1549, %v1518, %v655
      %v1552 = vsel %vm1549, %v1519, %v657
      %v1553 = vsel %vm1549, %v1520, %v659
      %v1554 = vsel %vm1549, %v1521, %v661
      %v1555 = vsel %vm1549, %v1522, %v663
      %v1556 = vsel %vm1549, %v1523, %v665
      %v1557 = vsel %vm1549, %v1524, %v667
      %v1558 = vsel %vm1549, %v1525, %v669
      %v1559 = vsel %vm1549, %v1526, %v671
      %v1560 = vsel %vm1549, %v1527, %v673
      %v1561 = vsel %vm1549, %v1528, %v675
      %v1562 = vsel %vm1549, %v1529, %v677
      %v1563 = vsel %vm1549, %v1530, %v679
      %v1564 = vsel %vm1549, %v1531, %v681
      %v1565 = vsel %vm1549, %v1532, %v683
      %v1566 = vsel %vm1549, %v1533, %v685
      %v1567 = vsel %vm1549, %v1534, %v687
      %v1568 = vsel %vm1549, %v1535, %v689
      %v1569 = vsel %vm1549, %v1536, %v691
      %v1570 = vsel %vm1549, %v1537, %v693
      %v1571 = vsel %vm1549, %v1538, %v695
      %v1572 = vsel %vm1549, %v1539, %v697
      %v1573 = vsel %vm1549, %v1540, %v699
      %v1574 = vsel %vm1549, %v1541, %v701
      %v1575 = vsel %vm1549, %v1542, %v703
      %v1576 = vsel %vm1549, %v1543, %v705
      %v1577 = vsel %vm1549, %v1544, %v707
      %v1578 = vsel %vm1549, %v1545, %v709
      %v1579 = vsel %vm1549, %v1546, %v711
      %v1580 = vsel %vm1549, %v1547, %v713
      %v1581 = vsel %vm1549, %v1548, %v715
      %vm1582 = vcmask 97280
      %v1583 = vsel %vm1582, %v1550, %v781
      %v1584 = vsel %vm1582, %v1551, %v783
      %v1585 = vsel %vm1582, %v1552, %v785
      %v1586 = vsel %vm1582, %v1553, %v787
      %v1587 = vsel %vm1582, %v1554, %v789
      %v1588 = vsel %vm1582, %v1555, %v791
      %v1589 = vsel %vm1582, %v1556, %v793
      %v1590 = vsel %vm1582, %v1557, %v795
      %v1591 = vsel %vm1582, %v1558, %v797
      %v1592 = vsel %vm1582, %v1559, %v799
      %v1593 = vsel %vm1582, %v1560, %v801
      %v1594 = vsel %vm1582, %v1561, %v803
      %v1595 = vsel %vm1582, %v1562, %v805
      %v1596 = vsel %vm1582, %v1563, %v807
      %v1597 = vsel %vm1582, %v1564, %v809
      %v1598 = vsel %vm1582, %v1565, %v811
      %v1599 = vsel %vm1582, %v1566, %v813
      %v1600 = vsel %vm1582, %v1567, %v815
      %v1601 = vsel %vm1582, %v1568, %v817
      %v1602 = vsel %vm1582, %v1569, %v819
      %v1603 = vsel %vm1582, %v1570, %v821
      %v1604 = vsel %vm1582, %v1571, %v823
      %v1605 = vsel %vm1582, %v1572, %v825
      %v1606 = vsel %vm1582, %v1573, %v827
      %v1607 = vsel %vm1582, %v1574, %v829
      %v1608 = vsel %vm1582, %v1575, %v831
      %v1609 = vsel %vm1582, %v1576, %v833
      %v1610 = vsel %vm1582, %v1577, %v835
      %v1611 = vsel %vm1582, %v1578, %v837
      %v1612 = vsel %vm1582, %v1579, %v839
      %v1613 = vsel %vm1582, %v1580, %v841
      %v1614 = vsel %vm1582, %v1581, %v843
      %vm1615 = vcmask 130048
      %v1616 = vsel %vm1615, %v1583, %v909
      %v1617 = vsel %vm1615, %v1584, %v911
      %v1618 = vsel %vm1615, %v1585, %v913
      %v1619 = vsel %vm1615, %v1586, %v915
      %v1620 = vsel %vm1615, %v1587, %v917
      %v1621 = vsel %vm1615, %v1588, %v919
      %v1622 = vsel %vm1615, %v1589, %v921
      %v1623 = vsel %vm1615, %v1590, %v923
      %v1624 = vsel %vm1615, %v1591, %v925
      %v1625 = vsel %vm1615, %v1592, %v927
      %v1626 = vsel %vm1615, %v1593, %v929
      %v1627 = vsel %vm1615, %v1594, %v931
      %v1628 = vsel %vm1615, %v1595, %v933
      %v1629 = vsel %vm1615, %v1596, %v935
      %v1630 = vsel %vm1615, %v1597, %v937
      %v1631 = vsel %vm1615, %v1598, %v939
      %v1632 = vsel %vm1615, %v1599, %v941
      %v1633 = vsel %vm1615, %v1600, %v943
      %v1634 = vsel %vm1615, %v1601, %v945
      %v1635 = vsel %vm1615, %v1602, %v947
      %v1636 = vsel %vm1615, %v1603, %v949
      %v1637 = vsel %vm1615, %v1604, %v951
      %v1638 = vsel %vm1615, %v1605, %v953
      %v1639 = vsel %vm1615, %v1606, %v955
      %v1640 = vsel %vm1615, %v1607, %v957
      %v1641 = vsel %vm1615, %v1608, %v959
      %v1642 = vsel %vm1615, %v1609, %v961
      %v1643 = vsel %vm1615, %v1610, %v963
      %v1644 = vsel %vm1615, %v1611, %v965
      %v1645 = vsel %vm1615, %v1612, %v967
      %v1646 = vsel %vm1615, %v1613, %v969
      %v1647 = vsel %vm1615, %v1614, %v971
      %vm1648 = vcmask 162816
      %v1649 = vsel %vm1648, %v1616, %v1037
      %v1650 = vsel %vm1648, %v1617, %v1039
      %v1651 = vsel %vm1648, %v1618, %v1041
      %v1652 = vsel %vm1648, %v1619, %v1043
      %v1653 = vsel %vm1648, %v1620, %v1045
      %v1654 = vsel %vm1648, %v1621, %v1047
      %v1655 = vsel %vm1648, %v1622, %v1049
      %v1656 = vsel %vm1648, %v1623, %v1051
      %v1657 = vsel %vm1648, %v1624, %v1053
      %v1658 = vsel %vm1648, %v1625, %v1055
      %v1659 = vsel %vm1648, %v1626, %v1057
      %v1660 = vsel %vm1648, %v1627, %v1059
      %v1661 = vsel %vm1648, %v1628, %v1061
      %v1662 = vsel %vm1648, %v1629, %v1063
      %v1663 = vsel %vm1648, %v1630, %v1065
      %v1664 = vsel %vm1648, %v1631, %v1067
      %v1665 = vsel %vm1648, %v1632, %v1069
      %v1666 = vsel %vm1648, %v1633, %v1071
      %v1667 = vsel %vm1648, %v1634, %v1073
      %v1668 = vsel %vm1648, %v1635, %v1075
      %v1669 = vsel %vm1648, %v1636, %v1077
      %v1670 = vsel %vm1648, %v1637, %v1079
      %v1671 = vsel %vm1648, %v1638, %v1081
      %v1672 = vsel %vm1648, %v1639, %v1083
      %v1673 = vsel %vm1648, %v1640, %v1085
      %v1674 = vsel %vm1648, %v1641, %v1087
      %v1675 = vsel %vm1648, %v1642, %v1089
      %v1676 = vsel %vm1648, %v1643, %v1091
      %v1677 = vsel %vm1648, %v1644, %v1093
      %v1678 = vsel %vm1648, %v1645, %v1095
      %v1679 = vsel %vm1648, %v1646, %v1097
      %v1680 = vsel %vm1648, %v1647, %v1099
      %vm1681 = vcmask 195584
      %v1682 = vsel %vm1681, %v1649, %v1165
      %v1683 = vsel %vm1681, %v1650, %v1167
      %v1684 = vsel %vm1681, %v1651, %v1169
      %v1685 = vsel %vm1681, %v1652, %v1171
      %v1686 = vsel %vm1681, %v1653, %v1173
      %v1687 = vsel %vm1681, %v1654, %v1175
      %v1688 = vsel %vm1681, %v1655, %v1177
      %v1689 = vsel %vm1681, %v1656, %v1179
      %v1690 = vsel %vm1681, %v1657, %v1181
      %v1691 = vsel %vm1681, %v1658, %v1183
      %v1692 = vsel %vm1681, %v1659, %v1185
      %v1693 = vsel %vm1681, %v1660, %v1187
      %v1694 = vsel %vm1681, %v1661, %v1189
      %v1695 = vsel %vm1681, %v1662, %v1191
      %v1696 = vsel %vm1681, %v1663, %v1193
      %v1697 = vsel %vm1681, %v1664, %v1195
      %v1698 = vsel %vm1681, %v1665, %v1197
      %v1699 = vsel %vm1681, %v1666, %v1199
      %v1700 = vsel %vm1681, %v1667, %v1201
      %v1701 = vsel %vm1681, %v1668, %v1203
      %v1702 = vsel %vm1681, %v1669, %v1205
      %v1703 = vsel %vm1681, %v1670, %v1207
      %v1704 = vsel %vm1681, %v1671, %v1209
      %v1705 = vsel %vm1681, %v1672, %v1211
      %v1706 = vsel %vm1681, %v1673, %v1213
      %v1707 = vsel %vm1681, %v1674, %v1215
      %v1708 = vsel %vm1681, %v1675, %v1217
      %v1709 = vsel %vm1681, %v1676, %v1219
      %v1710 = vsel %vm1681, %v1677, %v1221
      %v1711 = vsel %vm1681, %v1678, %v1223
      %v1712 = vsel %vm1681, %v1679, %v1225
      %v1713 = vsel %vm1681, %v1680, %v1227
      %vm1714 = vcmask 228352
      %v1715 = vsel %vm1714, %v1682, %v1293
      %v1716 = vsel %vm1714, %v1683, %v1295
      %v1717 = vsel %vm1714, %v1684, %v1297
      %v1718 = vsel %vm1714, %v1685, %v1299
      %v1719 = vsel %vm1714, %v1686, %v1301
      %v1720 = vsel %vm1714, %v1687, %v1303
      %v1721 = vsel %vm1714, %v1688, %v1305
      %v1722 = vsel %vm1714, %v1689, %v1307
      %v1723 = vsel %vm1714, %v1690, %v1309
      %v1724 = vsel %vm1714, %v1691, %v1311
      %v1725 = vsel %vm1714, %v1692, %v1313
      %v1726 = vsel %vm1714, %v1693, %v1315
      %v1727 = vsel %vm1714, %v1694, %v1317
      %v1728 = vsel %vm1714, %v1695, %v1319
      %v1729 = vsel %vm1714, %v1696, %v1321
      %v1730 = vsel %vm1714, %v1697, %v1323
      %v1731 = vsel %vm1714, %v1698, %v1325
      %v1732 = vsel %vm1714, %v1699, %v1327
      %v1733 = vsel %vm1714, %v1700, %v1329
      %v1734 = vsel %vm1714, %v1701, %v1331
      %v1735 = vsel %vm1714, %v1702, %v1333
      %v1736 = vsel %vm1714, %v1703, %v1335
      %v1737 = vsel %vm1714, %v1704, %v1337
      %v1738 = vsel %vm1714, %v1705, %v1339
      %v1739 = vsel %vm1714, %v1706, %v1341
      %v1740 = vsel %vm1714, %v1707, %v1343
      %v1741 = vsel %vm1714, %v1708, %v1345
      %v1742 = vsel %vm1714, %v1709, %v1347
      %v1743 = vsel %vm1714, %v1710, %v1349
      %v1744 = vsel %vm1714, %v1711, %v1351
      %v1745 = vsel %vm1714, %v1712, %v1353
      %v1746 = vsel %vm1714, %v1713, %v1355
      %vm1747 = vcmask 261120
      %v1748 = vsel %vm1747, %v1715, %v1421
      %v1749 = vsel %vm1747, %v1716, %v1423
      %v1750 = vsel %vm1747, %v1717, %v1425
      %v1751 = vsel %vm1747, %v1718, %v1427
      %v1752 = vsel %vm1747, %v1719, %v1429
      %v1753 = vsel %vm1747, %v1720, %v1431
      %v1754 = vsel %vm1747, %v1721, %v1433
      %v1755 = vsel %vm1747, %v1722, %v1435
      %v1756 = vsel %vm1747, %v1723, %v1437
      %v1757 = vsel %vm1747, %v1724, %v1439
      %v1758 = vsel %vm1747, %v1725, %v1441
      %v1759 = vsel %vm1747, %v1726, %v1443
      %v1760 = vsel %vm1747, %v1727, %v1445
      %v1761 = vsel %vm1747, %v1728, %v1447
      %v1762 = vsel %vm1747, %v1729, %v1449
      %v1763 = vsel %vm1747, %v1730, %v1451
      %v1764 = vsel %vm1747, %v1731, %v1453
      %v1765 = vsel %vm1747, %v1732, %v1455
      %v1766 = vsel %vm1747, %v1733, %v1457
      %v1767 = vsel %vm1747, %v1734, %v1459
      %v1768 = vsel %vm1747, %v1735, %v1461
      %v1769 = vsel %vm1747, %v1736, %v1463
      %v1770 = vsel %vm1747, %v1737, %v1465
      %v1771 = vsel %vm1747, %v1738, %v1467
      %v1772 = vsel %vm1747, %v1739, %v1469
      %v1773 = vsel %vm1747, %v1740, %v1471
      %v1774 = vsel %vm1747, %v1741, %v1473
      %v1775 = vsel %vm1747, %v1742, %v1475
      %v1776 = vsel %vm1747, %v1743, %v1477
      %v1777 = vsel %vm1747, %v1744, %v1479
      %v1778 = vsel %vm1747, %v1745, %v1481
      %v1779 = vsel %vm1747, %v1746, %v1483
      %v1780 = vld [vmem:[%s1] sm:$0xff]
      %v1781 = vld [vmem:[%s1 + $0x8] sm:$0xff]
      %v1782 = vld [vmem:[%s1 + $0x10] sm:$0xff]
      %v1783 = vld [vmem:[%s1 + $0x18] sm:$0xff]
      %v1784 = vld [vmem:[%s1 + $0x20] sm:$0xf]
      %s1785 = sadd.s32 %s194, 2
      %s1786 = smul.u32 %s1785, 24
      %s1787 = scalar_lea.vmem %s183, %s1786
      %v1788 = vld [vmem:[%s1787 + $0x2] sm:$0xff]
      %v1789 = vld [vmem:[%s1787 + $0xa] sm:$0xff]
      %v1790 = vld [vmem:[%s1787 + $0x1a] sm:$0xff]
      %v1791 = vld [vmem:[%s1787 + $0x22] sm:$0xff]
      %v1792 = vld [vmem:[%s1787 + $0x32] sm:$0xff]
      %v1793 = vld [vmem:[%s1787 + $0x3a] sm:$0xff]
      %v1794 = vld [vmem:[%s1787 + $0x4a] sm:$0xff]
      %v1795 = vld [vmem:[%s1787 + $0x52] sm:$0xff]
      %v1796 = vld [vmem:[%s1787 + $0x62] sm:$0xff]
      %v1797 = vld [vmem:[%s1787 + $0x6a] sm:$0xff]
      %v1798 = vld [vmem:[%s1787 + $0x7a] sm:$0xff]
      %v1799 = vld [vmem:[%s1787 + $0x82] sm:$0xff]
      %v1800 = vld [vmem:[%s1787 + $0x92] sm:$0xff]
      %v1801 = vld [vmem:[%s1787 + $0x9a] sm:$0xff]
      %v1802 = vld [vmem:[%s1787 + $0xaa] sm:$0xff]
      %v1803 = vld [vmem:[%s1787 + $0xb2] sm:$0xff]
      %v1804 = vld [vmem:[%s1787 + $0xc2] sm:$0xff]
      %v1805 = vld [vmem:[%s1787 + $0xca] sm:$0xff]
      %v1806 = vld [vmem:[%s1787 + $0xda] sm:$0xff]
      %v1807 = vld [vmem:[%s1787 + $0xe2] sm:$0xff]
      %v1808 = vld [vmem:[%s1787 + $0xf2] sm:$0xff]
      %v1809 = vld [vmem:[%s1787 + $0xfa] sm:$0xff]
      %v1810 = vld [vmem:[%s1787 + $0x10a] sm:$0xff]
      %v1811 = vld [vmem:[%s1787 + $0x112] sm:$0xff]
      %v1812 = vld [vmem:[%s1787 + $0x122] sm:$0xff]
      %v1813 = vld [vmem:[%s1787 + $0x12a] sm:$0xff]
      %v1814 = vld [vmem:[%s1787 + $0x13a] sm:$0xff]
      %v1815 = vld [vmem:[%s1787 + $0x142] sm:$0xff]
      %v1816 = vld [vmem:[%s1787 + $0x152] sm:$0xff]
      %v1817 = vld [vmem:[%s1787 + $0x15a] sm:$0xff]
      %v1818 = vld [vmem:[%s1787 + $0x16a] sm:$0xff]
      %v1819 = vld [vmem:[%s1787 + $0x172] sm:$0xff]
      %v1820 = vld [vmem:[%s1787 + $0x4] sm:$0xff]
      %v1821 = vld [vmem:[%s1787 + $0xc] sm:$0xff]
      %v1822 = vld [vmem:[%s1787 + $0x1c] sm:$0xff]
      %v1823 = vld [vmem:[%s1787 + $0x24] sm:$0xff]
      %v1824 = vld [vmem:[%s1787 + $0x34] sm:$0xff]
      %v1825 = vld [vmem:[%s1787 + $0x3c] sm:$0xff]
      %v1826 = vld [vmem:[%s1787 + $0x4c] sm:$0xff]
      %v1827 = vld [vmem:[%s1787 + $0x54] sm:$0xff]
      %v1828 = vld [vmem:[%s1787 + $0x64] sm:$0xff]
      %v1829 = vld [vmem:[%s1787 + $0x6c] sm:$0xff]
      %v1830 = vld [vmem:[%s1787 + $0x7c] sm:$0xff]
      %v1831 = vld [vmem:[%s1787 + $0x84] sm:$0xff]
      %v1832 = vld [vmem:[%s1787 + $0x94] sm:$0xff]
      %v1833 = vld [vmem:[%s1787 + $0x9c] sm:$0xff]
      %v1834 = vld [vmem:[%s1787 + $0xac] sm:$0xff]
      %v1835 = vld [vmem:[%s1787 + $0xb4] sm:$0xff]
      %v1836 = vld [vmem:[%s1787 + $0xc4] sm:$0xff]
      %v1837 = vld [vmem:[%s1787 + $0xcc] sm:$0xff]
      %v1838 = vld [vmem:[%s1787 + $0xdc] sm:$0xff]
      %v1839 = vld [vmem:[%s1787 + $0xe4] sm:$0xff]
      %v1840 = vld [vmem:[%s1787 + $0xf4] sm:$0xff]
      %v1841 = vld [vmem:[%s1787 + $0xfc] sm:$0xff]
      %v1842 = vld [vmem:[%s1787 + $0x10c] sm:$0xff]
      %v1843 = vld [vmem:[%s1787 + $0x114] sm:$0xff]
      %v1844 = vld [vmem:[%s1787 + $0x124] sm:$0xff]
      %v1845 = vld [vmem:[%s1787 + $0x12c] sm:$0xff]
      %v1846 = vld [vmem:[%s1787 + $0x13c] sm:$0xff]
      %v1847 = vld [vmem:[%s1787 + $0x144] sm:$0xff]
      %v1848 = vld [vmem:[%s1787 + $0x154] sm:$0xff]
      %v1849 = vld [vmem:[%s1787 + $0x15c] sm:$0xff]
      %v1850 = vld [vmem:[%s1787 + $0x16c] sm:$0xff]
      %v1851 = vld [vmem:[%s1787 + $0x174] sm:$0xff]
      %v1852 = vld [vmem:[%s1787 + $0x6] sm:$0xff]
      %v1853 = vld [vmem:[%s1787 + $0xe] sm:$0xff]
      %v1854 = vld [vmem:[%s1787 + $0x1e] sm:$0xff]
      %v1855 = vld [vmem:[%s1787 + $0x26] sm:$0xff]
      %v1856 = vld [vmem:[%s1787 + $0x36] sm:$0xff]
      %v1857 = vld [vmem:[%s1787 + $0x3e] sm:$0xff]
      %v1858 = vld [vmem:[%s1787 + $0x4e] sm:$0xff]
      %v1859 = vld [vmem:[%s1787 + $0x56] sm:$0xff]
      %v1860 = vld [vmem:[%s1787 + $0x66] sm:$0xff]
      %v1861 = vld [vmem:[%s1787 + $0x6e] sm:$0xff]
      %v1862 = vld [vmem:[%s1787 + $0x7e] sm:$0xff]
      %v1863 = vld [vmem:[%s1787 + $0x86] sm:$0xff]
      %v1864 = vld [vmem:[%s1787 + $0x96] sm:$0xff]
      %v1865 = vld [vmem:[%s1787 + $0x9e] sm:$0xff]
      %v1866 = vld [vmem:[%s1787 + $0xae] sm:$0xff]
      %v1867 = vld [vmem:[%s1787 + $0xb6] sm:$0xff]
      %v1868 = vld [vmem:[%s1787 + $0xc6] sm:$0xff]
      %v1869 = vld [vmem:[%s1787 + $0xce] sm:$0xff]
      %v1870 = vld [vmem:[%s1787 + $0xde] sm:$0xff]
      %v1871 = vld [vmem:[%s1787 + $0xe6] sm:$0xff]
      %v1872 = vld [vmem:[%s1787 + $0xf6] sm:$0xff]
      %v1873 = vld [vmem:[%s1787 + $0xfe] sm:$0xff]
      %v1874 = vld [vmem:[%s1787 + $0x10e] sm:$0xff]
      %v1875 = vld [vmem:[%s1787 + $0x116] sm:$0xff]
      %v1876 = vld [vmem:[%s1787 + $0x126] sm:$0xff]
      %v1877 = vld [vmem:[%s1787 + $0x12e] sm:$0xff]
      %v1878 = vld [vmem:[%s1787 + $0x13e] sm:$0xff]
      %v1879 = vld [vmem:[%s1787 + $0x146] sm:$0xff]
      %v1880 = vld [vmem:[%s1787 + $0x156] sm:$0xff]
      %v1881 = vld [vmem:[%s1787 + $0x15e] sm:$0xff]
      %v1882 = vld [vmem:[%s1787 + $0x16e] sm:$0xff]
      %v1883 = vld [vmem:[%s1787 + $0x176] sm:$0xff]
      %v1884 = vld [vmem:[%s296 + $0x2] sm:$0xff]
      %v1885 = vld [vmem:[%s296 + $0xa] sm:$0xff]
      %v1886 = vld [vmem:[%s296 + $0x1a] sm:$0xff]
      %v1887 = vld [vmem:[%s296 + $0x22] sm:$0xff]
      %v1888 = vld [vmem:[%s296 + $0x32] sm:$0xff]
      %v1889 = vld [vmem:[%s296 + $0x3a] sm:$0xff]
      %v1890 = vld [vmem:[%s296 + $0x4a] sm:$0xff]
      %v1891 = vld [vmem:[%s296 + $0x52] sm:$0xff]
      %v1892 = vld [vmem:[%s296 + $0x62] sm:$0xff]
      %v1893 = vld [vmem:[%s296 + $0x6a] sm:$0xff]
      %v1894 = vld [vmem:[%s296 + $0x7a] sm:$0xff]
      %v1895 = vld [vmem:[%s296 + $0x82] sm:$0xff]
      %v1896 = vld [vmem:[%s296 + $0x92] sm:$0xff]
      %v1897 = vld [vmem:[%s296 + $0x9a] sm:$0xff]
      %v1898 = vld [vmem:[%s296 + $0xaa] sm:$0xff]
      %v1899 = vld [vmem:[%s296 + $0xb2] sm:$0xff]
      %v1900 = vld [vmem:[%s296 + $0xc2] sm:$0xff]
      %v1901 = vld [vmem:[%s296 + $0xca] sm:$0xff]
      %v1902 = vld [vmem:[%s296 + $0xda] sm:$0xff]
      %v1903 = vld [vmem:[%s296 + $0xe2] sm:$0xff]
      %v1904 = vld [vmem:[%s296 + $0xf2] sm:$0xff]
      %v1905 = vld [vmem:[%s296 + $0xfa] sm:$0xff]
      %v1906 = vld [vmem:[%s296 + $0x10a] sm:$0xff]
      %v1907 = vld [vmem:[%s296 + $0x112] sm:$0xff]
      %v1908 = vld [vmem:[%s296 + $0x122] sm:$0xff]
      %v1909 = vld [vmem:[%s296 + $0x12a] sm:$0xff]
      %v1910 = vld [vmem:[%s296 + $0x13a] sm:$0xff]
      %v1911 = vld [vmem:[%s296 + $0x142] sm:$0xff]
      %v1912 = vld [vmem:[%s296 + $0x152] sm:$0xff]
      %v1913 = vld [vmem:[%s296 + $0x15a] sm:$0xff]
      %v1914 = vld [vmem:[%s296 + $0x16a] sm:$0xff]
      %v1915 = vld [vmem:[%s296 + $0x172] sm:$0xff]
      %v1916 = vld [vmem:[%s296 + $0x6] sm:$0xff]
      %v1917 = vld [vmem:[%s296 + $0xe] sm:$0xff]
      %v1918 = vld [vmem:[%s296 + $0x1e] sm:$0xff]
      %v1919 = vld [vmem:[%s296 + $0x26] sm:$0xff]
      %v1920 = vld [vmem:[%s296 + $0x36] sm:$0xff]
      %v1921 = vld [vmem:[%s296 + $0x3e] sm:$0xff]
      %v1922 = vld [vmem:[%s296 + $0x4e] sm:$0xff]
      %v1923 = vld [vmem:[%s296 + $0x56] sm:$0xff]
      %v1924 = vld [vmem:[%s296 + $0x66] sm:$0xff]
      %v1925 = vld [vmem:[%s296 + $0x6e] sm:$0xff]
      %v1926 = vld [vmem:[%s296 + $0x7e] sm:$0xff]
      %v1927 = vld [vmem:[%s296 + $0x86] sm:$0xff]
      %v1928 = vld [vmem:[%s296 + $0x96] sm:$0xff]
      %v1929 = vld [vmem:[%s296 + $0x9e] sm:$0xff]
      %v1930 = vld [vmem:[%s296 + $0xae] sm:$0xff]
      %v1931 = vld [vmem:[%s296 + $0xb6] sm:$0xff]
      %v1932 = vld [vmem:[%s296 + $0xc6] sm:$0xff]
      %v1933 = vld [vmem:[%s296 + $0xce] sm:$0xff]
      %v1934 = vld [vmem:[%s296 + $0xde] sm:$0xff]
      %v1935 = vld [vmem:[%s296 + $0xe6] sm:$0xff]
      %v1936 = vld [vmem:[%s296 + $0xf6] sm:$0xff]
      %v1937 = vld [vmem:[%s296 + $0xfe] sm:$0xff]
      %v1938 = vld [vmem:[%s296 + $0x10e] sm:$0xff]
      %v1939 = vld [vmem:[%s296 + $0x116] sm:$0xff]
      %v1940 = vld [vmem:[%s296 + $0x126] sm:$0xff]
      %v1941 = vld [vmem:[%s296 + $0x12e] sm:$0xff]
      %v1942 = vld [vmem:[%s296 + $0x13e] sm:$0xff]
      %v1943 = vld [vmem:[%s296 + $0x146] sm:$0xff]
      %v1944 = vld [vmem:[%s296 + $0x156] sm:$0xff]
      %v1945 = vld [vmem:[%s296 + $0x15e] sm:$0xff]
      %v1946 = vld [vmem:[%s296 + $0x16e] sm:$0xff]
      %v1947 = vld [vmem:[%s296 + $0x176] sm:$0xff]
      %s1948 = sadd.s32 %s194, 6
      %s1949 = smul.u32 %s1948, 24
      %s1950 = scalar_lea.vmem %s183, %s1949
      %v1951 = vld [vmem:[%s1950 + $0x2] sm:$0xff]
      %v1952 = vld [vmem:[%s1950 + $0xa] sm:$0xff]
      %v1953 = vld [vmem:[%s1950 + $0x1a] sm:$0xff]
      %v1954 = vld [vmem:[%s1950 + $0x22] sm:$0xff]
      %v1955 = vld [vmem:[%s1950 + $0x32] sm:$0xff]
      %v1956 = vld [vmem:[%s1950 + $0x3a] sm:$0xff]
      %v1957 = vld [vmem:[%s1950 + $0x4a] sm:$0xff]
      %v1958 = vld [vmem:[%s1950 + $0x52] sm:$0xff]
      %v1959 = vld [vmem:[%s1950 + $0x62] sm:$0xff]
      %v1960 = vld [vmem:[%s1950 + $0x6a] sm:$0xff]
      %v1961 = vld [vmem:[%s1950 + $0x7a] sm:$0xff]
      %v1962 = vld [vmem:[%s1950 + $0x82] sm:$0xff]
      %v1963 = vld [vmem:[%s1950 + $0x92] sm:$0xff]
      %v1964 = vld [vmem:[%s1950 + $0x9a] sm:$0xff]
      %v1965 = vld [vmem:[%s1950 + $0xaa] sm:$0xff]
      %v1966 = vld [vmem:[%s1950 + $0xb2] sm:$0xff]
      %v1967 = vld [vmem:[%s1950 + $0xc2] sm:$0xff]
      %v1968 = vld [vmem:[%s1950 + $0xca] sm:$0xff]
      %v1969 = vld [vmem:[%s1950 + $0xda] sm:$0xff]
      %v1970 = vld [vmem:[%s1950 + $0xe2] sm:$0xff]
      %v1971 = vld [vmem:[%s1950 + $0xf2] sm:$0xff]
      %v1972 = vld [vmem:[%s1950 + $0xfa] sm:$0xff]
      %v1973 = vld [vmem:[%s1950 + $0x10a] sm:$0xff]
      %v1974 = vld [vmem:[%s1950 + $0x112] sm:$0xff]
      %v1975 = vld [vmem:[%s1950 + $0x122] sm:$0xff]
      %v1976 = vld [vmem:[%s1950 + $0x12a] sm:$0xff]
      %v1977 = vld [vmem:[%s1950 + $0x13a] sm:$0xff]
      %v1978 = vld [vmem:[%s1950 + $0x142] sm:$0xff]
      %v1979 = vld [vmem:[%s1950 + $0x152] sm:$0xff]
      %v1980 = vld [vmem:[%s1950 + $0x15a] sm:$0xff]
      %v1981 = vld [vmem:[%s1950 + $0x16a] sm:$0xff]
      %v1982 = vld [vmem:[%s1950 + $0x172] sm:$0xff]
      %v1983 = vld [vmem:[%s1950 + $0x4] sm:$0xff]
      %v1984 = vld [vmem:[%s1950 + $0xc] sm:$0xff]
      %v1985 = vld [vmem:[%s1950 + $0x1c] sm:$0xff]
      %v1986 = vld [vmem:[%s1950 + $0x24] sm:$0xff]
      %v1987 = vld [vmem:[%s1950 + $0x34] sm:$0xff]
      %v1988 = vld [vmem:[%s1950 + $0x3c] sm:$0xff]
      %v1989 = vld [vmem:[%s1950 + $0x4c] sm:$0xff]
      %v1990 = vld [vmem:[%s1950 + $0x54] sm:$0xff]
      %v1991 = vld [vmem:[%s1950 + $0x64] sm:$0xff]
      %v1992 = vld [vmem:[%s1950 + $0x6c] sm:$0xff]
      %v1993 = vld [vmem:[%s1950 + $0x7c] sm:$0xff]
      %v1994 = vld [vmem:[%s1950 + $0x84] sm:$0xff]
      %v1995 = vld [vmem:[%s1950 + $0x94] sm:$0xff]
      %v1996 = vld [vmem:[%s1950 + $0x9c] sm:$0xff]
      %v1997 = vld [vmem:[%s1950 + $0xac] sm:$0xff]
      %v1998 = vld [vmem:[%s1950 + $0xb4] sm:$0xff]
      %v1999 = vld [vmem:[%s1950 + $0xc4] sm:$0xff]
      %v2000 = vld [vmem:[%s1950 + $0xcc] sm:$0xff]
      %v2001 = vld [vmem:[%s1950 + $0xdc] sm:$0xff]
      %v2002 = vld [vmem:[%s1950 + $0xe4] sm:$0xff]
      %v2003 = vld [vmem:[%s1950 + $0xf4] sm:$0xff]
      %v2004 = vld [vmem:[%s1950 + $0xfc] sm:$0xff]
      %v2005 = vld [vmem:[%s1950 + $0x10c] sm:$0xff]
      %v2006 = vld [vmem:[%s1950 + $0x114] sm:$0xff]
      %v2007 = vld [vmem:[%s1950 + $0x124] sm:$0xff]
      %v2008 = vld [vmem:[%s1950 + $0x12c] sm:$0xff]
      %v2009 = vld [vmem:[%s1950 + $0x13c] sm:$0xff]
      %v2010 = vld [vmem:[%s1950 + $0x144] sm:$0xff]
      %v2011 = vld [vmem:[%s1950 + $0x154] sm:$0xff]
      %v2012 = vld [vmem:[%s1950 + $0x15c] sm:$0xff]
      %v2013 = vld [vmem:[%s1950 + $0x16c] sm:$0xff]
      %v2014 = vld [vmem:[%s1950 + $0x174] sm:$0xff]
      %v2015 = vld [vmem:[%s1950 + $0x6] sm:$0xff]
      %v2016 = vld [vmem:[%s1950 + $0xe] sm:$0xff]
      %v2017 = vld [vmem:[%s1950 + $0x1e] sm:$0xff]
      %v2018 = vld [vmem:[%s1950 + $0x26] sm:$0xff]
      %v2019 = vld [vmem:[%s1950 + $0x36] sm:$0xff]
      %v2020 = vld [vmem:[%s1950 + $0x3e] sm:$0xff]
      %v2021 = vld [vmem:[%s1950 + $0x4e] sm:$0xff]
      %v2022 = vld [vmem:[%s1950 + $0x56] sm:$0xff]
      %v2023 = vld [vmem:[%s1950 + $0x66] sm:$0xff]
      %v2024 = vld [vmem:[%s1950 + $0x6e] sm:$0xff]
      %v2025 = vld [vmem:[%s1950 + $0x7e] sm:$0xff]
      %v2026 = vld [vmem:[%s1950 + $0x86] sm:$0xff]
      %v2027 = vld [vmem:[%s1950 + $0x96] sm:$0xff]
      %v2028 = vld [vmem:[%s1950 + $0x9e] sm:$0xff]
      %v2029 = vld [vmem:[%s1950 + $0xae] sm:$0xff]
      %v2030 = vld [vmem:[%s1950 + $0xb6] sm:$0xff]
      %v2031 = vld [vmem:[%s1950 + $0xc6] sm:$0xff]
      %v2032 = vld [vmem:[%s1950 + $0xce] sm:$0xff]
      %v2033 = vld [vmem:[%s1950 + $0xde] sm:$0xff]
      %v2034 = vld [vmem:[%s1950 + $0xe6] sm:$0xff]
      %v2035 = vld [vmem:[%s1950 + $0xf6] sm:$0xff]
      %v2036 = vld [vmem:[%s1950 + $0xfe] sm:$0xff]
      %v2037 = vld [vmem:[%s1950 + $0x10e] sm:$0xff]
      %v2038 = vld [vmem:[%s1950 + $0x116] sm:$0xff]
      %v2039 = vld [vmem:[%s1950 + $0x126] sm:$0xff]
      %v2040 = vld [vmem:[%s1950 + $0x12e] sm:$0xff]
      %v2041 = vld [vmem:[%s1950 + $0x13e] sm:$0xff]
      %v2042 = vld [vmem:[%s1950 + $0x146] sm:$0xff]
      %v2043 = vld [vmem:[%s1950 + $0x156] sm:$0xff]
      %v2044 = vld [vmem:[%s1950 + $0x15e] sm:$0xff]
      %v2045 = vld [vmem:[%s1950 + $0x16e] sm:$0xff]
      %v2046 = vld [vmem:[%s1950 + $0x176] sm:$0xff]
      %2079 = vrot.lane.b32.xlu0 %v1820, 4
      %v2080 = vpop.permute.xlu0 %2079
      %2081 = vrot.lane.b32.xlu0 %v1821, 4
      %v2082 = vpop.permute.xlu0 %2081
      %2083 = vrot.lane.b32.xlu0 %v1822, 4
      %v2084 = vpop.permute.xlu0 %2083
      %2085 = vrot.lane.b32.xlu0 %v1823, 4
      %v2086 = vpop.permute.xlu0 %2085
      %2087 = vrot.lane.b32.xlu0 %v1824, 4
      %v2088 = vpop.permute.xlu0 %2087
      %2089 = vrot.lane.b32.xlu0 %v1825, 4
      %v2090 = vpop.permute.xlu0 %2089
      %2091 = vrot.lane.b32.xlu0 %v1826, 4
      %v2092 = vpop.permute.xlu0 %2091
      %2093 = vrot.lane.b32.xlu0 %v1827, 4
      %v2094 = vpop.permute.xlu0 %2093
      %2095 = vrot.lane.b32.xlu0 %v1828, 4
      %v2096 = vpop.permute.xlu0 %2095
      %2097 = vrot.lane.b32.xlu0 %v1829, 4
      %v2098 = vpop.permute.xlu0 %2097
      %2099 = vrot.lane.b32.xlu0 %v1830, 4
      %v2100 = vpop.permute.xlu0 %2099
      %2101 = vrot.lane.b32.xlu0 %v1831, 4
      %v2102 = vpop.permute.xlu0 %2101
      %2103 = vrot.lane.b32.xlu0 %v1832, 4
      %v2104 = vpop.permute.xlu0 %2103
      %2105 = vrot.lane.b32.xlu0 %v1833, 4
      %v2106 = vpop.permute.xlu0 %2105
      %2107 = vrot.lane.b32.xlu0 %v1834, 4
      %v2108 = vpop.permute.xlu0 %2107
      %2109 = vrot.lane.b32.xlu0 %v1835, 4
      %v2110 = vpop.permute.xlu0 %2109
      %2111 = vrot.lane.b32.xlu0 %v1836, 4
      %v2112 = vpop.permute.xlu0 %2111
      %2113 = vrot.lane.b32.xlu0 %v1837, 4
      %v2114 = vpop.permute.xlu0 %2113
      %2115 = vrot.lane.b32.xlu0 %v1838, 4
      %v2116 = vpop.permute.xlu0 %2115
      %2117 = vrot.lane.b32.xlu0 %v1839, 4
      %v2118 = vpop.permute.xlu0 %2117
      %2119 = vrot.lane.b32.xlu0 %v1840, 4
      %v2120 = vpop.permute.xlu0 %2119
      %2121 = vrot.lane.b32.xlu0 %v1841, 4
      %v2122 = vpop.permute.xlu0 %2121
      %2123 = vrot.lane.b32.xlu0 %v1842, 4
      %v2124 = vpop.permute.xlu0 %2123
      %2125 = vrot.lane.b32.xlu0 %v1843, 4
      %v2126 = vpop.permute.xlu0 %2125
      %2127 = vrot.lane.b32.xlu0 %v1844, 4
      %v2128 = vpop.permute.xlu0 %2127
      %2129 = vrot.lane.b32.xlu0 %v1845, 4
      %v2130 = vpop.permute.xlu0 %2129
      %2131 = vrot.lane.b32.xlu0 %v1846, 4
      %v2132 = vpop.permute.xlu0 %2131
      %2133 = vrot.lane.b32.xlu0 %v1847, 4
      %v2134 = vpop.permute.xlu0 %2133
      %2135 = vrot.lane.b32.xlu0 %v1848, 4
      %v2136 = vpop.permute.xlu0 %2135
      %2137 = vrot.lane.b32.xlu0 %v1849, 4
      %v2138 = vpop.permute.xlu0 %2137
      %2139 = vrot.lane.b32.xlu0 %v1850, 4
      %v2140 = vpop.permute.xlu0 %2139
      %2141 = vrot.lane.b32.xlu0 %v1851, 4
      %v2142 = vpop.permute.xlu0 %2141
      %2207 = vrot.lane.b32.xlu0 %v1852, 8
      %v2208 = vpop.permute.xlu0 %2207
      %2209 = vrot.lane.b32.xlu0 %v1853, 8
      %v2210 = vpop.permute.xlu0 %2209
      %2211 = vrot.lane.b32.xlu0 %v1854, 8
      %v2212 = vpop.permute.xlu0 %2211
      %2213 = vrot.lane.b32.xlu0 %v1855, 8
      %v2214 = vpop.permute.xlu0 %2213
      %2215 = vrot.lane.b32.xlu0 %v1856, 8
      %v2216 = vpop.permute.xlu0 %2215
      %2217 = vrot.lane.b32.xlu0 %v1857, 8
      %v2218 = vpop.permute.xlu0 %2217
      %2219 = vrot.lane.b32.xlu0 %v1858, 8
      %v2220 = vpop.permute.xlu0 %2219
      %2221 = vrot.lane.b32.xlu0 %v1859, 8
      %v2222 = vpop.permute.xlu0 %2221
      %2223 = vrot.lane.b32.xlu0 %v1860, 8
      %v2224 = vpop.permute.xlu0 %2223
      %2225 = vrot.lane.b32.xlu0 %v1861, 8
      %v2226 = vpop.permute.xlu0 %2225
      %2227 = vrot.lane.b32.xlu0 %v1862, 8
      %v2228 = vpop.permute.xlu0 %2227
      %2229 = vrot.lane.b32.xlu0 %v1863, 8
      %v2230 = vpop.permute.xlu0 %2229
      %2231 = vrot.lane.b32.xlu0 %v1864, 8
      %v2232 = vpop.permute.xlu0 %2231
      %2233 = vrot.lane.b32.xlu0 %v1865, 8
      %v2234 = vpop.permute.xlu0 %2233
      %2235 = vrot.lane.b32.xlu0 %v1866, 8
      %v2236 = vpop.permute.xlu0 %2235
      %2237 = vrot.lane.b32.xlu0 %v1867, 8
      %v2238 = vpop.permute.xlu0 %2237
      %2239 = vrot.lane.b32.xlu0 %v1868, 8
      %v2240 = vpop.permute.xlu0 %2239
      %2241 = vrot.lane.b32.xlu0 %v1869, 8
      %v2242 = vpop.permute.xlu0 %2241
      %2243 = vrot.lane.b32.xlu0 %v1870, 8
      %v2244 = vpop.permute.xlu0 %2243
      %2245 = vrot.lane.b32.xlu0 %v1871, 8
      %v2246 = vpop.permute.xlu0 %2245
      %2247 = vrot.lane.b32.xlu0 %v1872, 8
      %v2248 = vpop.permute.xlu0 %2247
      %2249 = vrot.lane.b32.xlu0 %v1873, 8
      %v2250 = vpop.permute.xlu0 %2249
      %2251 = vrot.lane.b32.xlu0 %v1874, 8
      %v2252 = vpop.permute.xlu0 %2251
      %2253 = vrot.lane.b32.xlu0 %v1875, 8
      %v2254 = vpop.permute.xlu0 %2253
      %2255 = vrot.lane.b32.xlu0 %v1876, 8
      %v2256 = vpop.permute.xlu0 %2255
      %2257 = vrot.lane.b32.xlu0 %v1877, 8
      %v2258 = vpop.permute.xlu0 %2257
      %2259 = vrot.lane.b32.xlu0 %v1878, 8
      %v2260 = vpop.permute.xlu0 %2259
      %2261 = vrot.lane.b32.xlu0 %v1879, 8
      %v2262 = vpop.permute.xlu0 %2261
      %2263 = vrot.lane.b32.xlu0 %v1880, 8
      %v2264 = vpop.permute.xlu0 %2263
      %2265 = vrot.lane.b32.xlu0 %v1881, 8
      %v2266 = vpop.permute.xlu0 %2265
      %2267 = vrot.lane.b32.xlu0 %v1882, 8
      %v2268 = vpop.permute.xlu0 %2267
      %2269 = vrot.lane.b32.xlu0 %v1883, 8
      %v2270 = vpop.permute.xlu0 %2269
      %2335 = vrot.lane.b32.xlu0 %v1884, 12
      %v2336 = vpop.permute.xlu0 %2335
      %2337 = vrot.lane.b32.xlu0 %v1885, 12
      %v2338 = vpop.permute.xlu0 %2337
      %2339 = vrot.lane.b32.xlu0 %v1886, 12
      %v2340 = vpop.permute.xlu0 %2339
      %2341 = vrot.lane.b32.xlu0 %v1887, 12
      %v2342 = vpop.permute.xlu0 %2341
      %2343 = vrot.lane.b32.xlu0 %v1888, 12
      %v2344 = vpop.permute.xlu0 %2343
      %2345 = vrot.lane.b32.xlu0 %v1889, 12
      %v2346 = vpop.permute.xlu0 %2345
      %2347 = vrot.lane.b32.xlu0 %v1890, 12
      %v2348 = vpop.permute.xlu0 %2347
      %2349 = vrot.lane.b32.xlu0 %v1891, 12
      %v2350 = vpop.permute.xlu0 %2349
      %2351 = vrot.lane.b32.xlu0 %v1892, 12
      %v2352 = vpop.permute.xlu0 %2351
      %2353 = vrot.lane.b32.xlu0 %v1893, 12
      %v2354 = vpop.permute.xlu0 %2353
      %2355 = vrot.lane.b32.xlu0 %v1894, 12
      %v2356 = vpop.permute.xlu0 %2355
      %2357 = vrot.lane.b32.xlu0 %v1895, 12
      %v2358 = vpop.permute.xlu0 %2357
      %2359 = vrot.lane.b32.xlu0 %v1896, 12
      %v2360 = vpop.permute.xlu0 %2359
      %2361 = vrot.lane.b32.xlu0 %v1897, 12
      %v2362 = vpop.permute.xlu0 %2361
      %2363 = vrot.lane.b32.xlu0 %v1898, 12
      %v2364 = vpop.permute.xlu0 %2363
      %2365 = vrot.lane.b32.xlu0 %v1899, 12
      %v2366 = vpop.permute.xlu0 %2365
      %2367 = vrot.lane.b32.xlu0 %v1900, 12
      %v2368 = vpop.permute.xlu0 %2367
      %2369 = vrot.lane.b32.xlu0 %v1901, 12
      %v2370 = vpop.permute.xlu0 %2369
      %2371 = vrot.lane.b32.xlu0 %v1902, 12
      %v2372 = vpop.permute.xlu0 %2371
      %2373 = vrot.lane.b32.xlu0 %v1903, 12
      %v2374 = vpop.permute.xlu0 %2373
      %2375 = vrot.lane.b32.xlu0 %v1904, 12
      %v2376 = vpop.permute.xlu0 %2375
      %2377 = vrot.lane.b32.xlu0 %v1905, 12
      %v2378 = vpop.permute.xlu0 %2377
      %2379 = vrot.lane.b32.xlu0 %v1906, 12
      %v2380 = vpop.permute.xlu0 %2379
      %2381 = vrot.lane.b32.xlu0 %v1907, 12
      %v2382 = vpop.permute.xlu0 %2381
      %2383 = vrot.lane.b32.xlu0 %v1908, 12
      %v2384 = vpop.permute.xlu0 %2383
      %2385 = vrot.lane.b32.xlu0 %v1909, 12
      %v2386 = vpop.permute.xlu0 %2385
      %2387 = vrot.lane.b32.xlu0 %v1910, 12
      %v2388 = vpop.permute.xlu0 %2387
      %2389 = vrot.lane.b32.xlu0 %v1911, 12
      %v2390 = vpop.permute.xlu0 %2389
      %2391 = vrot.lane.b32.xlu0 %v1912, 12
      %v2392 = vpop.permute.xlu0 %2391
      %2393 = vrot.lane.b32.xlu0 %v1913, 12
      %v2394 = vpop.permute.xlu0 %2393
      %2395 = vrot.lane.b32.xlu0 %v1914, 12
      %v2396 = vpop.permute.xlu0 %2395
      %2397 = vrot.lane.b32.xlu0 %v1915, 12
      %v2398 = vpop.permute.xlu0 %2397
      %2463 = vrot.lane.b32.xlu0 %v1916, 20
      %v2464 = vpop.permute.xlu0 %2463
      %2465 = vrot.lane.b32.xlu0 %v1917, 20
      %v2466 = vpop.permute.xlu0 %2465
      %2467 = vrot.lane.b32.xlu0 %v1918, 20
      %v2468 = vpop.permute.xlu0 %2467
      %2469 = vrot.lane.b32.xlu0 %v1919, 20
      %v2470 = vpop.permute.xlu0 %2469
      %2471 = vrot.lane.b32.xlu0 %v1920, 20
      %v2472 = vpop.permute.xlu0 %2471
      %2473 = vrot.lane.b32.xlu0 %v1921, 20
      %v2474 = vpop.permute.xlu0 %2473
      %2475 = vrot.lane.b32.xlu0 %v1922, 20
      %v2476 = vpop.permute.xlu0 %2475
      %2477 = vrot.lane.b32.xlu0 %v1923, 20
      %v2478 = vpop.permute.xlu0 %2477
      %2479 = vrot.lane.b32.xlu0 %v1924, 20
      %v2480 = vpop.permute.xlu0 %2479
      %2481 = vrot.lane.b32.xlu0 %v1925, 20
      %v2482 = vpop.permute.xlu0 %2481
      %2483 = vrot.lane.b32.xlu0 %v1926, 20
      %v2484 = vpop.permute.xlu0 %2483
      %2485 = vrot.lane.b32.xlu0 %v1927, 20
      %v2486 = vpop.permute.xlu0 %2485
      %2487 = vrot.lane.b32.xlu0 %v1928, 20
      %v2488 = vpop.permute.xlu0 %2487
      %2489 = vrot.lane.b32.xlu0 %v1929, 20
      %v2490 = vpop.permute.xlu0 %2489
      %2491 = vrot.lane.b32.xlu0 %v1930, 20
      %v2492 = vpop.permute.xlu0 %2491
      %2493 = vrot.lane.b32.xlu0 %v1931, 20
      %v2494 = vpop.permute.xlu0 %2493
      %2495 = vrot.lane.b32.xlu0 %v1932, 20
      %v2496 = vpop.permute.xlu0 %2495
      %2497 = vrot.lane.b32.xlu0 %v1933, 20
      %v2498 = vpop.permute.xlu0 %2497
      %2499 = vrot.lane.b32.xlu0 %v1934, 20
      %v2500 = vpop.permute.xlu0 %2499
      %2501 = vrot.lane.b32.xlu0 %v1935, 20
      %v2502 = vpop.permute.xlu0 %2501
      %2503 = vrot.lane.b32.xlu0 %v1936, 20
      %v2504 = vpop.permute.xlu0 %2503
      %2505 = vrot.lane.b32.xlu0 %v1937, 20
      %v2506 = vpop.permute.xlu0 %2505
      %2507 = vrot.lane.b32.xlu0 %v1938, 20
      %v2508 = vpop.permute.xlu0 %2507
      %2509 = vrot.lane.b32.xlu0 %v1939, 20
      %v2510 = vpop.permute.xlu0 %2509
      %2511 = vrot.lane.b32.xlu0 %v1940, 20
      %v2512 = vpop.permute.xlu0 %2511
      %2513 = vrot.lane.b32.xlu0 %v1941, 20
      %v2514 = vpop.permute.xlu0 %2513
      %2515 = vrot.lane.b32.xlu0 %v1942, 20
      %v2516 = vpop.permute.xlu0 %2515
      %2517 = vrot.lane.b32.xlu0 %v1943, 20
      %v2518 = vpop.permute.xlu0 %2517
      %2519 = vrot.lane.b32.xlu0 %v1944, 20
      %v2520 = vpop.permute.xlu0 %2519
      %2521 = vrot.lane.b32.xlu0 %v1945, 20
      %v2522 = vpop.permute.xlu0 %2521
      %2523 = vrot.lane.b32.xlu0 %v1946, 20
      %v2524 = vpop.permute.xlu0 %2523
      %2525 = vrot.lane.b32.xlu0 %v1947, 20
      %v2526 = vpop.permute.xlu0 %2525
      %2591 = vrot.lane.b32.xlu0 %v1951, 24
      %v2592 = vpop.permute.xlu0 %2591
      %2593 = vrot.lane.b32.xlu0 %v1952, 24
      %v2594 = vpop.permute.xlu0 %2593
      %2595 = vrot.lane.b32.xlu0 %v1953, 24
      %v2596 = vpop.permute.xlu0 %2595
      %2597 = vrot.lane.b32.xlu0 %v1954, 24
      %v2598 = vpop.permute.xlu0 %2597
      %2599 = vrot.lane.b32.xlu0 %v1955, 24
      %v2600 = vpop.permute.xlu0 %2599
      %2601 = vrot.lane.b32.xlu0 %v1956, 24
      %v2602 = vpop.permute.xlu0 %2601
      %2603 = vrot.lane.b32.xlu0 %v1957, 24
      %v2604 = vpop.permute.xlu0 %2603
      %2605 = vrot.lane.b32.xlu0 %v1958, 24
      %v2606 = vpop.permute.xlu0 %2605
      %2607 = vrot.lane.b32.xlu0 %v1959, 24
      %v2608 = vpop.permute.xlu0 %2607
      %2609 = vrot.lane.b32.xlu0 %v1960, 24
      %v2610 = vpop.permute.xlu0 %2609
      %2611 = vrot.lane.b32.xlu0 %v1961, 24
      %v2612 = vpop.permute.xlu0 %2611
      %2613 = vrot.lane.b32.xlu0 %v1962, 24
      %v2614 = vpop.permute.xlu0 %2613
      %2615 = vrot.lane.b32.xlu0 %v1963, 24
      %v2616 = vpop.permute.xlu0 %2615
      %2617 = vrot.lane.b32.xlu0 %v1964, 24
      %v2618 = vpop.permute.xlu0 %2617
      %2619 = vrot.lane.b32.xlu0 %v1965, 24
      %v2620 = vpop.permute.xlu0 %2619
      %2621 = vrot.lane.b32.xlu0 %v1966, 24
      %v2622 = vpop.permute.xlu0 %2621
      %2623 = vrot.lane.b32.xlu0 %v1967, 24
      %v2624 = vpop.permute.xlu0 %2623
      %2625 = vrot.lane.b32.xlu0 %v1968, 24
      %v2626 = vpop.permute.xlu0 %2625
      %2627 = vrot.lane.b32.xlu0 %v1969, 24
      %v2628 = vpop.permute.xlu0 %2627
      %2629 = vrot.lane.b32.xlu0 %v1970, 24
      %v2630 = vpop.permute.xlu0 %2629
      %2631 = vrot.lane.b32.xlu0 %v1971, 24
      %v2632 = vpop.permute.xlu0 %2631
      %2633 = vrot.lane.b32.xlu0 %v1972, 24
      %v2634 = vpop.permute.xlu0 %2633
      %2635 = vrot.lane.b32.xlu0 %v1973, 24
      %v2636 = vpop.permute.xlu0 %2635
      %2637 = vrot.lane.b32.xlu0 %v1974, 24
      %v2638 = vpop.permute.xlu0 %2637
      %2639 = vrot.lane.b32.xlu0 %v1975, 24
      %v2640 = vpop.permute.xlu0 %2639
      %2641 = vrot.lane.b32.xlu0 %v1976, 24
      %v2642 = vpop.permute.xlu0 %2641
      %2643 = vrot.lane.b32.xlu0 %v1977, 24
      %v2644 = vpop.permute.xlu0 %2643
      %2645 = vrot.lane.b32.xlu0 %v1978, 24
      %v2646 = vpop.permute.xlu0 %2645
      %2647 = vrot.lane.b32.xlu0 %v1979, 24
      %v2648 = vpop.permute.xlu0 %2647
      %2649 = vrot.lane.b32.xlu0 %v1980, 24
      %v2650 = vpop.permute.xlu0 %2649
      %2651 = vrot.lane.b32.xlu0 %v1981, 24
      %v2652 = vpop.permute.xlu0 %2651
      %2653 = vrot.lane.b32.xlu0 %v1982, 24
      %v2654 = vpop.permute.xlu0 %2653
      %2719 = vrot.lane.b32.xlu0 %v1983, 28
      %v2720 = vpop.permute.xlu0 %2719
      %2721 = vrot.lane.b32.xlu0 %v1984, 28
      %v2722 = vpop.permute.xlu0 %2721
      %2723 = vrot.lane.b32.xlu0 %v1985, 28
      %v2724 = vpop.permute.xlu0 %2723
      %2725 = vrot.lane.b32.xlu0 %v1986, 28
      %v2726 = vpop.permute.xlu0 %2725
      %2727 = vrot.lane.b32.xlu0 %v1987, 28
      %v2728 = vpop.permute.xlu0 %2727
      %2729 = vrot.lane.b32.xlu0 %v1988, 28
      %v2730 = vpop.permute.xlu0 %2729
      %2731 = vrot.lane.b32.xlu0 %v1989, 28
      %v2732 = vpop.permute.xlu0 %2731
      %2733 = vrot.lane.b32.xlu0 %v1990, 28
      %v2734 = vpop.permute.xlu0 %2733
      %2735 = vrot.lane.b32.xlu0 %v1991, 28
      %v2736 = vpop.permute.xlu0 %2735
      %2737 = vrot.lane.b32.xlu0 %v1992, 28
      %v2738 = vpop.permute.xlu0 %2737
      %2739 = vrot.lane.b32.xlu0 %v1993, 28
      %v2740 = vpop.permute.xlu0 %2739
      %2741 = vrot.lane.b32.xlu0 %v1994, 28
      %v2742 = vpop.permute.xlu0 %2741
      %2743 = vrot.lane.b32.xlu0 %v1995, 28
      %v2744 = vpop.permute.xlu0 %2743
      %2745 = vrot.lane.b32.xlu0 %v1996, 28
      %v2746 = vpop.permute.xlu0 %2745
      %2747 = vrot.lane.b32.xlu0 %v1997, 28
      %v2748 = vpop.permute.xlu0 %2747
      %2749 = vrot.lane.b32.xlu0 %v1998, 28
      %v2750 = vpop.permute.xlu0 %2749
      %2751 = vrot.lane.b32.xlu0 %v1999, 28
      %v2752 = vpop.permute.xlu0 %2751
      %2753 = vrot.lane.b32.xlu0 %v2000, 28
      %v2754 = vpop.permute.xlu0 %2753
      %2755 = vrot.lane.b32.xlu0 %v2001, 28
      %v2756 = vpop.permute.xlu0 %2755
      %2757 = vrot.lane.b32.xlu0 %v2002, 28
      %v2758 = vpop.permute.xlu0 %2757
      %2759 = vrot.lane.b32.xlu0 %v2003, 28
      %v2760 = vpop.permute.xlu0 %2759
      %2761 = vrot.lane.b32.xlu0 %v2004, 28
      %v2762 = vpop.permute.xlu0 %2761
      %2763 = vrot.lane.b32.xlu0 %v2005, 28
      %v2764 = vpop.permute.xlu0 %2763
      %2765 = vrot.lane.b32.xlu0 %v2006, 28
      %v2766 = vpop.permute.xlu0 %2765
      %2767 = vrot.lane.b32.xlu0 %v2007, 28
      %v2768 = vpop.permute.xlu0 %2767
      %2769 = vrot.lane.b32.xlu0 %v2008, 28
      %v2770 = vpop.permute.xlu0 %2769
      %2771 = vrot.lane.b32.xlu0 %v2009, 28
      %v2772 = vpop.permute.xlu0 %2771
      %2773 = vrot.lane.b32.xlu0 %v2010, 28
      %v2774 = vpop.permute.xlu0 %2773
      %2775 = vrot.lane.b32.xlu0 %v2011, 28
      %v2776 = vpop.permute.xlu0 %2775
      %2777 = vrot.lane.b32.xlu0 %v2012, 28
      %v2778 = vpop.permute.xlu0 %2777
      %2779 = vrot.lane.b32.xlu0 %v2013, 28
      %v2780 = vpop.permute.xlu0 %2779
      %2781 = vrot.lane.b32.xlu0 %v2014, 28
      %v2782 = vpop.permute.xlu0 %2781
      %2847 = vrot.lane.b32.xlu0 %v2015, 32
      %v2848 = vpop.permute.xlu0 %2847
      %2849 = vrot.lane.b32.xlu0 %v2016, 32
      %v2850 = vpop.permute.xlu0 %2849
      %2851 = vrot.lane.b32.xlu0 %v2017, 32
      %v2852 = vpop.permute.xlu0 %2851
      %2853 = vrot.lane.b32.xlu0 %v2018, 32
      %v2854 = vpop.permute.xlu0 %2853
      %2855 = vrot.lane.b32.xlu0 %v2019, 32
      %v2856 = vpop.permute.xlu0 %2855
      %2857 = vrot.lane.b32.xlu0 %v2020, 32
      %v2858 = vpop.permute.xlu0 %2857
      %2859 = vrot.lane.b32.xlu0 %v2021, 32
      %v2860 = vpop.permute.xlu0 %2859
      %2861 = vrot.lane.b32.xlu0 %v2022, 32
      %v2862 = vpop.permute.xlu0 %2861
      %2863 = vrot.lane.b32.xlu0 %v2023, 32
      %v2864 = vpop.permute.xlu0 %2863
      %2865 = vrot.lane.b32.xlu0 %v2024, 32
      %v2866 = vpop.permute.xlu0 %2865
      %2867 = vrot.lane.b32.xlu0 %v2025, 32
      %v2868 = vpop.permute.xlu0 %2867
      %2869 = vrot.lane.b32.xlu0 %v2026, 32
      %v2870 = vpop.permute.xlu0 %2869
      %2871 = vrot.lane.b32.xlu0 %v2027, 32
      %v2872 = vpop.permute.xlu0 %2871
      %2873 = vrot.lane.b32.xlu0 %v2028, 32
      %v2874 = vpop.permute.xlu0 %2873
      %2875 = vrot.lane.b32.xlu0 %v2029, 32
      %v2876 = vpop.permute.xlu0 %2875
      %2877 = vrot.lane.b32.xlu0 %v2030, 32
      %v2878 = vpop.permute.xlu0 %2877
      %2879 = vrot.lane.b32.xlu0 %v2031, 32
      %v2880 = vpop.permute.xlu0 %2879
      %2881 = vrot.lane.b32.xlu0 %v2032, 32
      %v2882 = vpop.permute.xlu0 %2881
      %2883 = vrot.lane.b32.xlu0 %v2033, 32
      %v2884 = vpop.permute.xlu0 %2883
      %2885 = vrot.lane.b32.xlu0 %v2034, 32
      %v2886 = vpop.permute.xlu0 %2885
      %2887 = vrot.lane.b32.xlu0 %v2035, 32
      %v2888 = vpop.permute.xlu0 %2887
      %2889 = vrot.lane.b32.xlu0 %v2036, 32
      %v2890 = vpop.permute.xlu0 %2889
      %2891 = vrot.lane.b32.xlu0 %v2037, 32
      %v2892 = vpop.permute.xlu0 %2891
      %2893 = vrot.lane.b32.xlu0 %v2038, 32
      %v2894 = vpop.permute.xlu0 %2893
      %2895 = vrot.lane.b32.xlu0 %v2039, 32
      %v2896 = vpop.permute.xlu0 %2895
      %2897 = vrot.lane.b32.xlu0 %v2040, 32
      %v2898 = vpop.permute.xlu0 %2897
      %2899 = vrot.lane.b32.xlu0 %v2041, 32
      %v2900 = vpop.permute.xlu0 %2899
      %2901 = vrot.lane.b32.xlu0 %v2042, 32
      %v2902 = vpop.permute.xlu0 %2901
      %2903 = vrot.lane.b32.xlu0 %v2043, 32
      %v2904 = vpop.permute.xlu0 %2903
      %2905 = vrot.lane.b32.xlu0 %v2044, 32
      %v2906 = vpop.permute.xlu0 %2905
      %2907 = vrot.lane.b32.xlu0 %v2045, 32
      %v2908 = vpop.permute.xlu0 %2907
      %2909 = vrot.lane.b32.xlu0 %v2046, 32
      %v2910 = vpop.permute.xlu0 %2909
      %v2943 = vsel %vm1516, %v1788, %v2080
      %v2944 = vsel %vm1516, %v1789, %v2082
      %v2945 = vsel %vm1516, %v1790, %v2084
      %v2946 = vsel %vm1516, %v1791, %v2086
      %v2947 = vsel %vm1516, %v1792, %v2088
      %v2948 = vsel %vm1516, %v1793, %v2090
      %v2949 = vsel %vm1516, %v1794, %v2092
      %v2950 = vsel %vm1516, %v1795, %v2094
      %v2951 = vsel %vm1516, %v1796, %v2096
      %v2952 = vsel %vm1516, %v1797, %v2098
      %v2953 = vsel %vm1516, %v1798, %v2100
      %v2954 = vsel %vm1516, %v1799, %v2102
      %v2955 = vsel %vm1516, %v1800, %v2104
      %v2956 = vsel %vm1516, %v1801, %v2106
      %v2957 = vsel %vm1516, %v1802, %v2108
      %v2958 = vsel %vm1516, %v1803, %v2110
      %v2959 = vsel %vm1516, %v1804, %v2112
      %v2960 = vsel %vm1516, %v1805, %v2114
      %v2961 = vsel %vm1516, %v1806, %v2116
      %v2962 = vsel %vm1516, %v1807, %v2118
      %v2963 = vsel %vm1516, %v1808, %v2120
      %v2964 = vsel %vm1516, %v1809, %v2122
      %v2965 = vsel %vm1516, %v1810, %v2124
      %v2966 = vsel %vm1516, %v1811, %v2126
      %v2967 = vsel %vm1516, %v1812, %v2128
      %v2968 = vsel %vm1516, %v1813, %v2130
      %v2969 = vsel %vm1516, %v1814, %v2132
      %v2970 = vsel %vm1516, %v1815, %v2134
      %v2971 = vsel %vm1516, %v1816, %v2136
      %v2972 = vsel %vm1516, %v1817, %v2138
      %v2973 = vsel %vm1516, %v1818, %v2140
      %v2974 = vsel %vm1516, %v1819, %v2142
      %v2975 = vsel %vm1549, %v2943, %v2208
      %v2976 = vsel %vm1549, %v2944, %v2210
      %v2977 = vsel %vm1549, %v2945, %v2212
      %v2978 = vsel %vm1549, %v2946, %v2214
      %v2979 = vsel %vm1549, %v2947, %v2216
      %v2980 = vsel %vm1549, %v2948, %v2218
      %v2981 = vsel %vm1549, %v2949, %v2220
      %v2982 = vsel %vm1549, %v2950, %v2222
      %v2983 = vsel %vm1549, %v2951, %v2224
      %v2984 = vsel %vm1549, %v2952, %v2226
      %v2985 = vsel %vm1549, %v2953, %v2228
      %v2986 = vsel %vm1549, %v2954, %v2230
      %v2987 = vsel %vm1549, %v2955, %v2232
      %v2988 = vsel %vm1549, %v2956, %v2234
      %v2989 = vsel %vm1549, %v2957, %v2236
      %v2990 = vsel %vm1549, %v2958, %v2238
      %v2991 = vsel %vm1549, %v2959, %v2240
      %v2992 = vsel %vm1549, %v2960, %v2242
      %v2993 = vsel %vm1549, %v2961, %v2244
      %v2994 = vsel %vm1549, %v2962, %v2246
      %v2995 = vsel %vm1549, %v2963, %v2248
      %v2996 = vsel %vm1549, %v2964, %v2250
      %v2997 = vsel %vm1549, %v2965, %v2252
      %v2998 = vsel %vm1549, %v2966, %v2254
      %v2999 = vsel %vm1549, %v2967, %v2256
      %v3000 = vsel %vm1549, %v2968, %v2258
      %v3001 = vsel %vm1549, %v2969, %v2260
      %v3002 = vsel %vm1549, %v2970, %v2262
      %v3003 = vsel %vm1549, %v2971, %v2264
      %v3004 = vsel %vm1549, %v2972, %v2266
      %v3005 = vsel %vm1549, %v2973, %v2268
      %v3006 = vsel %vm1549, %v2974, %v2270
      %v3007 = vsel %vm1582, %v2975, %v2336
      %v3008 = vsel %vm1582, %v2976, %v2338
      %v3009 = vsel %vm1582, %v2977, %v2340
      %v3010 = vsel %vm1582, %v2978, %v2342
      %v3011 = vsel %vm1582, %v2979, %v2344
      %v3012 = vsel %vm1582, %v2980, %v2346
      %v3013 = vsel %vm1582, %v2981, %v2348
      %v3014 = vsel %vm1582, %v2982, %v2350
      %v3015 = vsel %vm1582, %v2983, %v2352
      %v3016 = vsel %vm1582, %v2984, %v2354
      %v3017 = vsel %vm1582, %v2985, %v2356
      %v3018 = vsel %vm1582, %v2986, %v2358
      %v3019 = vsel %vm1582, %v2987, %v2360
      %v3020 = vsel %vm1582, %v2988, %v2362
      %v3021 = vsel %vm1582, %v2989, %v2364
      %v3022 = vsel %vm1582, %v2990, %v2366
      %v3023 = vsel %vm1582, %v2991, %v2368
      %v3024 = vsel %vm1582, %v2992, %v2370
      %v3025 = vsel %vm1582, %v2993, %v2372
      %v3026 = vsel %vm1582, %v2994, %v2374
      %v3027 = vsel %vm1582, %v2995, %v2376
      %v3028 = vsel %vm1582, %v2996, %v2378
      %v3029 = vsel %vm1582, %v2997, %v2380
      %v3030 = vsel %vm1582, %v2998, %v2382
      %v3031 = vsel %vm1582, %v2999, %v2384
      %v3032 = vsel %vm1582, %v3000, %v2386
      %v3033 = vsel %vm1582, %v3001, %v2388
      %v3034 = vsel %vm1582, %v3002, %v2390
      %v3035 = vsel %vm1582, %v3003, %v2392
      %v3036 = vsel %vm1582, %v3004, %v2394
      %v3037 = vsel %vm1582, %v3005, %v2396
      %v3038 = vsel %vm1582, %v3006, %v2398
      %v3039 = vsel %vm1615, %v3007, %v909
      %v3040 = vsel %vm1615, %v3008, %v911
      %v3041 = vsel %vm1615, %v3009, %v913
      %v3042 = vsel %vm1615, %v3010, %v915
      %v3043 = vsel %vm1615, %v3011, %v917
      %v3044 = vsel %vm1615, %v3012, %v919
      %v3045 = vsel %vm1615, %v3013, %v921
      %v3046 = vsel %vm1615, %v3014, %v923
      %v3047 = vsel %vm1615, %v3015, %v925
      %v3048 = vsel %vm1615, %v3016, %v927
      %v3049 = vsel %vm1615, %v3017, %v929
      %v3050 = vsel %vm1615, %v3018, %v931
      %v3051 = vsel %vm1615, %v3019, %v933
      %v3052 = vsel %vm1615, %v3020, %v935
      %v3053 = vsel %vm1615, %v3021, %v937
      %v3054 = vsel %vm1615, %v3022, %v939
      %v3055 = vsel %vm1615, %v3023, %v941
      %v3056 = vsel %vm1615, %v3024, %v943
      %v3057 = vsel %vm1615, %v3025, %v945
      %v3058 = vsel %vm1615, %v3026, %v947
      %v3059 = vsel %vm1615, %v3027, %v949
      %v3060 = vsel %vm1615, %v3028, %v951
      %v3061 = vsel %vm1615, %v3029, %v953
      %v3062 = vsel %vm1615, %v3030, %v955
      %v3063 = vsel %vm1615, %v3031, %v957
      %v3064 = vsel %vm1615, %v3032, %v959
      %v3065 = vsel %vm1615, %v3033, %v961
      %v3066 = vsel %vm1615, %v3034, %v963
      %v3067 = vsel %vm1615, %v3035, %v965
      %v3068 = vsel %vm1615, %v3036, %v967
      %v3069 = vsel %vm1615, %v3037, %v969
      %v3070 = vsel %vm1615, %v3038, %v971
      %v3071 = vsel %vm1648, %v3039, %v2464
      %v3072 = vsel %vm1648, %v3040, %v2466
      %v3073 = vsel %vm1648, %v3041, %v2468
      %v3074 = vsel %vm1648, %v3042, %v2470
      %v3075 = vsel %vm1648, %v3043, %v2472
      %v3076 = vsel %vm1648, %v3044, %v2474
      %v3077 = vsel %vm1648, %v3045, %v2476
      %v3078 = vsel %vm1648, %v3046, %v2478
      %v3079 = vsel %vm1648, %v3047, %v2480
      %v3080 = vsel %vm1648, %v3048, %v2482
      %v3081 = vsel %vm1648, %v3049, %v2484
      %v3082 = vsel %vm1648, %v3050, %v2486
      %v3083 = vsel %vm1648, %v3051, %v2488
      %v3084 = vsel %vm1648, %v3052, %v2490
      %v3085 = vsel %vm1648, %v3053, %v2492
      %v3086 = vsel %vm1648, %v3054, %v2494
      %v3087 = vsel %vm1648, %v3055, %v2496
      %v3088 = vsel %vm1648, %v3056, %v2498
      %v3089 = vsel %vm1648, %v3057, %v2500
      %v3090 = vsel %vm1648, %v3058, %v2502
      %v3091 = vsel %vm1648, %v3059, %v2504
      %v3092 = vsel %vm1648, %v3060, %v2506
      %v3093 = vsel %vm1648, %v3061, %v2508
      %v3094 = vsel %vm1648, %v3062, %v2510
      %v3095 = vsel %vm1648, %v3063, %v2512
      %v3096 = vsel %vm1648, %v3064, %v2514
      %v3097 = vsel %vm1648, %v3065, %v2516
      %v3098 = vsel %vm1648, %v3066, %v2518
      %v3099 = vsel %vm1648, %v3067, %v2520
      %v3100 = vsel %vm1648, %v3068, %v2522
      %v3101 = vsel %vm1648, %v3069, %v2524
      %v3102 = vsel %vm1648, %v3070, %v2526
      %v3103 = vsel %vm1681, %v3071, %v2592
      %v3104 = vsel %vm1681, %v3072, %v2594
      %v3105 = vsel %vm1681, %v3073, %v2596
      %v3106 = vsel %vm1681, %v3074, %v2598
      %v3107 = vsel %vm1681, %v3075, %v2600
      %v3108 = vsel %vm1681, %v3076, %v2602
      %v3109 = vsel %vm1681, %v3077, %v2604
      %v3110 = vsel %vm1681, %v3078, %v2606
      %v3111 = vsel %vm1681, %v3079, %v2608
      %v3112 = vsel %vm1681, %v3080, %v2610
      %v3113 = vsel %vm1681, %v3081, %v2612
      %v3114 = vsel %vm1681, %v3082, %v2614
      %v3115 = vsel %vm1681, %v3083, %v2616
      %v3116 = vsel %vm1681, %v3084, %v2618
      %v3117 = vsel %vm1681, %v3085, %v2620
      %v3118 = vsel %vm1681, %v3086, %v2622
      %v3119 = vsel %vm1681, %v3087, %v2624
      %v3120 = vsel %vm1681, %v3088, %v2626
      %v3121 = vsel %vm1681, %v3089, %v2628
      %v3122 = vsel %vm1681, %v3090, %v2630
      %v3123 = vsel %vm1681, %v3091, %v2632
      %v3124 = vsel %vm1681, %v3092, %v2634
      %v3125 = vsel %vm1681, %v3093, %v2636
      %v3126 = vsel %vm1681, %v3094, %v2638
      %v3127 = vsel %vm1681, %v3095, %v2640
      %v3128 = vsel %vm1681, %v3096, %v2642
      %v3129 = vsel %vm1681, %v3097, %v2644
      %v3130 = vsel %vm1681, %v3098, %v2646
      %v3131 = vsel %vm1681, %v3099, %v2648
      %v3132 = vsel %vm1681, %v3100, %v2650
      %v3133 = vsel %vm1681, %v3101, %v2652
      %v3134 = vsel %vm1681, %v3102, %v2654
      %v3135 = vsel %vm1714, %v3103, %v2720
      %v3136 = vsel %vm1714, %v3104, %v2722
      %v3137 = vsel %vm1714, %v3105, %v2724
      %v3138 = vsel %vm1714, %v3106, %v2726
      %v3139 = vsel %vm1714, %v3107, %v2728
      %v3140 = vsel %vm1714, %v3108, %v2730
      %v3141 = vsel %vm1714, %v3109, %v2732
      %v3142 = vsel %vm1714, %v3110, %v2734
      %v3143 = vsel %vm1714, %v3111, %v2736
      %v3144 = vsel %vm1714, %v3112, %v2738
      %v3145 = vsel %vm1714, %v3113, %v2740
      %v3146 = vsel %vm1714, %v3114, %v2742
      %v3147 = vsel %vm1714, %v3115, %v2744
      %v3148 = vsel %vm1714, %v3116, %v2746
      %v3149 = vsel %vm1714, %v3117, %v2748
      %v3150 = vsel %vm1714, %v3118, %v2750
      %v3151 = vsel %vm1714, %v3119, %v2752
      %v3152 = vsel %vm1714, %v3120, %v2754
      %v3153 = vsel %vm1714, %v3121, %v2756
      %v3154 = vsel %vm1714, %v3122, %v2758
      %v3155 = vsel %vm1714, %v3123, %v2760
      %v3156 = vsel %vm1714, %v3124, %v2762
      %v3157 = vsel %vm1714, %v3125, %v2764
      %v3158 = vsel %vm1714, %v3126, %v2766
      %v3159 = vsel %vm1714, %v3127, %v2768
      %v3160 = vsel %vm1714, %v3128, %v2770
      %v3161 = vsel %vm1714, %v3129, %v2772
      %v3162 = vsel %vm1714, %v3130, %v2774
      %v3163 = vsel %vm1714, %v3131, %v2776
      %v3164 = vsel %vm1714, %v3132, %v2778
      %v3165 = vsel %vm1714, %v3133, %v2780
      %v3166 = vsel %vm1714, %v3134, %v2782
      %v3167 = vsel %vm1747, %v3135, %v2848
      %v3168 = vsel %vm1747, %v3136, %v2850
      %v3169 = vsel %vm1747, %v3137, %v2852
      %v3170 = vsel %vm1747, %v3138, %v2854
      %v3171 = vsel %vm1747, %v3139, %v2856
      %v3172 = vsel %vm1747, %v3140, %v2858
      %v3173 = vsel %vm1747, %v3141, %v2860
      %v3174 = vsel %vm1747, %v3142, %v2862
      %v3175 = vsel %vm1747, %v3143, %v2864
      %v3176 = vsel %vm1747, %v3144, %v2866
      %v3177 = vsel %vm1747, %v3145, %v2868
      %v3178 = vsel %vm1747, %v3146, %v2870
      %v3179 = vsel %vm1747, %v3147, %v2872
      %v3180 = vsel %vm1747, %v3148, %v2874
      %v3181 = vsel %vm1747, %v3149, %v2876
      %v3182 = vsel %vm1747, %v3150, %v2878
      %v3183 = vsel %vm1747, %v3151, %v2880
      %v3184 = vsel %vm1747, %v3152, %v2882
      %v3185 = vsel %vm1747, %v3153, %v2884
      %v3186 = vsel %vm1747, %v3154, %v2886
      %v3187 = vsel %vm1747, %v3155, %v2888
      %v3188 = vsel %vm1747, %v3156, %v2890
      %v3189 = vsel %vm1747, %v3157, %v2892
      %v3190 = vsel %vm1747, %v3158, %v2894
      %v3191 = vsel %vm1747, %v3159, %v2896
      %v3192 = vsel %vm1747, %v3160, %v2898
      %v3193 = vsel %vm1747, %v3161, %v2900
      %v3194 = vsel %vm1747, %v3162, %v2902
      %v3195 = vsel %vm1747, %v3163, %v2904
      %v3196 = vsel %vm1747, %v3164, %v2906
      %v3197 = vsel %vm1747, %v3165, %v2908
      %v3198 = vsel %vm1747, %v3166, %v2910
      %v3199 = vld [vmem:[%s1 + $0x24] sm:$0xff]
      %v3200 = vld [vmem:[%s1 + $0x2c] sm:$0xff]
      %v3201 = vld [vmem:[%s1 + $0x34] sm:$0xff]
      %v3202 = vld [vmem:[%s1 + $0x3c] sm:$0xff]
      %v3203 = vld [vmem:[%s1 + $0x44] sm:$0xf]
      %vm3204 = vcmask 293888
      %v3206 = vsel %vm3204, %v3167, 0
      %v3209 = vsel %vm3204, %v3168, 0
      %v3212 = vsel %vm3204, %v3169, 0
      %v3215 = vsel %vm3204, %v3170, 0
      %v3218 = vsel %vm3204, %v3171, 0
      %v3221 = vsel %vm3204, %v3172, 0
      %v3224 = vsel %vm3204, %v3173, 0
      %v3227 = vsel %vm3204, %v3174, 0
      %v3230 = vsel %vm3204, %v3175, 0
      %v3233 = vsel %vm3204, %v3176, 0
      %v3236 = vsel %vm3204, %v3177, 0
      %v3239 = vsel %vm3204, %v3178, 0
      %v3242 = vsel %vm3204, %v3179, 0
      %v3245 = vsel %vm3204, %v3180, 0
      %v3248 = vsel %vm3204, %v3181, 0
      %v3251 = vsel %vm3204, %v3182, 0
      %v3254 = vsel %vm3204, %v3183, 0
      %v3257 = vsel %vm3204, %v3184, 0
      %v3260 = vsel %vm3204, %v3185, 0
      %v3263 = vsel %vm3204, %v3186, 0
      %v3266 = vsel %vm3204, %v3187, 0
      %v3269 = vsel %vm3204, %v3188, 0
      %v3272 = vsel %vm3204, %v3189, 0
      %v3275 = vsel %vm3204, %v3190, 0
      %v3278 = vsel %vm3204, %v3191, 0
      %v3281 = vsel %vm3204, %v3192, 0
      %v3284 = vsel %vm3204, %v3193, 0
      %v3287 = vsel %vm3204, %v3194, 0
      %v3290 = vsel %vm3204, %v3195, 0
      %v3293 = vsel %vm3204, %v3196, 0
      %v3296 = vsel %vm3204, %v3197, 0
      %v3299 = vsel %vm3204, %v3198, 0
      %vm3301 = vcmask 1043456
      %v3303 = vsel %vm3301, %v3203, 0
      %3305 = vmatprep.subr.mxu0 0.0
      %3306 = vmatpush1.msra.mxu0 0.0
      %3307 = vmatprep.subr.mxu0 0.0
      %3308 = vmatpush1.msra.mxu0 0.0
      %3309 = vmatprep.subr.mxu0 0.0
      %3310 = vmatpush1.msra.mxu0 0.0
      %3311 = vmatprep.subr.mxu0 0.0
      %3312 = vmatpush1.msra.mxu0 0.0
      %3313 = vmatprep.subr.mxu0 0.0
      %3314 = vmatpush1.msra.mxu0 0.0
      %3315 = vmatprep.subr.mxu0 0.0
      %3316 = vmatpush1.msra.mxu0 0.0
      %3317 = vmatprep.subr.mxu0 0.0
      %3318 = vmatpush1.msra.mxu0 0.0
      %3319 = vmatprep.subr.mxu0 0.0
      %3320 = vmatpush1.msra.mxu0 0.0
      %3321 = vmatprep.subr.mxu0 0.0
      %3322 = vmatpush1.msra.mxu0 0.0
      %3323 = vmatprep.subr.mxu0 0.0
      %3324 = vmatpush1.msra.mxu0 0.0
      %3325 = vmatprep.subr.mxu0 0.0
      %3326 = vmatpush1.msra.mxu0 0.0
      %3327 = vmatprep.subr.mxu0 0.0
      %3328 = vmatpush1.msra.mxu0 %v3303
      %3329 = vmatprep.subr.mxu0 0.0
      %3330 = vmatpush1.msra.mxu0 %v3202
      %3331 = vmatprep.subr.mxu0 0.0
      %3332 = vmatpush1.msra.mxu0 %v3201
      %3333 = vmatprep.subr.mxu0 0.0
      %3334 = vmatpush1.msra.mxu0 %v3200
      %3335 = vmatprep.subr.mxu0 0.0
      %3336 = vmatpush1.msra.mxu0 %v3199
      %3337 = vmatprep.subr.mxu0 0.0
      %3338 = vmatpush2.msra.mxu0 0.0
      %3339 = vmatprep.subr.mxu0 0.0
      %3340 = vmatpush2.msra.mxu0 0.0
      %3341 = vmatprep.subr.mxu0 0.0
      %3342 = vmatpush2.msra.mxu0 0.0
      %3343 = vmatprep.subr.mxu0 0.0
      %3344 = vmatpush2.msra.mxu0 0.0
      %3345 = vmatprep.subr.mxu0 0.0
      %3346 = vmatpush2.msra.mxu0 0.0
      %3347 = vmatprep.subr.mxu0 0.0
      %3348 = vmatpush2.msra.mxu0 0.0
      %3349 = vmatprep.subr.mxu0 0.0
      %3350 = vmatpush2.msra.mxu0 0.0
      %3351 = vmatprep.subr.mxu0 0.0
      %3352 = vmatpush2.msra.mxu0 0.0
      %3353 = vmatprep.subr.mxu0 0.0
      %3354 = vmatpush2.msra.mxu0 0.0
      %3355 = vmatprep.subr.mxu0 0.0
      %3356 = vmatpush2.msra.mxu0 0.0
      %3357 = vmatprep.subr.mxu0 0.0
      %3358 = vmatpush2.msra.mxu0 0.0
      %3359 = vmatprep.subr.mxu0 0.0
      %3360 = vmatpush2.msra.mxu0 0.0
      %3361 = vmatprep.subr.mxu0 0.0
      %3362 = vmatpush2.msra.mxu0 0.0
      %3363 = vmatprep.subr.mxu0 0.0
      %3364 = vmatpush2.msra.mxu0 0.0
      %3365 = vmatprep.subr.mxu0 0.0
      %3366 = vmatpush2.msra.mxu0 0.0
      %3367 = vmatprep.subr.mxu0 0.0
      %3368 = vmatpush2.msra.mxu0 0.0
      %3369 = vmatprep.mubr.f32.mxu0 0.0
      %3370 = vmatmul.mubr.f32.gmra.mxu0 %v3206
      %v3371 = vpop.f32.mrf.mxu0
      %v3372 = vadd.f32 0.0, %v3371
      %v3373 = vpop.f32.mrf.mxu0
      %3374 = vmatprep.mubr.f32.mxu0 0.0
      %3375 = vmatmul.mubr.f32.gmra.mxu0 %v3209
      %v3376 = vpop.f32.mrf.mxu0
      %v3377 = vadd.f32 0.0, %v3376
      %v3378 = vpop.f32.mrf.mxu0
      %3379 = vmatprep.mubr.f32.mxu0 0.0
      %3380 = vmatmul.mubr.f32.gmra.mxu0 %v3212
      %v3381 = vpop.f32.mrf.mxu0
      %v3382 = vadd.f32 0.0, %v3381
      %v3383 = vpop.f32.mrf.mxu0
      %3384 = vmatprep.mubr.f32.mxu0 0.0
      %3385 = vmatmul.mubr.f32.gmra.mxu0 %v3215
      %v3386 = vpop.f32.mrf.mxu0
      %v3387 = vadd.f32 0.0, %v3386
      %v3388 = vpop.f32.mrf.mxu0
      %3389 = vmatprep.mubr.f32.mxu0 0.0
      %3390 = vmatmul.mubr.f32.gmra.mxu0 %v3218
      %v3391 = vpop.f32.mrf.mxu0
      %v3392 = vadd.f32 0.0, %v3391
      %v3393 = vpop.f32.mrf.mxu0
      %3394 = vmatprep.mubr.f32.mxu0 0.0
      %3395 = vmatmul.mubr.f32.gmra.mxu0 %v3221
      %v3396 = vpop.f32.mrf.mxu0
      %v3397 = vadd.f32 0.0, %v3396
      %v3398 = vpop.f32.mrf.mxu0
      %3399 = vmatprep.mubr.f32.mxu0 0.0
      %3400 = vmatmul.mubr.f32.gmra.mxu0 %v3224
      %v3401 = vpop.f32.mrf.mxu0
      %v3402 = vadd.f32 0.0, %v3401
      %v3403 = vpop.f32.mrf.mxu0
      %3404 = vmatprep.mubr.f32.mxu0 0.0
      %3405 = vmatmul.mubr.f32.gmra.mxu0 %v3227
      %v3406 = vpop.f32.mrf.mxu0
      %v3407 = vadd.f32 0.0, %v3406
      %v3408 = vpop.f32.mrf.mxu0
      %3409 = vmatprep.mubr.f32.mxu0 0.0
      %3410 = vmatmul.mubr.f32.gmra.mxu0 %v3230
      %v3411 = vpop.f32.mrf.mxu0
      %v3412 = vadd.f32 0.0, %v3411
      %v3413 = vpop.f32.mrf.mxu0
      %3414 = vmatprep.mubr.f32.mxu0 0.0
      %3415 = vmatmul.mubr.f32.gmra.mxu0 %v3233
      %v3416 = vpop.f32.mrf.mxu0
      %v3417 = vadd.f32 0.0, %v3416
      %v3418 = vpop.f32.mrf.mxu0
      %3419 = vmatprep.mubr.f32.mxu0 0.0
      %3420 = vmatmul.mubr.f32.gmra.mxu0 %v3236
      %v3421 = vpop.f32.mrf.mxu0
      %v3422 = vadd.f32 0.0, %v3421
      %v3423 = vpop.f32.mrf.mxu0
      %3424 = vmatprep.mubr.f32.mxu0 0.0
      %3425 = vmatmul.mubr.f32.gmra.mxu0 %v3239
      %v3426 = vpop.f32.mrf.mxu0
      %v3427 = vadd.f32 0.0, %v3426
      %v3428 = vpop.f32.mrf.mxu0
      %3429 = vmatprep.mubr.f32.mxu0 0.0
      %3430 = vmatmul.mubr.f32.gmra.mxu0 %v3242
      %v3431 = vpop.f32.mrf.mxu0
      %v3432 = vadd.f32 0.0, %v3431
      %v3433 = vpop.f32.mrf.mxu0
      %3434 = vmatprep.mubr.f32.mxu0 0.0
      %3435 = vmatmul.mubr.f32.gmra.mxu0 %v3245
      %v3436 = vpop.f32.mrf.mxu0
      %v3437 = vadd.f32 0.0, %v3436
      %v3438 = vpop.f32.mrf.mxu0
      %3439 = vmatprep.mubr.f32.mxu0 0.0
      %3440 = vmatmul.mubr.f32.gmra.mxu0 %v3248
      %v3441 = vpop.f32.mrf.mxu0
      %v3442 = vadd.f32 0.0, %v3441
      %v3443 = vpop.f32.mrf.mxu0
      %3444 = vmatprep.mubr.f32.mxu0 0.0
      %3445 = vmatmul.mubr.f32.gmra.mxu0 %v3251
      %v3446 = vpop.f32.mrf.mxu0
      %v3447 = vadd.f32 0.0, %v3446
      %v3448 = vpop.f32.mrf.mxu0
      %3449 = vmatprep.mubr.f32.mxu0 0.0
      %3450 = vmatmul.mubr.f32.gmra.mxu0 %v3254
      %v3451 = vpop.f32.mrf.mxu0
      %v3452 = vadd.f32 0.0, %v3451
      %v3453 = vpop.f32.mrf.mxu0
      %3454 = vmatprep.mubr.f32.mxu0 0.0
      %3455 = vmatmul.mubr.f32.gmra.mxu0 %v3257
      %v3456 = vpop.f32.mrf.mxu0
      %v3457 = vadd.f32 0.0, %v3456
      %v3458 = vpop.f32.mrf.mxu0
      %3459 = vmatprep.mubr.f32.mxu0 0.0
      %3460 = vmatmul.mubr.f32.gmra.mxu0 %v3260
      %v3461 = vpop.f32.mrf.mxu0
      %v3462 = vadd.f32 0.0, %v3461
      %v3463 = vpop.f32.mrf.mxu0
      %3464 = vmatprep.mubr.f32.mxu0 0.0
      %3465 = vmatmul.mubr.f32.gmra.mxu0 %v3263
      %v3466 = vpop.f32.mrf.mxu0
      %v3467 = vadd.f32 0.0, %v3466
      %v3468 = vpop.f32.mrf.mxu0
      %3469 = vmatprep.mubr.f32.mxu0 0.0
      %3470 = vmatmul.mubr.f32.gmra.mxu0 %v3266
      %v3471 = vpop.f32.mrf.mxu0
      %v3472 = vadd.f32 0.0, %v3471
      %v3473 = vpop.f32.mrf.mxu0
      %3474 = vmatprep.mubr.f32.mxu0 0.0
      %3475 = vmatmul.mubr.f32.gmra.mxu0 %v3269
      %v3476 = vpop.f32.mrf.mxu0
      %v3477 = vadd.f32 0.0, %v3476
      %v3478 = vpop.f32.mrf.mxu0
      %3479 = vmatprep.mubr.f32.mxu0 0.0
      %3480 = vmatmul.mubr.f32.gmra.mxu0 %v3272
      %v3481 = vpop.f32.mrf.mxu0
      %v3482 = vadd.f32 0.0, %v3481
      %v3483 = vpop.f32.mrf.mxu0
      %3484 = vmatprep.mubr.f32.mxu0 0.0
      %3485 = vmatmul.mubr.f32.gmra.mxu0 %v3275
      %v3486 = vpop.f32.mrf.mxu0
      %v3487 = vadd.f32 0.0, %v3486
      %v3488 = vpop.f32.mrf.mxu0
      %3489 = vmatprep.mubr.f32.mxu0 0.0
      %3490 = vmatmul.mubr.f32.gmra.mxu0 %v3278
      %v3491 = vpop.f32.mrf.mxu0
      %v3492 = vadd.f32 0.0, %v3491
      %v3493 = vpop.f32.mrf.mxu0
      %3494 = vmatprep.mubr.f32.mxu0 0.0
      %3495 = vmatmul.mubr.f32.gmra.mxu0 %v3281
      %v3496 = vpop.f32.mrf.mxu0
      %v3497 = vadd.f32 0.0, %v3496
      %v3498 = vpop.f32.mrf.mxu0
      %3499 = vmatprep.mubr.f32.mxu0 0.0
      %3500 = vmatmul.mubr.f32.gmra.mxu0 %v3284
      %v3501 = vpop.f32.mrf.mxu0
      %v3502 = vadd.f32 0.0, %v3501
      %v3503 = vpop.f32.mrf.mxu0
      %3504 = vmatprep.mubr.f32.mxu0 0.0
      %3505 = vmatmul.mubr.f32.gmra.mxu0 %v3287
      %v3506 = vpop.f32.mrf.mxu0
      %v3507 = vadd.f32 0.0, %v3506
      %v3508 = vpop.f32.mrf.mxu0
      %3509 = vmatprep.mubr.f32.mxu0 0.0
      %3510 = vmatmul.mubr.f32.gmra.mxu0 %v3290
      %v3511 = vpop.f32.mrf.mxu0
      %v3512 = vadd.f32 0.0, %v3511
      %v3513 = vpop.f32.mrf.mxu0
      %3514 = vmatprep.mubr.f32.mxu0 0.0
      %3515 = vmatmul.mubr.f32.gmra.mxu0 %v3293
      %v3516 = vpop.f32.mrf.mxu0
      %v3517 = vadd.f32 0.0, %v3516
      %v3518 = vpop.f32.mrf.mxu0
      %3519 = vmatprep.mubr.f32.mxu0 0.0
      %3520 = vmatmul.mubr.f32.gmra.mxu0 %v3296
      %v3521 = vpop.f32.mrf.mxu0
      %v3522 = vadd.f32 0.0, %v3521
      %v3523 = vpop.f32.mrf.mxu0
      %3524 = vmatprep.mubr.f32.mxu0 0.0
      %3525 = vmatmul.mubr.f32.gmra.mxu0 %v3299
      %v3526 = vpop.f32.mrf.mxu0
      %v3527 = vadd.f32 0.0, %v3526
      %v3528 = vpop.f32.mrf.mxu0
      %3529 = vdwg.mxu0
      %v3531 = vsel %vm3204, %v1748, 0
      %v3534 = vsel %vm3204, %v1749, 0
      %v3537 = vsel %vm3204, %v1750, 0
      %v3540 = vsel %vm3204, %v1751, 0
      %v3543 = vsel %vm3204, %v1752, 0
      %v3546 = vsel %vm3204, %v1753, 0
      %v3549 = vsel %vm3204, %v1754, 0
      %v3552 = vsel %vm3204, %v1755, 0
      %v3555 = vsel %vm3204, %v1756, 0
      %v3558 = vsel %vm3204, %v1757, 0
      %v3561 = vsel %vm3204, %v1758, 0
      %v3564 = vsel %vm3204, %v1759, 0
      %v3567 = vsel %vm3204, %v1760, 0
      %v3570 = vsel %vm3204, %v1761, 0
      %v3573 = vsel %vm3204, %v1762, 0
      %v3576 = vsel %vm3204, %v1763, 0
      %v3579 = vsel %vm3204, %v1764, 0
      %v3582 = vsel %vm3204, %v1765, 0
      %v3585 = vsel %vm3204, %v1766, 0
      %v3588 = vsel %vm3204, %v1767, 0
      %v3591 = vsel %vm3204, %v1768, 0
      %v3594 = vsel %vm3204, %v1769, 0
      %v3597 = vsel %vm3204, %v1770, 0
      %v3600 = vsel %vm3204, %v1771, 0
      %v3603 = vsel %vm3204, %v1772, 0
      %v3606 = vsel %vm3204, %v1773, 0
      %v3609 = vsel %vm3204, %v1774, 0
      %v3612 = vsel %vm3204, %v1775, 0
      %v3615 = vsel %vm3204, %v1776, 0
      %v3618 = vsel %vm3204, %v1777, 0
      %v3621 = vsel %vm3204, %v1778, 0
      %v3624 = vsel %vm3204, %v1779, 0
      %v3627 = vsel %vm3301, %v1784, 0
      %3629 = vmatprep.subr.mxu0 0.0
      %3630 = vmatpush1.msra.mxu0 0.0
      %3631 = vmatprep.subr.mxu0 0.0
      %3632 = vmatpush1.msra.mxu0 0.0
      %3633 = vmatprep.subr.mxu0 0.0
      %3634 = vmatpush1.msra.mxu0 0.0
      %3635 = vmatprep.subr.mxu0 0.0
      %3636 = vmatpush1.msra.mxu0 0.0
      %3637 = vmatprep.subr.mxu0 0.0
      %3638 = vmatpush1.msra.mxu0 0.0
      %3639 = vmatprep.subr.mxu0 0.0
      %3640 = vmatpush1.msra.mxu0 0.0
      %3641 = vmatprep.subr.mxu0 0.0
      %3642 = vmatpush1.msra.mxu0 0.0
      %3643 = vmatprep.subr.mxu0 0.0
      %3644 = vmatpush1.msra.mxu0 0.0
      %3645 = vmatprep.subr.mxu0 0.0
      %3646 = vmatpush1.msra.mxu0 0.0
      %3647 = vmatprep.subr.mxu0 0.0
      %3648 = vmatpush1.msra.mxu0 0.0
      %3649 = vmatprep.subr.mxu0 0.0
      %3650 = vmatpush1.msra.mxu0 0.0
      %3651 = vmatprep.subr.mxu0 0.0
      %3652 = vmatpush1.msra.mxu0 %v3627
      %3653 = vmatprep.subr.mxu0 0.0
      %3654 = vmatpush1.msra.mxu0 %v1783
      %3655 = vmatprep.subr.mxu0 0.0
      %3656 = vmatpush1.msra.mxu0 %v1782
      %3657 = vmatprep.subr.mxu0 0.0
      %3658 = vmatpush1.msra.mxu0 %v1781
      %3659 = vmatprep.subr.mxu0 0.0
      %3660 = vmatpush1.msra.mxu0 %v1780
      %3661 = vmatprep.subr.mxu0 0.0
      %3662 = vmatpush2.msra.mxu0 0.0
      %3663 = vmatprep.subr.mxu0 0.0
      %3664 = vmatpush2.msra.mxu0 0.0
      %3665 = vmatprep.subr.mxu0 0.0
      %3666 = vmatpush2.msra.mxu0 0.0
      %3667 = vmatprep.subr.mxu0 0.0
      %3668 = vmatpush2.msra.mxu0 0.0
      %3669 = vmatprep.subr.mxu0 0.0
      %3670 = vmatpush2.msra.mxu0 0.0
      %3671 = vmatprep.subr.mxu0 0.0
      %3672 = vmatpush2.msra.mxu0 0.0
      %3673 = vmatprep.subr.mxu0 0.0
      %3674 = vmatpush2.msra.mxu0 0.0
      %3675 = vmatprep.subr.mxu0 0.0
      %3676 = vmatpush2.msra.mxu0 0.0
      %3677 = vmatprep.subr.mxu0 0.0
      %3678 = vmatpush2.msra.mxu0 0.0
      %3679 = vmatprep.subr.mxu0 0.0
      %3680 = vmatpush2.msra.mxu0 0.0
      %3681 = vmatprep.subr.mxu0 0.0
      %3682 = vmatpush2.msra.mxu0 0.0
      %3683 = vmatprep.subr.mxu0 0.0
      %3684 = vmatpush2.msra.mxu0 0.0
      %3685 = vmatprep.subr.mxu0 0.0
      %3686 = vmatpush2.msra.mxu0 0.0
      %3687 = vmatprep.subr.mxu0 0.0
      %3688 = vmatpush2.msra.mxu0 0.0
      %3689 = vmatprep.subr.mxu0 0.0
      %3690 = vmatpush2.msra.mxu0 0.0
      %3691 = vmatprep.subr.mxu0 0.0
      %3692 = vmatpush2.msra.mxu0 0.0
      %3693 = vmatprep.mubr.f32.mxu0 0.0
      %3694 = vmatmul.mubr.f32.gmra.mxu0 %v3531
      %v3695 = vpop.f32.mrf.mxu0
      %v3696 = vadd.f32 %v3372, %v3695
      %v3697 = vpop.f32.mrf.mxu0
      %3698 = vmatprep.mubr.f32.mxu0 0.0
      %3699 = vmatmul.mubr.f32.gmra.mxu0 %v3534
      %v3700 = vpop.f32.mrf.mxu0
      %v3701 = vadd.f32 %v3377, %v3700
      %v3702 = vpop.f32.mrf.mxu0
      %3703 = vmatprep.mubr.f32.mxu0 0.0
      %3704 = vmatmul.mubr.f32.gmra.mxu0 %v3537
      %v3705 = vpop.f32.mrf.mxu0
      %v3706 = vadd.f32 %v3382, %v3705
      %v3707 = vpop.f32.mrf.mxu0
      %3708 = vmatprep.mubr.f32.mxu0 0.0
      %3709 = vmatmul.mubr.f32.gmra.mxu0 %v3540
      %v3710 = vpop.f32.mrf.mxu0
      %v3711 = vadd.f32 %v3387, %v3710
      %v3712 = vpop.f32.mrf.mxu0
      %3713 = vmatprep.mubr.f32.mxu0 0.0
      %3714 = vmatmul.mubr.f32.gmra.mxu0 %v3543
      %v3715 = vpop.f32.mrf.mxu0
      %v3716 = vadd.f32 %v3392, %v3715
      %v3717 = vpop.f32.mrf.mxu0
      %3718 = vmatprep.mubr.f32.mxu0 0.0
      %3719 = vmatmul.mubr.f32.gmra.mxu0 %v3546
      %v3720 = vpop.f32.mrf.mxu0
      %v3721 = vadd.f32 %v3397, %v3720
      %v3722 = vpop.f32.mrf.mxu0
      %3723 = vmatprep.mubr.f32.mxu0 0.0
      %3724 = vmatmul.mubr.f32.gmra.mxu0 %v3549
      %v3725 = vpop.f32.mrf.mxu0
      %v3726 = vadd.f32 %v3402, %v3725
      %v3727 = vpop.f32.mrf.mxu0
      %3728 = vmatprep.mubr.f32.mxu0 0.0
      %3729 = vmatmul.mubr.f32.gmra.mxu0 %v3552
      %v3730 = vpop.f32.mrf.mxu0
      %v3731 = vadd.f32 %v3407, %v3730
      %v3732 = vpop.f32.mrf.mxu0
      %3733 = vmatprep.mubr.f32.mxu0 0.0
      %3734 = vmatmul.mubr.f32.gmra.mxu0 %v3555
      %v3735 = vpop.f32.mrf.mxu0
      %v3736 = vadd.f32 %v3412, %v3735
      %v3737 = vpop.f32.mrf.mxu0
      %3738 = vmatprep.mubr.f32.mxu0 0.0
      %3739 = vmatmul.mubr.f32.gmra.mxu0 %v3558
      %v3740 = vpop.f32.mrf.mxu0
      %v3741 = vadd.f32 %v3417, %v3740
      %v3742 = vpop.f32.mrf.mxu0
      %3743 = vmatprep.mubr.f32.mxu0 0.0
      %3744 = vmatmul.mubr.f32.gmra.mxu0 %v3561
      %v3745 = vpop.f32.mrf.mxu0
      %v3746 = vadd.f32 %v3422, %v3745
      %v3747 = vpop.f32.mrf.mxu0
      %3748 = vmatprep.mubr.f32.mxu0 0.0
      %3749 = vmatmul.mubr.f32.gmra.mxu0 %v3564
      %v3750 = vpop.f32.mrf.mxu0
      %v3751 = vadd.f32 %v3427, %v3750
      %v3752 = vpop.f32.mrf.mxu0
      %3753 = vmatprep.mubr.f32.mxu0 0.0
      %3754 = vmatmul.mubr.f32.gmra.mxu0 %v3567
      %v3755 = vpop.f32.mrf.mxu0
      %v3756 = vadd.f32 %v3432, %v3755
      %v3757 = vpop.f32.mrf.mxu0
      %3758 = vmatprep.mubr.f32.mxu0 0.0
      %3759 = vmatmul.mubr.f32.gmra.mxu0 %v3570
      %v3760 = vpop.f32.mrf.mxu0
      %v3761 = vadd.f32 %v3437, %v3760
      %v3762 = vpop.f32.mrf.mxu0
      %3763 = vmatprep.mubr.f32.mxu0 0.0
      %3764 = vmatmul.mubr.f32.gmra.mxu0 %v3573
      %v3765 = vpop.f32.mrf.mxu0
      %v3766 = vadd.f32 %v3442, %v3765
      %v3767 = vpop.f32.mrf.mxu0
      %3768 = vmatprep.mubr.f32.mxu0 0.0
      %3769 = vmatmul.mubr.f32.gmra.mxu0 %v3576
      %v3770 = vpop.f32.mrf.mxu0
      %v3771 = vadd.f32 %v3447, %v3770
      %v3772 = vpop.f32.mrf.mxu0
      %3773 = vmatprep.mubr.f32.mxu0 0.0
      %3774 = vmatmul.mubr.f32.gmra.mxu0 %v3579
      %v3775 = vpop.f32.mrf.mxu0
      %v3776 = vadd.f32 %v3452, %v3775
      %v3777 = vpop.f32.mrf.mxu0
      %3778 = vmatprep.mubr.f32.mxu0 0.0
      %3779 = vmatmul.mubr.f32.gmra.mxu0 %v3582
      %v3780 = vpop.f32.mrf.mxu0
      %v3781 = vadd.f32 %v3457, %v3780
      %v3782 = vpop.f32.mrf.mxu0
      %3783 = vmatprep.mubr.f32.mxu0 0.0
      %3784 = vmatmul.mubr.f32.gmra.mxu0 %v3585
      %v3785 = vpop.f32.mrf.mxu0
      %v3786 = vadd.f32 %v3462, %v3785
      %v3787 = vpop.f32.mrf.mxu0
      %3788 = vmatprep.mubr.f32.mxu0 0.0
      %3789 = vmatmul.mubr.f32.gmra.mxu0 %v3588
      %v3790 = vpop.f32.mrf.mxu0
      %v3791 = vadd.f32 %v3467, %v3790
      %v3792 = vpop.f32.mrf.mxu0
      %3793 = vmatprep.mubr.f32.mxu0 0.0
      %3794 = vmatmul.mubr.f32.gmra.mxu0 %v3591
      %v3795 = vpop.f32.mrf.mxu0
      %v3796 = vadd.f32 %v3472, %v3795
      %v3797 = vpop.f32.mrf.mxu0
      %3798 = vmatprep.mubr.f32.mxu0 0.0
      %3799 = vmatmul.mubr.f32.gmra.mxu0 %v3594
      %v3800 = vpop.f32.mrf.mxu0
      %v3801 = vadd.f32 %v3477, %v3800
      %v3802 = vpop.f32.mrf.mxu0
      %3803 = vmatprep.mubr.f32.mxu0 0.0
      %3804 = vmatmul.mubr.f32.gmra.mxu0 %v3597
      %v3805 = vpop.f32.mrf.mxu0
      %v3806 = vadd.f32 %v3482, %v3805
      %v3807 = vpop.f32.mrf.mxu0
      %3808 = vmatprep.mubr.f32.mxu0 0.0
      %3809 = vmatmul.mubr.f32.gmra.mxu0 %v3600
      %v3810 = vpop.f32.mrf.mxu0
      %v3811 = vadd.f32 %v3487, %v3810
      %v3812 = vpop.f32.mrf.mxu0
      %3813 = vmatprep.mubr.f32.mxu0 0.0
      %3814 = vmatmul.mubr.f32.gmra.mxu0 %v3603
      %v3815 = vpop.f32.mrf.mxu0
      %v3816 = vadd.f32 %v3492, %v3815
      %v3817 = vpop.f32.mrf.mxu0
      %3818 = vmatprep.mubr.f32.mxu0 0.0
      %3819 = vmatmul.mubr.f32.gmra.mxu0 %v3606
      %v3820 = vpop.f32.mrf.mxu0
      %v3821 = vadd.f32 %v3497, %v3820
      %v3822 = vpop.f32.mrf.mxu0
      %3823 = vmatprep.mubr.f32.mxu0 0.0
      %3824 = vmatmul.mubr.f32.gmra.mxu0 %v3609
      %v3825 = vpop.f32.mrf.mxu0
      %v3826 = vadd.f32 %v3502, %v3825
      %v3827 = vpop.f32.mrf.mxu0
      %3828 = vmatprep.mubr.f32.mxu0 0.0
      %3829 = vmatmul.mubr.f32.gmra.mxu0 %v3612
      %v3830 = vpop.f32.mrf.mxu0
      %v3831 = vadd.f32 %v3507, %v3830
      %v3832 = vpop.f32.mrf.mxu0
      %3833 = vmatprep.mubr.f32.mxu0 0.0
      %3834 = vmatmul.mubr.f32.gmra.mxu0 %v3615
      %v3835 = vpop.f32.mrf.mxu0
      %v3836 = vadd.f32 %v3512, %v3835
      %v3837 = vpop.f32.mrf.mxu0
      %3838 = vmatprep.mubr.f32.mxu0 0.0
      %3839 = vmatmul.mubr.f32.gmra.mxu0 %v3618
      %v3840 = vpop.f32.mrf.mxu0
      %v3841 = vadd.f32 %v3517, %v3840
      %v3842 = vpop.f32.mrf.mxu0
      %3843 = vmatprep.mubr.f32.mxu0 0.0
      %3844 = vmatmul.mubr.f32.gmra.mxu0 %v3621
      %v3845 = vpop.f32.mrf.mxu0
      %v3846 = vadd.f32 %v3522, %v3845
      %v3847 = vpop.f32.mrf.mxu0
      %3848 = vmatprep.mubr.f32.mxu0 0.0
      %3849 = vmatmul.mubr.f32.gmra.mxu0 %v3624
      %v3850 = vpop.f32.mrf.mxu0
      %v3851 = vadd.f32 %v3527, %v3850
      %v3852 = vpop.f32.mrf.mxu0
      %3853 = vdwg.mxu0
      %s3854 = smul.u32 %s194, 24
      %s3855 = scalar_lea.vmem %s183, %s3854
      %v3856 = vld [vmem:[%s3855] sm:$0xff]
      %v3857 = vld [vmem:[%s3855 + $0x8] sm:$0xff]
      %v3858 = vld [vmem:[%s3855 + $0x18] sm:$0xff]
      %v3859 = vld [vmem:[%s3855 + $0x20] sm:$0xff]
      %v3860 = vld [vmem:[%s3855 + $0x30] sm:$0xff]
      %v3861 = vld [vmem:[%s3855 + $0x38] sm:$0xff]
      %v3862 = vld [vmem:[%s3855 + $0x48] sm:$0xff]
      %v3863 = vld [vmem:[%s3855 + $0x50] sm:$0xff]
      %v3864 = vld [vmem:[%s3855 + $0x60] sm:$0xff]
      %v3865 = vld [vmem:[%s3855 + $0x68] sm:$0xff]
      %v3866 = vld [vmem:[%s3855 + $0x78] sm:$0xff]
      %v3867 = vld [vmem:[%s3855 + $0x80] sm:$0xff]
      %v3868 = vld [vmem:[%s3855 + $0x90] sm:$0xff]
      %v3869 = vld [vmem:[%s3855 + $0x98] sm:$0xff]
      %v3870 = vld [vmem:[%s3855 + $0xa8] sm:$0xff]
      %v3871 = vld [vmem:[%s3855 + $0xb0] sm:$0xff]
      %v3872 = vld [vmem:[%s3855 + $0xc0] sm:$0xff]
      %v3873 = vld [vmem:[%s3855 + $0xc8] sm:$0xff]
      %v3874 = vld [vmem:[%s3855 + $0xd8] sm:$0xff]
      %v3875 = vld [vmem:[%s3855 + $0xe0] sm:$0xff]
      %v3876 = vld [vmem:[%s3855 + $0xf0] sm:$0xff]
      %v3877 = vld [vmem:[%s3855 + $0xf8] sm:$0xff]
      %v3878 = vld [vmem:[%s3855 + $0x108] sm:$0xff]
      %v3879 = vld [vmem:[%s3855 + $0x110] sm:$0xff]
      %v3880 = vld [vmem:[%s3855 + $0x120] sm:$0xff]
      %v3881 = vld [vmem:[%s3855 + $0x128] sm:$0xff]
      %v3882 = vld [vmem:[%s3855 + $0x138] sm:$0xff]
      %v3883 = vld [vmem:[%s3855 + $0x140] sm:$0xff]
      %v3884 = vld [vmem:[%s3855 + $0x150] sm:$0xff]
      %v3885 = vld [vmem:[%s3855 + $0x158] sm:$0xff]
      %v3886 = vld [vmem:[%s3855 + $0x168] sm:$0xff]
      %v3887 = vld [vmem:[%s3855 + $0x170] sm:$0xff]
      %v3888 = vld [vmem:[%s3855 + $0x4] sm:$0xff]
      %v3889 = vld [vmem:[%s3855 + $0xc] sm:$0xff]
      %v3890 = vld [vmem:[%s3855 + $0x1c] sm:$0xff]
      %v3891 = vld [vmem:[%s3855 + $0x24] sm:$0xff]
      %v3892 = vld [vmem:[%s3855 + $0x34] sm:$0xff]
      %v3893 = vld [vmem:[%s3855 + $0x3c] sm:$0xff]
      %v3894 = vld [vmem:[%s3855 + $0x4c] sm:$0xff]
      %v3895 = vld [vmem:[%s3855 + $0x54] sm:$0xff]
      %v3896 = vld [vmem:[%s3855 + $0x64] sm:$0xff]
      %v3897 = vld [vmem:[%s3855 + $0x6c] sm:$0xff]
      %v3898 = vld [vmem:[%s3855 + $0x7c] sm:$0xff]
      %v3899 = vld [vmem:[%s3855 + $0x84] sm:$0xff]
      %v3900 = vld [vmem:[%s3855 + $0x94] sm:$0xff]
      %v3901 = vld [vmem:[%s3855 + $0x9c] sm:$0xff]
      %v3902 = vld [vmem:[%s3855 + $0xac] sm:$0xff]
      %v3903 = vld [vmem:[%s3855 + $0xb4] sm:$0xff]
      %v3904 = vld [vmem:[%s3855 + $0xc4] sm:$0xff]
      %v3905 = vld [vmem:[%s3855 + $0xcc] sm:$0xff]
      %v3906 = vld [vmem:[%s3855 + $0xdc] sm:$0xff]
      %v3907 = vld [vmem:[%s3855 + $0xe4] sm:$0xff]
      %v3908 = vld [vmem:[%s3855 + $0xf4] sm:$0xff]
      %v3909 = vld [vmem:[%s3855 + $0xfc] sm:$0xff]
      %v3910 = vld [vmem:[%s3855 + $0x10c] sm:$0xff]
      %v3911 = vld [vmem:[%s3855 + $0x114] sm:$0xff]
      %v3912 = vld [vmem:[%s3855 + $0x124] sm:$0xff]
      %v3913 = vld [vmem:[%s3855 + $0x12c] sm:$0xff]
      %v3914 = vld [vmem:[%s3855 + $0x13c] sm:$0xff]
      %v3915 = vld [vmem:[%s3855 + $0x144] sm:$0xff]
      %v3916 = vld [vmem:[%s3855 + $0x154] sm:$0xff]
      %v3917 = vld [vmem:[%s3855 + $0x15c] sm:$0xff]
      %v3918 = vld [vmem:[%s3855 + $0x16c] sm:$0xff]
      %v3919 = vld [vmem:[%s3855 + $0x174] sm:$0xff]
      %v3920 = vld [vmem:[%s3855 + $0x10] sm:$0xff]
      %v3921 = vld [vmem:[%s3855 + $0x28] sm:$0xff]
      %v3922 = vld [vmem:[%s3855 + $0x40] sm:$0xff]
      %v3923 = vld [vmem:[%s3855 + $0x58] sm:$0xff]
      %v3924 = vld [vmem:[%s3855 + $0x70] sm:$0xff]
      %v3925 = vld [vmem:[%s3855 + $0x88] sm:$0xff]
      %v3926 = vld [vmem:[%s3855 + $0xa0] sm:$0xff]
      %v3927 = vld [vmem:[%s3855 + $0xb8] sm:$0xff]
      %v3928 = vld [vmem:[%s3855 + $0xd0] sm:$0xff]
      %v3929 = vld [vmem:[%s3855 + $0xe8] sm:$0xff]
      %v3930 = vld [vmem:[%s3855 + $0x100] sm:$0xff]
      %v3931 = vld [vmem:[%s3855 + $0x118] sm:$0xff]
      %v3932 = vld [vmem:[%s3855 + $0x130] sm:$0xff]
      %v3933 = vld [vmem:[%s3855 + $0x148] sm:$0xff]
      %v3934 = vld [vmem:[%s3855 + $0x160] sm:$0xff]
      %v3935 = vld [vmem:[%s3855 + $0x178] sm:$0xff]
      %v3936 = vld [vmem:[%s296] sm:$0xff]
      %v3937 = vld [vmem:[%s296 + $0x8] sm:$0xff]
      %v3938 = vld [vmem:[%s296 + $0x18] sm:$0xff]
      %v3939 = vld [vmem:[%s296 + $0x20] sm:$0xff]
      %v3940 = vld [vmem:[%s296 + $0x30] sm:$0xff]
      %v3941 = vld [vmem:[%s296 + $0x38] sm:$0xff]
      %v3942 = vld [vmem:[%s296 + $0x48] sm:$0xff]
      %v3943 = vld [vmem:[%s296 + $0x50] sm:$0xff]
      %v3944 = vld [vmem:[%s296 + $0x60] sm:$0xff]
      %v3945 = vld [vmem:[%s296 + $0x68] sm:$0xff]
      %v3946 = vld [vmem:[%s296 + $0x78] sm:$0xff]
      %v3947 = vld [vmem:[%s296 + $0x80] sm:$0xff]
      %v3948 = vld [vmem:[%s296 + $0x90] sm:$0xff]
      %v3949 = vld [vmem:[%s296 + $0x98] sm:$0xff]
      %v3950 = vld [vmem:[%s296 + $0xa8] sm:$0xff]
      %v3951 = vld [vmem:[%s296 + $0xb0] sm:$0xff]
      %v3952 = vld [vmem:[%s296 + $0xc0] sm:$0xff]
      %v3953 = vld [vmem:[%s296 + $0xc8] sm:$0xff]
      %v3954 = vld [vmem:[%s296 + $0xd8] sm:$0xff]
      %v3955 = vld [vmem:[%s296 + $0xe0] sm:$0xff]
      %v3956 = vld [vmem:[%s296 + $0xf0] sm:$0xff]
      %v3957 = vld [vmem:[%s296 + $0xf8] sm:$0xff]
      %v3958 = vld [vmem:[%s296 + $0x108] sm:$0xff]
      %v3959 = vld [vmem:[%s296 + $0x110] sm:$0xff]
      %v3960 = vld [vmem:[%s296 + $0x120] sm:$0xff]
      %v3961 = vld [vmem:[%s296 + $0x128] sm:$0xff]
      %v3962 = vld [vmem:[%s296 + $0x138] sm:$0xff]
      %v3963 = vld [vmem:[%s296 + $0x140] sm:$0xff]
      %v3964 = vld [vmem:[%s296 + $0x150] sm:$0xff]
      %v3965 = vld [vmem:[%s296 + $0x158] sm:$0xff]
      %v3966 = vld [vmem:[%s296 + $0x168] sm:$0xff]
      %v3967 = vld [vmem:[%s296 + $0x170] sm:$0xff]
      %v3968 = vld [vmem:[%s296 + $0x10] sm:$0xff]
      %v3969 = vld [vmem:[%s296 + $0x28] sm:$0xff]
      %v3970 = vld [vmem:[%s296 + $0x40] sm:$0xff]
      %v3971 = vld [vmem:[%s296 + $0x58] sm:$0xff]
      %v3972 = vld [vmem:[%s296 + $0x70] sm:$0xff]
      %v3973 = vld [vmem:[%s296 + $0x88] sm:$0xff]
      %v3974 = vld [vmem:[%s296 + $0xa0] sm:$0xff]
      %v3975 = vld [vmem:[%s296 + $0xb8] sm:$0xff]
      %v3976 = vld [vmem:[%s296 + $0xd0] sm:$0xff]
      %v3977 = vld [vmem:[%s296 + $0xe8] sm:$0xff]
      %v3978 = vld [vmem:[%s296 + $0x100] sm:$0xff]
      %v3979 = vld [vmem:[%s296 + $0x118] sm:$0xff]
      %v3980 = vld [vmem:[%s296 + $0x130] sm:$0xff]
      %v3981 = vld [vmem:[%s296 + $0x148] sm:$0xff]
      %v3982 = vld [vmem:[%s296 + $0x160] sm:$0xff]
      %v3983 = vld [vmem:[%s296 + $0x178] sm:$0xff]
      %s3984 = sadd.s32 %s194, 8
      %s3985 = smul.u32 %s3984, 24
      %s3986 = scalar_lea.vmem %s183, %s3985
      %v3987 = vld [vmem:[%s3986] sm:$0xff]
      %v3988 = vld [vmem:[%s3986 + $0x8] sm:$0xff]
      %v3989 = vld [vmem:[%s3986 + $0x18] sm:$0xff]
      %v3990 = vld [vmem:[%s3986 + $0x20] sm:$0xff]
      %v3991 = vld [vmem:[%s3986 + $0x30] sm:$0xff]
      %v3992 = vld [vmem:[%s3986 + $0x38] sm:$0xff]
      %v3993 = vld [vmem:[%s3986 + $0x48] sm:$0xff]
      %v3994 = vld [vmem:[%s3986 + $0x50] sm:$0xff]
      %v3995 = vld [vmem:[%s3986 + $0x60] sm:$0xff]
      %v3996 = vld [vmem:[%s3986 + $0x68] sm:$0xff]
      %v3997 = vld [vmem:[%s3986 + $0x78] sm:$0xff]
      %v3998 = vld [vmem:[%s3986 + $0x80] sm:$0xff]
      %v3999 = vld [vmem:[%s3986 + $0x90] sm:$0xff]
      %v4000 = vld [vmem:[%s3986 + $0x98] sm:$0xff]
      %v4001 = vld [vmem:[%s3986 + $0xa8] sm:$0xff]
      %v4002 = vld [vmem:[%s3986 + $0xb0] sm:$0xff]
      %v4003 = vld [vmem:[%s3986 + $0xc0] sm:$0xff]
      %v4004 = vld [vmem:[%s3986 + $0xc8] sm:$0xff]
      %v4005 = vld [vmem:[%s3986 + $0xd8] sm:$0xff]
      %v4006 = vld [vmem:[%s3986 + $0xe0] sm:$0xff]
      %v4007 = vld [vmem:[%s3986 + $0xf0] sm:$0xff]
      %v4008 = vld [vmem:[%s3986 + $0xf8] sm:$0xff]
      %v4009 = vld [vmem:[%s3986 + $0x108] sm:$0xff]
      %v4010 = vld [vmem:[%s3986 + $0x110] sm:$0xff]
      %v4011 = vld [vmem:[%s3986 + $0x120] sm:$0xff]
      %v4012 = vld [vmem:[%s3986 + $0x128] sm:$0xff]
      %v4013 = vld [vmem:[%s3986 + $0x138] sm:$0xff]
      %v4014 = vld [vmem:[%s3986 + $0x140] sm:$0xff]
      %v4015 = vld [vmem:[%s3986 + $0x150] sm:$0xff]
      %v4016 = vld [vmem:[%s3986 + $0x158] sm:$0xff]
      %v4017 = vld [vmem:[%s3986 + $0x168] sm:$0xff]
      %v4018 = vld [vmem:[%s3986 + $0x170] sm:$0xff]
      %v4019 = vld [vmem:[%s3986 + $0x4] sm:$0xff]
      %v4020 = vld [vmem:[%s3986 + $0xc] sm:$0xff]
      %v4021 = vld [vmem:[%s3986 + $0x1c] sm:$0xff]
      %v4022 = vld [vmem:[%s3986 + $0x24] sm:$0xff]
      %v4023 = vld [vmem:[%s3986 + $0x34] sm:$0xff]
      %v4024 = vld [vmem:[%s3986 + $0x3c] sm:$0xff]
      %v4025 = vld [vmem:[%s3986 + $0x4c] sm:$0xff]
      %v4026 = vld [vmem:[%s3986 + $0x54] sm:$0xff]
      %v4027 = vld [vmem:[%s3986 + $0x64] sm:$0xff]
      %v4028 = vld [vmem:[%s3986 + $0x6c] sm:$0xff]
      %v4029 = vld [vmem:[%s3986 + $0x7c] sm:$0xff]
      %v4030 = vld [vmem:[%s3986 + $0x84] sm:$0xff]
      %v4031 = vld [vmem:[%s3986 + $0x94] sm:$0xff]
      %v4032 = vld [vmem:[%s3986 + $0x9c] sm:$0xff]
      %v4033 = vld [vmem:[%s3986 + $0xac] sm:$0xff]
      %v4034 = vld [vmem:[%s3986 + $0xb4] sm:$0xff]
      %v4035 = vld [vmem:[%s3986 + $0xc4] sm:$0xff]
      %v4036 = vld [vmem:[%s3986 + $0xcc] sm:$0xff]
      %v4037 = vld [vmem:[%s3986 + $0xdc] sm:$0xff]
      %v4038 = vld [vmem:[%s3986 + $0xe4] sm:$0xff]
      %v4039 = vld [vmem:[%s3986 + $0xf4] sm:$0xff]
      %v4040 = vld [vmem:[%s3986 + $0xfc] sm:$0xff]
      %v4041 = vld [vmem:[%s3986 + $0x10c] sm:$0xff]
      %v4042 = vld [vmem:[%s3986 + $0x114] sm:$0xff]
      %v4043 = vld [vmem:[%s3986 + $0x124] sm:$0xff]
      %v4044 = vld [vmem:[%s3986 + $0x12c] sm:$0xff]
      %v4045 = vld [vmem:[%s3986 + $0x13c] sm:$0xff]
      %v4046 = vld [vmem:[%s3986 + $0x144] sm:$0xff]
      %v4047 = vld [vmem:[%s3986 + $0x154] sm:$0xff]
      %v4048 = vld [vmem:[%s3986 + $0x15c] sm:$0xff]
      %v4049 = vld [vmem:[%s3986 + $0x16c] sm:$0xff]
      %v4050 = vld [vmem:[%s3986 + $0x174] sm:$0xff]
      %v4051 = vld [vmem:[%s3986 + $0x10] sm:$0xff]
      %v4052 = vld [vmem:[%s3986 + $0x28] sm:$0xff]
      %v4053 = vld [vmem:[%s3986 + $0x40] sm:$0xff]
      %v4054 = vld [vmem:[%s3986 + $0x58] sm:$0xff]
      %v4055 = vld [vmem:[%s3986 + $0x70] sm:$0xff]
      %v4056 = vld [vmem:[%s3986 + $0x88] sm:$0xff]
      %v4057 = vld [vmem:[%s3986 + $0xa0] sm:$0xff]
      %v4058 = vld [vmem:[%s3986 + $0xb8] sm:$0xff]
      %v4059 = vld [vmem:[%s3986 + $0xd0] sm:$0xff]
      %v4060 = vld [vmem:[%s3986 + $0xe8] sm:$0xff]
      %v4061 = vld [vmem:[%s3986 + $0x100] sm:$0xff]
      %v4062 = vld [vmem:[%s3986 + $0x118] sm:$0xff]
      %v4063 = vld [vmem:[%s3986 + $0x130] sm:$0xff]
      %v4064 = vld [vmem:[%s3986 + $0x148] sm:$0xff]
      %v4065 = vld [vmem:[%s3986 + $0x160] sm:$0xff]
      %v4066 = vld [vmem:[%s3986 + $0x178] sm:$0xff]
      %4099 = vrot.lane.b32.xlu0 %v3888, 4
      %v4100 = vpop.permute.xlu0 %4099
      %4101 = vrot.lane.b32.xlu0 %v3889, 4
      %v4102 = vpop.permute.xlu0 %4101
      %4103 = vrot.lane.b32.xlu0 %v3890, 4
      %v4104 = vpop.permute.xlu0 %4103
      %4105 = vrot.lane.b32.xlu0 %v3891, 4
      %v4106 = vpop.permute.xlu0 %4105
      %4107 = vrot.lane.b32.xlu0 %v3892, 4
      %v4108 = vpop.permute.xlu0 %4107
      %4109 = vrot.lane.b32.xlu0 %v3893, 4
      %v4110 = vpop.permute.xlu0 %4109
      %4111 = vrot.lane.b32.xlu0 %v3894, 4
      %v4112 = vpop.permute.xlu0 %4111
      %4113 = vrot.lane.b32.xlu0 %v3895, 4
      %v4114 = vpop.permute.xlu0 %4113
      %4115 = vrot.lane.b32.xlu0 %v3896, 4
      %v4116 = vpop.permute.xlu0 %4115
      %4117 = vrot.lane.b32.xlu0 %v3897, 4
      %v4118 = vpop.permute.xlu0 %4117
      %4119 = vrot.lane.b32.xlu0 %v3898, 4
      %v4120 = vpop.permute.xlu0 %4119
      %4121 = vrot.lane.b32.xlu0 %v3899, 4
      %v4122 = vpop.permute.xlu0 %4121
      %4123 = vrot.lane.b32.xlu0 %v3900, 4
      %v4124 = vpop.permute.xlu0 %4123
      %4125 = vrot.lane.b32.xlu0 %v3901, 4
      %v4126 = vpop.permute.xlu0 %4125
      %4127 = vrot.lane.b32.xlu0 %v3902, 4
      %v4128 = vpop.permute.xlu0 %4127
      %4129 = vrot.lane.b32.xlu0 %v3903, 4
      %v4130 = vpop.permute.xlu0 %4129
      %4131 = vrot.lane.b32.xlu0 %v3904, 4
      %v4132 = vpop.permute.xlu0 %4131
      %4133 = vrot.lane.b32.xlu0 %v3905, 4
      %v4134 = vpop.permute.xlu0 %4133
      %4135 = vrot.lane.b32.xlu0 %v3906, 4
      %v4136 = vpop.permute.xlu0 %4135
      %4137 = vrot.lane.b32.xlu0 %v3907, 4
      %v4138 = vpop.permute.xlu0 %4137
      %4139 = vrot.lane.b32.xlu0 %v3908, 4
      %v4140 = vpop.permute.xlu0 %4139
      %4141 = vrot.lane.b32.xlu0 %v3909, 4
      %v4142 = vpop.permute.xlu0 %4141
      %4143 = vrot.lane.b32.xlu0 %v3910, 4
      %v4144 = vpop.permute.xlu0 %4143
      %4145 = vrot.lane.b32.xlu0 %v3911, 4
      %v4146 = vpop.permute.xlu0 %4145
      %4147 = vrot.lane.b32.xlu0 %v3912, 4
      %v4148 = vpop.permute.xlu0 %4147
      %4149 = vrot.lane.b32.xlu0 %v3913, 4
      %v4150 = vpop.permute.xlu0 %4149
      %4151 = vrot.lane.b32.xlu0 %v3914, 4
      %v4152 = vpop.permute.xlu0 %4151
      %4153 = vrot.lane.b32.xlu0 %v3915, 4
      %v4154 = vpop.permute.xlu0 %4153
      %4155 = vrot.lane.b32.xlu0 %v3916, 4
      %v4156 = vpop.permute.xlu0 %4155
      %4157 = vrot.lane.b32.xlu0 %v3917, 4
      %v4158 = vpop.permute.xlu0 %4157
      %4159 = vrot.lane.b32.xlu0 %v3918, 4
      %v4160 = vpop.permute.xlu0 %4159
      %4161 = vrot.lane.b32.xlu0 %v3919, 4
      %v4162 = vpop.permute.xlu0 %4161
      %4227 = vrot.lane.b32.xlu0 %v3857, 8
      %v4228 = vpop.permute.xlu0 %4227
      %4229 = vrot.lane.b32.xlu0 %v3920, 8
      %v4230 = vpop.permute.xlu0 %4229
      %4231 = vrot.lane.b32.xlu0 %v3859, 8
      %v4232 = vpop.permute.xlu0 %4231
      %4233 = vrot.lane.b32.xlu0 %v3921, 8
      %v4234 = vpop.permute.xlu0 %4233
      %4235 = vrot.lane.b32.xlu0 %v3861, 8
      %v4236 = vpop.permute.xlu0 %4235
      %4237 = vrot.lane.b32.xlu0 %v3922, 8
      %v4238 = vpop.permute.xlu0 %4237
      %4239 = vrot.lane.b32.xlu0 %v3863, 8
      %v4240 = vpop.permute.xlu0 %4239
      %4241 = vrot.lane.b32.xlu0 %v3923, 8
      %v4242 = vpop.permute.xlu0 %4241
      %4243 = vrot.lane.b32.xlu0 %v3865, 8
      %v4244 = vpop.permute.xlu0 %4243
      %4245 = vrot.lane.b32.xlu0 %v3924, 8
      %v4246 = vpop.permute.xlu0 %4245
      %4247 = vrot.lane.b32.xlu0 %v3867, 8
      %v4248 = vpop.permute.xlu0 %4247
      %4249 = vrot.lane.b32.xlu0 %v3925, 8
      %v4250 = vpop.permute.xlu0 %4249
      %4251 = vrot.lane.b32.xlu0 %v3869, 8
      %v4252 = vpop.permute.xlu0 %4251
      %4253 = vrot.lane.b32.xlu0 %v3926, 8
      %v4254 = vpop.permute.xlu0 %4253
      %4255 = vrot.lane.b32.xlu0 %v3871, 8
      %v4256 = vpop.permute.xlu0 %4255
      %4257 = vrot.lane.b32.xlu0 %v3927, 8
      %v4258 = vpop.permute.xlu0 %4257
      %4259 = vrot.lane.b32.xlu0 %v3873, 8
      %v4260 = vpop.permute.xlu0 %4259
      %4261 = vrot.lane.b32.xlu0 %v3928, 8
      %v4262 = vpop.permute.xlu0 %4261
      %4263 = vrot.lane.b32.xlu0 %v3875, 8
      %v4264 = vpop.permute.xlu0 %4263
      %4265 = vrot.lane.b32.xlu0 %v3929, 8
      %v4266 = vpop.permute.xlu0 %4265
      %4267 = vrot.lane.b32.xlu0 %v3877, 8
      %v4268 = vpop.permute.xlu0 %4267
      %4269 = vrot.lane.b32.xlu0 %v3930, 8
      %v4270 = vpop.permute.xlu0 %4269
      %4271 = vrot.lane.b32.xlu0 %v3879, 8
      %v4272 = vpop.permute.xlu0 %4271
      %4273 = vrot.lane.b32.xlu0 %v3931, 8
      %v4274 = vpop.permute.xlu0 %4273
      %4275 = vrot.lane.b32.xlu0 %v3881, 8
      %v4276 = vpop.permute.xlu0 %4275
      %4277 = vrot.lane.b32.xlu0 %v3932, 8
      %v4278 = vpop.permute.xlu0 %4277
      %4279 = vrot.lane.b32.xlu0 %v3883, 8
      %v4280 = vpop.permute.xlu0 %4279
      %4281 = vrot.lane.b32.xlu0 %v3933, 8
      %v4282 = vpop.permute.xlu0 %4281
      %4283 = vrot.lane.b32.xlu0 %v3885, 8
      %v4284 = vpop.permute.xlu0 %4283
      %4285 = vrot.lane.b32.xlu0 %v3934, 8
      %v4286 = vpop.permute.xlu0 %4285
      %4287 = vrot.lane.b32.xlu0 %v3887, 8
      %v4288 = vpop.permute.xlu0 %4287
      %4289 = vrot.lane.b32.xlu0 %v3935, 8
      %v4290 = vpop.permute.xlu0 %4289
      %4355 = vrot.lane.b32.xlu0 %v3936, 12
      %v4356 = vpop.permute.xlu0 %4355
      %4357 = vrot.lane.b32.xlu0 %v3937, 12
      %v4358 = vpop.permute.xlu0 %4357
      %4359 = vrot.lane.b32.xlu0 %v3938, 12
      %v4360 = vpop.permute.xlu0 %4359
      %4361 = vrot.lane.b32.xlu0 %v3939, 12
      %v4362 = vpop.permute.xlu0 %4361
      %4363 = vrot.lane.b32.xlu0 %v3940, 12
      %v4364 = vpop.permute.xlu0 %4363
      %4365 = vrot.lane.b32.xlu0 %v3941, 12
      %v4366 = vpop.permute.xlu0 %4365
      %4367 = vrot.lane.b32.xlu0 %v3942, 12
      %v4368 = vpop.permute.xlu0 %4367
      %4369 = vrot.lane.b32.xlu0 %v3943, 12
      %v4370 = vpop.permute.xlu0 %4369
      %4371 = vrot.lane.b32.xlu0 %v3944, 12
      %v4372 = vpop.permute.xlu0 %4371
      %4373 = vrot.lane.b32.xlu0 %v3945, 12
      %v4374 = vpop.permute.xlu0 %4373
      %4375 = vrot.lane.b32.xlu0 %v3946, 12
      %v4376 = vpop.permute.xlu0 %4375
      %4377 = vrot.lane.b32.xlu0 %v3947, 12
      %v4378 = vpop.permute.xlu0 %4377
      %4379 = vrot.lane.b32.xlu0 %v3948, 12
      %v4380 = vpop.permute.xlu0 %4379
      %4381 = vrot.lane.b32.xlu0 %v3949, 12
      %v4382 = vpop.permute.xlu0 %4381
      %4383 = vrot.lane.b32.xlu0 %v3950, 12
      %v4384 = vpop.permute.xlu0 %4383
      %4385 = vrot.lane.b32.xlu0 %v3951, 12
      %v4386 = vpop.permute.xlu0 %4385
      %4387 = vrot.lane.b32.xlu0 %v3952, 12
      %v4388 = vpop.permute.xlu0 %4387
      %4389 = vrot.lane.b32.xlu0 %v3953, 12
      %v4390 = vpop.permute.xlu0 %4389
      %4391 = vrot.lane.b32.xlu0 %v3954, 12
      %v4392 = vpop.permute.xlu0 %4391
      %4393 = vrot.lane.b32.xlu0 %v3955, 12
      %v4394 = vpop.permute.xlu0 %4393
      %4395 = vrot.lane.b32.xlu0 %v3956, 12
      %v4396 = vpop.permute.xlu0 %4395
      %4397 = vrot.lane.b32.xlu0 %v3957, 12
      %v4398 = vpop.permute.xlu0 %4397
      %4399 = vrot.lane.b32.xlu0 %v3958, 12
      %v4400 = vpop.permute.xlu0 %4399
      %4401 = vrot.lane.b32.xlu0 %v3959, 12
      %v4402 = vpop.permute.xlu0 %4401
      %4403 = vrot.lane.b32.xlu0 %v3960, 12
      %v4404 = vpop.permute.xlu0 %4403
      %4405 = vrot.lane.b32.xlu0 %v3961, 12
      %v4406 = vpop.permute.xlu0 %4405
      %4407 = vrot.lane.b32.xlu0 %v3962, 12
      %v4408 = vpop.permute.xlu0 %4407
      %4409 = vrot.lane.b32.xlu0 %v3963, 12
      %v4410 = vpop.permute.xlu0 %4409
      %4411 = vrot.lane.b32.xlu0 %v3964, 12
      %v4412 = vpop.permute.xlu0 %4411
      %4413 = vrot.lane.b32.xlu0 %v3965, 12
      %v4414 = vpop.permute.xlu0 %4413
      %4415 = vrot.lane.b32.xlu0 %v3966, 12
      %v4416 = vpop.permute.xlu0 %4415
      %4417 = vrot.lane.b32.xlu0 %v3967, 12
      %v4418 = vpop.permute.xlu0 %4417
      %4467 = vrot.lane.b32.xlu0 %v3937, 20
      %v4468 = vpop.permute.xlu0 %4467
      %4469 = vrot.lane.b32.xlu0 %v3968, 20
      %v4470 = vpop.permute.xlu0 %4469
      %4471 = vrot.lane.b32.xlu0 %v3939, 20
      %v4472 = vpop.permute.xlu0 %4471
      %4473 = vrot.lane.b32.xlu0 %v3969, 20
      %v4474 = vpop.permute.xlu0 %4473
      %4475 = vrot.lane.b32.xlu0 %v3941, 20
      %v4476 = vpop.permute.xlu0 %4475
      %4477 = vrot.lane.b32.xlu0 %v3970, 20
      %v4478 = vpop.permute.xlu0 %4477
      %4479 = vrot.lane.b32.xlu0 %v3943, 20
      %v4480 = vpop.permute.xlu0 %4479
      %4481 = vrot.lane.b32.xlu0 %v3971, 20
      %v4482 = vpop.permute.xlu0 %4481
      %4483 = vrot.lane.b32.xlu0 %v3945, 20
      %v4484 = vpop.permute.xlu0 %4483
      %4485 = vrot.lane.b32.xlu0 %v3972, 20
      %v4486 = vpop.permute.xlu0 %4485
      %4487 = vrot.lane.b32.xlu0 %v3947, 20
      %v4488 = vpop.permute.xlu0 %4487
      %4489 = vrot.lane.b32.xlu0 %v3973, 20
      %v4490 = vpop.permute.xlu0 %4489
      %4491 = vrot.lane.b32.xlu0 %v3949, 20
      %v4492 = vpop.permute.xlu0 %4491
      %4493 = vrot.lane.b32.xlu0 %v3974, 20
      %v4494 = vpop.permute.xlu0 %4493
      %4495 = vrot.lane.b32.xlu0 %v3951, 20
      %v4496 = vpop.permute.xlu0 %4495
      %4497 = vrot.lane.b32.xlu0 %v3975, 20
      %v4498 = vpop.permute.xlu0 %4497
      %4499 = vrot.lane.b32.xlu0 %v3953, 20
      %v4500 = vpop.permute.xlu0 %4499
      %4501 = vrot.lane.b32.xlu0 %v3976, 20
      %v4502 = vpop.permute.xlu0 %4501
      %4503 = vrot.lane.b32.xlu0 %v3955, 20
      %v4504 = vpop.permute.xlu0 %4503
      %4505 = vrot.lane.b32.xlu0 %v3977, 20
      %v4506 = vpop.permute.xlu0 %4505
      %4507 = vrot.lane.b32.xlu0 %v3957, 20
      %v4508 = vpop.permute.xlu0 %4507
      %4509 = vrot.lane.b32.xlu0 %v3978, 20
      %v4510 = vpop.permute.xlu0 %4509
      %4511 = vrot.lane.b32.xlu0 %v3959, 20
      %v4512 = vpop.permute.xlu0 %4511
      %4513 = vrot.lane.b32.xlu0 %v3979, 20
      %v4514 = vpop.permute.xlu0 %4513
      %4515 = vrot.lane.b32.xlu0 %v3961, 20
      %v4516 = vpop.permute.xlu0 %4515
      %4517 = vrot.lane.b32.xlu0 %v3980, 20
      %v4518 = vpop.permute.xlu0 %4517
      %4519 = vrot.lane.b32.xlu0 %v3963, 20
      %v4520 = vpop.permute.xlu0 %4519
      %4521 = vrot.lane.b32.xlu0 %v3981, 20
      %v4522 = vpop.permute.xlu0 %4521
      %4523 = vrot.lane.b32.xlu0 %v3965, 20
      %v4524 = vpop.permute.xlu0 %4523
      %4525 = vrot.lane.b32.xlu0 %v3982, 20
      %v4526 = vpop.permute.xlu0 %4525
      %4527 = vrot.lane.b32.xlu0 %v3967, 20
      %v4528 = vpop.permute.xlu0 %4527
      %4529 = vrot.lane.b32.xlu0 %v3983, 20
      %v4530 = vpop.permute.xlu0 %4529
      %4595 = vrot.lane.b32.xlu0 %v3987, 24
      %v4596 = vpop.permute.xlu0 %4595
      %4597 = vrot.lane.b32.xlu0 %v3988, 24
      %v4598 = vpop.permute.xlu0 %4597
      %4599 = vrot.lane.b32.xlu0 %v3989, 24
      %v4600 = vpop.permute.xlu0 %4599
      %4601 = vrot.lane.b32.xlu0 %v3990, 24
      %v4602 = vpop.permute.xlu0 %4601
      %4603 = vrot.lane.b32.xlu0 %v3991, 24
      %v4604 = vpop.permute.xlu0 %4603
      %4605 = vrot.lane.b32.xlu0 %v3992, 24
      %v4606 = vpop.permute.xlu0 %4605
      %4607 = vrot.lane.b32.xlu0 %v3993, 24
      %v4608 = vpop.permute.xlu0 %4607
      %4609 = vrot.lane.b32.xlu0 %v3994, 24
      %v4610 = vpop.permute.xlu0 %4609
      %4611 = vrot.lane.b32.xlu0 %v3995, 24
      %v4612 = vpop.permute.xlu0 %4611
      %4613 = vrot.lane.b32.xlu0 %v3996, 24
      %v4614 = vpop.permute.xlu0 %4613
      %4615 = vrot.lane.b32.xlu0 %v3997, 24
      %v4616 = vpop.permute.xlu0 %4615
      %4617 = vrot.lane.b32.xlu0 %v3998, 24
      %v4618 = vpop.permute.xlu0 %4617
      %4619 = vrot.lane.b32.xlu0 %v3999, 24
      %v4620 = vpop.permute.xlu0 %4619
      %4621 = vrot.lane.b32.xlu0 %v4000, 24
      %v4622 = vpop.permute.xlu0 %4621
      %4623 = vrot.lane.b32.xlu0 %v4001, 24
      %v4624 = vpop.permute.xlu0 %4623
      %4625 = vrot.lane.b32.xlu0 %v4002, 24
      %v4626 = vpop.permute.xlu0 %4625
      %4627 = vrot.lane.b32.xlu0 %v4003, 24
      %v4628 = vpop.permute.xlu0 %4627
      %4629 = vrot.lane.b32.xlu0 %v4004, 24
      %v4630 = vpop.permute.xlu0 %4629
      %4631 = vrot.lane.b32.xlu0 %v4005, 24
      %v4632 = vpop.permute.xlu0 %4631
      %4633 = vrot.lane.b32.xlu0 %v4006, 24
      %v4634 = vpop.permute.xlu0 %4633
      %4635 = vrot.lane.b32.xlu0 %v4007, 24
      %v4636 = vpop.permute.xlu0 %4635
      %4637 = vrot.lane.b32.xlu0 %v4008, 24
      %v4638 = vpop.permute.xlu0 %4637
      %4639 = vrot.lane.b32.xlu0 %v4009, 24
      %v4640 = vpop.permute.xlu0 %4639
      %4641 = vrot.lane.b32.xlu0 %v4010, 24
      %v4642 = vpop.permute.xlu0 %4641
      %4643 = vrot.lane.b32.xlu0 %v4011, 24
      %v4644 = vpop.permute.xlu0 %4643
      %4645 = vrot.lane.b32.xlu0 %v4012, 24
      %v4646 = vpop.permute.xlu0 %4645
      %4647 = vrot.lane.b32.xlu0 %v4013, 24
      %v4648 = vpop.permute.xlu0 %4647
      %4649 = vrot.lane.b32.xlu0 %v4014, 24
      %v4650 = vpop.permute.xlu0 %4649
      %4651 = vrot.lane.b32.xlu0 %v4015, 24
      %v4652 = vpop.permute.xlu0 %4651
      %4653 = vrot.lane.b32.xlu0 %v4016, 24
      %v4654 = vpop.permute.xlu0 %4653
      %4655 = vrot.lane.b32.xlu0 %v4017, 24
      %v4656 = vpop.permute.xlu0 %4655
      %4657 = vrot.lane.b32.xlu0 %v4018, 24
      %v4658 = vpop.permute.xlu0 %4657
      %4723 = vrot.lane.b32.xlu0 %v4019, 28
      %v4724 = vpop.permute.xlu0 %4723
      %4725 = vrot.lane.b32.xlu0 %v4020, 28
      %v4726 = vpop.permute.xlu0 %4725
      %4727 = vrot.lane.b32.xlu0 %v4021, 28
      %v4728 = vpop.permute.xlu0 %4727
      %4729 = vrot.lane.b32.xlu0 %v4022, 28
      %v4730 = vpop.permute.xlu0 %4729
      %4731 = vrot.lane.b32.xlu0 %v4023, 28
      %v4732 = vpop.permute.xlu0 %4731
      %4733 = vrot.lane.b32.xlu0 %v4024, 28
      %v4734 = vpop.permute.xlu0 %4733
      %4735 = vrot.lane.b32.xlu0 %v4025, 28
      %v4736 = vpop.permute.xlu0 %4735
      %4737 = vrot.lane.b32.xlu0 %v4026, 28
      %v4738 = vpop.permute.xlu0 %4737
      %4739 = vrot.lane.b32.xlu0 %v4027, 28
      %v4740 = vpop.permute.xlu0 %4739
      %4741 = vrot.lane.b32.xlu0 %v4028, 28
      %v4742 = vpop.permute.xlu0 %4741
      %4743 = vrot.lane.b32.xlu0 %v4029, 28
      %v4744 = vpop.permute.xlu0 %4743
      %4745 = vrot.lane.b32.xlu0 %v4030, 28
      %v4746 = vpop.permute.xlu0 %4745
      %4747 = vrot.lane.b32.xlu0 %v4031, 28
      %v4748 = vpop.permute.xlu0 %4747
      %4749 = vrot.lane.b32.xlu0 %v4032, 28
      %v4750 = vpop.permute.xlu0 %4749
      %4751 = vrot.lane.b32.xlu0 %v4033, 28
      %v4752 = vpop.permute.xlu0 %4751
      %4753 = vrot.lane.b32.xlu0 %v4034, 28
      %v4754 = vpop.permute.xlu0 %4753
      %4755 = vrot.lane.b32.xlu0 %v4035, 28
      %v4756 = vpop.permute.xlu0 %4755
      %4757 = vrot.lane.b32.xlu0 %v4036, 28
      %v4758 = vpop.permute.xlu0 %4757
      %4759 = vrot.lane.b32.xlu0 %v4037, 28
      %v4760 = vpop.permute.xlu0 %4759
      %4761 = vrot.lane.b32.xlu0 %v4038, 28
      %v4762 = vpop.permute.xlu0 %4761
      %4763 = vrot.lane.b32.xlu0 %v4039, 28
      %v4764 = vpop.permute.xlu0 %4763
      %4765 = vrot.lane.b32.xlu0 %v4040, 28
      %v4766 = vpop.permute.xlu0 %4765
      %4767 = vrot.lane.b32.xlu0 %v4041, 28
      %v4768 = vpop.permute.xlu0 %4767
      %4769 = vrot.lane.b32.xlu0 %v4042, 28
      %v4770 = vpop.permute.xlu0 %4769
      %4771 = vrot.lane.b32.xlu0 %v4043, 28
      %v4772 = vpop.permute.xlu0 %4771
      %4773 = vrot.lane.b32.xlu0 %v4044, 28
      %v4774 = vpop.permute.xlu0 %4773
      %4775 = vrot.lane.b32.xlu0 %v4045, 28
      %v4776 = vpop.permute.xlu0 %4775
      %4777 = vrot.lane.b32.xlu0 %v4046, 28
      %v4778 = vpop.permute.xlu0 %4777
      %4779 = vrot.lane.b32.xlu0 %v4047, 28
      %v4780 = vpop.permute.xlu0 %4779
      %4781 = vrot.lane.b32.xlu0 %v4048, 28
      %v4782 = vpop.permute.xlu0 %4781
      %4783 = vrot.lane.b32.xlu0 %v4049, 28
      %v4784 = vpop.permute.xlu0 %4783
      %4785 = vrot.lane.b32.xlu0 %v4050, 28
      %v4786 = vpop.permute.xlu0 %4785
      %4835 = vrot.lane.b32.xlu0 %v3988, 32
      %v4836 = vpop.permute.xlu0 %4835
      %4837 = vrot.lane.b32.xlu0 %v4051, 32
      %v4838 = vpop.permute.xlu0 %4837
      %4839 = vrot.lane.b32.xlu0 %v3990, 32
      %v4840 = vpop.permute.xlu0 %4839
      %4841 = vrot.lane.b32.xlu0 %v4052, 32
      %v4842 = vpop.permute.xlu0 %4841
      %4843 = vrot.lane.b32.xlu0 %v3992, 32
      %v4844 = vpop.permute.xlu0 %4843
      %4845 = vrot.lane.b32.xlu0 %v4053, 32
      %v4846 = vpop.permute.xlu0 %4845
      %4847 = vrot.lane.b32.xlu0 %v3994, 32
      %v4848 = vpop.permute.xlu0 %4847
      %4849 = vrot.lane.b32.xlu0 %v4054, 32
      %v4850 = vpop.permute.xlu0 %4849
      %4851 = vrot.lane.b32.xlu0 %v3996, 32
      %v4852 = vpop.permute.xlu0 %4851
      %4853 = vrot.lane.b32.xlu0 %v4055, 32
      %v4854 = vpop.permute.xlu0 %4853
      %4855 = vrot.lane.b32.xlu0 %v3998, 32
      %v4856 = vpop.permute.xlu0 %4855
      %4857 = vrot.lane.b32.xlu0 %v4056, 32
      %v4858 = vpop.permute.xlu0 %4857
      %4859 = vrot.lane.b32.xlu0 %v4000, 32
      %v4860 = vpop.permute.xlu0 %4859
      %4861 = vrot.lane.b32.xlu0 %v4057, 32
      %v4862 = vpop.permute.xlu0 %4861
      %4863 = vrot.lane.b32.xlu0 %v4002, 32
      %v4864 = vpop.permute.xlu0 %4863
      %4865 = vrot.lane.b32.xlu0 %v4058, 32
      %v4866 = vpop.permute.xlu0 %4865
      %4867 = vrot.lane.b32.xlu0 %v4004, 32
      %v4868 = vpop.permute.xlu0 %4867
      %4869 = vrot.lane.b32.xlu0 %v4059, 32
      %v4870 = vpop.permute.xlu0 %4869
      %4871 = vrot.lane.b32.xlu0 %v4006, 32
      %v4872 = vpop.permute.xlu0 %4871
      %4873 = vrot.lane.b32.xlu0 %v4060, 32
      %v4874 = vpop.permute.xlu0 %4873
      %4875 = vrot.lane.b32.xlu0 %v4008, 32
      %v4876 = vpop.permute.xlu0 %4875
      %4877 = vrot.lane.b32.xlu0 %v4061, 32
      %v4878 = vpop.permute.xlu0 %4877
      %4879 = vrot.lane.b32.xlu0 %v4010, 32
      %v4880 = vpop.permute.xlu0 %4879
      %4881 = vrot.lane.b32.xlu0 %v4062, 32
      %v4882 = vpop.permute.xlu0 %4881
      %4883 = vrot.lane.b32.xlu0 %v4012, 32
      %v4884 = vpop.permute.xlu0 %4883
      %4885 = vrot.lane.b32.xlu0 %v4063, 32
      %v4886 = vpop.permute.xlu0 %4885
      %4887 = vrot.lane.b32.xlu0 %v4014, 32
      %v4888 = vpop.permute.xlu0 %4887
      %4889 = vrot.lane.b32.xlu0 %v4064, 32
      %v4890 = vpop.permute.xlu0 %4889
      %4891 = vrot.lane.b32.xlu0 %v4016, 32
      %v4892 = vpop.permute.xlu0 %4891
      %4893 = vrot.lane.b32.xlu0 %v4065, 32
      %v4894 = vpop.permute.xlu0 %4893
      %4895 = vrot.lane.b32.xlu0 %v4018, 32
      %v4896 = vpop.permute.xlu0 %4895
      %4897 = vrot.lane.b32.xlu0 %v4066, 32
      %v4898 = vpop.permute.xlu0 %4897
      %v4931 = vsel %vm1516, %v3856, %v4100
      %v4932 = vsel %vm1516, %v3857, %v4102
      %v4933 = vsel %vm1516, %v3858, %v4104
      %v4934 = vsel %vm1516, %v3859, %v4106
      %v4935 = vsel %vm1516, %v3860, %v4108
      %v4936 = vsel %vm1516, %v3861, %v4110
      %v4937 = vsel %vm1516, %v3862, %v4112
      %v4938 = vsel %vm1516, %v3863, %v4114
      %v4939 = vsel %vm1516, %v3864, %v4116
      %v4940 = vsel %vm1516, %v3865, %v4118
      %v4941 = vsel %vm1516, %v3866, %v4120
      %v4942 = vsel %vm1516, %v3867, %v4122
      %v4943 = vsel %vm1516, %v3868, %v4124
      %v4944 = vsel %vm1516, %v3869, %v4126
      %v4945 = vsel %vm1516, %v3870, %v4128
      %v4946 = vsel %vm1516, %v3871, %v4130
      %v4947 = vsel %vm1516, %v3872, %v4132
      %v4948 = vsel %vm1516, %v3873, %v4134
      %v4949 = vsel %vm1516, %v3874, %v4136
      %v4950 = vsel %vm1516, %v3875, %v4138
      %v4951 = vsel %vm1516, %v3876, %v4140
      %v4952 = vsel %vm1516, %v3877, %v4142
      %v4953 = vsel %vm1516, %v3878, %v4144
      %v4954 = vsel %vm1516, %v3879, %v4146
      %v4955 = vsel %vm1516, %v3880, %v4148
      %v4956 = vsel %vm1516, %v3881, %v4150
      %v4957 = vsel %vm1516, %v3882, %v4152
      %v4958 = vsel %vm1516, %v3883, %v4154
      %v4959 = vsel %vm1516, %v3884, %v4156
      %v4960 = vsel %vm1516, %v3885, %v4158
      %v4961 = vsel %vm1516, %v3886, %v4160
      %v4962 = vsel %vm1516, %v3887, %v4162
      %v4963 = vsel %vm1549, %v4931, %v4228
      %v4964 = vsel %vm1549, %v4932, %v4230
      %v4965 = vsel %vm1549, %v4933, %v4232
      %v4966 = vsel %vm1549, %v4934, %v4234
      %v4967 = vsel %vm1549, %v4935, %v4236
      %v4968 = vsel %vm1549, %v4936, %v4238
      %v4969 = vsel %vm1549, %v4937, %v4240
      %v4970 = vsel %vm1549, %v4938, %v4242
      %v4971 = vsel %vm1549, %v4939, %v4244
      %v4972 = vsel %vm1549, %v4940, %v4246
      %v4973 = vsel %vm1549, %v4941, %v4248
      %v4974 = vsel %vm1549, %v4942, %v4250
      %v4975 = vsel %vm1549, %v4943, %v4252
      %v4976 = vsel %vm1549, %v4944, %v4254
      %v4977 = vsel %vm1549, %v4945, %v4256
      %v4978 = vsel %vm1549, %v4946, %v4258
      %v4979 = vsel %vm1549, %v4947, %v4260
      %v4980 = vsel %vm1549, %v4948, %v4262
      %v4981 = vsel %vm1549, %v4949, %v4264
      %v4982 = vsel %vm1549, %v4950, %v4266
      %v4983 = vsel %vm1549, %v4951, %v4268
      %v4984 = vsel %vm1549, %v4952, %v4270
      %v4985 = vsel %vm1549, %v4953, %v4272
      %v4986 = vsel %vm1549, %v4954, %v4274
      %v4987 = vsel %vm1549, %v4955, %v4276
      %v4988 = vsel %vm1549, %v4956, %v4278
      %v4989 = vsel %vm1549, %v4957, %v4280
      %v4990 = vsel %vm1549, %v4958, %v4282
      %v4991 = vsel %vm1549, %v4959, %v4284
      %v4992 = vsel %vm1549, %v4960, %v4286
      %v4993 = vsel %vm1549, %v4961, %v4288
      %v4994 = vsel %vm1549, %v4962, %v4290
      %v4995 = vsel %vm1582, %v4963, %v4356
      %v4996 = vsel %vm1582, %v4964, %v4358
      %v4997 = vsel %vm1582, %v4965, %v4360
      %v4998 = vsel %vm1582, %v4966, %v4362
      %v4999 = vsel %vm1582, %v4967, %v4364
      %v5000 = vsel %vm1582, %v4968, %v4366
      %v5001 = vsel %vm1582, %v4969, %v4368
      %v5002 = vsel %vm1582, %v4970, %v4370
      %v5003 = vsel %vm1582, %v4971, %v4372
      %v5004 = vsel %vm1582, %v4972, %v4374
      %v5005 = vsel %vm1582, %v4973, %v4376
      %v5006 = vsel %vm1582, %v4974, %v4378
      %v5007 = vsel %vm1582, %v4975, %v4380
      %v5008 = vsel %vm1582, %v4976, %v4382
      %v5009 = vsel %vm1582, %v4977, %v4384
      %v5010 = vsel %vm1582, %v4978, %v4386
      %v5011 = vsel %vm1582, %v4979, %v4388
      %v5012 = vsel %vm1582, %v4980, %v4390
      %v5013 = vsel %vm1582, %v4981, %v4392
      %v5014 = vsel %vm1582, %v4982, %v4394
      %v5015 = vsel %vm1582, %v4983, %v4396
      %v5016 = vsel %vm1582, %v4984, %v4398
      %v5017 = vsel %vm1582, %v4985, %v4400
      %v5018 = vsel %vm1582, %v4986, %v4402
      %v5019 = vsel %vm1582, %v4987, %v4404
      %v5020 = vsel %vm1582, %v4988, %v4406
      %v5021 = vsel %vm1582, %v4989, %v4408
      %v5022 = vsel %vm1582, %v4990, %v4410
      %v5023 = vsel %vm1582, %v4991, %v4412
      %v5024 = vsel %vm1582, %v4992, %v4414
      %v5025 = vsel %vm1582, %v4993, %v4416
      %v5026 = vsel %vm1582, %v4994, %v4418
      %v5027 = vsel %vm1615, %v4995, %v909
      %v5028 = vsel %vm1615, %v4996, %v911
      %v5029 = vsel %vm1615, %v4997, %v913
      %v5030 = vsel %vm1615, %v4998, %v915
      %v5031 = vsel %vm1615, %v4999, %v917
      %v5032 = vsel %vm1615, %v5000, %v919
      %v5033 = vsel %vm1615, %v5001, %v921
      %v5034 = vsel %vm1615, %v5002, %v923
      %v5035 = vsel %vm1615, %v5003, %v925
      %v5036 = vsel %vm1615, %v5004, %v927
      %v5037 = vsel %vm1615, %v5005, %v929
      %v5038 = vsel %vm1615, %v5006, %v931
      %v5039 = vsel %vm1615, %v5007, %v933
      %v5040 = vsel %vm1615, %v5008, %v935
      %v5041 = vsel %vm1615, %v5009, %v937
      %v5042 = vsel %vm1615, %v5010, %v939
      %v5043 = vsel %vm1615, %v5011, %v941
      %v5044 = vsel %vm1615, %v5012, %v943
      %v5045 = vsel %vm1615, %v5013, %v945
      %v5046 = vsel %vm1615, %v5014, %v947
      %v5047 = vsel %vm1615, %v5015, %v949
      %v5048 = vsel %vm1615, %v5016, %v951
      %v5049 = vsel %vm1615, %v5017, %v953
      %v5050 = vsel %vm1615, %v5018, %v955
      %v5051 = vsel %vm1615, %v5019, %v957
      %v5052 = vsel %vm1615, %v5020, %v959
      %v5053 = vsel %vm1615, %v5021, %v961
      %v5054 = vsel %vm1615, %v5022, %v963
      %v5055 = vsel %vm1615, %v5023, %v965
      %v5056 = vsel %vm1615, %v5024, %v967
      %v5057 = vsel %vm1615, %v5025, %v969
      %v5058 = vsel %vm1615, %v5026, %v971
      %v5059 = vsel %vm1648, %v5027, %v4468
      %v5060 = vsel %vm1648, %v5028, %v4470
      %v5061 = vsel %vm1648, %v5029, %v4472
      %v5062 = vsel %vm1648, %v5030, %v4474
      %v5063 = vsel %vm1648, %v5031, %v4476
      %v5064 = vsel %vm1648, %v5032, %v4478
      %v5065 = vsel %vm1648, %v5033, %v4480
      %v5066 = vsel %vm1648, %v5034, %v4482
      %v5067 = vsel %vm1648, %v5035, %v4484
      %v5068 = vsel %vm1648, %v5036, %v4486
      %v5069 = vsel %vm1648, %v5037, %v4488
      %v5070 = vsel %vm1648, %v5038, %v4490
      %v5071 = vsel %vm1648, %v5039, %v4492
      %v5072 = vsel %vm1648, %v5040, %v4494
      %v5073 = vsel %vm1648, %v5041, %v4496
      %v5074 = vsel %vm1648, %v5042, %v4498
      %v5075 = vsel %vm1648, %v5043, %v4500
      %v5076 = vsel %vm1648, %v5044, %v4502
      %v5077 = vsel %vm1648, %v5045, %v4504
      %v5078 = vsel %vm1648, %v5046, %v4506
      %v5079 = vsel %vm1648, %v5047, %v4508
      %v5080 = vsel %vm1648, %v5048, %v4510
      %v5081 = vsel %vm1648, %v5049, %v4512
      %v5082 = vsel %vm1648, %v5050, %v4514
      %v5083 = vsel %vm1648, %v5051, %v4516
      %v5084 = vsel %vm1648, %v5052, %v4518
      %v5085 = vsel %vm1648, %v5053, %v4520
      %v5086 = vsel %vm1648, %v5054, %v4522
      %v5087 = vsel %vm1648, %v5055, %v4524
      %v5088 = vsel %vm1648, %v5056, %v4526
      %v5089 = vsel %vm1648, %v5057, %v4528
      %v5090 = vsel %vm1648, %v5058, %v4530
      %v5091 = vsel %vm1681, %v5059, %v4596
      %v5092 = vsel %vm1681, %v5060, %v4598
      %v5093 = vsel %vm1681, %v5061, %v4600
      %v5094 = vsel %vm1681, %v5062, %v4602
      %v5095 = vsel %vm1681, %v5063, %v4604
      %v5096 = vsel %vm1681, %v5064, %v4606
      %v5097 = vsel %vm1681, %v5065, %v4608
      %v5098 = vsel %vm1681, %v5066, %v4610
      %v5099 = vsel %vm1681, %v5067, %v4612
      %v5100 = vsel %vm1681, %v5068, %v4614
      %v5101 = vsel %vm1681, %v5069, %v4616
      %v5102 = vsel %vm1681, %v5070, %v4618
      %v5103 = vsel %vm1681, %v5071, %v4620
      %v5104 = vsel %vm1681, %v5072, %v4622
      %v5105 = vsel %vm1681, %v5073, %v4624
      %v5106 = vsel %vm1681, %v5074, %v4626
      %v5107 = vsel %vm1681, %v5075, %v4628
      %v5108 = vsel %vm1681, %v5076, %v4630
      %v5109 = vsel %vm1681, %v5077, %v4632
      %v5110 = vsel %vm1681, %v5078, %v4634
      %v5111 = vsel %vm1681, %v5079, %v4636
      %v5112 = vsel %vm1681, %v5080, %v4638
      %v5113 = vsel %vm1681, %v5081, %v4640
      %v5114 = vsel %vm1681, %v5082, %v4642
      %v5115 = vsel %vm1681, %v5083, %v4644
      %v5116 = vsel %vm1681, %v5084, %v4646
      %v5117 = vsel %vm1681, %v5085, %v4648
      %v5118 = vsel %vm1681, %v5086, %v4650
      %v5119 = vsel %vm1681, %v5087, %v4652
      %v5120 = vsel %vm1681, %v5088, %v4654
      %v5121 = vsel %vm1681, %v5089, %v4656
      %v5122 = vsel %vm1681, %v5090, %v4658
      %v5123 = vsel %vm1714, %v5091, %v4724
      %v5124 = vsel %vm1714, %v5092, %v4726
      %v5125 = vsel %vm1714, %v5093, %v4728
      %v5126 = vsel %vm1714, %v5094, %v4730
      %v5127 = vsel %vm1714, %v5095, %v4732
      %v5128 = vsel %vm1714, %v5096, %v4734
      %v5129 = vsel %vm1714, %v5097, %v4736
      %v5130 = vsel %vm1714, %v5098, %v4738
      %v5131 = vsel %vm1714, %v5099, %v4740
      %v5132 = vsel %vm1714, %v5100, %v4742
      %v5133 = vsel %vm1714, %v5101, %v4744
      %v5134 = vsel %vm1714, %v5102, %v4746
      %v5135 = vsel %vm1714, %v5103, %v4748
      %v5136 = vsel %vm1714, %v5104, %v4750
      %v5137 = vsel %vm1714, %v5105, %v4752
      %v5138 = vsel %vm1714, %v5106, %v4754
      %v5139 = vsel %vm1714, %v5107, %v4756
      %v5140 = vsel %vm1714, %v5108, %v4758
      %v5141 = vsel %vm1714, %v5109, %v4760
      %v5142 = vsel %vm1714, %v5110, %v4762
      %v5143 = vsel %vm1714, %v5111, %v4764
      %v5144 = vsel %vm1714, %v5112, %v4766
      %v5145 = vsel %vm1714, %v5113, %v4768
      %v5146 = vsel %vm1714, %v5114, %v4770
      %v5147 = vsel %vm1714, %v5115, %v4772
      %v5148 = vsel %vm1714, %v5116, %v4774
      %v5149 = vsel %vm1714, %v5117, %v4776
      %v5150 = vsel %vm1714, %v5118, %v4778
      %v5151 = vsel %vm1714, %v5119, %v4780
      %v5152 = vsel %vm1714, %v5120, %v4782
      %v5153 = vsel %vm1714, %v5121, %v4784
      %v5154 = vsel %vm1714, %v5122, %v4786
      %v5155 = vsel %vm1747, %v5123, %v4836
      %v5156 = vsel %vm1747, %v5124, %v4838
      %v5157 = vsel %vm1747, %v5125, %v4840
      %v5158 = vsel %vm1747, %v5126, %v4842
      %v5159 = vsel %vm1747, %v5127, %v4844
      %v5160 = vsel %vm1747, %v5128, %v4846
      %v5161 = vsel %vm1747, %v5129, %v4848
      %v5162 = vsel %vm1747, %v5130, %v4850
      %v5163 = vsel %vm1747, %v5131, %v4852
      %v5164 = vsel %vm1747, %v5132, %v4854
      %v5165 = vsel %vm1747, %v5133, %v4856
      %v5166 = vsel %vm1747, %v5134, %v4858
      %v5167 = vsel %vm1747, %v5135, %v4860
      %v5168 = vsel %vm1747, %v5136, %v4862
      %v5169 = vsel %vm1747, %v5137, %v4864
      %v5170 = vsel %vm1747, %v5138, %v4866
      %v5171 = vsel %vm1747, %v5139, %v4868
      %v5172 = vsel %vm1747, %v5140, %v4870
      %v5173 = vsel %vm1747, %v5141, %v4872
      %v5174 = vsel %vm1747, %v5142, %v4874
      %v5175 = vsel %vm1747, %v5143, %v4876
      %v5176 = vsel %vm1747, %v5144, %v4878
      %v5177 = vsel %vm1747, %v5145, %v4880
      %v5178 = vsel %vm1747, %v5146, %v4882
      %v5179 = vsel %vm1747, %v5147, %v4884
      %v5180 = vsel %vm1747, %v5148, %v4886
      %v5181 = vsel %vm1747, %v5149, %v4888
      %v5182 = vsel %vm1747, %v5150, %v4890
      %v5183 = vsel %vm1747, %v5151, %v4892
      %v5184 = vsel %vm1747, %v5152, %v4894
      %v5185 = vsel %vm1747, %v5153, %v4896
      %v5186 = vsel %vm1747, %v5154, %v4898
      %v5187 = vld [vmem:[%s1 + $0x48] sm:$0xff]
      %v5188 = vld [vmem:[%s1 + $0x50] sm:$0xff]
      %v5189 = vld [vmem:[%s1 + $0x58] sm:$0xff]
      %v5190 = vld [vmem:[%s1 + $0x60] sm:$0xff]
      %v5191 = vld [vmem:[%s1 + $0x68] sm:$0xf]
      %v5193 = vsel %vm3204, %v5155, 0
      %v5196 = vsel %vm3204, %v5156, 0
      %v5199 = vsel %vm3204, %v5157, 0
      %v5202 = vsel %vm3204, %v5158, 0
      %v5205 = vsel %vm3204, %v5159, 0
      %v5208 = vsel %vm3204, %v5160, 0
      %v5211 = vsel %vm3204, %v5161, 0
      %v5214 = vsel %vm3204, %v5162, 0
      %v5217 = vsel %vm3204, %v5163, 0
      %v5220 = vsel %vm3204, %v5164, 0
      %v5223 = vsel %vm3204, %v5165, 0
      %v5226 = vsel %vm3204, %v5166, 0
      %v5229 = vsel %vm3204, %v5167, 0
      %v5232 = vsel %vm3204, %v5168, 0
      %v5235 = vsel %vm3204, %v5169, 0
      %v5238 = vsel %vm3204, %v5170, 0
      %v5241 = vsel %vm3204, %v5171, 0
      %v5244 = vsel %vm3204, %v5172, 0
      %v5247 = vsel %vm3204, %v5173, 0
      %v5250 = vsel %vm3204, %v5174, 0
      %v5253 = vsel %vm3204, %v5175, 0
      %v5256 = vsel %vm3204, %v5176, 0
      %v5259 = vsel %vm3204, %v5177, 0
      %v5262 = vsel %vm3204, %v5178, 0
      %v5265 = vsel %vm3204, %v5179, 0
      %v5268 = vsel %vm3204, %v5180, 0
      %v5271 = vsel %vm3204, %v5181, 0
      %v5274 = vsel %vm3204, %v5182, 0
      %v5277 = vsel %vm3204, %v5183, 0
      %v5280 = vsel %vm3204, %v5184, 0
      %v5283 = vsel %vm3204, %v5185, 0
      %v5286 = vsel %vm3204, %v5186, 0
      %v5289 = vsel %vm3301, %v5191, 0
      %5291 = vmatprep.subr.mxu0 0.0
      %5292 = vmatpush1.msra.mxu0 0.0
      %5293 = vmatprep.subr.mxu0 0.0
      %5294 = vmatpush1.msra.mxu0 0.0
      %5295 = vmatprep.subr.mxu0 0.0
      %5296 = vmatpush1.msra.mxu0 0.0
      %5297 = vmatprep.subr.mxu0 0.0
      %5298 = vmatpush1.msra.mxu0 0.0
      %5299 = vmatprep.subr.mxu0 0.0
      %5300 = vmatpush1.msra.mxu0 0.0
      %5301 = vmatprep.subr.mxu0 0.0
      %5302 = vmatpush1.msra.mxu0 0.0
      %5303 = vmatprep.subr.mxu0 0.0
      %5304 = vmatpush1.msra.mxu0 0.0
      %5305 = vmatprep.subr.mxu0 0.0
      %5306 = vmatpush1.msra.mxu0 0.0
      %5307 = vmatprep.subr.mxu0 0.0
      %5308 = vmatpush1.msra.mxu0 0.0
      %5309 = vmatprep.subr.mxu0 0.0
      %5310 = vmatpush1.msra.mxu0 0.0
      %5311 = vmatprep.subr.mxu0 0.0
      %5312 = vmatpush1.msra.mxu0 0.0
      %5313 = vmatprep.subr.mxu0 0.0
      %5314 = vmatpush1.msra.mxu0 %v5289
      %5315 = vmatprep.subr.mxu0 0.0
      %5316 = vmatpush1.msra.mxu0 %v5190
      %5317 = vmatprep.subr.mxu0 0.0
      %5318 = vmatpush1.msra.mxu0 %v5189
      %5319 = vmatprep.subr.mxu0 0.0
      %5320 = vmatpush1.msra.mxu0 %v5188
      %5321 = vmatprep.subr.mxu0 0.0
      %5322 = vmatpush1.msra.mxu0 %v5187
      %5323 = vmatprep.subr.mxu0 0.0
      %5324 = vmatpush2.msra.mxu0 0.0
      %5325 = vmatprep.subr.mxu0 0.0
      %5326 = vmatpush2.msra.mxu0 0.0
      %5327 = vmatprep.subr.mxu0 0.0
      %5328 = vmatpush2.msra.mxu0 0.0
      %5329 = vmatprep.subr.mxu0 0.0
      %5330 = vmatpush2.msra.mxu0 0.0
      %5331 = vmatprep.subr.mxu0 0.0
      %5332 = vmatpush2.msra.mxu0 0.0
      %5333 = vmatprep.subr.mxu0 0.0
      %5334 = vmatpush2.msra.mxu0 0.0
      %5335 = vmatprep.subr.mxu0 0.0
      %5336 = vmatpush2.msra.mxu0 0.0
      %5337 = vmatprep.subr.mxu0 0.0
      %5338 = vmatpush2.msra.mxu0 0.0
      %5339 = vmatprep.subr.mxu0 0.0
      %5340 = vmatpush2.msra.mxu0 0.0
      %5341 = vmatprep.subr.mxu0 0.0
      %5342 = vmatpush2.msra.mxu0 0.0
      %5343 = vmatprep.subr.mxu0 0.0
      %5344 = vmatpush2.msra.mxu0 0.0
      %5345 = vmatprep.subr.mxu0 0.0
      %5346 = vmatpush2.msra.mxu0 0.0
      %5347 = vmatprep.subr.mxu0 0.0
      %5348 = vmatpush2.msra.mxu0 0.0
      %5349 = vmatprep.subr.mxu0 0.0
      %5350 = vmatpush2.msra.mxu0 0.0
      %5351 = vmatprep.subr.mxu0 0.0
      %5352 = vmatpush2.msra.mxu0 0.0
      %5353 = vmatprep.subr.mxu0 0.0
      %5354 = vmatpush2.msra.mxu0 0.0
      %5355 = vmatprep.mubr.f32.mxu0 0.0
      %5356 = vmatmul.mubr.f32.gmra.mxu0 %v5193
      %v5357 = vpop.f32.mrf.mxu0
      %v5358 = vadd.f32 0.0, %v5357
      %v5359 = vpop.f32.mrf.mxu0
      %5360 = vmatprep.mubr.f32.mxu0 0.0
      %5361 = vmatmul.mubr.f32.gmra.mxu0 %v5196
      %v5362 = vpop.f32.mrf.mxu0
      %v5363 = vadd.f32 0.0, %v5362
      %v5364 = vpop.f32.mrf.mxu0
      %5365 = vmatprep.mubr.f32.mxu0 0.0
      %5366 = vmatmul.mubr.f32.gmra.mxu0 %v5199
      %v5367 = vpop.f32.mrf.mxu0
      %v5368 = vadd.f32 0.0, %v5367
      %v5369 = vpop.f32.mrf.mxu0
      %5370 = vmatprep.mubr.f32.mxu0 0.0
      %5371 = vmatmul.mubr.f32.gmra.mxu0 %v5202
      %v5372 = vpop.f32.mrf.mxu0
      %v5373 = vadd.f32 0.0, %v5372
      %v5374 = vpop.f32.mrf.mxu0
      %5375 = vmatprep.mubr.f32.mxu0 0.0
      %5376 = vmatmul.mubr.f32.gmra.mxu0 %v5205
      %v5377 = vpop.f32.mrf.mxu0
      %v5378 = vadd.f32 0.0, %v5377
      %v5379 = vpop.f32.mrf.mxu0
      %5380 = vmatprep.mubr.f32.mxu0 0.0
      %5381 = vmatmul.mubr.f32.gmra.mxu0 %v5208
      %v5382 = vpop.f32.mrf.mxu0
      %v5383 = vadd.f32 0.0, %v5382
      %v5384 = vpop.f32.mrf.mxu0
      %5385 = vmatprep.mubr.f32.mxu0 0.0
      %5386 = vmatmul.mubr.f32.gmra.mxu0 %v5211
      %v5387 = vpop.f32.mrf.mxu0
      %v5388 = vadd.f32 0.0, %v5387
      %v5389 = vpop.f32.mrf.mxu0
      %5390 = vmatprep.mubr.f32.mxu0 0.0
      %5391 = vmatmul.mubr.f32.gmra.mxu0 %v5214
      %v5392 = vpop.f32.mrf.mxu0
      %v5393 = vadd.f32 0.0, %v5392
      %v5394 = vpop.f32.mrf.mxu0
      %5395 = vmatprep.mubr.f32.mxu0 0.0
      %5396 = vmatmul.mubr.f32.gmra.mxu0 %v5217
      %v5397 = vpop.f32.mrf.mxu0
      %v5398 = vadd.f32 0.0, %v5397
      %v5399 = vpop.f32.mrf.mxu0
      %5400 = vmatprep.mubr.f32.mxu0 0.0
      %5401 = vmatmul.mubr.f32.gmra.mxu0 %v5220
      %v5402 = vpop.f32.mrf.mxu0
      %v5403 = vadd.f32 0.0, %v5402
      %v5404 = vpop.f32.mrf.mxu0
      %5405 = vmatprep.mubr.f32.mxu0 0.0
      %5406 = vmatmul.mubr.f32.gmra.mxu0 %v5223
      %v5407 = vpop.f32.mrf.mxu0
      %v5408 = vadd.f32 0.0, %v5407
      %v5409 = vpop.f32.mrf.mxu0
      %5410 = vmatprep.mubr.f32.mxu0 0.0
      %5411 = vmatmul.mubr.f32.gmra.mxu0 %v5226
      %v5412 = vpop.f32.mrf.mxu0
      %v5413 = vadd.f32 0.0, %v5412
      %v5414 = vpop.f32.mrf.mxu0
      %5415 = vmatprep.mubr.f32.mxu0 0.0
      %5416 = vmatmul.mubr.f32.gmra.mxu0 %v5229
      %v5417 = vpop.f32.mrf.mxu0
      %v5418 = vadd.f32 0.0, %v5417
      %v5419 = vpop.f32.mrf.mxu0
      %5420 = vmatprep.mubr.f32.mxu0 0.0
      %5421 = vmatmul.mubr.f32.gmra.mxu0 %v5232
      %v5422 = vpop.f32.mrf.mxu0
      %v5423 = vadd.f32 0.0, %v5422
      %v5424 = vpop.f32.mrf.mxu0
      %5425 = vmatprep.mubr.f32.mxu0 0.0
      %5426 = vmatmul.mubr.f32.gmra.mxu0 %v5235
      %v5427 = vpop.f32.mrf.mxu0
      %v5428 = vadd.f32 0.0, %v5427
      %v5429 = vpop.f32.mrf.mxu0
      %5430 = vmatprep.mubr.f32.mxu0 0.0
      %5431 = vmatmul.mubr.f32.gmra.mxu0 %v5238
      %v5432 = vpop.f32.mrf.mxu0
      %v5433 = vadd.f32 0.0, %v5432
      %v5434 = vpop.f32.mrf.mxu0
      %5435 = vmatprep.mubr.f32.mxu0 0.0
      %5436 = vmatmul.mubr.f32.gmra.mxu0 %v5241
      %v5437 = vpop.f32.mrf.mxu0
      %v5438 = vadd.f32 0.0, %v5437
      %v5439 = vpop.f32.mrf.mxu0
      %5440 = vmatprep.mubr.f32.mxu0 0.0
      %5441 = vmatmul.mubr.f32.gmra.mxu0 %v5244
      %v5442 = vpop.f32.mrf.mxu0
      %v5443 = vadd.f32 0.0, %v5442
      %v5444 = vpop.f32.mrf.mxu0
      %5445 = vmatprep.mubr.f32.mxu0 0.0
      %5446 = vmatmul.mubr.f32.gmra.mxu0 %v5247
      %v5447 = vpop.f32.mrf.mxu0
      %v5448 = vadd.f32 0.0, %v5447
      %v5449 = vpop.f32.mrf.mxu0
      %5450 = vmatprep.mubr.f32.mxu0 0.0
      %5451 = vmatmul.mubr.f32.gmra.mxu0 %v5250
      %v5452 = vpop.f32.mrf.mxu0
      %v5453 = vadd.f32 0.0, %v5452
      %v5454 = vpop.f32.mrf.mxu0
      %5455 = vmatprep.mubr.f32.mxu0 0.0
      %5456 = vmatmul.mubr.f32.gmra.mxu0 %v5253
      %v5457 = vpop.f32.mrf.mxu0
      %v5458 = vadd.f32 0.0, %v5457
      %v5459 = vpop.f32.mrf.mxu0
      %5460 = vmatprep.mubr.f32.mxu0 0.0
      %5461 = vmatmul.mubr.f32.gmra.mxu0 %v5256
      %v5462 = vpop.f32.mrf.mxu0
      %v5463 = vadd.f32 0.0, %v5462
      %v5464 = vpop.f32.mrf.mxu0
      %5465 = vmatprep.mubr.f32.mxu0 0.0
      %5466 = vmatmul.mubr.f32.gmra.mxu0 %v5259
      %v5467 = vpop.f32.mrf.mxu0
      %v5468 = vadd.f32 0.0, %v5467
      %v5469 = vpop.f32.mrf.mxu0
      %5470 = vmatprep.mubr.f32.mxu0 0.0
      %5471 = vmatmul.mubr.f32.gmra.mxu0 %v5262
      %v5472 = vpop.f32.mrf.mxu0
      %v5473 = vadd.f32 0.0, %v5472
      %v5474 = vpop.f32.mrf.mxu0
      %5475 = vmatprep.mubr.f32.mxu0 0.0
      %5476 = vmatmul.mubr.f32.gmra.mxu0 %v5265
      %v5477 = vpop.f32.mrf.mxu0
      %v5478 = vadd.f32 0.0, %v5477
      %v5479 = vpop.f32.mrf.mxu0
      %5480 = vmatprep.mubr.f32.mxu0 0.0
      %5481 = vmatmul.mubr.f32.gmra.mxu0 %v5268
      %v5482 = vpop.f32.mrf.mxu0
      %v5483 = vadd.f32 0.0, %v5482
      %v5484 = vpop.f32.mrf.mxu0
      %5485 = vmatprep.mubr.f32.mxu0 0.0
      %5486 = vmatmul.mubr.f32.gmra.mxu0 %v5271
      %v5487 = vpop.f32.mrf.mxu0
      %v5488 = vadd.f32 0.0, %v5487
      %v5489 = vpop.f32.mrf.mxu0
      %5490 = vmatprep.mubr.f32.mxu0 0.0
      %5491 = vmatmul.mubr.f32.gmra.mxu0 %v5274
      %v5492 = vpop.f32.mrf.mxu0
      %v5493 = vadd.f32 0.0, %v5492
      %v5494 = vpop.f32.mrf.mxu0
      %5495 = vmatprep.mubr.f32.mxu0 0.0
      %5496 = vmatmul.mubr.f32.gmra.mxu0 %v5277
      %v5497 = vpop.f32.mrf.mxu0
      %v5498 = vadd.f32 0.0, %v5497
      %v5499 = vpop.f32.mrf.mxu0
      %5500 = vmatprep.mubr.f32.mxu0 0.0
      %5501 = vmatmul.mubr.f32.gmra.mxu0 %v5280
      %v5502 = vpop.f32.mrf.mxu0
      %v5503 = vadd.f32 0.0, %v5502
      %v5504 = vpop.f32.mrf.mxu0
      %5505 = vmatprep.mubr.f32.mxu0 0.0
      %5506 = vmatmul.mubr.f32.gmra.mxu0 %v5283
      %v5507 = vpop.f32.mrf.mxu0
      %v5508 = vadd.f32 0.0, %v5507
      %v5509 = vpop.f32.mrf.mxu0
      %5510 = vmatprep.mubr.f32.mxu0 0.0
      %5511 = vmatmul.mubr.f32.gmra.mxu0 %v5286
      %v5512 = vpop.f32.mrf.mxu0
      %v5513 = vadd.f32 0.0, %v5512
      %v5514 = vpop.f32.mrf.mxu0
      %5515 = vdwg.mxu0
      %v5516 = vadd.f32 %v3696, %v5358
      %v5517 = vadd.f32 %v3701, %v5363
      %v5518 = vadd.f32 %v3706, %v5368
      %v5519 = vadd.f32 %v3711, %v5373
      %v5520 = vadd.f32 %v3716, %v5378
      %v5521 = vadd.f32 %v3721, %v5383
      %v5522 = vadd.f32 %v3726, %v5388
      %v5523 = vadd.f32 %v3731, %v5393
      %v5524 = vadd.f32 %v3736, %v5398
      %v5525 = vadd.f32 %v3741, %v5403
      %v5526 = vadd.f32 %v3746, %v5408
      %v5527 = vadd.f32 %v3751, %v5413
      %v5528 = vadd.f32 %v3756, %v5418
      %v5529 = vadd.f32 %v3761, %v5423
      %v5530 = vadd.f32 %v3766, %v5428
      %v5531 = vadd.f32 %v3771, %v5433
      %v5532 = vadd.f32 %v3776, %v5438
      %v5533 = vadd.f32 %v3781, %v5443
      %v5534 = vadd.f32 %v3786, %v5448
      %v5535 = vadd.f32 %v3791, %v5453
      %v5536 = vadd.f32 %v3796, %v5458
      %v5537 = vadd.f32 %v3801, %v5463
      %v5538 = vadd.f32 %v3806, %v5468
      %v5539 = vadd.f32 %v3811, %v5473
      %v5540 = vadd.f32 %v3816, %v5478
      %v5541 = vadd.f32 %v3821, %v5483
      %v5542 = vadd.f32 %v3826, %v5488
      %v5543 = vadd.f32 %v3831, %v5493
      %v5544 = vadd.f32 %v3836, %v5498
      %v5545 = vadd.f32 %v3841, %v5503
      %v5546 = vadd.f32 %v3846, %v5508
      %v5547 = vadd.f32 %v3851, %v5513
      %v5548 = vld [vmem:[%s2] sm:$0x1]
      %v5550 = vlaneseq
      %v5551 = vshrl.u32 %v5550, 7
      %v5552 = vsub.s32 0, %v5551
      %v5553 = vrot.slane %v5548, %v5552
      %v5555 = vadd.f32 %v5516, %v5553
      %v5556 = vadd.f32 %v5517, %v5553
      %v5557 = vadd.f32 %v5518, %v5553
      %v5558 = vadd.f32 %v5519, %v5553
      %v5559 = vadd.f32 %v5520, %v5553
      %v5560 = vadd.f32 %v5521, %v5553
      %v5561 = vadd.f32 %v5522, %v5553
      %v5562 = vadd.f32 %v5523, %v5553
      %v5563 = vadd.f32 %v5524, %v5553
      %v5564 = vadd.f32 %v5525, %v5553
      %v5565 = vadd.f32 %v5526, %v5553
      %v5566 = vadd.f32 %v5527, %v5553
      %v5567 = vadd.f32 %v5528, %v5553
      %v5568 = vadd.f32 %v5529, %v5553
      %v5569 = vadd.f32 %v5530, %v5553
      %v5570 = vadd.f32 %v5531, %v5553
      %v5571 = vadd.f32 %v5532, %v5553
      %v5572 = vadd.f32 %v5533, %v5553
      %v5573 = vadd.f32 %v5534, %v5553
      %v5574 = vadd.f32 %v5535, %v5553
      %v5575 = vadd.f32 %v5536, %v5553
      %v5576 = vadd.f32 %v5537, %v5553
      %v5577 = vadd.f32 %v5538, %v5553
      %v5578 = vadd.f32 %v5539, %v5553
      %v5579 = vadd.f32 %v5540, %v5553
      %v5580 = vadd.f32 %v5541, %v5553
      %v5581 = vadd.f32 %v5542, %v5553
      %v5582 = vadd.f32 %v5543, %v5553
      %v5583 = vadd.f32 %v5544, %v5553
      %v5584 = vadd.f32 %v5545, %v5553
      %v5585 = vadd.f32 %v5546, %v5553
      %v5586 = vadd.f32 %v5547, %v5553
      %5587 = vst.msk [vmem:[%s192] sm:$0xff] %vm1549, %v5555
      %5588 = vst.msk [vmem:[%s192 + $0x8] sm:$0xff] %vm1549, %v5556
      %5589 = vst.msk [vmem:[%s192 + $0x10] sm:$0xff] %vm1549, %v5557
      %5590 = vst.msk [vmem:[%s192 + $0x18] sm:$0xff] %vm1549, %v5558
      %5591 = vst.msk [vmem:[%s192 + $0x20] sm:$0xff] %vm1549, %v5559
      %5592 = vst.msk [vmem:[%s192 + $0x28] sm:$0xff] %vm1549, %v5560
      %5593 = vst.msk [vmem:[%s192 + $0x30] sm:$0xff] %vm1549, %v5561
      %5594 = vst.msk [vmem:[%s192 + $0x38] sm:$0xff] %vm1549, %v5562
      %5595 = vst.msk [vmem:[%s192 + $0x40] sm:$0xff] %vm1549, %v5563
      %5596 = vst.msk [vmem:[%s192 + $0x48] sm:$0xff] %vm1549, %v5564
      %5597 = vst.msk [vmem:[%s192 + $0x50] sm:$0xff] %vm1549, %v5565
      %5598 = vst.msk [vmem:[%s192 + $0x58] sm:$0xff] %vm1549, %v5566
      %5599 = vst.msk [vmem:[%s192 + $0x60] sm:$0xff] %vm1549, %v5567
      %5600 = vst.msk [vmem:[%s192 + $0x68] sm:$0xff] %vm1549, %v5568
      %5601 = vst.msk [vmem:[%s192 + $0x70] sm:$0xff] %vm1549, %v5569
      %5602 = vst.msk [vmem:[%s192 + $0x78] sm:$0xff] %vm1549, %v5570
      %5603 = vst.msk [vmem:[%s192 + $0x80] sm:$0xff] %vm1549, %v5571
      %5604 = vst.msk [vmem:[%s192 + $0x88] sm:$0xff] %vm1549, %v5572
      %5605 = vst.msk [vmem:[%s192 + $0x90] sm:$0xff] %vm1549, %v5573
      %5606 = vst.msk [vmem:[%s192 + $0x98] sm:$0xff] %vm1549, %v5574
      %5607 = vst.msk [vmem:[%s192 + $0xa0] sm:$0xff] %vm1549, %v5575
      %5608 = vst.msk [vmem:[%s192 + $0xa8] sm:$0xff] %vm1549, %v5576
      %5609 = vst.msk [vmem:[%s192 + $0xb0] sm:$0xff] %vm1549, %v5577
      %5610 = vst.msk [vmem:[%s192 + $0xb8] sm:$0xff] %vm1549, %v5578
      %5611 = vst.msk [vmem:[%s192 + $0xc0] sm:$0xff] %vm1549, %v5579
      %5612 = vst.msk [vmem:[%s192 + $0xc8] sm:$0xff] %vm1549, %v5580
      %5613 = vst.msk [vmem:[%s192 + $0xd0] sm:$0xff] %vm1549, %v5581
      %5614 = vst.msk [vmem:[%s192 + $0xd8] sm:$0xff] %vm1549, %v5582
      %5615 = vst.msk [vmem:[%s192 + $0xe0] sm:$0xff] %vm1549, %v5583
      %5616 = vst.msk [vmem:[%s192 + $0xe8] sm:$0xff] %vm1549, %v5584
      %5617 = vst.msk [vmem:[%s192 + $0xf0] sm:$0xff] %vm1549, %v5585
      %5618 = vst.msk [vmem:[%s192 + $0xf8] sm:$0xff] %vm1549, %v5586
      %s5619 = smul.u32 32, %s19
      %p5620 = scmp.lt.s32.totalorder %s18, 1
      %s5621 = scalar_select %p5620, %s18, 1
      %p5622 = scmp.lt.s32.totalorder %s5619, 31
      %s5623 = scalar_select %p5622, %s5619, 31
      %s5624 = smul.addr %s5621, 32
      %s5625 = sadd.s32 %s5623, %s5624
      %s5626 = smul.addr %s5625, 8
      %s5627 = scalar_lea.vmem %s3, %s5626
      // Predicated region
      $region33: #{tpu_custom_call.1} parent=31 // pred_check
        %p5628 = pneg %p114
      $region34: #{tpu_custom_call.1} parent=31 // pred_check_branch
        %5630 = sbr.rel (%p5628) target = $region36
      $region35: #{tpu_custom_call.1} parent=31 // pred_region
        %s5631 = smul.u32 32, %s19
      $region36: #{tpu_custom_call.1} parent=31 // pred_fallthru
        _
    $region32: #{tpu_custom_call.1} parent=5 // pred_fallthru
      _
    %p5632 = scmp.le.s32.totalorder 2, %s9
    // Predicated region
    $region37: #{tpu_custom_call.1} parent=5 // pred_check
      %p5633 = pneg %p5632
    $region38: #{tpu_custom_call.1} parent=5 // pred_check_branch
      %5635 = sbr.rel (%p5633) target = $region40
    $region39: #{tpu_custom_call.1} parent=5 // pred_region
      %s5636 = ssub.s32 %s9, 2
      // Predicated region
      $region41: #{tpu_custom_call.1} parent=39 // pred_check
        %p5637 = pneg %p120
      $region42: #{tpu_custom_call.1} parent=39 // pred_check_branch
        %5639 = sbr.rel (%p5637) target = $region44
      $region43: #{tpu_custom_call.1} parent=39 // pred_region
        %s5640 = smul.u32 32, %s21
        %p5641 = scmp.lt.s32.totalorder %s20, 1
        %s5642 = scalar_select %p5641, %s20, 1
        %p5643 = scmp.lt.s32.totalorder %s5640, 31
        %s5644 = scalar_select %p5643, %s5640, 31
        %s5645 = smul.addr %s5642, 32
        %s5646 = sadd.s32 %s5644, %s5645
        %s5647 = smul.addr %s5646, 8
        %s5648 = scalar_lea.vmem %s3, %s5647
      $region44: #{tpu_custom_call.1} parent=39 // pred_fallthru
        _
    $region40: #{tpu_custom_call.1} parent=5 // pred_fallthru
      _
  $region6: #{tpu_custom_call.1} parent=0 // loop_footer
    %s13 = sadd.s32 1, %s9
  $region7: #{tpu_custom_call.1} parent=0 // loop_footer_branch
    %8 = sbr.rel target = $region3
  $region8: #{tpu_custom_call.1} parent=0 // loop_exit
    _

// kernel: tpu_custom_call.1
$region0: #{tpu_custom_call.1}
  #allocation0 [shape = 'u32[]', space=smem, size = 0x4, offset = 0x4, fixed_abs, tag = 'smem constant byte address 0x4 - core index']
  #allocation1 [shape = 'u32[144,128]{1,0:T(1,128)}', space=vmem, size = 0x12000, scoped, tag = 'internal scratch']
  %s0 = inlined_call_operand.vmem [shape: f32[2,24,24,4], index: 0, kind: input, shape index: {}]
  %s1 = inlined_call_operand.vmem [shape: f32[108,8], index: 1, kind: input, shape index: {}]
  %s2 = inlined_call_operand.vmem [shape: f32[1,8], index: 2, kind: input, shape index: {}]
  %s3 = inlined_call_operand.vmem [shape: f32[2,256,8], index: 3, kind: output, shape index: {}]
  %s4 = sld [smem:[#allocation0]]
  $region45: #{tpu_custom_call.1} parent=0
    _
  %s6 = ssub.s32 1, %s4
  %s7 = scalar_select 0, %s6, %s4
  loop: start=0, step=1, limit=4
  $region2: #{tpu_custom_call.1} parent=0 // loop_pre_header
    _
  $region3: #{tpu_custom_call.1} parent=0 // loop_header
    %s9 = sphi 0, %s13
    %p10 = scmp.ge.s32.totalorder %s9, 4
    %s16 = sphi 0, %s28
    %s17 = sphi 0, %s24
    %s18 = sphi 0, %s16
    %s19 = sphi 0, %s17
    %s20 = sphi 0, %s18
    %s21 = sphi 0, %s19
    %s31 = sphi 0, %s33
    %s34 = sphi 0, %s31
    %s35 = sphi 0, %s34
    %s51 = sphi 0, %s35
    %s55 = sphi 0, %s55
    %s57 = sphi 0, %s55
    %s58 = sphi 0, %s57
    %s72 = sphi 0, %s58
    %s76 = sphi 0, %s76
    %s78 = sphi 0, %s76
    %s79 = sphi 0, %s78
    %s93 = sphi 0, %s79
    %s101 = sphi 0, %s103
    %s104 = sphi 0, %s101
    %s105 = sphi 0, %s104
    %s121 = sphi 0, %s105
  $region4: #{tpu_custom_call.1} parent=0 // loop_header_branch
    %12 = sbr.rel (%p10) target = $region8
  $region5: #{tpu_custom_call.1} parent=0 // loop_body
    %s14 = ssub.s32 %s9, 1
    %s15 = ssub.s32 %s9, 2
    %s22 = sadd.s32 1, %s17
    %p23 = scmp.ge.s32.totalorder %s22, 1
    %s24 = scalar_select %p23, 0, %s22
    %s25 = sadd.s32 1, %s16
    %s26 = scalar_select %p23, %s25, %s16
    %p27 = scmp.ge.s32.totalorder %s26, 2
    %s28 = scalar_select %p27, 0, %s26
    %s29 = ssub.s32 %s16, %s28
    %p30 = scmp.eq.s32.totalorder %s29, 0
    %s32 = sadd.s32 %s31, 1
    %s33 = scalar_select %p30, %s31, %s32
    %p36 = pneg %p30
    %p37 = scmp.eq.s32.totalorder %s9, 1
    %p38 = por %p36, %p37
    %p39 = scmp.ne.s32.totalorder %s31, %s34
    %p40 = scmp.eq.s32.totalorder %s9, 0
    %p41 = por %p39, %p40
    %p42 = scmp.ne.s32.totalorder %s31, %s34
    %p43 = scmp.eq.s32.totalorder %s14, 1
    %p44 = por %p42, %p43
    %p45 = scmp.ne.s32.totalorder %s34, %s35
    %p46 = scmp.eq.s32.totalorder %s14, 0
    %p47 = por %p45, %p46
    %p48 = scmp.ne.s32.totalorder %s34, %s35
    %p49 = scmp.eq.s32.totalorder %s15, 1
    %p50 = por %p48, %p49
    %p52 = scmp.ne.s32.totalorder %s35, %s51
    %p53 = scmp.eq.s32.totalorder %s15, 0
    %p54 = por %p52, %p53
    %s56 = sadd.s32 %s55, 1
    %p59 = scmp.eq.s32.totalorder %s9, 1
    %p60 = scmp.ne.s32.totalorder %s55, %s57
    %p61 = scmp.eq.s32.totalorder %s9, 0
    %p62 = por %p60, %p61
    %p63 = scmp.ne.s32.totalorder %s55, %s57
    %p64 = scmp.eq.s32.totalorder %s14, 1
    %p65 = por %p63, %p64
    %p66 = scmp.ne.s32.totalorder %s57, %s58
    %p67 = scmp.eq.s32.totalorder %s14, 0
    %p68 = por %p66, %p67
    %p69 = scmp.ne.s32.totalorder %s57, %s58
    %p70 = scmp.eq.s32.totalorder %s15, 1
    %p71 = por %p69, %p70
    %p73 = scmp.ne.s32.totalorder %s58, %s72
    %p74 = scmp.eq.s32.totalorder %s15, 0
    %p75 = por %p73, %p74
    %s77 = sadd.s32 %s76, 1
    %p80 = scmp.eq.s32.totalorder %s9, 1
    %p81 = scmp.ne.s32.totalorder %s76, %s78
    %p82 = scmp.eq.s32.totalorder %s9, 0
    %p83 = por %p81, %p82
    %p84 = scmp.ne.s32.totalorder %s76, %s78
    %p85 = scmp.eq.s32.totalorder %s14, 1
    %p86 = por %p84, %p85
    %p87 = scmp.ne.s32.totalorder %s78, %s79
    %p88 = scmp.eq.s32.totalorder %s14, 0
    %p89 = por %p87, %p88
    %p90 = scmp.ne.s32.totalorder %s78, %s79
    %p91 = scmp.eq.s32.totalorder %s15, 1
    %p92 = por %p90, %p91
    %p94 = scmp.ne.s32.totalorder %s79, %s93
    %p95 = scmp.eq.s32.totalorder %s15, 0
    %p96 = por %p94, %p95
    %s97 = ssub.s32 %s16, %s28
    %s98 = ssub.s32 %s17, %s24
    %s99 = sor.u32 %s97, %s98
    %p100 = scmp.eq.s32.totalorder %s99, 0
    %s102 = sadd.s32 %s101, 1
    %s103 = scalar_select %p100, %s101, %s102
    %p106 = pneg %p100
    %p107 = scmp.eq.s32.totalorder %s9, 1
    %p108 = por %p106, %p107
    %p109 = scmp.ne.s32.totalorder %s101, %s104
    %p110 = scmp.eq.s32.totalorder %s9, 0
    %p111 = por %p109, %p110
    %p112 = scmp.ne.s32.totalorder %s101, %s104
    %p113 = scmp.eq.s32.totalorder %s14, 1
    %p114 = por %p112, %p113
    %p115 = scmp.ne.s32.totalorder %s104, %s105
    %p116 = scmp.eq.s32.totalorder %s14, 0
    %p117 = por %p115, %p116
    %p118 = scmp.ne.s32.totalorder %s104, %s105
    %p119 = scmp.eq.s32.totalorder %s15, 1
    %p120 = por %p118, %p119
    %p122 = scmp.ne.s32.totalorder %s105, %s121
    %p123 = scmp.eq.s32.totalorder %s15, 0
    %p124 = por %p122, %p123
    %p125 = scmp.le.s32.totalorder 1, %s9
    %p126 = scmp.lt.s32.totalorder %s9, 3
    %p127 = pnand %p125, %p126
    %p128 = pneg %p127
    // Predicated region
    $region9: #{tpu_custom_call.1} parent=5 // pred_check
      _
    $region10: #{tpu_custom_call.1} parent=5 // pred_check_branch
      %130 = sbr.rel (%p127) target = $region12
    $region11: #{tpu_custom_call.1} parent=5 // pred_region
      %s131 = ssub.s32 %s9, 1
      // Predicated region
      $region13: #{tpu_custom_call.1} parent=11 // pred_check
        %p132 = pneg %p68
      $region14: #{tpu_custom_call.1} parent=11 // pred_check_branch
        %134 = sbr.rel (%p132) target = $region16
      $region15: #{tpu_custom_call.1} parent=11 // pred_region
        _
      $region16: #{tpu_custom_call.1} parent=11 // pred_fallthru
        _
      // Predicated region
      $region17: #{tpu_custom_call.1} parent=11 // pred_check
        %p135 = pneg %p89
      $region18: #{tpu_custom_call.1} parent=11 // pred_check_branch
        %137 = sbr.rel (%p135) target = $region20
      $region19: #{tpu_custom_call.1} parent=11 // pred_region
        _
      $region20: #{tpu_custom_call.1} parent=11 // pred_fallthru
        _
    $region12: #{tpu_custom_call.1} parent=5 // pred_fallthru
      _
    %p138 = scmp.lt.s32.totalorder %s9, 2
    // Predicated region
    $region21: #{tpu_custom_call.1} parent=5 // pred_check
      %p139 = pneg %p138
    $region22: #{tpu_custom_call.1} parent=5 // pred_check_branch
      %141 = sbr.rel (%p139) target = $region24
    $region23: #{tpu_custom_call.1} parent=5 // pred_region
      // Predicated region
      $region25: #{tpu_custom_call.1} parent=23 // pred_check
        %p142 = pneg %p41
      $region26: #{tpu_custom_call.1} parent=23 // pred_check_branch
        %144 = sbr.rel (%p142) target = $region28
      $region27: #{tpu_custom_call.1} parent=23 // pred_region
        %p145 = scmp.lt.s32.totalorder %s16, 1
        %s146 = scalar_select %p145, %s16, 1
        %s147 = smul.addr %s146, 72
        %s148 = smul.addr %s147, 8
        %s149 = scalar_lea.vmem %s0, %s148
      $region28: #{tpu_custom_call.1} parent=23 // pred_fallthru
        _
    $region24: #{tpu_custom_call.1} parent=5 // pred_fallthru
      _
    %p150 = scmp.le.s32.totalorder 1, %s9
    %p151 = scmp.lt.s32.totalorder %s9, 3
    %p152 = pnand %p150, %p151
    %p153 = pneg %p152
    // Predicated region
    $region29: #{tpu_custom_call.1} parent=5 // pred_check
      _
    $region30: #{tpu_custom_call.1} parent=5 // pred_check_branch
      %155 = sbr.rel (%p152) target = $region32
    $region31: #{tpu_custom_call.1} parent=5 // pred_region
      %s156 = ssub.s32 %s9, 1
      %p157 = scmp.lt.s32.totalorder %s18, 1
      %s158 = scalar_select %p157, %s18, 1
      %s159 = smul.addr %s158, 72
      %s160 = smul.addr %s159, 8
      %s161 = scalar_lea.vmem %s0, %s160
      %p162 = pneg %p47
      %p163 = pneg %p44
      %p164 = pneg %p68
      %p165 = pneg %p65
      %p166 = pneg %p89
      %p167 = pneg %p86
      %p168 = pneg %p117
      %p169 = pneg %p114
      %s170 = smul.u32 32, %s19
      %p171 = scmp.lt.s32.totalorder %s18, 1
      %s172 = scalar_select %p171, %s18, 1
      %p173 = scmp.lt.s32.totalorder %s170, 31
      %s174 = scalar_select %p173, %s170, 31
      %s175 = smul.addr %s172, 32
      %s176 = sadd.s32 %s174, %s175
      %s177 = smul.addr %s176, 8
      %s178 = scalar_lea.vmem %s3, %s177
      %p179 = scmp.lt.s32.totalorder %s18, 1
      %s180 = scalar_select %p179, %s18, 1
      %s181 = smul.addr %s180, 72
      %s182 = smul.addr %s181, 8
      %s183 = scalar_lea.vmem %s0, %s182
      %s184 = smul.u32 32, %s19
      %p185 = scmp.lt.s32.totalorder %s18, 1
      %s186 = scalar_select %p185, %s18, 1
      %p187 = scmp.lt.s32.totalorder %s184, 31
      %s188 = scalar_select %p187, %s184, 31
      %s189 = smul.addr %s186, 32
      %s190 = sadd.s32 %s188, %s189
      %s191 = smul.addr %s190, 8
      %s192 = scalar_lea.vmem %s3, %s191
      %s193 = smul.u32 32, %s19
      %s194 = smul.u32 %s19, 16
      %s195 = sadd.s32 %s194, 3
      %s196 = smul.u32 %s195, 24
      %s197 = scalar_lea.vmem %s183, %s196
      %v198 = vld [vmem:[%s197 + $0x3] sm:$0xff]
      %v199 = vld [vmem:[%s197 + $0xb] sm:$0xff]
      %v200 = vld [vmem:[%s197 + $0x1b] sm:$0xff]
      %v201 = vld [vmem:[%s197 + $0x23] sm:$0xff]
      %v202 = vld [vmem:[%s197 + $0x33] sm:$0xff]
      %v203 = vld [vmem:[%s197 + $0x3b] sm:$0xff]
      %v204 = vld [vmem:[%s197 + $0x4b] sm:$0xff]
      %v205 = vld [vmem:[%s197 + $0x53] sm:$0xff]
      %v206 = vld [vmem:[%s197 + $0x63] sm:$0xff]
      %v207 = vld [vmem:[%s197 + $0x6b] sm:$0xff]
      %v208 = vld [vmem:[%s197 + $0x7b] sm:$0xff]
      %v209 = vld [vmem:[%s197 + $0x83] sm:$0xff]
      %v210 = vld [vmem:[%s197 + $0x93] sm:$0xff]
      %v211 = vld [vmem:[%s197 + $0x9b] sm:$0xff]
      %v212 = vld [vmem:[%s197 + $0xab] sm:$0xff]
      %v213 = vld [vmem:[%s197 + $0xb3] sm:$0xff]
      %v214 = vld [vmem:[%s197 + $0xc3] sm:$0xff]
      %v215 = vld [vmem:[%s197 + $0xcb] sm:$0xff]
      %v216 = vld [vmem:[%s197 + $0xdb] sm:$0xff]
      %v217 = vld [vmem:[%s197 + $0xe3] sm:$0xff]
      %v218 = vld [vmem:[%s197 + $0xf3] sm:$0xff]
      %v219 = vld [vmem:[%s197 + $0xfb] sm:$0xff]
      %v220 = vld [vmem:[%s197 + $0x10b] sm:$0xff]
      %v221 = vld [vmem:[%s197 + $0x113] sm:$0xff]
      %v222 = vld [vmem:[%s197 + $0x123] sm:$0xff]
      %v223 = vld [vmem:[%s197 + $0x12b] sm:$0xff]
      %v224 = vld [vmem:[%s197 + $0x13b] sm:$0xff]
      %v225 = vld [vmem:[%s197 + $0x143] sm:$0xff]
      %v226 = vld [vmem:[%s197 + $0x153] sm:$0xff]
      %v227 = vld [vmem:[%s197 + $0x15b] sm:$0xff]
      %v228 = vld [vmem:[%s197 + $0x16b] sm:$0xff]
      %v229 = vld [vmem:[%s197 + $0x173] sm:$0xff]
      %v230 = vld [vmem:[%s197 + $0x4] sm:$0xff]
      %v231 = vld [vmem:[%s197 + $0xc] sm:$0xff]
      %v232 = vld [vmem:[%s197 + $0x1c] sm:$0xff]
      %v233 = vld [vmem:[%s197 + $0x24] sm:$0xff]
      %v234 = vld [vmem:[%s197 + $0x34] sm:$0xff]
      %v235 = vld [vmem:[%s197 + $0x3c] sm:$0xff]
      %v236 = vld [vmem:[%s197 + $0x4c] sm:$0xff]
      %v237 = vld [vmem:[%s197 + $0x54] sm:$0xff]
      %v238 = vld [vmem:[%s197 + $0x64] sm:$0xff]
      %v239 = vld [vmem:[%s197 + $0x6c] sm:$0xff]
      %v240 = vld [vmem:[%s197 + $0x7c] sm:$0xff]
      %v241 = vld [vmem:[%s197 + $0x84] sm:$0xff]
      %v242 = vld [vmem:[%s197 + $0x94] sm:$0xff]
      %v243 = vld [vmem:[%s197 + $0x9c] sm:$0xff]
      %v244 = vld [vmem:[%s197 + $0xac] sm:$0xff]
      %v245 = vld [vmem:[%s197 + $0xb4] sm:$0xff]
      %v246 = vld [vmem:[%s197 + $0xc4] sm:$0xff]
      %v247 = vld [vmem:[%s197 + $0xcc] sm:$0xff]
      %v248 = vld [vmem:[%s197 + $0xdc] sm:$0xff]
      %v249 = vld [vmem:[%s197 + $0xe4] sm:$0xff]
      %v250 = vld [vmem:[%s197 + $0xf4] sm:$0xff]
      %v251 = vld [vmem:[%s197 + $0xfc] sm:$0xff]
      %v252 = vld [vmem:[%s197 + $0x10c] sm:$0xff]
      %v253 = vld [vmem:[%s197 + $0x114] sm:$0xff]
      %v254 = vld [vmem:[%s197 + $0x124] sm:$0xff]
      %v255 = vld [vmem:[%s197 + $0x12c] sm:$0xff]
      %v256 = vld [vmem:[%s197 + $0x13c] sm:$0xff]
      %v257 = vld [vmem:[%s197 + $0x144] sm:$0xff]
      %v258 = vld [vmem:[%s197 + $0x154] sm:$0xff]
      %v259 = vld [vmem:[%s197 + $0x15c] sm:$0xff]
      %v260 = vld [vmem:[%s197 + $0x16c] sm:$0xff]
      %v261 = vld [vmem:[%s197 + $0x174] sm:$0xff]
      %v262 = vld [vmem:[%s197 + $0x5] sm:$0xff]
      %v263 = vld [vmem:[%s197 + $0xd] sm:$0xff]
      %v264 = vld [vmem:[%s197 + $0x1d] sm:$0xff]
      %v265 = vld [vmem:[%s197 + $0x25] sm:$0xff]
      %v266 = vld [vmem:[%s197 + $0x35] sm:$0xff]
      %v267 = vld [vmem:[%s197 + $0x3d] sm:$0xff]
      %v268 = vld [vmem:[%s197 + $0x4d] sm:$0xff]
      %v269 = vld [vmem:[%s197 + $0x55] sm:$0xff]
      %v270 = vld [vmem:[%s197 + $0x65] sm:$0xff]
      %v271 = vld [vmem:[%s197 + $0x6d] sm:$0xff]
      %v272 = vld [vmem:[%s197 + $0x7d] sm:$0xff]
      %v273 = vld [vmem:[%s197 + $0x85] sm:$0xff]
      %v274 = vld [vmem:[%s197 + $0x95] sm:$0xff]
      %v275 = vld [vmem:[%s197 + $0x9d] sm:$0xff]
      %v276 = vld [vmem:[%s197 + $0xad] sm:$0xff]
      %v277 = vld [vmem:[%s197 + $0xb5] sm:$0xff]
      %v278 = vld [vmem:[%s197 + $0xc5] sm:$0xff]
      %v279 = vld [vmem:[%s197 + $0xcd] sm:$0xff]
      %v280 = vld [vmem:[%s197 + $0xdd] sm:$0xff]
      %v281 = vld [vmem:[%s197 + $0xe5] sm:$0xff]
      %v282 = vld [vmem:[%s197 + $0xf5] sm:$0xff]
      %v283 = vld [vmem:[%s197 + $0xfd] sm:$0xff]
      %v284 = vld [vmem:[%s197 + $0x10d] sm:$0xff]
      %v285 = vld [vmem:[%s197 + $0x115] sm:$0xff]
      %v286 = vld [vmem:[%s197 + $0x125] sm:$0xff]
      %v287 = vld [vmem:[%s197 + $0x12d] sm:$0xff]
      %v288 = vld [vmem:[%s197 + $0x13d] sm:$0xff]
      %v289 = vld [vmem:[%s197 + $0x145] sm:$0xff]
      %v290 = vld [vmem:[%s197 + $0x155] sm:$0xff]
      %v291 = vld [vmem:[%s197 + $0x15d] sm:$0xff]
      %v292 = vld [vmem:[%s197 + $0x16d] sm:$0xff]
      %v293 = vld [vmem:[%s197 + $0x175] sm:$0xff]
      %s294 = sadd.s32 %s194, 4
      %s295 = smul.u32 %s294, 24
      %s296 = scalar_lea.vmem %s183, %s295
      %v297 = vld [vmem:[%s296 + $0x3] sm:$0xff]
      %v298 = vld [vmem:[%s296 + $0xb] sm:$0xff]
      %v299 = vld [vmem:[%s296 + $0x1b] sm:$0xff]
      %v300 = vld [vmem:[%s296 + $0x23] sm:$0xff]
      %v301 = vld [vmem:[%s296 + $0x33] sm:$0xff]
      %v302 = vld [vmem:[%s296 + $0x3b] sm:$0xff]
      %v303 = vld [vmem:[%s296 + $0x4b] sm:$0xff]
      %v304 = vld [vmem:[%s296 + $0x53] sm:$0xff]
      %v305 = vld [vmem:[%s296 + $0x63] sm:$0xff]
      %v306 = vld [vmem:[%s296 + $0x6b] sm:$0xff]
      %v307 = vld [vmem:[%s296 + $0x7b] sm:$0xff]
      %v308 = vld [vmem:[%s296 + $0x83] sm:$0xff]
      %v309 = vld [vmem:[%s296 + $0x93] sm:$0xff]
      %v310 = vld [vmem:[%s296 + $0x9b] sm:$0xff]
      %v311 = vld [vmem:[%s296 + $0xab] sm:$0xff]
      %v312 = vld [vmem:[%s296 + $0xb3] sm:$0xff]
      %v313 = vld [vmem:[%s296 + $0xc3] sm:$0xff]
      %v314 = vld [vmem:[%s296 + $0xcb] sm:$0xff]
      %v315 = vld [vmem:[%s296 + $0xdb] sm:$0xff]
      %v316 = vld [vmem:[%s296 + $0xe3] sm:$0xff]
      %v317 = vld [vmem:[%s296 + $0xf3] sm:$0xff]
      %v318 = vld [vmem:[%s296 + $0xfb] sm:$0xff]
      %v319 = vld [vmem:[%s296 + $0x10b] sm:$0xff]
      %v320 = vld [vmem:[%s296 + $0x113] sm:$0xff]
      %v321 = vld [vmem:[%s296 + $0x123] sm:$0xff]
      %v322 = vld [vmem:[%s296 + $0x12b] sm:$0xff]
      %v323 = vld [vmem:[%s296 + $0x13b] sm:$0xff]
      %v324 = vld [vmem:[%s296 + $0x143] sm:$0xff]
      %v325 = vld [vmem:[%s296 + $0x153] sm:$0xff]
      %v326 = vld [vmem:[%s296 + $0x15b] sm:$0xff]
      %v327 = vld [vmem:[%s296 + $0x16b] sm:$0xff]
      %v328 = vld [vmem:[%s296 + $0x173] sm:$0xff]
      %v329 = vld [vmem:[%s296 + $0x4] sm:$0xff]
      %v330 = vld [vmem:[%s296 + $0xc] sm:$0xff]
      %v331 = vld [vmem:[%s296 + $0x1c] sm:$0xff]
      %v332 = vld [vmem:[%s296 + $0x24] sm:$0xff]
      %v333 = vld [vmem:[%s296 + $0x34] sm:$0xff]
      %v334 = vld [vmem:[%s296 + $0x3c] sm:$0xff]
      %v335 = vld [vmem:[%s296 + $0x4c] sm:$0xff]
      %v336 = vld [vmem:[%s296 + $0x54] sm:$0xff]
      %v337 = vld [vmem:[%s296 + $0x64] sm:$0xff]
      %v338 = vld [vmem:[%s296 + $0x6c] sm:$0xff]
      %v339 = vld [vmem:[%s296 + $0x7c] sm:$0xff]
      %v340 = vld [vmem:[%s296 + $0x84] sm:$0xff]
      %v341 = vld [vmem:[%s296 + $0x94] sm:$0xff]
      %v342 = vld [vmem:[%s296 + $0x9c] sm:$0xff]
      %v343 = vld [vmem:[%s296 + $0xac] sm:$0xff]
      %v344 = vld [vmem:[%s296 + $0xb4] sm:$0xff]
      %v345 = vld [vmem:[%s296 + $0xc4] sm:$0xff]
      %v346 = vld [vmem:[%s296 + $0xcc] sm:$0xff]
      %v347 = vld [vmem:[%s296 + $0xdc] sm:$0xff]
      %v348 = vld [vmem:[%s296 + $0xe4] sm:$0xff]
      %v349 = vld [vmem:[%s296 + $0xf4] sm:$0xff]
      %v350 = vld [vmem:[%s296 + $0xfc] sm:$0xff]
      %v351 = vld [vmem:[%s296 + $0x10c] sm:$0xff]
      %v352 = vld [vmem:[%s296 + $0x114] sm:$0xff]
      %v353 = vld [vmem:[%s296 + $0x124] sm:$0xff]
      %v354 = vld [vmem:[%s296 + $0x12c] sm:$0xff]
      %v355 = vld [vmem:[%s296 + $0x13c] sm:$0xff]
      %v356 = vld [vmem:[%s296 + $0x144] sm:$0xff]
      %v357 = vld [vmem:[%s296 + $0x154] sm:$0xff]
      %v358 = vld [vmem:[%s296 + $0x15c] sm:$0xff]
      %v359 = vld [vmem:[%s296 + $0x16c] sm:$0xff]
      %v360 = vld [vmem:[%s296 + $0x174] sm:$0xff]
      %v361 = vld [vmem:[%s296 + $0x5] sm:$0xff]
      %v362 = vld [vmem:[%s296 + $0xd] sm:$0xff]
      %v363 = vld [vmem:[%s296 + $0x1d] sm:$0xff]
      %v364 = vld [vmem:[%s296 + $0x25] sm:$0xff]
      %v365 = vld [vmem:[%s296 + $0x35] sm:$0xff]
      %v366 = vld [vmem:[%s296 + $0x3d] sm:$0xff]
      %v367 = vld [vmem:[%s296 + $0x4d] sm:$0xff]
      %v368 = vld [vmem:[%s296 + $0x55] sm:$0xff]
      %v369 = vld [vmem:[%s296 + $0x65] sm:$0xff]
      %v370 = vld [vmem:[%s296 + $0x6d] sm:$0xff]
      %v371 = vld [vmem:[%s296 + $0x7d] sm:$0xff]
      %v372 = vld [vmem:[%s296 + $0x85] sm:$0xff]
      %v373 = vld [vmem:[%s296 + $0x95] sm:$0xff]
      %v374 = vld [vmem:[%s296 + $0x9d] sm:$0xff]
      %v375 = vld [vmem:[%s296 + $0xad] sm:$0xff]
      %v376 = vld [vmem:[%s296 + $0xb5] sm:$0xff]
      %v377 = vld [vmem:[%s296 + $0xc5] sm:$0xff]
      %v378 = vld [vmem:[%s296 + $0xcd] sm:$0xff]
      %v379 = vld [vmem:[%s296 + $0xdd] sm:$0xff]
      %v380 = vld [vmem:[%s296 + $0xe5] sm:$0xff]
      %v381 = vld [vmem:[%s296 + $0xf5] sm:$0xff]
      %v382 = vld [vmem:[%s296 + $0xfd] sm:$0xff]
      %v383 = vld [vmem:[%s296 + $0x10d] sm:$0xff]
      %v384 = vld [vmem:[%s296 + $0x115] sm:$0xff]
      %v385 = vld [vmem:[%s296 + $0x125] sm:$0xff]
      %v386 = vld [vmem:[%s296 + $0x12d] sm:$0xff]
      %v387 = vld [vmem:[%s296 + $0x13d] sm:$0xff]
      %v388 = vld [vmem:[%s296 + $0x145] sm:$0xff]
      %v389 = vld [vmem:[%s296 + $0x155] sm:$0xff]
      %v390 = vld [vmem:[%s296 + $0x15d] sm:$0xff]
      %v391 = vld [vmem:[%s296 + $0x16d] sm:$0xff]
      %v392 = vld [vmem:[%s296 + $0x175] sm:$0xff]
      %s393 = sadd.s32 %s194, 5
      %s394 = smul.u32 %s393, 24
      %s395 = scalar_lea.vmem %s183, %s394
      %v396 = vld [vmem:[%s395 + $0x3] sm:$0xff]
      %v397 = vld [vmem:[%s395 + $0xb] sm:$0xff]
      %v398 = vld [vmem:[%s395 + $0x1b] sm:$0xff]
      %v399 = vld [vmem:[%s395 + $0x23] sm:$0xff]
      %v400 = vld [vmem:[%s395 + $0x33] sm:$0xff]
      %v401 = vld [vmem:[%s395 + $0x3b] sm:$0xff]
      %v402 = vld [vmem:[%s395 + $0x4b] sm:$0xff]
      %v403 = vld [vmem:[%s395 + $0x53] sm:$0xff]
      %v404 = vld [vmem:[%s395 + $0x63] sm:$0xff]
      %v405 = vld [vmem:[%s395 + $0x6b] sm:$0xff]
      %v406 = vld [vmem:[%s395 + $0x7b] sm:$0xff]
      %v407 = vld [vmem:[%s395 + $0x83] sm:$0xff]
      %v408 = vld [vmem:[%s395 + $0x93] sm:$0xff]
      %v409 = vld [vmem:[%s395 + $0x9b] sm:$0xff]
      %v410 = vld [vmem:[%s395 + $0xab] sm:$0xff]
      %v411 = vld [vmem:[%s395 + $0xb3] sm:$0xff]
      %v412 = vld [vmem:[%s395 + $0xc3] sm:$0xff]
      %v413 = vld [vmem:[%s395 + $0xcb] sm:$0xff]
      %v414 = vld [vmem:[%s395 + $0xdb] sm:$0xff]
      %v415 = vld [vmem:[%s395 + $0xe3] sm:$0xff]
      %v416 = vld [vmem:[%s395 + $0xf3] sm:$0xff]
      %v417 = vld [vmem:[%s395 + $0xfb] sm:$0xff]
      %v418 = vld [vmem:[%s395 + $0x10b] sm:$0xff]
      %v419 = vld [vmem:[%s395 + $0x113] sm:$0xff]
      %v420 = vld [vmem:[%s395 + $0x123] sm:$0xff]
      %v421 = vld [vmem:[%s395 + $0x12b] sm:$0xff]
      %v422 = vld [vmem:[%s395 + $0x13b] sm:$0xff]
      %v423 = vld [vmem:[%s395 + $0x143] sm:$0xff]
      %v424 = vld [vmem:[%s395 + $0x153] sm:$0xff]
      %v425 = vld [vmem:[%s395 + $0x15b] sm:$0xff]
      %v426 = vld [vmem:[%s395 + $0x16b] sm:$0xff]
      %v427 = vld [vmem:[%s395 + $0x173] sm:$0xff]
      %v428 = vld [vmem:[%s395 + $0x4] sm:$0xff]
      %v429 = vld [vmem:[%s395 + $0xc] sm:$0xff]
      %v430 = vld [vmem:[%s395 + $0x1c] sm:$0xff]
      %v431 = vld [vmem:[%s395 + $0x24] sm:$0xff]
      %v432 = vld [vmem:[%s395 + $0x34] sm:$0xff]
      %v433 = vld [vmem:[%s395 + $0x3c] sm:$0xff]
      %v434 = vld [vmem:[%s395 + $0x4c] sm:$0xff]
      %v435 = vld [vmem:[%s395 + $0x54] sm:$0xff]
      %v436 = vld [vmem:[%s395 + $0x64] sm:$0xff]
      %v437 = vld [vmem:[%s395 + $0x6c] sm:$0xff]
      %v438 = vld [vmem:[%s395 + $0x7c] sm:$0xff]
      %v439 = vld [vmem:[%s395 + $0x84] sm:$0xff]
      %v440 = vld [vmem:[%s395 + $0x94] sm:$0xff]
      %v441 = vld [vmem:[%s395 + $0x9c] sm:$0xff]
      %v442 = vld [vmem:[%s395 + $0xac] sm:$0xff]
      %v443 = vld [vmem:[%s395 + $0xb4] sm:$0xff]
      %v444 = vld [vmem:[%s395 + $0xc4] sm:$0xff]
      %v445 = vld [vmem:[%s395 + $0xcc] sm:$0xff]
      %v446 = vld [vmem:[%s395 + $0xdc] sm:$0xff]
      %v447 = vld [vmem:[%s395 + $0xe4] sm:$0xff]
      %v448 = vld [vmem:[%s395 + $0xf4] sm:$0xff]
      %v449 = vld [vmem:[%s395 + $0xfc] sm:$0xff]
      %v450 = vld [vmem:[%s395 + $0x10c] sm:$0xff]
      %v451 = vld [vmem:[%s395 + $0x114] sm:$0xff]
      %v452 = vld [vmem:[%s395 + $0x124] sm:$0xff]
      %v453 = vld [vmem:[%s395 + $0x12c] sm:$0xff]
      %v454 = vld [vmem:[%s395 + $0x13c] sm:$0xff]
      %v455 = vld [vmem:[%s395 + $0x144] sm:$0xff]
      %v456 = vld [vmem:[%s395 + $0x154] sm:$0xff]
      %v457 = vld [vmem:[%s395 + $0x15c] sm:$0xff]
      %v458 = vld [vmem:[%s395 + $0x16c] sm:$0xff]
      %v459 = vld [vmem:[%s395 + $0x174] sm:$0xff]
      %v460 = vld [vmem:[%s395 + $0x5] sm:$0xff]
      %v461 = vld [vmem:[%s395 + $0xd] sm:$0xff]
      %v462 = vld [vmem:[%s395 + $0x1d] sm:$0xff]
      %v463 = vld [vmem:[%s395 + $0x25] sm:$0xff]
      %v464 = vld [vmem:[%s395 + $0x35] sm:$0xff]
      %v465 = vld [vmem:[%s395 + $0x3d] sm:$0xff]
      %v466 = vld [vmem:[%s395 + $0x4d] sm:$0xff]
      %v467 = vld [vmem:[%s395 + $0x55] sm:$0xff]
      %v468 = vld [vmem:[%s395 + $0x65] sm:$0xff]
      %v469 = vld [vmem:[%s395 + $0x6d] sm:$0xff]
      %v470 = vld [vmem:[%s395 + $0x7d] sm:$0xff]
      %v471 = vld [vmem:[%s395 + $0x85] sm:$0xff]
      %v472 = vld [vmem:[%s395 + $0x95] sm:$0xff]
      %v473 = vld [vmem:[%s395 + $0x9d] sm:$0xff]
      %v474 = vld [vmem:[%s395 + $0xad] sm:$0xff]
      %v475 = vld [vmem:[%s395 + $0xb5] sm:$0xff]
      %v476 = vld [vmem:[%s395 + $0xc5] sm:$0xff]
      %v477 = vld [vmem:[%s395 + $0xcd] sm:$0xff]
      %v478 = vld [vmem:[%s395 + $0xdd] sm:$0xff]
      %v479 = vld [vmem:[%s395 + $0xe5] sm:$0xff]
      %v480 = vld [vmem:[%s395 + $0xf5] sm:$0xff]
      %v481 = vld [vmem:[%s395 + $0xfd] sm:$0xff]
      %v482 = vld [vmem:[%s395 + $0x10d] sm:$0xff]
      %v483 = vld [vmem:[%s395 + $0x115] sm:$0xff]
      %v484 = vld [vmem:[%s395 + $0x125] sm:$0xff]
      %v485 = vld [vmem:[%s395 + $0x12d] sm:$0xff]
      %v486 = vld [vmem:[%s395 + $0x13d] sm:$0xff]
      %v487 = vld [vmem:[%s395 + $0x145] sm:$0xff]
      %v488 = vld [vmem:[%s395 + $0x155] sm:$0xff]
      %v489 = vld [vmem:[%s395 + $0x15d] sm:$0xff]
      %v490 = vld [vmem:[%s395 + $0x16d] sm:$0xff]
      %v491 = vld [vmem:[%s395 + $0x175] sm:$0xff]
      %524 = vrot.lane.b32.xlu0 %v230, 4
      %v525 = vpop.permute.xlu0 %524
      %526 = vrot.lane.b32.xlu0 %v231, 4
      %v527 = vpop.permute.xlu0 %526
      %528 = vrot.lane.b32.xlu0 %v232, 4
      %v529 = vpop.permute.xlu0 %528
      %530 = vrot.lane.b32.xlu0 %v233, 4
      %v531 = vpop.permute.xlu0 %530
      %532 = vrot.lane.b32.xlu0 %v234, 4
      %v533 = vpop.permute.xlu0 %532
      %534 = vrot.lane.b32.xlu0 %v235, 4
      %v535 = vpop.permute.xlu0 %534
      %536 = vrot.lane.b32.xlu0 %v236, 4
      %v537 = vpop.permute.xlu0 %536
      %538 = vrot.lane.b32.xlu0 %v237, 4
      %v539 = vpop.permute.xlu0 %538
      %540 = vrot.lane.b32.xlu0 %v238, 4
      %v541 = vpop.permute.xlu0 %540
      %542 = vrot.lane.b32.xlu0 %v239, 4
      %v543 = vpop.permute.xlu0 %542
      %544 = vrot.lane.b32.xlu0 %v240, 4
      %v545 = vpop.permute.xlu0 %544
      %546 = vrot.lane.b32.xlu0 %v241, 4
      %v547 = vpop.permute.xlu0 %546
      %548 = vrot.lane.b32.xlu0 %v242, 4
      %v549 = vpop.permute.xlu0 %548
      %550 = vrot.lane.b32.xlu0 %v243, 4
      %v551 = vpop.permute.xlu0 %550
      %552 = vrot.lane.b32.xlu0 %v244, 4
      %v553 = vpop.permute.xlu0 %552
      %554 = vrot.lane.b32.xlu0 %v245, 4
      %v555 = vpop.permute.xlu0 %554
      %556 = vrot.lane.b32.xlu0 %v246, 4
      %v557 = vpop.permute.xlu0 %556
      %558 = vrot.lane.b32.xlu0 %v247, 4
      %v559 = vpop.permute.xlu0 %558
      %560 = vrot.lane.b32.xlu0 %v248, 4
      %v561 = vpop.permute.xlu0 %560
      %562 = vrot.lane.b32.xlu0 %v249, 4
      %v563 = vpop.permute.xlu0 %562
      %564 = vrot.lane.b32.xlu0 %v250, 4
      %v565 = vpop.permute.xlu0 %564
      %566 = vrot.lane.b32.xlu0 %v251, 4
      %v567 = vpop.permute.xlu0 %566
      %568 = vrot.lane.b32.xlu0 %v252, 4
      %v569 = vpop.permute.xlu0 %568
      %570 = vrot.lane.b32.xlu0 %v253, 4
      %v571 = vpop.permute.xlu0 %570
      %572 = vrot.lane.b32.xlu0 %v254, 4
      %v573 = vpop.permute.xlu0 %572
      %574 = vrot.lane.b32.xlu0 %v255, 4
      %v575 = vpop.permute.xlu0 %574
      %576 = vrot.lane.b32.xlu0 %v256, 4
      %v577 = vpop.permute.xlu0 %576
      %578 = vrot.lane.b32.xlu0 %v257, 4
      %v579 = vpop.permute.xlu0 %578
      %580 = vrot.lane.b32.xlu0 %v258, 4
      %v581 = vpop.permute.xlu0 %580
      %582 = vrot.lane.b32.xlu0 %v259, 4
      %v583 = vpop.permute.xlu0 %582
      %584 = vrot.lane.b32.xlu0 %v260, 4
      %v585 = vpop.permute.xlu0 %584
      %586 = vrot.lane.b32.xlu0 %v261, 4
      %v587 = vpop.permute.xlu0 %586
      %652 = vrot.lane.b32.xlu0 %v262, 8
      %v653 = vpop.permute.xlu0 %652
      %654 = vrot.lane.b32.xlu0 %v263, 8
      %v655 = vpop.permute.xlu0 %654
      %656 = vrot.lane.b32.xlu0 %v264, 8
      %v657 = vpop.permute.xlu0 %656
      %658 = vrot.lane.b32.xlu0 %v265, 8
      %v659 = vpop.permute.xlu0 %658
      %660 = vrot.lane.b32.xlu0 %v266, 8
      %v661 = vpop.permute.xlu0 %660
      %662 = vrot.lane.b32.xlu0 %v267, 8
      %v663 = vpop.permute.xlu0 %662
      %664 = vrot.lane.b32.xlu0 %v268, 8
      %v665 = vpop.permute.xlu0 %664
      %666 = vrot.lane.b32.xlu0 %v269, 8
      %v667 = vpop.permute.xlu0 %666
      %668 = vrot.lane.b32.xlu0 %v270, 8
      %v669 = vpop.permute.xlu0 %668
      %670 = vrot.lane.b32.xlu0 %v271, 8
      %v671 = vpop.permute.xlu0 %670
      %672 = vrot.lane.b32.xlu0 %v272, 8
      %v673 = vpop.permute.xlu0 %672
      %674 = vrot.lane.b32.xlu0 %v273, 8
      %v675 = vpop.permute.xlu0 %674
      %676 = vrot.lane.b32.xlu0 %v274, 8
      %v677 = vpop.permute.xlu0 %676
      %678 = vrot.lane.b32.xlu0 %v275, 8
      %v679 = vpop.permute.xlu0 %678
      %680 = vrot.lane.b32.xlu0 %v276, 8
      %v681 = vpop.permute.xlu0 %680
      %682 = vrot.lane.b32.xlu0 %v277, 8
      %v683 = vpop.permute.xlu0 %682
      %684 = vrot.lane.b32.xlu0 %v278, 8
      %v685 = vpop.permute.xlu0 %684
      %686 = vrot.lane.b32.xlu0 %v279, 8
      %v687 = vpop.permute.xlu0 %686
      %688 = vrot.lane.b32.xlu0 %v280, 8
      %v689 = vpop.permute.xlu0 %688
      %690 = vrot.lane.b32.xlu0 %v281, 8
      %v691 = vpop.permute.xlu0 %690
      %692 = vrot.lane.b32.xlu0 %v282, 8
      %v693 = vpop.permute.xlu0 %692
      %694 = vrot.lane.b32.xlu0 %v283, 8
      %v695 = vpop.permute.xlu0 %694
      %696 = vrot.lane.b32.xlu0 %v284, 8
      %v697 = vpop.permute.xlu0 %696
      %698 = vrot.lane.b32.xlu0 %v285, 8
      %v699 = vpop.permute.xlu0 %698
      %700 = vrot.lane.b32.xlu0 %v286, 8
      %v701 = vpop.permute.xlu0 %700
      %702 = vrot.lane.b32.xlu0 %v287, 8
      %v703 = vpop.permute.xlu0 %702
      %704 = vrot.lane.b32.xlu0 %v288, 8
      %v705 = vpop.permute.xlu0 %704
      %706 = vrot.lane.b32.xlu0 %v289, 8
      %v707 = vpop.permute.xlu0 %706
      %708 = vrot.lane.b32.xlu0 %v290, 8
      %v709 = vpop.permute.xlu0 %708
      %710 = vrot.lane.b32.xlu0 %v291, 8
      %v711 = vpop.permute.xlu0 %710
      %712 = vrot.lane.b32.xlu0 %v292, 8
      %v713 = vpop.permute.xlu0 %712
      %714 = vrot.lane.b32.xlu0 %v293, 8
      %v715 = vpop.permute.xlu0 %714
      %780 = vrot.lane.b32.xlu0 %v297, 12
      %v781 = vpop.permute.xlu0 %780
      %782 = vrot.lane.b32.xlu0 %v298, 12
      %v783 = vpop.permute.xlu0 %782
      %784 = vrot.lane.b32.xlu0 %v299, 12
      %v785 = vpop.permute.xlu0 %784
      %786 = vrot.lane.b32.xlu0 %v300, 12
      %v787 = vpop.permute.xlu0 %786
      %788 = vrot.lane.b32.xlu0 %v301, 12
      %v789 = vpop.permute.xlu0 %788
      %790 = vrot.lane.b32.xlu0 %v302, 12
      %v791 = vpop.permute.xlu0 %790
      %792 = vrot.lane.b32.xlu0 %v303, 12
      %v793 = vpop.permute.xlu0 %792
      %794 = vrot.lane.b32.xlu0 %v304, 12
      %v795 = vpop.permute.xlu0 %794
      %796 = vrot.lane.b32.xlu0 %v305, 12
      %v797 = vpop.permute.xlu0 %796
      %798 = vrot.lane.b32.xlu0 %v306, 12
      %v799 = vpop.permute.xlu0 %798
      %800 = vrot.lane.b32.xlu0 %v307, 12
      %v801 = vpop.permute.xlu0 %800
      %802 = vrot.lane.b32.xlu0 %v308, 12
      %v803 = vpop.permute.xlu0 %802
      %804 = vrot.lane.b32.xlu0 %v309, 12
      %v805 = vpop.permute.xlu0 %804
      %806 = vrot.lane.b32.xlu0 %v310, 12
      %v807 = vpop.permute.xlu0 %806
      %808 = vrot.lane.b32.xlu0 %v311, 12
      %v809 = vpop.permute.xlu0 %808
      %810 = vrot.lane.b32.xlu0 %v312, 12
      %v811 = vpop.permute.xlu0 %810
      %812 = vrot.lane.b32.xlu0 %v313, 12
      %v813 = vpop.permute.xlu0 %812
      %814 = vrot.lane.b32.xlu0 %v314, 12
      %v815 = vpop.permute.xlu0 %814
      %816 = vrot.lane.b32.xlu0 %v315, 12
      %v817 = vpop.permute.xlu0 %816
      %818 = vrot.lane.b32.xlu0 %v316, 12
      %v819 = vpop.permute.xlu0 %818
      %820 = vrot.lane.b32.xlu0 %v317, 12
      %v821 = vpop.permute.xlu0 %820
      %822 = vrot.lane.b32.xlu0 %v318, 12
      %v823 = vpop.permute.xlu0 %822
      %824 = vrot.lane.b32.xlu0 %v319, 12
      %v825 = vpop.permute.xlu0 %824
      %826 = vrot.lane.b32.xlu0 %v320, 12
      %v827 = vpop.permute.xlu0 %826
      %828 = vrot.lane.b32.xlu0 %v321, 12
      %v829 = vpop.permute.xlu0 %828
      %830 = vrot.lane.b32.xlu0 %v322, 12
      %v831 = vpop.permute.xlu0 %830
      %832 = vrot.lane.b32.xlu0 %v323, 12
      %v833 = vpop.permute.xlu0 %832
      %834 = vrot.lane.b32.xlu0 %v324, 12
      %v835 = vpop.permute.xlu0 %834
      %836 = vrot.lane.b32.xlu0 %v325, 12
      %v837 = vpop.permute.xlu0 %836
      %838 = vrot.lane.b32.xlu0 %v326, 12
      %v839 = vpop.permute.xlu0 %838
      %840 = vrot.lane.b32.xlu0 %v327, 12
      %v841 = vpop.permute.xlu0 %840
      %842 = vrot.lane.b32.xlu0 %v328, 12
      %v843 = vpop.permute.xlu0 %842
      %908 = vrot.lane.b32.xlu0 %v329, 16
      %v909 = vpop.permute.xlu0 %908
      %910 = vrot.lane.b32.xlu0 %v330, 16
      %v911 = vpop.permute.xlu0 %910
      %912 = vrot.lane.b32.xlu0 %v331, 16
      %v913 = vpop.permute.xlu0 %912
      %914 = vrot.lane.b32.xlu0 %v332, 16
      %v915 = vpop.permute.xlu0 %914
      %916 = vrot.lane.b32.xlu0 %v333, 16
      %v917 = vpop.permute.xlu0 %916
      %918 = vrot.lane.b32.xlu0 %v334, 16
      %v919 = vpop.permute.xlu0 %918
      %920 = vrot.lane.b32.xlu0 %v335, 16
      %v921 = vpop.permute.xlu0 %920
      %922 = vrot.lane.b32.xlu0 %v336, 16
      %v923 = vpop.permute.xlu0 %922
      %924 = vrot.lane.b32.xlu0 %v337, 16
      %v925 = vpop.permute.xlu0 %924
      %926 = vrot.lane.b32.xlu0 %v338, 16
      %v927 = vpop.permute.xlu0 %926
      %928 = vrot.lane.b32.xlu0 %v339, 16
      %v929 = vpop.permute.xlu0 %928
      %930 = vrot.lane.b32.xlu0 %v340, 16
      %v931 = vpop.permute.xlu0 %930
      %932 = vrot.lane.b32.xlu0 %v341, 16
      %v933 = vpop.permute.xlu0 %932
      %934 = vrot.lane.b32.xlu0 %v342, 16
      %v935 = vpop.permute.xlu0 %934
      %936 = vrot.lane.b32.xlu0 %v343, 16
      %v937 = vpop.permute.xlu0 %936
      %938 = vrot.lane.b32.xlu0 %v344, 16
      %v939 = vpop.permute.xlu0 %938
      %940 = vrot.lane.b32.xlu0 %v345, 16
      %v941 = vpop.permute.xlu0 %940
      %942 = vrot.lane.b32.xlu0 %v346, 16
      %v943 = vpop.permute.xlu0 %942
      %944 = vrot.lane.b32.xlu0 %v347, 16
      %v945 = vpop.permute.xlu0 %944
      %946 = vrot.lane.b32.xlu0 %v348, 16
      %v947 = vpop.permute.xlu0 %946
      %948 = vrot.lane.b32.xlu0 %v349, 16
      %v949 = vpop.permute.xlu0 %948
      %950 = vrot.lane.b32.xlu0 %v350, 16
      %v951 = vpop.permute.xlu0 %950
      %952 = vrot.lane.b32.xlu0 %v351, 16
      %v953 = vpop.permute.xlu0 %952
      %954 = vrot.lane.b32.xlu0 %v352, 16
      %v955 = vpop.permute.xlu0 %954
      %956 = vrot.lane.b32.xlu0 %v353, 16
      %v957 = vpop.permute.xlu0 %956
      %958 = vrot.lane.b32.xlu0 %v354, 16
      %v959 = vpop.permute.xlu0 %958
      %960 = vrot.lane.b32.xlu0 %v355, 16
      %v961 = vpop.permute.xlu0 %960
      %962 = vrot.lane.b32.xlu0 %v356, 16
      %v963 = vpop.permute.xlu0 %962
      %964 = vrot.lane.b32.xlu0 %v357, 16
      %v965 = vpop.permute.xlu0 %964
      %966 = vrot.lane.b32.xlu0 %v358, 16
      %v967 = vpop.permute.xlu0 %966
      %968 = vrot.lane.b32.xlu0 %v359, 16
      %v969 = vpop.permute.xlu0 %968
      %970 = vrot.lane.b32.xlu0 %v360, 16
      %v971 = vpop.permute.xlu0 %970
      %1036 = vrot.lane.b32.xlu0 %v361, 20
      %v1037 = vpop.permute.xlu0 %1036
      %1038 = vrot.lane.b32.xlu0 %v362, 20
      %v1039 = vpop.permute.xlu0 %1038
      %1040 = vrot.lane.b32.xlu0 %v363, 20
      %v1041 = vpop.permute.xlu0 %1040
      %1042 = vrot.lane.b32.xlu0 %v364, 20
      %v1043 = vpop.permute.xlu0 %1042
      %1044 = vrot.lane.b32.xlu0 %v365, 20
      %v1045 = vpop.permute.xlu0 %1044
      %1046 = vrot.lane.b32.xlu0 %v366, 20
      %v1047 = vpop.permute.xlu0 %1046
      %1048 = vrot.lane.b32.xlu0 %v367, 20
      %v1049 = vpop.permute.xlu0 %1048
      %1050 = vrot.lane.b32.xlu0 %v368, 20
      %v1051 = vpop.permute.xlu0 %1050
      %1052 = vrot.lane.b32.xlu0 %v369, 20
      %v1053 = vpop.permute.xlu0 %1052
      %1054 = vrot.lane.b32.xlu0 %v370, 20
      %v1055 = vpop.permute.xlu0 %1054
      %1056 = vrot.lane.b32.xlu0 %v371, 20
      %v1057 = vpop.permute.xlu0 %1056
      %1058 = vrot.lane.b32.xlu0 %v372, 20
      %v1059 = vpop.permute.xlu0 %1058
      %1060 = vrot.lane.b32.xlu0 %v373, 20
      %v1061 = vpop.permute.xlu0 %1060
      %1062 = vrot.lane.b32.xlu0 %v374, 20
      %v1063 = vpop.permute.xlu0 %1062
      %1064 = vrot.lane.b32.xlu0 %v375, 20
      %v1065 = vpop.permute.xlu0 %1064
      %1066 = vrot.lane.b32.xlu0 %v376, 20
      %v1067 = vpop.permute.xlu0 %1066
      %1068 = vrot.lane.b32.xlu0 %v377, 20
      %v1069 = vpop.permute.xlu0 %1068
      %1070 = vrot.lane.b32.xlu0 %v378, 20
      %v1071 = vpop.permute.xlu0 %1070
      %1072 = vrot.lane.b32.xlu0 %v379, 20
      %v1073 = vpop.permute.xlu0 %1072
      %1074 = vrot.lane.b32.xlu0 %v380, 20
      %v1075 = vpop.permute.xlu0 %1074
      %1076 = vrot.lane.b32.xlu0 %v381, 20
      %v1077 = vpop.permute.xlu0 %1076
      %1078 = vrot.lane.b32.xlu0 %v382, 20
      %v1079 = vpop.permute.xlu0 %1078
      %1080 = vrot.lane.b32.xlu0 %v383, 20
      %v1081 = vpop.permute.xlu0 %1080
      %1082 = vrot.lane.b32.xlu0 %v384, 20
      %v1083 = vpop.permute.xlu0 %1082
      %1084 = vrot.lane.b32.xlu0 %v385, 20
      %v1085 = vpop.permute.xlu0 %1084
      %1086 = vrot.lane.b32.xlu0 %v386, 20
      %v1087 = vpop.permute.xlu0 %1086
      %1088 = vrot.lane.b32.xlu0 %v387, 20
      %v1089 = vpop.permute.xlu0 %1088
      %1090 = vrot.lane.b32.xlu0 %v388, 20
      %v1091 = vpop.permute.xlu0 %1090
      %1092 = vrot.lane.b32.xlu0 %v389, 20
      %v1093 = vpop.permute.xlu0 %1092
      %1094 = vrot.lane.b32.xlu0 %v390, 20
      %v1095 = vpop.permute.xlu0 %1094
      %1096 = vrot.lane.b32.xlu0 %v391, 20
      %v1097 = vpop.permute.xlu0 %1096
      %1098 = vrot.lane.b32.xlu0 %v392, 20
      %v1099 = vpop.permute.xlu0 %1098
      %1164 = vrot.lane.b32.xlu0 %v396, 24
      %v1165 = vpop.permute.xlu0 %1164
      %1166 = vrot.lane.b32.xlu0 %v397, 24
      %v1167 = vpop.permute.xlu0 %1166
      %1168 = vrot.lane.b32.xlu0 %v398, 24
      %v1169 = vpop.permute.xlu0 %1168
      %1170 = vrot.lane.b32.xlu0 %v399, 24
      %v1171 = vpop.permute.xlu0 %1170
      %1172 = vrot.lane.b32.xlu0 %v400, 24
      %v1173 = vpop.permute.xlu0 %1172
      %1174 = vrot.lane.b32.xlu0 %v401, 24
      %v1175 = vpop.permute.xlu0 %1174
      %1176 = vrot.lane.b32.xlu0 %v402, 24
      %v1177 = vpop.permute.xlu0 %1176
      %1178 = vrot.lane.b32.xlu0 %v403, 24
      %v1179 = vpop.permute.xlu0 %1178
      %1180 = vrot.lane.b32.xlu0 %v404, 24
      %v1181 = vpop.permute.xlu0 %1180
      %1182 = vrot.lane.b32.xlu0 %v405, 24
      %v1183 = vpop.permute.xlu0 %1182
      %1184 = vrot.lane.b32.xlu0 %v406, 24
      %v1185 = vpop.permute.xlu0 %1184
      %1186 = vrot.lane.b32.xlu0 %v407, 24
      %v1187 = vpop.permute.xlu0 %1186
      %1188 = vrot.lane.b32.xlu0 %v408, 24
      %v1189 = vpop.permute.xlu0 %1188
      %1190 = vrot.lane.b32.xlu0 %v409, 24
      %v1191 = vpop.permute.xlu0 %1190
      %1192 = vrot.lane.b32.xlu0 %v410, 24
      %v1193 = vpop.permute.xlu0 %1192
      %1194 = vrot.lane.b32.xlu0 %v411, 24
      %v1195 = vpop.permute.xlu0 %1194
      %1196 = vrot.lane.b32.xlu0 %v412, 24
      %v1197 = vpop.permute.xlu0 %1196
      %1198 = vrot.lane.b32.xlu0 %v413, 24
      %v1199 = vpop.permute.xlu0 %1198
      %1200 = vrot.lane.b32.xlu0 %v414, 24
      %v1201 = vpop.permute.xlu0 %1200
      %1202 = vrot.lane.b32.xlu0 %v415, 24
      %v1203 = vpop.permute.xlu0 %1202
      %1204 = vrot.lane.b32.xlu0 %v416, 24
      %v1205 = vpop.permute.xlu0 %1204
      %1206 = vrot.lane.b32.xlu0 %v417, 24
      %v1207 = vpop.permute.xlu0 %1206
      %1208 = vrot.lane.b32.xlu0 %v418, 24
      %v1209 = vpop.permute.xlu0 %1208
      %1210 = vrot.lane.b32.xlu0 %v419, 24
      %v1211 = vpop.permute.xlu0 %1210
      %1212 = vrot.lane.b32.xlu0 %v420, 24
      %v1213 = vpop.permute.xlu0 %1212
      %1214 = vrot.lane.b32.xlu0 %v421, 24
      %v1215 = vpop.permute.xlu0 %1214
      %1216 = vrot.lane.b32.xlu0 %v422, 24
      %v1217 = vpop.permute.xlu0 %1216
      %1218 = vrot.lane.b32.xlu0 %v423, 24
      %v1219 = vpop.permute.xlu0 %1218
      %1220 = vrot.lane.b32.xlu0 %v424, 24
      %v1221 = vpop.permute.xlu0 %1220
      %1222 = vrot.lane.b32.xlu0 %v425, 24
      %v1223 = vpop.permute.xlu0 %1222
      %1224 = vrot.lane.b32.xlu0 %v426, 24
      %v1225 = vpop.permute.xlu0 %1224
      %1226 = vrot.lane.b32.xlu0 %v427, 24
      %v1227 = vpop.permute.xlu0 %1226
      %1292 = vrot.lane.b32.xlu0 %v428, 28
      %v1293 = vpop.permute.xlu0 %1292
      %1294 = vrot.lane.b32.xlu0 %v429, 28
      %v1295 = vpop.permute.xlu0 %1294
      %1296 = vrot.lane.b32.xlu0 %v430, 28
      %v1297 = vpop.permute.xlu0 %1296
      %1298 = vrot.lane.b32.xlu0 %v431, 28
      %v1299 = vpop.permute.xlu0 %1298
      %1300 = vrot.lane.b32.xlu0 %v432, 28
      %v1301 = vpop.permute.xlu0 %1300
      %1302 = vrot.lane.b32.xlu0 %v433, 28
      %v1303 = vpop.permute.xlu0 %1302
      %1304 = vrot.lane.b32.xlu0 %v434, 28
      %v1305 = vpop.permute.xlu0 %1304
      %1306 = vrot.lane.b32.xlu0 %v435, 28
      %v1307 = vpop.permute.xlu0 %1306
      %1308 = vrot.lane.b32.xlu0 %v436, 28
      %v1309 = vpop.permute.xlu0 %1308
      %1310 = vrot.lane.b32.xlu0 %v437, 28
      %v1311 = vpop.permute.xlu0 %1310
      %1312 = vrot.lane.b32.xlu0 %v438, 28
      %v1313 = vpop.permute.xlu0 %1312
      %1314 = vrot.lane.b32.xlu0 %v439, 28
      %v1315 = vpop.permute.xlu0 %1314
      %1316 = vrot.lane.b32.xlu0 %v440, 28
      %v1317 = vpop.permute.xlu0 %1316
      %1318 = vrot.lane.b32.xlu0 %v441, 28
      %v1319 = vpop.permute.xlu0 %1318
      %1320 = vrot.lane.b32.xlu0 %v442, 28
      %v1321 = vpop.permute.xlu0 %1320
      %1322 = vrot.lane.b32.xlu0 %v443, 28
      %v1323 = vpop.permute.xlu0 %1322
      %1324 = vrot.lane.b32.xlu0 %v444, 28
      %v1325 = vpop.permute.xlu0 %1324
      %1326 = vrot.lane.b32.xlu0 %v445, 28
      %v1327 = vpop.permute.xlu0 %1326
      %1328 = vrot.lane.b32.xlu0 %v446, 28
      %v1329 = vpop.permute.xlu0 %1328
      %1330 = vrot.lane.b32.xlu0 %v447, 28
      %v1331 = vpop.permute.xlu0 %1330
      %1332 = vrot.lane.b32.xlu0 %v448, 28
      %v1333 = vpop.permute.xlu0 %1332
      %1334 = vrot.lane.b32.xlu0 %v449, 28
      %v1335 = vpop.permute.xlu0 %1334
      %1336 = vrot.lane.b32.xlu0 %v450, 28
      %v1337 = vpop.permute.xlu0 %1336
      %1338 = vrot.lane.b32.xlu0 %v451, 28
      %v1339 = vpop.permute.xlu0 %1338
      %1340 = vrot.lane.b32.xlu0 %v452, 28
      %v1341 = vpop.permute.xlu0 %1340
      %1342 = vrot.lane.b32.xlu0 %v453, 28
      %v1343 = vpop.permute.xlu0 %1342
      %1344 = vrot.lane.b32.xlu0 %v454, 28
      %v1345 = vpop.permute.xlu0 %1344
      %1346 = vrot.lane.b32.xlu0 %v455, 28
      %v1347 = vpop.permute.xlu0 %1346
      %1348 = vrot.lane.b32.xlu0 %v456, 28
      %v1349 = vpop.permute.xlu0 %1348
      %1350 = vrot.lane.b32.xlu0 %v457, 28
      %v1351 = vpop.permute.xlu0 %1350
      %1352 = vrot.lane.b32.xlu0 %v458, 28
      %v1353 = vpop.permute.xlu0 %1352
      %1354 = vrot.lane.b32.xlu0 %v459, 28
      %v1355 = vpop.permute.xlu0 %1354
      %1420 = vrot.lane.b32.xlu0 %v460, 32
      %v1421 = vpop.permute.xlu0 %1420
      %1422 = vrot.lane.b32.xlu0 %v461, 32
      %v1423 = vpop.permute.xlu0 %1422
      %1424 = vrot.lane.b32.xlu0 %v462, 32
      %v1425 = vpop.permute.xlu0 %1424
      %1426 = vrot.lane.b32.xlu0 %v463, 32
      %v1427 = vpop.permute.xlu0 %1426
      %1428 = vrot.lane.b32.xlu0 %v464, 32
      %v1429 = vpop.permute.xlu0 %1428
      %1430 = vrot.lane.b32.xlu0 %v465, 32
      %v1431 = vpop.permute.xlu0 %1430
      %1432 = vrot.lane.b32.xlu0 %v466, 32
      %v1433 = vpop.permute.xlu0 %1432
      %1434 = vrot.lane.b32.xlu0 %v467, 32
      %v1435 = vpop.permute.xlu0 %1434
      %1436 = vrot.lane.b32.xlu0 %v468, 32
      %v1437 = vpop.permute.xlu0 %1436
      %1438 = vrot.lane.b32.xlu0 %v469, 32
      %v1439 = vpop.permute.xlu0 %1438
      %1440 = vrot.lane.b32.xlu0 %v470, 32
      %v1441 = vpop.permute.xlu0 %1440
      %1442 = vrot.lane.b32.xlu0 %v471, 32
      %v1443 = vpop.permute.xlu0 %1442
      %1444 = vrot.lane.b32.xlu0 %v472, 32
      %v1445 = vpop.permute.xlu0 %1444
      %1446 = vrot.lane.b32.xlu0 %v473, 32
      %v1447 = vpop.permute.xlu0 %1446
      %1448 = vrot.lane.b32.xlu0 %v474, 32
      %v1449 = vpop.permute.xlu0 %1448
      %1450 = vrot.lane.b32.xlu0 %v475, 32
      %v1451 = vpop.permute.xlu0 %1450
      %1452 = vrot.lane.b32.xlu0 %v476, 32
      %v1453 = vpop.permute.xlu0 %1452
      %1454 = vrot.lane.b32.xlu0 %v477, 32
      %v1455 = vpop.permute.xlu0 %1454
      %1456 = vrot.lane.b32.xlu0 %v478, 32
      %v1457 = vpop.permute.xlu0 %1456
      %1458 = vrot.lane.b32.xlu0 %v479, 32
      %v1459 = vpop.permute.xlu0 %1458
      %1460 = vrot.lane.b32.xlu0 %v480, 32
      %v1461 = vpop.permute.xlu0 %1460
      %1462 = vrot.lane.b32.xlu0 %v481, 32
      %v1463 = vpop.permute.xlu0 %1462
      %1464 = vrot.lane.b32.xlu0 %v482, 32
      %v1465 = vpop.permute.xlu0 %1464
      %1466 = vrot.lane.b32.xlu0 %v483, 32
      %v1467 = vpop.permute.xlu0 %1466
      %1468 = vrot.lane.b32.xlu0 %v484, 32
      %v1469 = vpop.permute.xlu0 %1468
      %1470 = vrot.lane.b32.xlu0 %v485, 32
      %v1471 = vpop.permute.xlu0 %1470
      %1472 = vrot.lane.b32.xlu0 %v486, 32
      %v1473 = vpop.permute.xlu0 %1472
      %1474 = vrot.lane.b32.xlu0 %v487, 32
      %v1475 = vpop.permute.xlu0 %1474
      %1476 = vrot.lane.b32.xlu0 %v488, 32
      %v1477 = vpop.permute.xlu0 %1476
      %1478 = vrot.lane.b32.xlu0 %v489, 32
      %v1479 = vpop.permute.xlu0 %1478
      %1480 = vrot.lane.b32.xlu0 %v490, 32
      %v1481 = vpop.permute.xlu0 %1480
      %1482 = vrot.lane.b32.xlu0 %v491, 32
      %v1483 = vpop.permute.xlu0 %1482
      %vm1516 = vcmask 31744
      %v1517 = vsel %vm1516, %v198, %v525
      %v1518 = vsel %vm1516, %v199, %v527
      %v1519 = vsel %vm1516, %v200, %v529
      %v1520 = vsel %vm1516, %v201, %v531
      %v1521 = vsel %vm1516, %v202, %v533
      %v1522 = vsel %vm1516, %v203, %v535
      %v1523 = vsel %vm1516, %v204, %v537
      %v1524 = vsel %vm1516, %v205, %v539
      %v1525 = vsel %vm1516, %v206, %v541
      %v1526 = vsel %vm1516, %v207, %v543
      %v1527 = vsel %vm1516, %v208, %v545
      %v1528 = vsel %vm1516, %v209, %v547
      %v1529 = vsel %vm1516, %v210, %v549
      %v1530 = vsel %vm1516, %v211, %v551
      %v1531 = vsel %vm1516, %v212, %v553
      %v1532 = vsel %vm1516, %v213, %v555
      %v1533 = vsel %vm1516, %v214, %v557
      %v1534 = vsel %vm1516, %v215, %v559
      %v1535 = vsel %vm1516, %v216, %v561
      %v1536 = vsel %vm1516, %v217, %v563
      %v1537 = vsel %vm1516, %v218, %v565
      %v1538 = vsel %vm1516, %v219, %v567
      %v1539 = vsel %vm1516, %v220, %v569
      %v1540 = vsel %vm1516, %v221, %v571
      %v1541 = vsel %vm1516, %v222, %v573
      %v1542 = vsel %vm1516, %v223, %v575
      %v1543 = vsel %vm1516, %v224, %v577
      %v1544 = vsel %vm1516, %v225, %v579
      %v1545 = vsel %vm1516, %v226, %v581
      %v1546 = vsel %vm1516, %v227, %v583
      %v1547 = vsel %vm1516, %v228, %v585
      %v1548 = vsel %vm1516, %v229, %v587
      %vm1549 = vcmask 64512
      %v1550 = vsel %vm1549, %v1517, %v653
      %v1551 = vsel %vm1549, %v1518, %v655
      %v1552 = vsel %vm1549, %v1519, %v657
      %v1553 = vsel %vm1549, %v1520, %v659
      %v1554 = vsel %vm1549, %v1521, %v661
      %v1555 = vsel %vm1549, %v1522, %v663
      %v1556 = vsel %vm1549, %v1523, %v665
      %v1557 = vsel %vm1549, %v1524, %v667
      %v1558 = vsel %vm1549, %v1525, %v669
      %v1559 = vsel %vm1549, %v1526, %v671
      %v1560 = vsel %vm1549, %v1527, %v673
      %v1561 = vsel %vm1549, %v1528, %v675
      %v1562 = vsel %vm1549, %v1529, %v677
      %v1563 = vsel %vm1549, %v1530, %v679
      %v1564 = vsel %vm1549, %v1531, %v681
      %v1565 = vsel %vm1549, %v1532, %v683
      %v1566 = vsel %vm1549, %v1533, %v685
      %v1567 = vsel %vm1549, %v1534, %v687
      %v1568 = vsel %vm1549, %v1535, %v689
      %v1569 = vsel %vm1549, %v1536, %v691
      %v1570 = vsel %vm1549, %v1537, %v693
      %v1571 = vsel %vm1549, %v1538, %v695
      %v1572 = vsel %vm1549, %v1539, %v697
      %v1573 = vsel %vm1549, %v1540, %v699
      %v1574 = vsel %vm1549, %v1541, %v701
      %v1575 = vsel %vm1549, %v1542, %v703
      %v1576 = vsel %vm1549, %v1543, %v705
      %v1577 = vsel %vm1549, %v1544, %v707
      %v1578 = vsel %vm1549, %v1545, %v709
      %v1579 = vsel %vm1549, %v1546, %v711
      %v1580 = vsel %vm1549, %v1547, %v713
      %v1581 = vsel %vm1549, %v1548, %v715
      %vm1582 = vcmask 97280
      %v1583 = vsel %vm1582, %v1550, %v781
      %v1584 = vsel %vm1582, %v1551, %v783
      %v1585 = vsel %vm1582, %v1552, %v785
      %v1586 = vsel %vm1582, %v1553, %v787
      %v1587 = vsel %vm1582, %v1554, %v789
      %v1588 = vsel %vm1582, %v1555, %v791
      %v1589 = vsel %vm1582, %v1556, %v793
      %v1590 = vsel %vm1582, %v1557, %v795
      %v1591 = vsel %vm1582, %v1558, %v797
      %v1592 = vsel %vm1582, %v1559, %v799
      %v1593 = vsel %vm1582, %v1560, %v801
      %v1594 = vsel %vm1582, %v1561, %v803
      %v1595 = vsel %vm1582, %v1562, %v805
      %v1596 = vsel %vm1582, %v1563, %v807
      %v1597 = vsel %vm1582, %v1564, %v809
      %v1598 = vsel %vm1582, %v1565, %v811
      %v1599 = vsel %vm1582, %v1566, %v813
      %v1600 = vsel %vm1582, %v1567, %v815
      %v1601 = vsel %vm1582, %v1568, %v817
      %v1602 = vsel %vm1582, %v1569, %v819
      %v1603 = vsel %vm1582, %v1570, %v821
      %v1604 = vsel %vm1582, %v1571, %v823
      %v1605 = vsel %vm1582, %v1572, %v825
      %v1606 = vsel %vm1582, %v1573, %v827
      %v1607 = vsel %vm1582, %v1574, %v829
      %v1608 = vsel %vm1582, %v1575, %v831
      %v1609 = vsel %vm1582, %v1576, %v833
      %v1610 = vsel %vm1582, %v1577, %v835
      %v1611 = vsel %vm1582, %v1578, %v837
      %v1612 = vsel %vm1582, %v1579, %v839
      %v1613 = vsel %vm1582, %v1580, %v841
      %v1614 = vsel %vm1582, %v1581, %v843
      %vm1615 = vcmask 130048
      %v1616 = vsel %vm1615, %v1583, %v909
      %v1617 = vsel %vm1615, %v1584, %v911
      %v1618 = vsel %vm1615, %v1585, %v913
      %v1619 = vsel %vm1615, %v1586, %v915
      %v1620 = vsel %vm1615, %v1587, %v917
      %v1621 = vsel %vm1615, %v1588, %v919
      %v1622 = vsel %vm1615, %v1589, %v921
      %v1623 = vsel %vm1615, %v1590, %v923
      %v1624 = vsel %vm1615, %v1591, %v925
      %v1625 = vsel %vm1615, %v1592, %v927
      %v1626 = vsel %vm1615, %v1593, %v929
      %v1627 = vsel %vm1615, %v1594, %v931
      %v1628 = vsel %vm1615, %v1595, %v933
      %v1629 = vsel %vm1615, %v1596, %v935
      %v1630 = vsel %vm1615, %v1597, %v937
      %v1631 = vsel %vm1615, %v1598, %v939
      %v1632 = vsel %vm1615, %v1599, %v941
      %v1633 = vsel %vm1615, %v1600, %v943
      %v1634 = vsel %vm1615, %v1601, %v945
      %v1635 = vsel %vm1615, %v1602, %v947
      %v1636 = vsel %vm1615, %v1603, %v949
      %v1637 = vsel %vm1615, %v1604, %v951
      %v1638 = vsel %vm1615, %v1605, %v953
      %v1639 = vsel %vm1615, %v1606, %v955
      %v1640 = vsel %vm1615, %v1607, %v957
      %v1641 = vsel %vm1615, %v1608, %v959
      %v1642 = vsel %vm1615, %v1609, %v961
      %v1643 = vsel %vm1615, %v1610, %v963
      %v1644 = vsel %vm1615, %v1611, %v965
      %v1645 = vsel %vm1615, %v1612, %v967
      %v1646 = vsel %vm1615, %v1613, %v969
      %v1647 = vsel %vm1615, %v1614, %v971
      %vm1648 = vcmask 162816
      %v1649 = vsel %vm1648, %v1616, %v1037
      %v1650 = vsel %vm1648, %v1617, %v1039
      %v1651 = vsel %vm1648, %v1618, %v1041
      %v1652 = vsel %vm1648, %v1619, %v1043
      %v1653 = vsel %vm1648, %v1620, %v1045
      %v1654 = vsel %vm1648, %v1621, %v1047
      %v1655 = vsel %vm1648, %v1622, %v1049
      %v1656 = vsel %vm1648, %v1623, %v1051
      %v1657 = vsel %vm1648, %v1624, %v1053
      %v1658 = vsel %vm1648, %v1625, %v1055
      %v1659 = vsel %vm1648, %v1626, %v1057
      %v1660 = vsel %vm1648, %v1627, %v1059
      %v1661 = vsel %vm1648, %v1628, %v1061
      %v1662 = vsel %vm1648, %v1629, %v1063
      %v1663 = vsel %vm1648, %v1630, %v1065
      %v1664 = vsel %vm1648, %v1631, %v1067
      %v1665 = vsel %vm1648, %v1632, %v1069
      %v1666 = vsel %vm1648, %v1633, %v1071
      %v1667 = vsel %vm1648, %v1634, %v1073
      %v1668 = vsel %vm1648, %v1635, %v1075
      %v1669 = vsel %vm1648, %v1636, %v1077
      %v1670 = vsel %vm1648, %v1637, %v1079
      %v1671 = vsel %vm1648, %v1638, %v1081
      %v1672 = vsel %vm1648, %v1639, %v1083
      %v1673 = vsel %vm1648, %v1640, %v1085
      %v1674 = vsel %vm1648, %v1641, %v1087
      %v1675 = vsel %vm1648, %v1642, %v1089
      %v1676 = vsel %vm1648, %v1643, %v1091
      %v1677 = vsel %vm1648, %v1644, %v1093
      %v1678 = vsel %vm1648, %v1645, %v1095
      %v1679 = vsel %vm1648, %v1646, %v1097
      %v1680 = vsel %vm1648, %v1647, %v1099
      %vm1681 = vcmask 195584
      %v1682 = vsel %vm1681, %v1649, %v1165
      %v1683 = vsel %vm1681, %v1650, %v1167
      %v1684 = vsel %vm1681, %v1651, %v1169
      %v1685 = vsel %vm1681, %v1652, %v1171
      %v1686 = vsel %vm1681, %v1653, %v1173
      %v1687 = vsel %vm1681, %v1654, %v1175
      %v1688 = vsel %vm1681, %v1655, %v1177
      %v1689 = vsel %vm1681, %v1656, %v1179
      %v1690 = vsel %vm1681, %v1657, %v1181
      %v1691 = vsel %vm1681, %v1658, %v1183
      %v1692 = vsel %vm1681, %v1659, %v1185
      %v1693 = vsel %vm1681, %v1660, %v1187
      %v1694 = vsel %vm1681, %v1661, %v1189
      %v1695 = vsel %vm1681, %v1662, %v1191
      %v1696 = vsel %vm1681, %v1663, %v1193
      %v1697 = vsel %vm1681, %v1664, %v1195
      %v1698 = vsel %vm1681, %v1665, %v1197
      %v1699 = vsel %vm1681, %v1666, %v1199
      %v1700 = vsel %vm1681, %v1667, %v1201
      %v1701 = vsel %vm1681, %v1668, %v1203
      %v1702 = vsel %vm1681, %v1669, %v1205
      %v1703 = vsel %vm1681, %v1670, %v1207
      %v1704 = vsel %vm1681, %v1671, %v1209
      %v1705 = vsel %vm1681, %v1672, %v1211
      %v1706 = vsel %vm1681, %v1673, %v1213
      %v1707 = vsel %vm1681, %v1674, %v1215
      %v1708 = vsel %vm1681, %v1675, %v1217
      %v1709 = vsel %vm1681, %v1676, %v1219
      %v1710 = vsel %vm1681, %v1677, %v1221
      %v1711 = vsel %vm1681, %v1678, %v1223
      %v1712 = vsel %vm1681, %v1679, %v1225
      %v1713 = vsel %vm1681, %v1680, %v1227
      %vm1714 = vcmask 228352
      %v1715 = vsel %vm1714, %v1682, %v1293
      %v1716 = vsel %vm1714, %v1683, %v1295
      %v1717 = vsel %vm1714, %v1684, %v1297
      %v1718 = vsel %vm1714, %v1685, %v1299
      %v1719 = vsel %vm1714, %v1686, %v1301
      %v1720 = vsel %vm1714, %v1687, %v1303
      %v1721 = vsel %vm1714, %v1688, %v1305
      %v1722 = vsel %vm1714, %v1689, %v1307
      %v1723 = vsel %vm1714, %v1690, %v1309
      %v1724 = vsel %vm1714, %v1691, %v1311
      %v1725 = vsel %vm1714, %v1692, %v1313
      %v1726 = vsel %vm1714, %v1693, %v1315
      %v1727 = vsel %vm1714, %v1694, %v1317
      %v1728 = vsel %vm1714, %v1695, %v1319
      %v1729 = vsel %vm1714, %v1696, %v1321
      %v1730 = vsel %vm1714, %v1697, %v1323
      %v1731 = vsel %vm1714, %v1698, %v1325
      %v1732 = vsel %vm1714, %v1699, %v1327
      %v1733 = vsel %vm1714, %v1700, %v1329
      %v1734 = vsel %vm1714, %v1701, %v1331
      %v1735 = vsel %vm1714, %v1702, %v1333
      %v1736 = vsel %vm1714, %v1703, %v1335
      %v1737 = vsel %vm1714, %v1704, %v1337
      %v1738 = vsel %vm1714, %v1705, %v1339
      %v1739 = vsel %vm1714, %v1706, %v1341
      %v1740 = vsel %vm1714, %v1707, %v1343
      %v1741 = vsel %vm1714, %v1708, %v1345
      %v1742 = vsel %vm1714, %v1709, %v1347
      %v1743 = vsel %vm1714, %v1710, %v1349
      %v1744 = vsel %vm1714, %v1711, %v1351
      %v1745 = vsel %vm1714, %v1712, %v1353
      %v1746 = vsel %vm1714, %v1713, %v1355
      %vm1747 = vcmask 261120
      %v1748 = vsel %vm1747, %v1715, %v1421
      %v1749 = vsel %vm1747, %v1716, %v1423
      %v1750 = vsel %vm1747, %v1717, %v1425
      %v1751 = vsel %vm1747, %v1718, %v1427
      %v1752 = vsel %vm1747, %v1719, %v1429
      %v1753 = vsel %vm1747, %v1720, %v1431
      %v1754 = vsel %vm1747, %v1721, %v1433
      %v1755 = vsel %vm1747, %v1722, %v1435
      %v1756 = vsel %vm1747, %v1723, %v1437
      %v1757 = vsel %vm1747, %v1724, %v1439
      %v1758 = vsel %vm1747, %v1725, %v1441
      %v1759 = vsel %vm1747, %v1726, %v1443
      %v1760 = vsel %vm1747, %v1727, %v1445
      %v1761 = vsel %vm1747, %v1728, %v1447
      %v1762 = vsel %vm1747, %v1729, %v1449
      %v1763 = vsel %vm1747, %v1730, %v1451
      %v1764 = vsel %vm1747, %v1731, %v1453
      %v1765 = vsel %vm1747, %v1732, %v1455
      %v1766 = vsel %vm1747, %v1733, %v1457
      %v1767 = vsel %vm1747, %v1734, %v1459
      %v1768 = vsel %vm1747, %v1735, %v1461
      %v1769 = vsel %vm1747, %v1736, %v1463
      %v1770 = vsel %vm1747, %v1737, %v1465
      %v1771 = vsel %vm1747, %v1738, %v1467
      %v1772 = vsel %vm1747, %v1739, %v1469
      %v1773 = vsel %vm1747, %v1740, %v1471
      %v1774 = vsel %vm1747, %v1741, %v1473
      %v1775 = vsel %vm1747, %v1742, %v1475
      %v1776 = vsel %vm1747, %v1743, %v1477
      %v1777 = vsel %vm1747, %v1744, %v1479
      %v1778 = vsel %vm1747, %v1745, %v1481
      %v1779 = vsel %vm1747, %v1746, %v1483
      %v1780 = vld [vmem:[%s1] sm:$0xff]
      %v1781 = vld [vmem:[%s1 + $0x8] sm:$0xff]
      %v1782 = vld [vmem:[%s1 + $0x10] sm:$0xff]
      %v1783 = vld [vmem:[%s1 + $0x18] sm:$0xff]
      %v1784 = vld [vmem:[%s1 + $0x20] sm:$0xf]
      %s1785 = sadd.s32 %s194, 2
      %s1786 = smul.u32 %s1785, 24
      %s1787 = scalar_lea.vmem %s183, %s1786
      %v1788 = vld [vmem:[%s1787 + $0x2] sm:$0xff]
      %v1789 = vld [vmem:[%s1787 + $0xa] sm:$0xff]
      %v1790 = vld [vmem:[%s1787 + $0x1a] sm:$0xff]
      %v1791 = vld [vmem:[%s1787 + $0x22] sm:$0xff]
      %v1792 = vld [vmem:[%s1787 + $0x32] sm:$0xff]
      %v1793 = vld [vmem:[%s1787 + $0x3a] sm:$0xff]
      %v1794 = vld [vmem:[%s1787 + $0x4a] sm:$0xff]
      %v1795 = vld [vmem:[%s1787 + $0x52] sm:$0xff]
      %v1796 = vld [vmem:[%s1787 + $0x62] sm:$0xff]
      %v1797 = vld [vmem:[%s1787 + $0x6a] sm:$0xff]
      %v1798 = vld [vmem:[%s1787 + $0x7a] sm:$0xff]
      %v1799 = vld [vmem:[%s1787 + $0x82] sm:$0xff]
      %v1800 = vld [vmem:[%s1787 + $0x92] sm:$0xff]
      %v1801 = vld [vmem:[%s1787 + $0x9a] sm:$0xff]
      %v1802 = vld [vmem:[%s1787 + $0xaa] sm:$0xff]
      %v1803 = vld [vmem:[%s1787 + $0xb2] sm:$0xff]
      %v1804 = vld [vmem:[%s1787 + $0xc2] sm:$0xff]
      %v1805 = vld [vmem:[%s1787 + $0xca] sm:$0xff]
      %v1806 = vld [vmem:[%s1787 + $0xda] sm:$0xff]
      %v1807 = vld [vmem:[%s1787 + $0xe2] sm:$0xff]
      %v1808 = vld [vmem:[%s1787 + $0xf2] sm:$0xff]
      %v1809 = vld [vmem:[%s1787 + $0xfa] sm:$0xff]
      %v1810 = vld [vmem:[%s1787 + $0x10a] sm:$0xff]
      %v1811 = vld [vmem:[%s1787 + $0x112] sm:$0xff]
      %v1812 = vld [vmem:[%s1787 + $0x122] sm:$0xff]
      %v1813 = vld [vmem:[%s1787 + $0x12a] sm:$0xff]
      %v1814 = vld [vmem:[%s1787 + $0x13a] sm:$0xff]
      %v1815 = vld [vmem:[%s1787 + $0x142] sm:$0xff]
      %v1816 = vld [vmem:[%s1787 + $0x152] sm:$0xff]
      %v1817 = vld [vmem:[%s1787 + $0x15a] sm:$0xff]
      %v1818 = vld [vmem:[%s1787 + $0x16a] sm:$0xff]
      %v1819 = vld [vmem:[%s1787 + $0x172] sm:$0xff]
      %v1820 = vld [vmem:[%s1787 + $0x4] sm:$0xff]
      %v1821 = vld [vmem:[%s1787 + $0xc] sm:$0xff]
      %v1822 = vld [vmem:[%s1787 + $0x1c] sm:$0xff]
      %v1823 = vld [vmem:[%s1787 + $0x24] sm:$0xff]
      %v1824 = vld [vmem:[%s1787 + $0x34] sm:$0xff]
      %v1825 = vld [vmem:[%s1787 + $0x3c] sm:$0xff]
      %v1826 = vld [vmem:[%s1787 + $0x4c] sm:$0xff]
      %v1827 = vld [vmem:[%s1787 + $0x54] sm:$0xff]
      %v1828 = vld [vmem:[%s1787 + $0x64] sm:$0xff]
      %v1829 = vld [vmem:[%s1787 + $0x6c] sm:$0xff]
      %v1830 = vld [vmem:[%s1787 + $0x7c] sm:$0xff]
      %v1831 = vld [vmem:[%s1787 + $0x84] sm:$0xff]
      %v1832 = vld [vmem:[%s1787 + $0x94] sm:$0xff]
      %v1833 = vld [vmem:[%s1787 + $0x9c] sm:$0xff]
      %v1834 = vld [vmem:[%s1787 + $0xac] sm:$0xff]
      %v1835 = vld [vmem:[%s1787 + $0xb4] sm:$0xff]
      %v1836 = vld [vmem:[%s1787 + $0xc4] sm:$0xff]
      %v1837 = vld [vmem:[%s1787 + $0xcc] sm:$0xff]
      %v1838 = vld [vmem:[%s1787 + $0xdc] sm:$0xff]
      %v1839 = vld [vmem:[%s1787 + $0xe4] sm:$0xff]
      %v1840 = vld [vmem:[%s1787 + $0xf4] sm:$0xff]
      %v1841 = vld [vmem:[%s1787 + $0xfc] sm:$0xff]
      %v1842 = vld [vmem:[%s1787 + $0x10c] sm:$0xff]
      %v1843 = vld [vmem:[%s1787 + $0x114] sm:$0xff]
      %v1844 = vld [vmem:[%s1787 + $0x124] sm:$0xff]
      %v1845 = vld [vmem:[%s1787 + $0x12c] sm:$0xff]
      %v1846 = vld [vmem:[%s1787 + $0x13c] sm:$0xff]
      %v1847 = vld [vmem:[%s1787 + $0x144] sm:$0xff]
      %v1848 = vld [vmem:[%s1787 + $0x154] sm:$0xff]
      %v1849 = vld [vmem:[%s1787 + $0x15c] sm:$0xff]
      %v1850 = vld [vmem:[%s1787 + $0x16c] sm:$0xff]
      %v1851 = vld [vmem:[%s1787 + $0x174] sm:$0xff]
      %v1852 = vld [vmem:[%s1787 + $0x6] sm:$0xff]
      %v1853 = vld [vmem:[%s1787 + $0xe] sm:$0xff]
      %v1854 = vld [vmem:[%s1787 + $0x1e] sm:$0xff]
      %v1855 = vld [vmem:[%s1787 + $0x26] sm:$0xff]
      %v1856 = vld [vmem:[%s1787 + $0x36] sm:$0xff]
      %v1857 = vld [vmem:[%s1787 + $0x3e] sm:$0xff]
      %v1858 = vld [vmem:[%s1787 + $0x4e] sm:$0xff]
      %v1859 = vld [vmem:[%s1787 + $0x56] sm:$0xff]
      %v1860 = vld [vmem:[%s1787 + $0x66] sm:$0xff]
      %v1861 = vld [vmem:[%s1787 + $0x6e] sm:$0xff]
      %v1862 = vld [vmem:[%s1787 + $0x7e] sm:$0xff]
      %v1863 = vld [vmem:[%s1787 + $0x86] sm:$0xff]
      %v1864 = vld [vmem:[%s1787 + $0x96] sm:$0xff]
      %v1865 = vld [vmem:[%s1787 + $0x9e] sm:$0xff]
      %v1866 = vld [vmem:[%s1787 + $0xae] sm:$0xff]
      %v1867 = vld [vmem:[%s1787 + $0xb6] sm:$0xff]
      %v1868 = vld [vmem:[%s1787 + $0xc6] sm:$0xff]
      %v1869 = vld [vmem:[%s1787 + $0xce] sm:$0xff]
      %v1870 = vld [vmem:[%s1787 + $0xde] sm:$0xff]
      %v1871 = vld [vmem:[%s1787 + $0xe6] sm:$0xff]
      %v1872 = vld [vmem:[%s1787 + $0xf6] sm:$0xff]
      %v1873 = vld [vmem:[%s1787 + $0xfe] sm:$0xff]
      %v1874 = vld [vmem:[%s1787 + $0x10e] sm:$0xff]
      %v1875 = vld [vmem:[%s1787 + $0x116] sm:$0xff]
      %v1876 = vld [vmem:[%s1787 + $0x126] sm:$0xff]
      %v1877 = vld [vmem:[%s1787 + $0x12e] sm:$0xff]
      %v1878 = vld [vmem:[%s1787 + $0x13e] sm:$0xff]
      %v1879 = vld [vmem:[%s1787 + $0x146] sm:$0xff]
      %v1880 = vld [vmem:[%s1787 + $0x156] sm:$0xff]
      %v1881 = vld [vmem:[%s1787 + $0x15e] sm:$0xff]
      %v1882 = vld [vmem:[%s1787 + $0x16e] sm:$0xff]
      %v1883 = vld [vmem:[%s1787 + $0x176] sm:$0xff]
      %v1884 = vld [vmem:[%s296 + $0x2] sm:$0xff]
      %v1885 = vld [vmem:[%s296 + $0xa] sm:$0xff]
      %v1886 = vld [vmem:[%s296 + $0x1a] sm:$0xff]
      %v1887 = vld [vmem:[%s296 + $0x22] sm:$0xff]
      %v1888 = vld [vmem:[%s296 + $0x32] sm:$0xff]
      %v1889 = vld [vmem:[%s296 + $0x3a] sm:$0xff]
      %v1890 = vld [vmem:[%s296 + $0x4a] sm:$0xff]
      %v1891 = vld [vmem:[%s296 + $0x52] sm:$0xff]
      %v1892 = vld [vmem:[%s296 + $0x62] sm:$0xff]
      %v1893 = vld [vmem:[%s296 + $0x6a] sm:$0xff]
      %v1894 = vld [vmem:[%s296 + $0x7a] sm:$0xff]
      %v1895 = vld [vmem:[%s296 + $0x82] sm:$0xff]
      %v1896 = vld [vmem:[%s296 + $0x92] sm:$0xff]
      %v1897 = vld [vmem:[%s296 + $0x9a] sm:$0xff]
      %v1898 = vld [vmem:[%s296 + $0xaa] sm:$0xff]
      %v1899 = vld [vmem:[%s296 + $0xb2] sm:$0xff]
      %v1900 = vld [vmem:[%s296 + $0xc2] sm:$0xff]
      %v1901 = vld [vmem:[%s296 + $0xca] sm:$0xff]
      %v1902 = vld [vmem:[%s296 + $0xda] sm:$0xff]
      %v1903 = vld [vmem:[%s296 + $0xe2] sm:$0xff]
      %v1904 = vld [vmem:[%s296 + $0xf2] sm:$0xff]
      %v1905 = vld [vmem:[%s296 + $0xfa] sm:$0xff]
      %v1906 = vld [vmem:[%s296 + $0x10a] sm:$0xff]
      %v1907 = vld [vmem:[%s296 + $0x112] sm:$0xff]
      %v1908 = vld [vmem:[%s296 + $0x122] sm:$0xff]
      %v1909 = vld [vmem:[%s296 + $0x12a] sm:$0xff]
      %v1910 = vld [vmem:[%s296 + $0x13a] sm:$0xff]
      %v1911 = vld [vmem:[%s296 + $0x142] sm:$0xff]
      %v1912 = vld [vmem:[%s296 + $0x152] sm:$0xff]
      %v1913 = vld [vmem:[%s296 + $0x15a] sm:$0xff]
      %v1914 = vld [vmem:[%s296 + $0x16a] sm:$0xff]
      %v1915 = vld [vmem:[%s296 + $0x172] sm:$0xff]
      %v1916 = vld [vmem:[%s296 + $0x6] sm:$0xff]
      %v1917 = vld [vmem:[%s296 + $0xe] sm:$0xff]
      %v1918 = vld [vmem:[%s296 + $0x1e] sm:$0xff]
      %v1919 = vld [vmem:[%s296 + $0x26] sm:$0xff]
      %v1920 = vld [vmem:[%s296 + $0x36] sm:$0xff]
      %v1921 = vld [vmem:[%s296 + $0x3e] sm:$0xff]
      %v1922 = vld [vmem:[%s296 + $0x4e] sm:$0xff]
      %v1923 = vld [vmem:[%s296 + $0x56] sm:$0xff]
      %v1924 = vld [vmem:[%s296 + $0x66] sm:$0xff]
      %v1925 = vld [vmem:[%s296 + $0x6e] sm:$0xff]
      %v1926 = vld [vmem:[%s296 + $0x7e] sm:$0xff]
      %v1927 = vld [vmem:[%s296 + $0x86] sm:$0xff]
      %v1928 = vld [vmem:[%s296 + $0x96] sm:$0xff]
      %v1929 = vld [vmem:[%s296 + $0x9e] sm:$0xff]
      %v1930 = vld [vmem:[%s296 + $0xae] sm:$0xff]
      %v1931 = vld [vmem:[%s296 + $0xb6] sm:$0xff]
      %v1932 = vld [vmem:[%s296 + $0xc6] sm:$0xff]
      %v1933 = vld [vmem:[%s296 + $0xce] sm:$0xff]
      %v1934 = vld [vmem:[%s296 + $0xde] sm:$0xff]
      %v1935 = vld [vmem:[%s296 + $0xe6] sm:$0xff]
      %v1936 = vld [vmem:[%s296 + $0xf6] sm:$0xff]
      %v1937 = vld [vmem:[%s296 + $0xfe] sm:$0xff]
      %v1938 = vld [vmem:[%s296 + $0x10e] sm:$0xff]
      %v1939 = vld [vmem:[%s296 + $0x116] sm:$0xff]
      %v1940 = vld [vmem:[%s296 + $0x126] sm:$0xff]
      %v1941 = vld [vmem:[%s296 + $0x12e] sm:$0xff]
      %v1942 = vld [vmem:[%s296 + $0x13e] sm:$0xff]
      %v1943 = vld [vmem:[%s296 + $0x146] sm:$0xff]
      %v1944 = vld [vmem:[%s296 + $0x156] sm:$0xff]
      %v1945 = vld [vmem:[%s296 + $0x15e] sm:$0xff]
      %v1946 = vld [vmem:[%s296 + $0x16e] sm:$0xff]
      %v1947 = vld [vmem:[%s296 + $0x176] sm:$0xff]
      %s1948 = sadd.s32 %s194, 6
      %s1949 = smul.u32 %s1948, 24
      %s1950 = scalar_lea.vmem %s183, %s1949
      %v1951 = vld [vmem:[%s1950 + $0x2] sm:$0xff]
      %v1952 = vld [vmem:[%s1950 + $0xa] sm:$0xff]
      %v1953 = vld [vmem:[%s1950 + $0x1a] sm:$0xff]
      %v1954 = vld [vmem:[%s1950 + $0x22] sm:$0xff]
      %v1955 = vld [vmem:[%s1950 + $0x32] sm:$0xff]
      %v1956 = vld [vmem:[%s1950 + $0x3a] sm:$0xff]
      %v1957 = vld [vmem:[%s1950 + $0x4a] sm:$0xff]
      %v1958 = vld [vmem:[%s1950 + $0x52] sm:$0xff]
      %v1959 = vld [vmem:[%s1950 + $0x62] sm:$0xff]
      %v1960 = vld [vmem:[%s1950 + $0x6a] sm:$0xff]
      %v1961 = vld [vmem:[%s1950 + $0x7a] sm:$0xff]
      %v1962 = vld [vmem:[%s1950 + $0x82] sm:$0xff]
      %v1963 = vld [vmem:[%s1950 + $0x92] sm:$0xff]
      %v1964 = vld [vmem:[%s1950 + $0x9a] sm:$0xff]
      %v1965 = vld [vmem:[%s1950 + $0xaa] sm:$0xff]
      %v1966 = vld [vmem:[%s1950 + $0xb2] sm:$0xff]
      %v1967 = vld [vmem:[%s1950 + $0xc2] sm:$0xff]
      %v1968 = vld [vmem:[%s1950 + $0xca] sm:$0xff]
      %v1969 = vld [vmem:[%s1950 + $0xda] sm:$0xff]
      %v1970 = vld [vmem:[%s1950 + $0xe2] sm:$0xff]
      %v1971 = vld [vmem:[%s1950 + $0xf2] sm:$0xff]
      %v1972 = vld [vmem:[%s1950 + $0xfa] sm:$0xff]
      %v1973 = vld [vmem:[%s1950 + $0x10a] sm:$0xff]
      %v1974 = vld [vmem:[%s1950 + $0x112] sm:$0xff]
      %v1975 = vld [vmem:[%s1950 + $0x122] sm:$0xff]
      %v1976 = vld [vmem:[%s1950 + $0x12a] sm:$0xff]
      %v1977 = vld [vmem:[%s1950 + $0x13a] sm:$0xff]
      %v1978 = vld [vmem:[%s1950 + $0x142] sm:$0xff]
      %v1979 = vld [vmem:[%s1950 + $0x152] sm:$0xff]
      %v1980 = vld [vmem:[%s1950 + $0x15a] sm:$0xff]
      %v1981 = vld [vmem:[%s1950 + $0x16a] sm:$0xff]
      %v1982 = vld [vmem:[%s1950 + $0x172] sm:$0xff]
      %v1983 = vld [vmem:[%s1950 + $0x4] sm:$0xff]
      %v1984 = vld [vmem:[%s1950 + $0xc] sm:$0xff]
      %v1985 = vld [vmem:[%s1950 + $0x1c] sm:$0xff]
      %v1986 = vld [vmem:[%s1950 + $0x24] sm:$0xff]
      %v1987 = vld [vmem:[%s1950 + $0x34] sm:$0xff]
      %v1988 = vld [vmem:[%s1950 + $0x3c] sm:$0xff]
      %v1989 = vld [vmem:[%s1950 + $0x4c] sm:$0xff]
      %v1990 = vld [vmem:[%s1950 + $0x54] sm:$0xff]
      %v1991 = vld [vmem:[%s1950 + $0x64] sm:$0xff]
      %v1992 = vld [vmem:[%s1950 + $0x6c] sm:$0xff]
      %v1993 = vld [vmem:[%s1950 + $0x7c] sm:$0xff]
      %v1994 = vld [vmem:[%s1950 + $0x84] sm:$0xff]
      %v1995 = vld [vmem:[%s1950 + $0x94] sm:$0xff]
      %v1996 = vld [vmem:[%s1950 + $0x9c] sm:$0xff]
      %v1997 = vld [vmem:[%s1950 + $0xac] sm:$0xff]
      %v1998 = vld [vmem:[%s1950 + $0xb4] sm:$0xff]
      %v1999 = vld [vmem:[%s1950 + $0xc4] sm:$0xff]
      %v2000 = vld [vmem:[%s1950 + $0xcc] sm:$0xff]
      %v2001 = vld [vmem:[%s1950 + $0xdc] sm:$0xff]
      %v2002 = vld [vmem:[%s1950 + $0xe4] sm:$0xff]
      %v2003 = vld [vmem:[%s1950 + $0xf4] sm:$0xff]
      %v2004 = vld [vmem:[%s1950 + $0xfc] sm:$0xff]
      %v2005 = vld [vmem:[%s1950 + $0x10c] sm:$0xff]
      %v2006 = vld [vmem:[%s1950 + $0x114] sm:$0xff]
      %v2007 = vld [vmem:[%s1950 + $0x124] sm:$0xff]
      %v2008 = vld [vmem:[%s1950 + $0x12c] sm:$0xff]
      %v2009 = vld [vmem:[%s1950 + $0x13c] sm:$0xff]
      %v2010 = vld [vmem:[%s1950 + $0x144] sm:$0xff]
      %v2011 = vld [vmem:[%s1950 + $0x154] sm:$0xff]
      %v2012 = vld [vmem:[%s1950 + $0x15c] sm:$0xff]
      %v2013 = vld [vmem:[%s1950 + $0x16c] sm:$0xff]
      %v2014 = vld [vmem:[%s1950 + $0x174] sm:$0xff]
      %v2015 = vld [vmem:[%s1950 + $0x6] sm:$0xff]
      %v2016 = vld [vmem:[%s1950 + $0xe] sm:$0xff]
      %v2017 = vld [vmem:[%s1950 + $0x1e] sm:$0xff]
      %v2018 = vld [vmem:[%s1950 + $0x26] sm:$0xff]
      %v2019 = vld [vmem:[%s1950 + $0x36] sm:$0xff]
      %v2020 = vld [vmem:[%s1950 + $0x3e] sm:$0xff]
      %v2021 = vld [vmem:[%s1950 + $0x4e] sm:$0xff]
      %v2022 = vld [vmem:[%s1950 + $0x56] sm:$0xff]
      %v2023 = vld [vmem:[%s1950 + $0x66] sm:$0xff]
      %v2024 = vld [vmem:[%s1950 + $0x6e] sm:$0xff]
      %v2025 = vld [vmem:[%s1950 + $0x7e] sm:$0xff]
      %v2026 = vld [vmem:[%s1950 + $0x86] sm:$0xff]
      %v2027 = vld [vmem:[%s1950 + $0x96] sm:$0xff]
      %v2028 = vld [vmem:[%s1950 + $0x9e] sm:$0xff]
      %v2029 = vld [vmem:[%s1950 + $0xae] sm:$0xff]
      %v2030 = vld [vmem:[%s1950 + $0xb6] sm:$0xff]
      %v2031 = vld [vmem:[%s1950 + $0xc6] sm:$0xff]
      %v2032 = vld [vmem:[%s1950 + $0xce] sm:$0xff]
      %v2033 = vld [vmem:[%s1950 + $0xde] sm:$0xff]
      %v2034 = vld [vmem:[%s1950 + $0xe6] sm:$0xff]
      %v2035 = vld [vmem:[%s1950 + $0xf6] sm:$0xff]
      %v2036 = vld [vmem:[%s1950 + $0xfe] sm:$0xff]
      %v2037 = vld [vmem:[%s1950 + $0x10e] sm:$0xff]
      %v2038 = vld [vmem:[%s1950 + $0x116] sm:$0xff]
      %v2039 = vld [vmem:[%s1950 + $0x126] sm:$0xff]
      %v2040 = vld [vmem:[%s1950 + $0x12e] sm:$0xff]
      %v2041 = vld [vmem:[%s1950 + $0x13e] sm:$0xff]
      %v2042 = vld [vmem:[%s1950 + $0x146] sm:$0xff]
      %v2043 = vld [vmem:[%s1950 + $0x156] sm:$0xff]
      %v2044 = vld [vmem:[%s1950 + $0x15e] sm:$0xff]
      %v2045 = vld [vmem:[%s1950 + $0x16e] sm:$0xff]
      %v2046 = vld [vmem:[%s1950 + $0x176] sm:$0xff]
      %2079 = vrot.lane.b32.xlu0 %v1820, 4
      %v2080 = vpop.permute.xlu0 %2079
      %2081 = vrot.lane.b32.xlu0 %v1821, 4
      %v2082 = vpop.permute.xlu0 %2081
      %2083 = vrot.lane.b32.xlu0 %v1822, 4
      %v2084 = vpop.permute.xlu0 %2083
      %2085 = vrot.lane.b32.xlu0 %v1823, 4
      %v2086 = vpop.permute.xlu0 %2085
      %2087 = vrot.lane.b32.xlu0 %v1824, 4
      %v2088 = vpop.permute.xlu0 %2087
      %2089 = vrot.lane.b32.xlu0 %v1825, 4
      %v2090 = vpop.permute.xlu0 %2089
      %2091 = vrot.lane.b32.xlu0 %v1826, 4
      %v2092 = vpop.permute.xlu0 %2091
      %2093 = vrot.lane.b32.xlu0 %v1827, 4
      %v2094 = vpop.permute.xlu0 %2093
      %2095 = vrot.lane.b32.xlu0 %v1828, 4
      %v2096 = vpop.permute.xlu0 %2095
      %2097 = vrot.lane.b32.xlu0 %v1829, 4
      %v2098 = vpop.permute.xlu0 %2097
      %2099 = vrot.lane.b32.xlu0 %v1830, 4
      %v2100 = vpop.permute.xlu0 %2099
      %2101 = vrot.lane.b32.xlu0 %v1831, 4
      %v2102 = vpop.permute.xlu0 %2101
      %2103 = vrot.lane.b32.xlu0 %v1832, 4
      %v2104 = vpop.permute.xlu0 %2103
      %2105 = vrot.lane.b32.xlu0 %v1833, 4
      %v2106 = vpop.permute.xlu0 %2105
      %2107 = vrot.lane.b32.xlu0 %v1834, 4
      %v2108 = vpop.permute.xlu0 %2107
      %2109 = vrot.lane.b32.xlu0 %v1835, 4
      %v2110 = vpop.permute.xlu0 %2109
      %2111 = vrot.lane.b32.xlu0 %v1836, 4
      %v2112 = vpop.permute.xlu0 %2111
      %2113 = vrot.lane.b32.xlu0 %v1837, 4
      %v2114 = vpop.permute.xlu0 %2113
      %2115 = vrot.lane.b32.xlu0 %v1838, 4
      %v2116 = vpop.permute.xlu0 %2115
      %2117 = vrot.lane.b32.xlu0 %v1839, 4
      %v2118 = vpop.permute.xlu0 %2117
      %2119 = vrot.lane.b32.xlu0 %v1840, 4
      %v2120 = vpop.permute.xlu0 %2119
      %2121 = vrot.lane.b32.xlu0 %v1841, 4
      %v2122 = vpop.permute.xlu0 %2121
      %2123 = vrot.lane.b32.xlu0 %v1842, 4
      %v2124 = vpop.permute.xlu0 %2123
      %2125 = vrot.lane.b32.xlu0 %v1843, 4
      %v2126 = vpop.permute.xlu0 %2125
      %2127 = vrot.lane.b32.xlu0 %v1844, 4
      %v2128 = vpop.permute.xlu0 %2127
      %2129 = vrot.lane.b32.xlu0 %v1845, 4
      %v2130 = vpop.permute.xlu0 %2129
      %2131 = vrot.lane.b32.xlu0 %v1846, 4
      %v2132 = vpop.permute.xlu0 %2131
      %2133 = vrot.lane.b32.xlu0 %v1847, 4
      %v2134 = vpop.permute.xlu0 %2133
      %2135 = vrot.lane.b32.xlu0 %v1848, 4
      %v2136 = vpop.permute.xlu0 %2135
      %2137 = vrot.lane.b32.xlu0 %v1849, 4
      %v2138 = vpop.permute.xlu0 %2137
      %2139 = vrot.lane.b32.xlu0 %v1850, 4
      %v2140 = vpop.permute.xlu0 %2139
      %2141 = vrot.lane.b32.xlu0 %v1851, 4
      %v2142 = vpop.permute.xlu0 %2141
      %2207 = vrot.lane.b32.xlu0 %v1852, 8
      %v2208 = vpop.permute.xlu0 %2207
      %2209 = vrot.lane.b32.xlu0 %v1853, 8
      %v2210 = vpop.permute.xlu0 %2209
      %2211 = vrot.lane.b32.xlu0 %v1854, 8
      %v2212 = vpop.permute.xlu0 %2211
      %2213 = vrot.lane.b32.xlu0 %v1855, 8
      %v2214 = vpop.permute.xlu0 %2213
      %2215 = vrot.lane.b32.xlu0 %v1856, 8
      %v2216 = vpop.permute.xlu0 %2215
      %2217 = vrot.lane.b32.xlu0 %v1857, 8
      %v2218 = vpop.permute.xlu0 %2217
      %2219 = vrot.lane.b32.xlu0 %v1858, 8
      %v2220 = vpop.permute.xlu0 %2219
      %2221 = vrot.lane.b32.xlu0 %v1859, 8
      %v2222 = vpop.permute.xlu0 %2221
      %2223 = vrot.lane.b32.xlu0 %v1860, 8
      %v2224 = vpop.permute.xlu0 %2223
      %2225 = vrot.lane.b32.xlu0 %v1861, 8
      %v2226 = vpop.permute.xlu0 %2225
      %2227 = vrot.lane.b32.xlu0 %v1862, 8
      %v2228 = vpop.permute.xlu0 %2227
      %2229 = vrot.lane.b32.xlu0 %v1863, 8
      %v2230 = vpop.permute.xlu0 %2229
      %2231 = vrot.lane.b32.xlu0 %v1864, 8
      %v2232 = vpop.permute.xlu0 %2231
      %2233 = vrot.lane.b32.xlu0 %v1865, 8
      %v2234 = vpop.permute.xlu0 %2233
      %2235 = vrot.lane.b32.xlu0 %v1866, 8
      %v2236 = vpop.permute.xlu0 %2235
      %2237 = vrot.lane.b32.xlu0 %v1867, 8
      %v2238 = vpop.permute.xlu0 %2237
      %2239 = vrot.lane.b32.xlu0 %v1868, 8
      %v2240 = vpop.permute.xlu0 %2239
      %2241 = vrot.lane.b32.xlu0 %v1869, 8
      %v2242 = vpop.permute.xlu0 %2241
      %2243 = vrot.lane.b32.xlu0 %v1870, 8
      %v2244 = vpop.permute.xlu0 %2243
      %2245 = vrot.lane.b32.xlu0 %v1871, 8
      %v2246 = vpop.permute.xlu0 %2245
      %2247 = vrot.lane.b32.xlu0 %v1872, 8
      %v2248 = vpop.permute.xlu0 %2247
      %2249 = vrot.lane.b32.xlu0 %v1873, 8
      %v2250 = vpop.permute.xlu0 %2249
      %2251 = vrot.lane.b32.xlu0 %v1874, 8
      %v2252 = vpop.permute.xlu0 %2251
      %2253 = vrot.lane.b32.xlu0 %v1875, 8
      %v2254 = vpop.permute.xlu0 %2253
      %2255 = vrot.lane.b32.xlu0 %v1876, 8
      %v2256 = vpop.permute.xlu0 %2255
      %2257 = vrot.lane.b32.xlu0 %v1877, 8
      %v2258 = vpop.permute.xlu0 %2257
      %2259 = vrot.lane.b32.xlu0 %v1878, 8
      %v2260 = vpop.permute.xlu0 %2259
      %2261 = vrot.lane.b32.xlu0 %v1879, 8
      %v2262 = vpop.permute.xlu0 %2261
      %2263 = vrot.lane.b32.xlu0 %v1880, 8
      %v2264 = vpop.permute.xlu0 %2263
      %2265 = vrot.lane.b32.xlu0 %v1881, 8
      %v2266 = vpop.permute.xlu0 %2265
      %2267 = vrot.lane.b32.xlu0 %v1882, 8
      %v2268 = vpop.permute.xlu0 %2267
      %2269 = vrot.lane.b32.xlu0 %v1883, 8
      %v2270 = vpop.permute.xlu0 %2269
      %2335 = vrot.lane.b32.xlu0 %v1884, 12
      %v2336 = vpop.permute.xlu0 %2335
      %2337 = vrot.lane.b32.xlu0 %v1885, 12
      %v2338 = vpop.permute.xlu0 %2337
      %2339 = vrot.lane.b32.xlu0 %v1886, 12
      %v2340 = vpop.permute.xlu0 %2339
      %2341 = vrot.lane.b32.xlu0 %v1887, 12
      %v2342 = vpop.permute.xlu0 %2341
      %2343 = vrot.lane.b32.xlu0 %v1888, 12
      %v2344 = vpop.permute.xlu0 %2343
      %2345 = vrot.lane.b32.xlu0 %v1889, 12
      %v2346 = vpop.permute.xlu0 %2345
      %2347 = vrot.lane.b32.xlu0 %v1890, 12
      %v2348 = vpop.permute.xlu0 %2347
      %2349 = vrot.lane.b32.xlu0 %v1891, 12
      %v2350 = vpop.permute.xlu0 %2349
      %2351 = vrot.lane.b32.xlu0 %v1892, 12
      %v2352 = vpop.permute.xlu0 %2351
      %2353 = vrot.lane.b32.xlu0 %v1893, 12
      %v2354 = vpop.permute.xlu0 %2353
      %2355 = vrot.lane.b32.xlu0 %v1894, 12
      %v2356 = vpop.permute.xlu0 %2355
      %2357 = vrot.lane.b32.xlu0 %v1895, 12
      %v2358 = vpop.permute.xlu0 %2357
      %2359 = vrot.lane.b32.xlu0 %v1896, 12
      %v2360 = vpop.permute.xlu0 %2359
      %2361 = vrot.lane.b32.xlu0 %v1897, 12
      %v2362 = vpop.permute.xlu0 %2361
      %2363 = vrot.lane.b32.xlu0 %v1898, 12
      %v2364 = vpop.permute.xlu0 %2363
      %2365 = vrot.lane.b32.xlu0 %v1899, 12
      %v2366 = vpop.permute.xlu0 %2365
      %2367 = vrot.lane.b32.xlu0 %v1900, 12
      %v2368 = vpop.permute.xlu0 %2367
      %2369 = vrot.lane.b32.xlu0 %v1901, 12
      %v2370 = vpop.permute.xlu0 %2369
      %2371 = vrot.lane.b32.xlu0 %v1902, 12
      %v2372 = vpop.permute.xlu0 %2371
      %2373 = vrot.lane.b32.xlu0 %v1903, 12
      %v2374 = vpop.permute.xlu0 %2373
      %2375 = vrot.lane.b32.xlu0 %v1904, 12
      %v2376 = vpop.permute.xlu0 %2375
      %2377 = vrot.lane.b32.xlu0 %v1905, 12
      %v2378 = vpop.permute.xlu0 %2377
      %2379 = vrot.lane.b32.xlu0 %v1906, 12
      %v2380 = vpop.permute.xlu0 %2379
      %2381 = vrot.lane.b32.xlu0 %v1907, 12
      %v2382 = vpop.permute.xlu0 %2381
      %2383 = vrot.lane.b32.xlu0 %v1908, 12
      %v2384 = vpop.permute.xlu0 %2383
      %2385 = vrot.lane.b32.xlu0 %v1909, 12
      %v2386 = vpop.permute.xlu0 %2385
      %2387 = vrot.lane.b32.xlu0 %v1910, 12
      %v2388 = vpop.permute.xlu0 %2387
      %2389 = vrot.lane.b32.xlu0 %v1911, 12
      %v2390 = vpop.permute.xlu0 %2389
      %2391 = vrot.lane.b32.xlu0 %v1912, 12
      %v2392 = vpop.permute.xlu0 %2391
      %2393 = vrot.lane.b32.xlu0 %v1913, 12
      %v2394 = vpop.permute.xlu0 %2393
      %2395 = vrot.lane.b32.xlu0 %v1914, 12
      %v2396 = vpop.permute.xlu0 %2395
      %2397 = vrot.lane.b32.xlu0 %v1915, 12
      %v2398 = vpop.permute.xlu0 %2397
      %2463 = vrot.lane.b32.xlu0 %v1916, 20
      %v2464 = vpop.permute.xlu0 %2463
      %2465 = vrot.lane.b32.xlu0 %v1917, 20
      %v2466 = vpop.permute.xlu0 %2465
      %2467 = vrot.lane.b32.xlu0 %v1918, 20
      %v2468 = vpop.permute.xlu0 %2467
      %2469 = vrot.lane.b32.xlu0 %v1919, 20
      %v2470 = vpop.permute.xlu0 %2469
      %2471 = vrot.lane.b32.xlu0 %v1920, 20
      %v2472 = vpop.permute.xlu0 %2471
      %2473 = vrot.lane.b32.xlu0 %v1921, 20
      %v2474 = vpop.permute.xlu0 %2473
      %2475 = vrot.lane.b32.xlu0 %v1922, 20
      %v2476 = vpop.permute.xlu0 %2475
      %2477 = vrot.lane.b32.xlu0 %v1923, 20
      %v2478 = vpop.permute.xlu0 %2477
      %2479 = vrot.lane.b32.xlu0 %v1924, 20
      %v2480 = vpop.permute.xlu0 %2479
      %2481 = vrot.lane.b32.xlu0 %v1925, 20
      %v2482 = vpop.permute.xlu0 %2481
      %2483 = vrot.lane.b32.xlu0 %v1926, 20
      %v2484 = vpop.permute.xlu0 %2483
      %2485 = vrot.lane.b32.xlu0 %v1927, 20
      %v2486 = vpop.permute.xlu0 %2485
      %2487 = vrot.lane.b32.xlu0 %v1928, 20
      %v2488 = vpop.permute.xlu0 %2487
      %2489 = vrot.lane.b32.xlu0 %v1929, 20
      %v2490 = vpop.permute.xlu0 %2489
      %2491 = vrot.lane.b32.xlu0 %v1930, 20
      %v2492 = vpop.permute.xlu0 %2491
      %2493 = vrot.lane.b32.xlu0 %v1931, 20
      %v2494 = vpop.permute.xlu0 %2493
      %2495 = vrot.lane.b32.xlu0 %v1932, 20
      %v2496 = vpop.permute.xlu0 %2495
      %2497 = vrot.lane.b32.xlu0 %v1933, 20
      %v2498 = vpop.permute.xlu0 %2497
      %2499 = vrot.lane.b32.xlu0 %v1934, 20
      %v2500 = vpop.permute.xlu0 %2499
      %2501 = vrot.lane.b32.xlu0 %v1935, 20
      %v2502 = vpop.permute.xlu0 %2501
      %2503 = vrot.lane.b32.xlu0 %v1936, 20
      %v2504 = vpop.permute.xlu0 %2503
      %2505 = vrot.lane.b32.xlu0 %v1937, 20
      %v2506 = vpop.permute.xlu0 %2505
      %2507 = vrot.lane.b32.xlu0 %v1938, 20
      %v2508 = vpop.permute.xlu0 %2507
      %2509 = vrot.lane.b32.xlu0 %v1939, 20
      %v2510 = vpop.permute.xlu0 %2509
      %2511 = vrot.lane.b32.xlu0 %v1940, 20
      %v2512 = vpop.permute.xlu0 %2511
      %2513 = vrot.lane.b32.xlu0 %v1941, 20
      %v2514 = vpop.permute.xlu0 %2513
      %2515 = vrot.lane.b32.xlu0 %v1942, 20
      %v2516 = vpop.permute.xlu0 %2515
      %2517 = vrot.lane.b32.xlu0 %v1943, 20
      %v2518 = vpop.permute.xlu0 %2517
      %2519 = vrot.lane.b32.xlu0 %v1944, 20
      %v2520 = vpop.permute.xlu0 %2519
      %2521 = vrot.lane.b32.xlu0 %v1945, 20
      %v2522 = vpop.permute.xlu0 %2521
      %2523 = vrot.lane.b32.xlu0 %v1946, 20
      %v2524 = vpop.permute.xlu0 %2523
      %2525 = vrot.lane.b32.xlu0 %v1947, 20
      %v2526 = vpop.permute.xlu0 %2525
      %2591 = vrot.lane.b32.xlu0 %v1951, 24
      %v2592 = vpop.permute.xlu0 %2591
      %2593 = vrot.lane.b32.xlu0 %v1952, 24
      %v2594 = vpop.permute.xlu0 %2593
      %2595 = vrot.lane.b32.xlu0 %v1953, 24
      %v2596 = vpop.permute.xlu0 %2595
      %2597 = vrot.lane.b32.xlu0 %v1954, 24
      %v2598 = vpop.permute.xlu0 %2597
      %2599 = vrot.lane.b32.xlu0 %v1955, 24
      %v2600 = vpop.permute.xlu0 %2599
      %2601 = vrot.lane.b32.xlu0 %v1956, 24
      %v2602 = vpop.permute.xlu0 %2601
      %2603 = vrot.lane.b32.xlu0 %v1957, 24
      %v2604 = vpop.permute.xlu0 %2603
      %2605 = vrot.lane.b32.xlu0 %v1958, 24
      %v2606 = vpop.permute.xlu0 %2605
      %2607 = vrot.lane.b32.xlu0 %v1959, 24
      %v2608 = vpop.permute.xlu0 %2607
      %2609 = vrot.lane.b32.xlu0 %v1960, 24
      %v2610 = vpop.permute.xlu0 %2609
      %2611 = vrot.lane.b32.xlu0 %v1961, 24
      %v2612 = vpop.permute.xlu0 %2611
      %2613 = vrot.lane.b32.xlu0 %v1962, 24
      %v2614 = vpop.permute.xlu0 %2613
      %2615 = vrot.lane.b32.xlu0 %v1963, 24
      %v2616 = vpop.permute.xlu0 %2615
      %2617 = vrot.lane.b32.xlu0 %v1964, 24
      %v2618 = vpop.permute.xlu0 %2617
      %2619 = vrot.lane.b32.xlu0 %v1965, 24
      %v2620 = vpop.permute.xlu0 %2619
      %2621 = vrot.lane.b32.xlu0 %v1966, 24
      %v2622 = vpop.permute.xlu0 %2621
      %2623 = vrot.lane.b32.xlu0 %v1967, 24
      %v2624 = vpop.permute.xlu0 %2623
      %2625 = vrot.lane.b32.xlu0 %v1968, 24
      %v2626 = vpop.permute.xlu0 %2625
      %2627 = vrot.lane.b32.xlu0 %v1969, 24
      %v2628 = vpop.permute.xlu0 %2627
      %2629 = vrot.lane.b32.xlu0 %v1970, 24
      %v2630 = vpop.permute.xlu0 %2629
      %2631 = vrot.lane.b32.xlu0 %v1971, 24
      %v2632 = vpop.permute.xlu0 %2631
      %2633 = vrot.lane.b32.xlu0 %v1972, 24
      %v2634 = vpop.permute.xlu0 %2633
      %2635 = vrot.lane.b32.xlu0 %v1973, 24
      %v2636 = vpop.permute.xlu0 %2635
      %2637 = vrot.lane.b32.xlu0 %v1974, 24
      %v2638 = vpop.permute.xlu0 %2637
      %2639 = vrot.lane.b32.xlu0 %v1975, 24
      %v2640 = vpop.permute.xlu0 %2639
      %2641 = vrot.lane.b32.xlu0 %v1976, 24
      %v2642 = vpop.permute.xlu0 %2641
      %2643 = vrot.lane.b32.xlu0 %v1977, 24
      %v2644 = vpop.permute.xlu0 %2643
      %2645 = vrot.lane.b32.xlu0 %v1978, 24
      %v2646 = vpop.permute.xlu0 %2645
      %2647 = vrot.lane.b32.xlu0 %v1979, 24
      %v2648 = vpop.permute.xlu0 %2647
      %2649 = vrot.lane.b32.xlu0 %v1980, 24
      %v2650 = vpop.permute.xlu0 %2649
      %2651 = vrot.lane.b32.xlu0 %v1981, 24
      %v2652 = vpop.permute.xlu0 %2651
      %2653 = vrot.lane.b32.xlu0 %v1982, 24
      %v2654 = vpop.permute.xlu0 %2653
      %2719 = vrot.lane.b32.xlu0 %v1983, 28
      %v2720 = vpop.permute.xlu0 %2719
      %2721 = vrot.lane.b32.xlu0 %v1984, 28
      %v2722 = vpop.permute.xlu0 %2721
      %2723 = vrot.lane.b32.xlu0 %v1985, 28
      %v2724 = vpop.permute.xlu0 %2723
      %2725 = vrot.lane.b32.xlu0 %v1986, 28
      %v2726 = vpop.permute.xlu0 %2725
      %2727 = vrot.lane.b32.xlu0 %v1987, 28
      %v2728 = vpop.permute.xlu0 %2727
      %2729 = vrot.lane.b32.xlu0 %v1988, 28
      %v2730 = vpop.permute.xlu0 %2729
      %2731 = vrot.lane.b32.xlu0 %v1989, 28
      %v2732 = vpop.permute.xlu0 %2731
      %2733 = vrot.lane.b32.xlu0 %v1990, 28
      %v2734 = vpop.permute.xlu0 %2733
      %2735 = vrot.lane.b32.xlu0 %v1991, 28
      %v2736 = vpop.permute.xlu0 %2735
      %2737 = vrot.lane.b32.xlu0 %v1992, 28
      %v2738 = vpop.permute.xlu0 %2737
      %2739 = vrot.lane.b32.xlu0 %v1993, 28
      %v2740 = vpop.permute.xlu0 %2739
      %2741 = vrot.lane.b32.xlu0 %v1994, 28
      %v2742 = vpop.permute.xlu0 %2741
      %2743 = vrot.lane.b32.xlu0 %v1995, 28
      %v2744 = vpop.permute.xlu0 %2743
      %2745 = vrot.lane.b32.xlu0 %v1996, 28
      %v2746 = vpop.permute.xlu0 %2745
      %2747 = vrot.lane.b32.xlu0 %v1997, 28
      %v2748 = vpop.permute.xlu0 %2747
      %2749 = vrot.lane.b32.xlu0 %v1998, 28
      %v2750 = vpop.permute.xlu0 %2749
      %2751 = vrot.lane.b32.xlu0 %v1999, 28
      %v2752 = vpop.permute.xlu0 %2751
      %2753 = vrot.lane.b32.xlu0 %v2000, 28
      %v2754 = vpop.permute.xlu0 %2753
      %2755 = vrot.lane.b32.xlu0 %v2001, 28
      %v2756 = vpop.permute.xlu0 %2755
      %2757 = vrot.lane.b32.xlu0 %v2002, 28
      %v2758 = vpop.permute.xlu0 %2757
      %2759 = vrot.lane.b32.xlu0 %v2003, 28
      %v2760 = vpop.permute.xlu0 %2759
      %2761 = vrot.lane.b32.xlu0 %v2004, 28
      %v2762 = vpop.permute.xlu0 %2761
      %2763 = vrot.lane.b32.xlu0 %v2005, 28
      %v2764 = vpop.permute.xlu0 %2763
      %2765 = vrot.lane.b32.xlu0 %v2006, 28
      %v2766 = vpop.permute.xlu0 %2765
      %2767 = vrot.lane.b32.xlu0 %v2007, 28
      %v2768 = vpop.permute.xlu0 %2767
      %2769 = vrot.lane.b32.xlu0 %v2008, 28
      %v2770 = vpop.permute.xlu0 %2769
      %2771 = vrot.lane.b32.xlu0 %v2009, 28
      %v2772 = vpop.permute.xlu0 %2771
      %2773 = vrot.lane.b32.xlu0 %v2010, 28
      %v2774 = vpop.permute.xlu0 %2773
      %2775 = vrot.lane.b32.xlu0 %v2011, 28
      %v2776 = vpop.permute.xlu0 %2775
      %2777 = vrot.lane.b32.xlu0 %v2012, 28
      %v2778 = vpop.permute.xlu0 %2777
      %2779 = vrot.lane.b32.xlu0 %v2013, 28
      %v2780 = vpop.permute.xlu0 %2779
      %2781 = vrot.lane.b32.xlu0 %v2014, 28
      %v2782 = vpop.permute.xlu0 %2781
      %2847 = vrot.lane.b32.xlu0 %v2015, 32
      %v2848 = vpop.permute.xlu0 %2847
      %2849 = vrot.lane.b32.xlu0 %v2016, 32
      %v2850 = vpop.permute.xlu0 %2849
      %2851 = vrot.lane.b32.xlu0 %v2017, 32
      %v2852 = vpop.permute.xlu0 %2851
      %2853 = vrot.lane.b32.xlu0 %v2018, 32
      %v2854 = vpop.permute.xlu0 %2853
      %2855 = vrot.lane.b32.xlu0 %v2019, 32
      %v2856 = vpop.permute.xlu0 %2855
      %2857 = vrot.lane.b32.xlu0 %v2020, 32
      %v2858 = vpop.permute.xlu0 %2857
      %2859 = vrot.lane.b32.xlu0 %v2021, 32
      %v2860 = vpop.permute.xlu0 %2859
      %2861 = vrot.lane.b32.xlu0 %v2022, 32
      %v2862 = vpop.permute.xlu0 %2861
      %2863 = vrot.lane.b32.xlu0 %v2023, 32
      %v2864 = vpop.permute.xlu0 %2863
      %2865 = vrot.lane.b32.xlu0 %v2024, 32
      %v2866 = vpop.permute.xlu0 %2865
      %2867 = vrot.lane.b32.xlu0 %v2025, 32
      %v2868 = vpop.permute.xlu0 %2867
      %2869 = vrot.lane.b32.xlu0 %v2026, 32
      %v2870 = vpop.permute.xlu0 %2869
      %2871 = vrot.lane.b32.xlu0 %v2027, 32
      %v2872 = vpop.permute.xlu0 %2871
      %2873 = vrot.lane.b32.xlu0 %v2028, 32
      %v2874 = vpop.permute.xlu0 %2873
      %2875 = vrot.lane.b32.xlu0 %v2029, 32
      %v2876 = vpop.permute.xlu0 %2875
      %2877 = vrot.lane.b32.xlu0 %v2030, 32
      %v2878 = vpop.permute.xlu0 %2877
      %2879 = vrot.lane.b32.xlu0 %v2031, 32
      %v2880 = vpop.permute.xlu0 %2879
      %2881 = vrot.lane.b32.xlu0 %v2032, 32
      %v2882 = vpop.permute.xlu0 %2881
      %2883 = vrot.lane.b32.xlu0 %v2033, 32
      %v2884 = vpop.permute.xlu0 %2883
      %2885 = vrot.lane.b32.xlu0 %v2034, 32
      %v2886 = vpop.permute.xlu0 %2885
      %2887 = vrot.lane.b32.xlu0 %v2035, 32
      %v2888 = vpop.permute.xlu0 %2887
      %2889 = vrot.lane.b32.xlu0 %v2036, 32
      %v2890 = vpop.permute.xlu0 %2889
      %2891 = vrot.lane.b32.xlu0 %v2037, 32
      %v2892 = vpop.permute.xlu0 %2891
      %2893 = vrot.lane.b32.xlu0 %v2038, 32
      %v2894 = vpop.permute.xlu0 %2893
      %2895 = vrot.lane.b32.xlu0 %v2039, 32
      %v2896 = vpop.permute.xlu0 %2895
      %2897 = vrot.lane.b32.xlu0 %v2040, 32
      %v2898 = vpop.permute.xlu0 %2897
      %2899 = vrot.lane.b32.xlu0 %v2041, 32
      %v2900 = vpop.permute.xlu0 %2899
      %2901 = vrot.lane.b32.xlu0 %v2042, 32
      %v2902 = vpop.permute.xlu0 %2901
      %2903 = vrot.lane.b32.xlu0 %v2043, 32
      %v2904 = vpop.permute.xlu0 %2903
      %2905 = vrot.lane.b32.xlu0 %v2044, 32
      %v2906 = vpop.permute.xlu0 %2905
      %2907 = vrot.lane.b32.xlu0 %v2045, 32
      %v2908 = vpop.permute.xlu0 %2907
      %2909 = vrot.lane.b32.xlu0 %v2046, 32
      %v2910 = vpop.permute.xlu0 %2909
      %v2943 = vsel %vm1516, %v1788, %v2080
      %v2944 = vsel %vm1516, %v1789, %v2082
      %v2945 = vsel %vm1516, %v1790, %v2084
      %v2946 = vsel %vm1516, %v1791, %v2086
      %v2947 = vsel %vm1516, %v1792, %v2088
      %v2948 = vsel %vm1516, %v1793, %v2090
      %v2949 = vsel %vm1516, %v1794, %v2092
      %v2950 = vsel %vm1516, %v1795, %v2094
      %v2951 = vsel %vm1516, %v1796, %v2096
      %v2952 = vsel %vm1516, %v1797, %v2098
      %v2953 = vsel %vm1516, %v1798, %v2100
      %v2954 = vsel %vm1516, %v1799, %v2102
      %v2955 = vsel %vm1516, %v1800, %v2104
      %v2956 = vsel %vm1516, %v1801, %v2106
      %v2957 = vsel %vm1516, %v1802, %v2108
      %v2958 = vsel %vm1516, %v1803, %v2110
      %v2959 = vsel %vm1516, %v1804, %v2112
      %v2960 = vsel %vm1516, %v1805, %v2114
      %v2961 = vsel %vm1516, %v1806, %v2116
      %v2962 = vsel %vm1516, %v1807, %v2118
      %v2963 = vsel %vm1516, %v1808, %v2120
      %v2964 = vsel %vm1516, %v1809, %v2122
      %v2965 = vsel %vm1516, %v1810, %v2124
      %v2966 = vsel %vm1516, %v1811, %v2126
      %v2967 = vsel %vm1516, %v1812, %v2128
      %v2968 = vsel %vm1516, %v1813, %v2130
      %v2969 = vsel %vm1516, %v1814, %v2132
      %v2970 = vsel %vm1516, %v1815, %v2134
      %v2971 = vsel %vm1516, %v1816, %v2136
      %v2972 = vsel %vm1516, %v1817, %v2138
      %v2973 = vsel %vm1516, %v1818, %v2140
      %v2974 = vsel %vm1516, %v1819, %v2142
      %v2975 = vsel %vm1549, %v2943, %v2208
      %v2976 = vsel %vm1549, %v2944, %v2210
      %v2977 = vsel %vm1549, %v2945, %v2212
      %v2978 = vsel %vm1549, %v2946, %v2214
      %v2979 = vsel %vm1549, %v2947, %v2216
      %v2980 = vsel %vm1549, %v2948, %v2218
      %v2981 = vsel %vm1549, %v2949, %v2220
      %v2982 = vsel %vm1549, %v2950, %v2222
      %v2983 = vsel %vm1549, %v2951, %v2224
      %v2984 = vsel %vm1549, %v2952, %v2226
      %v2985 = vsel %vm1549, %v2953, %v2228
      %v2986 = vsel %vm1549, %v2954, %v2230
      %v2987 = vsel %vm1549, %v2955, %v2232
      %v2988 = vsel %vm1549, %v2956, %v2234
      %v2989 = vsel %vm1549, %v2957, %v2236
      %v2990 = vsel %vm1549, %v2958, %v2238
      %v2991 = vsel %vm1549, %v2959, %v2240
      %v2992 = vsel %vm1549, %v2960, %v2242
      %v2993 = vsel %vm1549, %v2961, %v2244
      %v2994 = vsel %vm1549, %v2962, %v2246
      %v2995 = vsel %vm1549, %v2963, %v2248
      %v2996 = vsel %vm1549, %v2964, %v2250
      %v2997 = vsel %vm1549, %v2965, %v2252
      %v2998 = vsel %vm1549, %v2966, %v2254
      %v2999 = vsel %vm1549, %v2967, %v2256
      %v3000 = vsel %vm1549, %v2968, %v2258
      %v3001 = vsel %vm1549, %v2969, %v2260
      %v3002 = vsel %vm1549, %v2970, %v2262
      %v3003 = vsel %vm1549, %v2971, %v2264
      %v3004 = vsel %vm1549, %v2972, %v2266
      %v3005 = vsel %vm1549, %v2973, %v2268
      %v3006 = vsel %vm1549, %v2974, %v2270
      %v3007 = vsel %vm1582, %v2975, %v2336
      %v3008 = vsel %vm1582, %v2976, %v2338
      %v3009 = vsel %vm1582, %v2977, %v2340
      %v3010 = vsel %vm1582, %v2978, %v2342
      %v3011 = vsel %vm1582, %v2979, %v2344
      %v3012 = vsel %vm1582, %v2980, %v2346
      %v3013 = vsel %vm1582, %v2981, %v2348
      %v3014 = vsel %vm1582, %v2982, %v2350
      %v3015 = vsel %vm1582, %v2983, %v2352
      %v3016 = vsel %vm1582, %v2984, %v2354
      %v3017 = vsel %vm1582, %v2985, %v2356
      %v3018 = vsel %vm1582, %v2986, %v2358
      %v3019 = vsel %vm1582, %v2987, %v2360
      %v3020 = vsel %vm1582, %v2988, %v2362
      %v3021 = vsel %vm1582, %v2989, %v2364
      %v3022 = vsel %vm1582, %v2990, %v2366
      %v3023 = vsel %vm1582, %v2991, %v2368
      %v3024 = vsel %vm1582, %v2992, %v2370
      %v3025 = vsel %vm1582, %v2993, %v2372
      %v3026 = vsel %vm1582, %v2994, %v2374
      %v3027 = vsel %vm1582, %v2995, %v2376
      %v3028 = vsel %vm1582, %v2996, %v2378
      %v3029 = vsel %vm1582, %v2997, %v2380
      %v3030 = vsel %vm1582, %v2998, %v2382
      %v3031 = vsel %vm1582, %v2999, %v2384
      %v3032 = vsel %vm1582, %v3000, %v2386
      %v3033 = vsel %vm1582, %v3001, %v2388
      %v3034 = vsel %vm1582, %v3002, %v2390
      %v3035 = vsel %vm1582, %v3003, %v2392
      %v3036 = vsel %vm1582, %v3004, %v2394
      %v3037 = vsel %vm1582, %v3005, %v2396
      %v3038 = vsel %vm1582, %v3006, %v2398
      %v3039 = vsel %vm1615, %v3007, %v909
      %v3040 = vsel %vm1615, %v3008, %v911
      %v3041 = vsel %vm1615, %v3009, %v913
      %v3042 = vsel %vm1615, %v3010, %v915
      %v3043 = vsel %vm1615, %v3011, %v917
      %v3044 = vsel %vm1615, %v3012, %v919
      %v3045 = vsel %vm1615, %v3013, %v921
      %v3046 = vsel %vm1615, %v3014, %v923
      %v3047 = vsel %vm1615, %v3015, %v925
      %v3048 = vsel %vm1615, %v3016, %v927
      %v3049 = vsel %vm1615, %v3017, %v929
      %v3050 = vsel %vm1615, %v3018, %v931
      %v3051 = vsel %vm1615, %v3019, %v933
      %v3052 = vsel %vm1615, %v3020, %v935
      %v3053 = vsel %vm1615, %v3021, %v937
      %v3054 = vsel %vm1615, %v3022, %v939
      %v3055 = vsel %vm1615, %v3023, %v941
      %v3056 = vsel %vm1615, %v3024, %v943
      %v3057 = vsel %vm1615, %v3025, %v945
      %v3058 = vsel %vm1615, %v3026, %v947
      %v3059 = vsel %vm1615, %v3027, %v949
      %v3060 = vsel %vm1615, %v3028, %v951
      %v3061 = vsel %vm1615, %v3029, %v953
      %v3062 = vsel %vm1615, %v3030, %v955
      %v3063 = vsel %vm1615, %v3031, %v957
      %v3064 = vsel %vm1615, %v3032, %v959
      %v3065 = vsel %vm1615, %v3033, %v961
      %v3066 = vsel %vm1615, %v3034, %v963
      %v3067 = vsel %vm1615, %v3035, %v965
      %v3068 = vsel %vm1615, %v3036, %v967
      %v3069 = vsel %vm1615, %v3037, %v969
      %v3070 = vsel %vm1615, %v3038, %v971
      %v3071 = vsel %vm1648, %v3039, %v2464
      %v3072 = vsel %vm1648, %v3040, %v2466
      %v3073 = vsel %vm1648, %v3041, %v2468
      %v3074 = vsel %vm1648, %v3042, %v2470
      %v3075 = vsel %vm1648, %v3043, %v2472
      %v3076 = vsel %vm1648, %v3044, %v2474
      %v3077 = vsel %vm1648, %v3045, %v2476
      %v3078 = vsel %vm1648, %v3046, %v2478
      %v3079 = vsel %vm1648, %v3047, %v2480
      %v3080 = vsel %vm1648, %v3048, %v2482
      %v3081 = vsel %vm1648, %v3049, %v2484
      %v3082 = vsel %vm1648, %v3050, %v2486
      %v3083 = vsel %vm1648, %v3051, %v2488
      %v3084 = vsel %vm1648, %v3052, %v2490
      %v3085 = vsel %vm1648, %v3053, %v2492
      %v3086 = vsel %vm1648, %v3054, %v2494
      %v3087 = vsel %vm1648, %v3055, %v2496
      %v3088 = vsel %vm1648, %v3056, %v2498
      %v3089 = vsel %vm1648, %v3057, %v2500
      %v3090 = vsel %vm1648, %v3058, %v2502
      %v3091 = vsel %vm1648, %v3059, %v2504
      %v3092 = vsel %vm1648, %v3060, %v2506
      %v3093 = vsel %vm1648, %v3061, %v2508
      %v3094 = vsel %vm1648, %v3062, %v2510
      %v3095 = vsel %vm1648, %v3063, %v2512
      %v3096 = vsel %vm1648, %v3064, %v2514
      %v3097 = vsel %vm1648, %v3065, %v2516
      %v3098 = vsel %vm1648, %v3066, %v2518
      %v3099 = vsel %vm1648, %v3067, %v2520
      %v3100 = vsel %vm1648, %v3068, %v2522
      %v3101 = vsel %vm1648, %v3069, %v2524
      %v3102 = vsel %vm1648, %v3070, %v2526
      %v3103 = vsel %vm1681, %v3071, %v2592
      %v3104 = vsel %vm1681, %v3072, %v2594
      %v3105 = vsel %vm1681, %v3073, %v2596
      %v3106 = vsel %vm1681, %v3074, %v2598
      %v3107 = vsel %vm1681, %v3075, %v2600
      %v3108 = vsel %vm1681, %v3076, %v2602
      %v3109 = vsel %vm1681, %v3077, %v2604
      %v3110 = vsel %vm1681, %v3078, %v2606
      %v3111 = vsel %vm1681, %v3079, %v2608
      %v3112 = vsel %vm1681, %v3080, %v2610
      %v3113 = vsel %vm1681, %v3081, %v2612
      %v3114 = vsel %vm1681, %v3082, %v2614
      %v3115 = vsel %vm1681, %v3083, %v2616
      %v3116 = vsel %vm1681, %v3084, %v2618
      %v3117 = vsel %vm1681, %v3085, %v2620
      %v3118 = vsel %vm1681, %v3086, %v2622
      %v3119 = vsel %vm1681, %v3087, %v2624
      %v3120 = vsel %vm1681, %v3088, %v2626
      %v3121 = vsel %vm1681, %v3089, %v2628
      %v3122 = vsel %vm1681, %v3090, %v2630
      %v3123 = vsel %vm1681, %v3091, %v2632
      %v3124 = vsel %vm1681, %v3092, %v2634
      %v3125 = vsel %vm1681, %v3093, %v2636
      %v3126 = vsel %vm1681, %v3094, %v2638
      %v3127 = vsel %vm1681, %v3095, %v2640
      %v3128 = vsel %vm1681, %v3096, %v2642
      %v3129 = vsel %vm1681, %v3097, %v2644
      %v3130 = vsel %vm1681, %v3098, %v2646
      %v3131 = vsel %vm1681, %v3099, %v2648
      %v3132 = vsel %vm1681, %v3100, %v2650
      %v3133 = vsel %vm1681, %v3101, %v2652
      %v3134 = vsel %vm1681, %v3102, %v2654
      %v3135 = vsel %vm1714, %v3103, %v2720
      %v3136 = vsel %vm1714, %v3104, %v2722
      %v3137 = vsel %vm1714, %v3105, %v2724
      %v3138 = vsel %vm1714, %v3106, %v2726
      %v3139 = vsel %vm1714, %v3107, %v2728
      %v3140 = vsel %vm1714, %v3108, %v2730
      %v3141 = vsel %vm1714, %v3109, %v2732
      %v3142 = vsel %vm1714, %v3110, %v2734
      %v3143 = vsel %vm1714, %v3111, %v2736
      %v3144 = vsel %vm1714, %v3112, %v2738
      %v3145 = vsel %vm1714, %v3113, %v2740
      %v3146 = vsel %vm1714, %v3114, %v2742
      %v3147 = vsel %vm1714, %v3115, %v2744
      %v3148 = vsel %vm1714, %v3116, %v2746
      %v3149 = vsel %vm1714, %v3117, %v2748
      %v3150 = vsel %vm1714, %v3118, %v2750
      %v3151 = vsel %vm1714, %v3119, %v2752
      %v3152 = vsel %vm1714, %v3120, %v2754
      %v3153 = vsel %vm1714, %v3121, %v2756
      %v3154 = vsel %vm1714, %v3122, %v2758
      %v3155 = vsel %vm1714, %v3123, %v2760
      %v3156 = vsel %vm1714, %v3124, %v2762
      %v3157 = vsel %vm1714, %v3125, %v2764
      %v3158 = vsel %vm1714, %v3126, %v2766
      %v3159 = vsel %vm1714, %v3127, %v2768
      %v3160 = vsel %vm1714, %v3128, %v2770
      %v3161 = vsel %vm1714, %v3129, %v2772
      %v3162 = vsel %vm1714, %v3130, %v2774
      %v3163 = vsel %vm1714, %v3131, %v2776
      %v3164 = vsel %vm1714, %v3132, %v2778
      %v3165 = vsel %vm1714, %v3133, %v2780
      %v3166 = vsel %vm1714, %v3134, %v2782
      %v3167 = vsel %vm1747, %v3135, %v2848
      %v3168 = vsel %vm1747, %v3136, %v2850
      %v3169 = vsel %vm1747, %v3137, %v2852
      %v3170 = vsel %vm1747, %v3138, %v2854
      %v3171 = vsel %vm1747, %v3139, %v2856
      %v3172 = vsel %vm1747, %v3140, %v2858
      %v3173 = vsel %vm1747, %v3141, %v2860
      %v3174 = vsel %vm1747, %v3142, %v2862
      %v3175 = vsel %vm1747, %v3143, %v2864
      %v3176 = vsel %vm1747, %v3144, %v2866
      %v3177 = vsel %vm1747, %v3145, %v2868
      %v3178 = vsel %vm1747, %v3146, %v2870
      %v3179 = vsel %vm1747, %v3147, %v2872
      %v3180 = vsel %vm1747, %v3148, %v2874
      %v3181 = vsel %vm1747, %v3149, %v2876
      %v3182 = vsel %vm1747, %v3150, %v2878
      %v3183 = vsel %vm1747, %v3151, %v2880
      %v3184 = vsel %vm1747, %v3152, %v2882
      %v3185 = vsel %vm1747, %v3153, %v2884
      %v3186 = vsel %vm1747, %v3154, %v2886
      %v3187 = vsel %vm1747, %v3155, %v2888
      %v3188 = vsel %vm1747, %v3156, %v2890
      %v3189 = vsel %vm1747, %v3157, %v2892
      %v3190 = vsel %vm1747, %v3158, %v2894
      %v3191 = vsel %vm1747, %v3159, %v2896
      %v3192 = vsel %vm1747, %v3160, %v2898
      %v3193 = vsel %vm1747, %v3161, %v2900
      %v3194 = vsel %vm1747, %v3162, %v2902
      %v3195 = vsel %vm1747, %v3163, %v2904
      %v3196 = vsel %vm1747, %v3164, %v2906
      %v3197 = vsel %vm1747, %v3165, %v2908
      %v3198 = vsel %vm1747, %v3166, %v2910
      %v3199 = vld [vmem:[%s1 + $0x24] sm:$0xff]
      %v3200 = vld [vmem:[%s1 + $0x2c] sm:$0xff]
      %v3201 = vld [vmem:[%s1 + $0x34] sm:$0xff]
      %v3202 = vld [vmem:[%s1 + $0x3c] sm:$0xff]
      %v3203 = vld [vmem:[%s1 + $0x44] sm:$0xf]
      %vm3204 = vcmask 293888
      %v3206 = vsel %vm3204, %v3167, 0
      %v3209 = vsel %vm3204, %v3168, 0
      %v3212 = vsel %vm3204, %v3169, 0
      %v3215 = vsel %vm3204, %v3170, 0
      %v3218 = vsel %vm3204, %v3171, 0
      %v3221 = vsel %vm3204, %v3172, 0
      %v3224 = vsel %vm3204, %v3173, 0
      %v3227 = vsel %vm3204, %v3174, 0
      %v3230 = vsel %vm3204, %v3175, 0
      %v3233 = vsel %vm3204, %v3176, 0
      %v3236 = vsel %vm3204, %v3177, 0
      %v3239 = vsel %vm3204, %v3178, 0
      %v3242 = vsel %vm3204, %v3179, 0
      %v3245 = vsel %vm3204, %v3180, 0
      %v3248 = vsel %vm3204, %v3181, 0
      %v3251 = vsel %vm3204, %v3182, 0
      %v3254 = vsel %vm3204, %v3183, 0
      %v3257 = vsel %vm3204, %v3184, 0
      %v3260 = vsel %vm3204, %v3185, 0
      %v3263 = vsel %vm3204, %v3186, 0
      %v3266 = vsel %vm3204, %v3187, 0
      %v3269 = vsel %vm3204, %v3188, 0
      %v3272 = vsel %vm3204, %v3189, 0
      %v3275 = vsel %vm3204, %v3190, 0
      %v3278 = vsel %vm3204, %v3191, 0
      %v3281 = vsel %vm3204, %v3192, 0
      %v3284 = vsel %vm3204, %v3193, 0
      %v3287 = vsel %vm3204, %v3194, 0
      %v3290 = vsel %vm3204, %v3195, 0
      %v3293 = vsel %vm3204, %v3196, 0
      %v3296 = vsel %vm3204, %v3197, 0
      %v3299 = vsel %vm3204, %v3198, 0
      %vm3301 = vcmask 1043456
      %v3303 = vsel %vm3301, %v3203, 0
      %3305 = vmatprep.subr.mxu0 0.0
      %3306 = vmatpush1.msra.mxu0 0.0
      %3307 = vmatprep.subr.mxu0 0.0
      %3308 = vmatpush1.msra.mxu0 0.0
      %3309 = vmatprep.subr.mxu0 0.0
      %3310 = vmatpush1.msra.mxu0 0.0
      %3311 = vmatprep.subr.mxu0 0.0
      %3312 = vmatpush1.msra.mxu0 0.0
      %3313 = vmatprep.subr.mxu0 0.0
      %3314 = vmatpush1.msra.mxu0 0.0
      %3315 = vmatprep.subr.mxu0 0.0
      %3316 = vmatpush1.msra.mxu0 0.0
      %3317 = vmatprep.subr.mxu0 0.0
      %3318 = vmatpush1.msra.mxu0 0.0
      %3319 = vmatprep.subr.mxu0 0.0
      %3320 = vmatpush1.msra.mxu0 0.0
      %3321 = vmatprep.subr.mxu0 0.0
      %3322 = vmatpush1.msra.mxu0 0.0
      %3323 = vmatprep.subr.mxu0 0.0
      %3324 = vmatpush1.msra.mxu0 0.0
      %3325 = vmatprep.subr.mxu0 0.0
      %3326 = vmatpush1.msra.mxu0 0.0
      %3327 = vmatprep.subr.mxu0 0.0
      %3328 = vmatpush1.msra.mxu0 %v3303
      %3329 = vmatprep.subr.mxu0 0.0
      %3330 = vmatpush1.msra.mxu0 %v3202
      %3331 = vmatprep.subr.mxu0 0.0
      %3332 = vmatpush1.msra.mxu0 %v3201
      %3333 = vmatprep.subr.mxu0 0.0
      %3334 = vmatpush1.msra.mxu0 %v3200
      %3335 = vmatprep.subr.mxu0 0.0
      %3336 = vmatpush1.msra.mxu0 %v3199
      %3337 = vmatprep.subr.mxu0 0.0
      %3338 = vmatpush2.msra.mxu0 0.0
      %3339 = vmatprep.subr.mxu0 0.0
      %3340 = vmatpush2.msra.mxu0 0.0
      %3341 = vmatprep.subr.mxu0 0.0
      %3342 = vmatpush2.msra.mxu0 0.0
      %3343 = vmatprep.subr.mxu0 0.0
      %3344 = vmatpush2.msra.mxu0 0.0
      %3345 = vmatprep.subr.mxu0 0.0
      %3346 = vmatpush2.msra.mxu0 0.0
      %3347 = vmatprep.subr.mxu0 0.0
      %3348 = vmatpush2.msra.mxu0 0.0
      %3349 = vmatprep.subr.mxu0 0.0
      %3350 = vmatpush2.msra.mxu0 0.0
      %3351 = vmatprep.subr.mxu0 0.0
      %3352 = vmatpush2.msra.mxu0 0.0
      %3353 = vmatprep.subr.mxu0 0.0
      %3354 = vmatpush2.msra.mxu0 0.0
      %3355 = vmatprep.subr.mxu0 0.0
      %3356 = vmatpush2.msra.mxu0 0.0
      %3357 = vmatprep.subr.mxu0 0.0
      %3358 = vmatpush2.msra.mxu0 0.0
      %3359 = vmatprep.subr.mxu0 0.0
      %3360 = vmatpush2.msra.mxu0 0.0
      %3361 = vmatprep.subr.mxu0 0.0
      %3362 = vmatpush2.msra.mxu0 0.0
      %3363 = vmatprep.subr.mxu0 0.0
      %3364 = vmatpush2.msra.mxu0 0.0
      %3365 = vmatprep.subr.mxu0 0.0
      %3366 = vmatpush2.msra.mxu0 0.0
      %3367 = vmatprep.subr.mxu0 0.0
      %3368 = vmatpush2.msra.mxu0 0.0
      %3369 = vmatprep.mubr.f32.mxu0 0.0
      %3370 = vmatmul.mubr.f32.gmra.mxu0 %v3206
      %v3371 = vpop.f32.mrf.mxu0
      %v3372 = vadd.f32 0.0, %v3371
      %v3373 = vpop.f32.mrf.mxu0
      %3374 = vmatprep.mubr.f32.mxu0 0.0
      %3375 = vmatmul.mubr.f32.gmra.mxu0 %v3209
      %v3376 = vpop.f32.mrf.mxu0
      %v3377 = vadd.f32 0.0, %v3376
      %v3378 = vpop.f32.mrf.mxu0
      %3379 = vmatprep.mubr.f32.mxu0 0.0
      %3380 = vmatmul.mubr.f32.gmra.mxu0 %v3212
      %v3381 = vpop.f32.mrf.mxu0
      %v3382 = vadd.f32 0.0, %v3381
      %v3383 = vpop.f32.mrf.mxu0
      %3384 = vmatprep.mubr.f32.mxu0 0.0
      %3385 = vmatmul.mubr.f32.gmra.mxu0 %v3215
      %v3386 = vpop.f32.mrf.mxu0
      %v3387 = vadd.f32 0.0, %v3386
      %v3388 = vpop.f32.mrf.mxu0
      %3389 = vmatprep.mubr.f32.mxu0 0.0
      %3390 = vmatmul.mubr.f32.gmra.mxu0 %v3218
      %v3391 = vpop.f32.mrf.mxu0
      %v3392 = vadd.f32 0.0, %v3391
      %v3393 = vpop.f32.mrf.mxu0
      %3394 = vmatprep.mubr.f32.mxu0 0.0
      %3395 = vmatmul.mubr.f32.gmra.mxu0 %v3221
      %v3396 = vpop.f32.mrf.mxu0
      %v3397 = vadd.f32 0.0, %v3396
      %v3398 = vpop.f32.mrf.mxu0
      %3399 = vmatprep.mubr.f32.mxu0 0.0
      %3400 = vmatmul.mubr.f32.gmra.mxu0 %v3224
      %v3401 = vpop.f32.mrf.mxu0
      %v3402 = vadd.f32 0.0, %v3401
      %v3403 = vpop.f32.mrf.mxu0
      %3404 = vmatprep.mubr.f32.mxu0 0.0
      %3405 = vmatmul.mubr.f32.gmra.mxu0 %v3227
      %v3406 = vpop.f32.mrf.mxu0
      %v3407 = vadd.f32 0.0, %v3406
      %v3408 = vpop.f32.mrf.mxu0
      %3409 = vmatprep.mubr.f32.mxu0 0.0
      %3410 = vmatmul.mubr.f32.gmra.mxu0 %v3230
      %v3411 = vpop.f32.mrf.mxu0
      %v3412 = vadd.f32 0.0, %v3411
      %v3413 = vpop.f32.mrf.mxu0
      %3414 = vmatprep.mubr.f32.mxu0 0.0
      %3415 = vmatmul.mubr.f32.gmra.mxu0 %v3233
      %v3416 = vpop.f32.mrf.mxu0
      %v3417 = vadd.f32 0.0, %v3416
      %v3418 = vpop.f32.mrf.mxu0
      %3419 = vmatprep.mubr.f32.mxu0 0.0
      %3420 = vmatmul.mubr.f32.gmra.mxu0 %v3236
      %v3421 = vpop.f32.mrf.mxu0
      %v3422 = vadd.f32 0.0, %v3421
      %v3423 = vpop.f32.mrf.mxu0
      %3424 = vmatprep.mubr.f32.mxu0 0.0
      %3425 = vmatmul.mubr.f32.gmra.mxu0 %v3239
      %v3426 = vpop.f32.mrf.mxu0
      %v3427 = vadd.f32 0.0, %v3426
      %v3428 = vpop.f32.mrf.mxu0
      %3429 = vmatprep.mubr.f32.mxu0 0.0
      %3430 = vmatmul.mubr.f32.gmra.mxu0 %v3242
      %v3431 = vpop.f32.mrf.mxu0
      %v3432 = vadd.f32 0.0, %v3431
      %v3433 = vpop.f32.mrf.mxu0
      %3434 = vmatprep.mubr.f32.mxu0 0.0
      %3435 = vmatmul.mubr.f32.gmra.mxu0 %v3245
      %v3436 = vpop.f32.mrf.mxu0
      %v3437 = vadd.f32 0.0, %v3436
      %v3438 = vpop.f32.mrf.mxu0
      %3439 = vmatprep.mubr.f32.mxu0 0.0
      %3440 = vmatmul.mubr.f32.gmra.mxu0 %v3248
      %v3441 = vpop.f32.mrf.mxu0
      %v3442 = vadd.f32 0.0, %v3441
      %v3443 = vpop.f32.mrf.mxu0
      %3444 = vmatprep.mubr.f32.mxu0 0.0
      %3445 = vmatmul.mubr.f32.gmra.mxu0 %v3251
      %v3446 = vpop.f32.mrf.mxu0
      %v3447 = vadd.f32 0.0, %v3446
      %v3448 = vpop.f32.mrf.mxu0
      %3449 = vmatprep.mubr.f32.mxu0 0.0
      %3450 = vmatmul.mubr.f32.gmra.mxu0 %v3254
      %v3451 = vpop.f32.mrf.mxu0
      %v3452 = vadd.f32 0.0, %v3451
      %v3453 = vpop.f32.mrf.mxu0
      %3454 = vmatprep.mubr.f32.mxu0 0.0
      %3455 = vmatmul.mubr.f32.gmra.mxu0 %v3257
      %v3456 = vpop.f32.mrf.mxu0
      %v3457 = vadd.f32 0.0, %v3456
      %v3458 = vpop.f32.mrf.mxu0
      %3459 = vmatprep.mubr.f32.mxu0 0.0
      %3460 = vmatmul.mubr.f32.gmra.mxu0 %v3260
      %v3461 = vpop.f32.mrf.mxu0
      %v3462 = vadd.f32 0.0, %v3461
      %v3463 = vpop.f32.mrf.mxu0
      %3464 = vmatprep.mubr.f32.mxu0 0.0
      %3465 = vmatmul.mubr.f32.gmra.mxu0 %v3263
      %v3466 = vpop.f32.mrf.mxu0
      %v3467 = vadd.f32 0.0, %v3466
      %v3468 = vpop.f32.mrf.mxu0
      %3469 = vmatprep.mubr.f32.mxu0 0.0
      %3470 = vmatmul.mubr.f32.gmra.mxu0 %v3266
      %v3471 = vpop.f32.mrf.mxu0
      %v3472 = vadd.f32 0.0, %v3471
      %v3473 = vpop.f32.mrf.mxu0
      %3474 = vmatprep.mubr.f32.mxu0 0.0
      %3475 = vmatmul.mubr.f32.gmra.mxu0 %v3269
      %v3476 = vpop.f32.mrf.mxu0
      %v3477 = vadd.f32 0.0, %v3476
      %v3478 = vpop.f32.mrf.mxu0
      %3479 = vmatprep.mubr.f32.mxu0 0.0
      %3480 = vmatmul.mubr.f32.gmra.mxu0 %v3272
      %v3481 = vpop.f32.mrf.mxu0
      %v3482 = vadd.f32 0.0, %v3481
      %v3483 = vpop.f32.mrf.mxu0
      %3484 = vmatprep.mubr.f32.mxu0 0.0
      %3485 = vmatmul.mubr.f32.gmra.mxu0 %v3275
      %v3486 = vpop.f32.mrf.mxu0
      %v3487 = vadd.f32 0.0, %v3486
      %v3488 = vpop.f32.mrf.mxu0
      %3489 = vmatprep.mubr.f32.mxu0 0.0
      %3490 = vmatmul.mubr.f32.gmra.mxu0 %v3278
      %v3491 = vpop.f32.mrf.mxu0
      %v3492 = vadd.f32 0.0, %v3491
      %v3493 = vpop.f32.mrf.mxu0
      %3494 = vmatprep.mubr.f32.mxu0 0.0
      %3495 = vmatmul.mubr.f32.gmra.mxu0 %v3281
      %v3496 = vpop.f32.mrf.mxu0
      %v3497 = vadd.f32 0.0, %v3496
      %v3498 = vpop.f32.mrf.mxu0
      %3499 = vmatprep.mubr.f32.mxu0 0.0
      %3500 = vmatmul.mubr.f32.gmra.mxu0 %v3284
      %v3501 = vpop.f32.mrf.mxu0
      %v3502 = vadd.f32 0.0, %v3501
      %v3503 = vpop.f32.mrf.mxu0
      %3504 = vmatprep.mubr.f32.mxu0 0.0
      %3505 = vmatmul.mubr.f32.gmra.mxu0 %v3287
      %v3506 = vpop.f32.mrf.mxu0
      %v3507 = vadd.f32 0.0, %v3506
      %v3508 = vpop.f32.mrf.mxu0
      %3509 = vmatprep.mubr.f32.mxu0 0.0
      %3510 = vmatmul.mubr.f32.gmra.mxu0 %v3290
      %v3511 = vpop.f32.mrf.mxu0
      %v3512 = vadd.f32 0.0, %v3511
      %v3513 = vpop.f32.mrf.mxu0
      %3514 = vmatprep.mubr.f32.mxu0 0.0
      %3515 = vmatmul.mubr.f32.gmra.mxu0 %v3293
      %v3516 = vpop.f32.mrf.mxu0
      %v3517 = vadd.f32 0.0, %v3516
      %v3518 = vpop.f32.mrf.mxu0
      %3519 = vmatprep.mubr.f32.mxu0 0.0
      %3520 = vmatmul.mubr.f32.gmra.mxu0 %v3296
      %v3521 = vpop.f32.mrf.mxu0
      %v3522 = vadd.f32 0.0, %v3521
      %v3523 = vpop.f32.mrf.mxu0
      %3524 = vmatprep.mubr.f32.mxu0 0.0
      %3525 = vmatmul.mubr.f32.gmra.mxu0 %v3299
      %v3526 = vpop.f32.mrf.mxu0
      %v3527 = vadd.f32 0.0, %v3526
      %v3528 = vpop.f32.mrf.mxu0
      %3529 = vdwg.mxu0
      %v3531 = vsel %vm3204, %v1748, 0
      %v3534 = vsel %vm3204, %v1749, 0
      %v3537 = vsel %vm3204, %v1750, 0
      %v3540 = vsel %vm3204, %v1751, 0
      %v3543 = vsel %vm3204, %v1752, 0
      %v3546 = vsel %vm3204, %v1753, 0
      %v3549 = vsel %vm3204, %v1754, 0
      %v3552 = vsel %vm3204, %v1755, 0
      %v3555 = vsel %vm3204, %v1756, 0
      %v3558 = vsel %vm3204, %v1757, 0
      %v3561 = vsel %vm3204, %v1758, 0
      %v3564 = vsel %vm3204, %v1759, 0
      %v3567 = vsel %vm3204, %v1760, 0
      %v3570 = vsel %vm3204, %v1761, 0
      %v3573 = vsel %vm3204, %v1762, 0
      %v3576 = vsel %vm3204, %v1763, 0
      %v3579 = vsel %vm3204, %v1764, 0
      %v3582 = vsel %vm3204, %v1765, 0
      %v3585 = vsel %vm3204, %v1766, 0
      %v3588 = vsel %vm3204, %v1767, 0
      %v3591 = vsel %vm3204, %v1768, 0
      %v3594 = vsel %vm3204, %v1769, 0
      %v3597 = vsel %vm3204, %v1770, 0
      %v3600 = vsel %vm3204, %v1771, 0
      %v3603 = vsel %vm3204, %v1772, 0
      %v3606 = vsel %vm3204, %v1773, 0
      %v3609 = vsel %vm3204, %v1774, 0
      %v3612 = vsel %vm3204, %v1775, 0
      %v3615 = vsel %vm3204, %v1776, 0
      %v3618 = vsel %vm3204, %v1777, 0
      %v3621 = vsel %vm3204, %v1778, 0
      %v3624 = vsel %vm3204, %v1779, 0
      %v3627 = vsel %vm3301, %v1784, 0
      %3629 = vmatprep.subr.mxu0 0.0
      %3630 = vmatpush1.msra.mxu0 0.0
      %3631 = vmatprep.subr.mxu0 0.0
      %3632 = vmatpush1.msra.mxu0 0.0
      %3633 = vmatprep.subr.mxu0 0.0
      %3634 = vmatpush1.msra.mxu0 0.0
      %3635 = vmatprep.subr.mxu0 0.0
      %3636 = vmatpush1.msra.mxu0 0.0
      %3637 = vmatprep.subr.mxu0 0.0
      %3638 = vmatpush1.msra.mxu0 0.0
      %3639 = vmatprep.subr.mxu0 0.0
      %3640 = vmatpush1.msra.mxu0 0.0
      %3641 = vmatprep.subr.mxu0 0.0
      %3642 = vmatpush1.msra.mxu0 0.0
      %3643 = vmatprep.subr.mxu0 0.0
      %3644 = vmatpush1.msra.mxu0 0.0
      %3645 = vmatprep.subr.mxu0 0.0
      %3646 = vmatpush1.msra.mxu0 0.0
      %3647 = vmatprep.subr.mxu0 0.0
      %3648 = vmatpush1.msra.mxu0 0.0
      %3649 = vmatprep.subr.mxu0 0.0
      %3650 = vmatpush1.msra.mxu0 0.0
      %3651 = vmatprep.subr.mxu0 0.0
      %3652 = vmatpush1.msra.mxu0 %v3627
      %3653 = vmatprep.subr.mxu0 0.0
      %3654 = vmatpush1.msra.mxu0 %v1783
      %3655 = vmatprep.subr.mxu0 0.0
      %3656 = vmatpush1.msra.mxu0 %v1782
      %3657 = vmatprep.subr.mxu0 0.0
      %3658 = vmatpush1.msra.mxu0 %v1781
      %3659 = vmatprep.subr.mxu0 0.0
      %3660 = vmatpush1.msra.mxu0 %v1780
      %3661 = vmatprep.subr.mxu0 0.0
      %3662 = vmatpush2.msra.mxu0 0.0
      %3663 = vmatprep.subr.mxu0 0.0
      %3664 = vmatpush2.msra.mxu0 0.0
      %3665 = vmatprep.subr.mxu0 0.0
      %3666 = vmatpush2.msra.mxu0 0.0
      %3667 = vmatprep.subr.mxu0 0.0
      %3668 = vmatpush2.msra.mxu0 0.0
      %3669 = vmatprep.subr.mxu0 0.0
      %3670 = vmatpush2.msra.mxu0 0.0
      %3671 = vmatprep.subr.mxu0 0.0
      %3672 = vmatpush2.msra.mxu0 0.0
      %3673 = vmatprep.subr.mxu0 0.0
      %3674 = vmatpush2.msra.mxu0 0.0
      %3675 = vmatprep.subr.mxu0 0.0
      %3676 = vmatpush2.msra.mxu0 0.0
      %3677 = vmatprep.subr.mxu0 0.0
      %3678 = vmatpush2.msra.mxu0 0.0
      %3679 = vmatprep.subr.mxu0 0.0
      %3680 = vmatpush2.msra.mxu0 0.0
      %3681 = vmatprep.subr.mxu0 0.0
      %3682 = vmatpush2.msra.mxu0 0.0
      %3683 = vmatprep.subr.mxu0 0.0
      %3684 = vmatpush2.msra.mxu0 0.0
      %3685 = vmatprep.subr.mxu0 0.0
      %3686 = vmatpush2.msra.mxu0 0.0
      %3687 = vmatprep.subr.mxu0 0.0
      %3688 = vmatpush2.msra.mxu0 0.0
      %3689 = vmatprep.subr.mxu0 0.0
      %3690 = vmatpush2.msra.mxu0 0.0
      %3691 = vmatprep.subr.mxu0 0.0
      %3692 = vmatpush2.msra.mxu0 0.0
      %3693 = vmatprep.mubr.f32.mxu0 0.0
      %3694 = vmatmul.mubr.f32.gmra.mxu0 %v3531
      %v3695 = vpop.f32.mrf.mxu0
      %v3696 = vadd.f32 %v3372, %v3695
      %v3697 = vpop.f32.mrf.mxu0
      %3698 = vmatprep.mubr.f32.mxu0 0.0
      %3699 = vmatmul.mubr.f32.gmra.mxu0 %v3534
      %v3700 = vpop.f32.mrf.mxu0
      %v3701 = vadd.f32 %v3377, %v3700
      %v3702 = vpop.f32.mrf.mxu0
      %3703 = vmatprep.mubr.f32.mxu0 0.0
      %3704 = vmatmul.mubr.f32.gmra.mxu0 %v3537
      %v3705 = vpop.f32.mrf.mxu0
      %v3706 = vadd.f32 %v3382, %v3705
      %v3707 = vpop.f32.mrf.mxu0
      %3708 = vmatprep.mubr.f32.mxu0 0.0
      %3709 = vmatmul.mubr.f32.gmra.mxu0 %v3540
      %v3710 = vpop.f32.mrf.mxu0
      %v3711 = vadd.f32 %v3387, %v3710
      %v3712 = vpop.f32.mrf.mxu0
      %3713 = vmatprep.mubr.f32.mxu0 0.0
      %3714 = vmatmul.mubr.f32.gmra.mxu0 %v3543
      %v3715 = vpop.f32.mrf.mxu0
      %v3716 = vadd.f32 %v3392, %v3715
      %v3717 = vpop.f32.mrf.mxu0
      %3718 = vmatprep.mubr.f32.mxu0 0.0
      %3719 = vmatmul.mubr.f32.gmra.mxu0 %v3546
      %v3720 = vpop.f32.mrf.mxu0
      %v3721 = vadd.f32 %v3397, %v3720
      %v3722 = vpop.f32.mrf.mxu0
      %3723 = vmatprep.mubr.f32.mxu0 0.0
      %3724 = vmatmul.mubr.f32.gmra.mxu0 %v3549
      %v3725 = vpop.f32.mrf.mxu0
      %v3726 = vadd.f32 %v3402, %v3725
      %v3727 = vpop.f32.mrf.mxu0
      %3728 = vmatprep.mubr.f32.mxu0 0.0
      %3729 = vmatmul.mubr.f32.gmra.mxu0 %v3552
      %v3730 = vpop.f32.mrf.mxu0
      %v3731 = vadd.f32 %v3407, %v3730
      %v3732 = vpop.f32.mrf.mxu0
      %3733 = vmatprep.mubr.f32.mxu0 0.0
      %3734 = vmatmul.mubr.f32.gmra.mxu0 %v3555
      %v3735 = vpop.f32.mrf.mxu0
      %v3736 = vadd.f32 %v3412, %v3735
      %v3737 = vpop.f32.mrf.mxu0
      %3738 = vmatprep.mubr.f32.mxu0 0.0
      %3739 = vmatmul.mubr.f32.gmra.mxu0 %v3558
      %v3740 = vpop.f32.mrf.mxu0
      %v3741 = vadd.f32 %v3417, %v3740
      %v3742 = vpop.f32.mrf.mxu0
      %3743 = vmatprep.mubr.f32.mxu0 0.0
      %3744 = vmatmul.mubr.f32.gmra.mxu0 %v3561
      %v3745 = vpop.f32.mrf.mxu0
      %v3746 = vadd.f32 %v3422, %v3745
      %v3747 = vpop.f32.mrf.mxu0
      %3748 = vmatprep.mubr.f32.mxu0 0.0
      %3749 = vmatmul.mubr.f32.gmra.mxu0 %v3564
      %v3750 = vpop.f32.mrf.mxu0
      %v3751 = vadd.f32 %v3427, %v3750
      %v3752 = vpop.f32.mrf.mxu0
      %3753 = vmatprep.mubr.f32.mxu0 0.0
      %3754 = vmatmul.mubr.f32.gmra.mxu0 %v3567
      %v3755 = vpop.f32.mrf.mxu0
      %v3756 = vadd.f32 %v3432, %v3755
      %v3757 = vpop.f32.mrf.mxu0
      %3758 = vmatprep.mubr.f32.mxu0 0.0
      %3759 = vmatmul.mubr.f32.gmra.mxu0 %v3570
      %v3760 = vpop.f32.mrf.mxu0
      %v3761 = vadd.f32 %v3437, %v3760
      %v3762 = vpop.f32.mrf.mxu0
      %3763 = vmatprep.mubr.f32.mxu0 0.0
      %3764 = vmatmul.mubr.f32.gmra.mxu0 %v3573
      %v3765 = vpop.f32.mrf.mxu0
      %v3766 = vadd.f32 %v3442, %v3765
      %v3767 = vpop.f32.mrf.mxu0
      %3768 = vmatprep.mubr.f32.mxu0 0.0
      %3769 = vmatmul.mubr.f32.gmra.mxu0 %v3576
      %v3770 = vpop.f32.mrf.mxu0
      %v3771 = vadd.f32 %v3447, %v3770
      %v3772 = vpop.f32.mrf.mxu0
      %3773 = vmatprep.mubr.f32.mxu0 0.0
      %3774 = vmatmul.mubr.f32.gmra.mxu0 %v3579
      %v3775 = vpop.f32.mrf.mxu0
      %v3776 = vadd.f32 %v3452, %v3775
      %v3777 = vpop.f32.mrf.mxu0
      %3778 = vmatprep.mubr.f32.mxu0 0.0
      %3779 = vmatmul.mubr.f32.gmra.mxu0 %v3582
      %v3780 = vpop.f32.mrf.mxu0
      %v3781 = vadd.f32 %v3457, %v3780
      %v3782 = vpop.f32.mrf.mxu0
      %3783 = vmatprep.mubr.f32.mxu0 0.0
      %3784 = vmatmul.mubr.f32.gmra.mxu0 %v3585
      %v3785 = vpop.f32.mrf.mxu0
      %v3786 = vadd.f32 %v3462, %v3785
      %v3787 = vpop.f32.mrf.mxu0
      %3788 = vmatprep.mubr.f32.mxu0 0.0
      %3789 = vmatmul.mubr.f32.gmra.mxu0 %v3588
      %v3790 = vpop.f32.mrf.mxu0
      %v3791 = vadd.f32 %v3467, %v3790
      %v3792 = vpop.f32.mrf.mxu0
      %3793 = vmatprep.mubr.f32.mxu0 0.0
      %3794 = vmatmul.mubr.f32.gmra.mxu0 %v3591
      %v3795 = vpop.f32.mrf.mxu0
      %v3796 = vadd.f32 %v3472, %v3795
      %v3797 = vpop.f32.mrf.mxu0
      %3798 = vmatprep.mubr.f32.mxu0 0.0
      %3799 = vmatmul.mubr.f32.gmra.mxu0 %v3594
      %v3800 = vpop.f32.mrf.mxu0
      %v3801 = vadd.f32 %v3477, %v3800
      %v3802 = vpop.f32.mrf.mxu0
      %3803 = vmatprep.mubr.f32.mxu0 0.0
      %3804 = vmatmul.mubr.f32.gmra.mxu0 %v3597
      %v3805 = vpop.f32.mrf.mxu0
      %v3806 = vadd.f32 %v3482, %v3805
      %v3807 = vpop.f32.mrf.mxu0
      %3808 = vmatprep.mubr.f32.mxu0 0.0
      %3809 = vmatmul.mubr.f32.gmra.mxu0 %v3600
      %v3810 = vpop.f32.mrf.mxu0
      %v3811 = vadd.f32 %v3487, %v3810
      %v3812 = vpop.f32.mrf.mxu0
      %3813 = vmatprep.mubr.f32.mxu0 0.0
      %3814 = vmatmul.mubr.f32.gmra.mxu0 %v3603
      %v3815 = vpop.f32.mrf.mxu0
      %v3816 = vadd.f32 %v3492, %v3815
      %v3817 = vpop.f32.mrf.mxu0
      %3818 = vmatprep.mubr.f32.mxu0 0.0
      %3819 = vmatmul.mubr.f32.gmra.mxu0 %v3606
      %v3820 = vpop.f32.mrf.mxu0
      %v3821 = vadd.f32 %v3497, %v3820
      %v3822 = vpop.f32.mrf.mxu0
      %3823 = vmatprep.mubr.f32.mxu0 0.0
      %3824 = vmatmul.mubr.f32.gmra.mxu0 %v3609
      %v3825 = vpop.f32.mrf.mxu0
      %v3826 = vadd.f32 %v3502, %v3825
      %v3827 = vpop.f32.mrf.mxu0
      %3828 = vmatprep.mubr.f32.mxu0 0.0
      %3829 = vmatmul.mubr.f32.gmra.mxu0 %v3612
      %v3830 = vpop.f32.mrf.mxu0
      %v3831 = vadd.f32 %v3507, %v3830
      %v3832 = vpop.f32.mrf.mxu0
      %3833 = vmatprep.mubr.f32.mxu0 0.0
      %3834 = vmatmul.mubr.f32.gmra.mxu0 %v3615
      %v3835 = vpop.f32.mrf.mxu0
      %v3836 = vadd.f32 %v3512, %v3835
      %v3837 = vpop.f32.mrf.mxu0
      %3838 = vmatprep.mubr.f32.mxu0 0.0
      %3839 = vmatmul.mubr.f32.gmra.mxu0 %v3618
      %v3840 = vpop.f32.mrf.mxu0
      %v3841 = vadd.f32 %v3517, %v3840
      %v3842 = vpop.f32.mrf.mxu0
      %3843 = vmatprep.mubr.f32.mxu0 0.0
      %3844 = vmatmul.mubr.f32.gmra.mxu0 %v3621
      %v3845 = vpop.f32.mrf.mxu0
      %v3846 = vadd.f32 %v3522, %v3845
      %v3847 = vpop.f32.mrf.mxu0
      %3848 = vmatprep.mubr.f32.mxu0 0.0
      %3849 = vmatmul.mubr.f32.gmra.mxu0 %v3624
      %v3850 = vpop.f32.mrf.mxu0
      %v3851 = vadd.f32 %v3527, %v3850
      %v3852 = vpop.f32.mrf.mxu0
      %3853 = vdwg.mxu0
      %s3854 = smul.u32 %s194, 24
      %s3855 = scalar_lea.vmem %s183, %s3854
      %v3856 = vld [vmem:[%s3855] sm:$0xff]
      %v3857 = vld [vmem:[%s3855 + $0x8] sm:$0xff]
      %v3858 = vld [vmem:[%s3855 + $0x18] sm:$0xff]
      %v3859 = vld [vmem:[%s3855 + $0x20] sm:$0xff]
      %v3860 = vld [vmem:[%s3855 + $0x30] sm:$0xff]
      %v3861 = vld [vmem:[%s3855 + $0x38] sm:$0xff]
      %v3862 = vld [vmem:[%s3855 + $0x48] sm:$0xff]
      %v3863 = vld [vmem:[%s3855 + $0x50] sm:$0xff]
      %v3864 = vld [vmem:[%s3855 + $0x60] sm:$0xff]
      %v3865 = vld [vmem:[%s3855 + $0x68] sm:$0xff]
      %v3866 = vld [vmem:[%s3855 + $0x78] sm:$0xff]
      %v3867 = vld [vmem:[%s3855 + $0x80] sm:$0xff]
      %v3868 = vld [vmem:[%s3855 + $0x90] sm:$0xff]
      %v3869 = vld [vmem:[%s3855 + $0x98] sm:$0xff]
      %v3870 = vld [vmem:[%s3855 + $0xa8] sm:$0xff]
      %v3871 = vld [vmem:[%s3855 + $0xb0] sm:$0xff]
      %v3872 = vld [vmem:[%s3855 + $0xc0] sm:$0xff]
      %v3873 = vld [vmem:[%s3855 + $0xc8] sm:$0xff]
      %v3874 = vld [vmem:[%s3855 + $0xd8] sm:$0xff]
      %v3875 = vld [vmem:[%s3855 + $0xe0] sm:$0xff]
      %v3876 = vld [vmem:[%s3855 + $0xf0] sm:$0xff]
      %v3877 = vld [vmem:[%s3855 + $0xf8] sm:$0xff]
      %v3878 = vld [vmem:[%s3855 + $0x108] sm:$0xff]
      %v3879 = vld [vmem:[%s3855 + $0x110] sm:$0xff]
      %v3880 = vld [vmem:[%s3855 + $0x120] sm:$0xff]
      %v3881 = vld [vmem:[%s3855 + $0x128] sm:$0xff]
      %v3882 = vld [vmem:[%s3855 + $0x138] sm:$0xff]
      %v3883 = vld [vmem:[%s3855 + $0x140] sm:$0xff]
      %v3884 = vld [vmem:[%s3855 + $0x150] sm:$0xff]
      %v3885 = vld [vmem:[%s3855 + $0x158] sm:$0xff]
      %v3886 = vld [vmem:[%s3855 + $0x168] sm:$0xff]
      %v3887 = vld [vmem:[%s3855 + $0x170] sm:$0xff]
      %v3888 = vld [vmem:[%s3855 + $0x4] sm:$0xff]
      %v3889 = vld [vmem:[%s3855 + $0xc] sm:$0xff]
      %v3890 = vld [vmem:[%s3855 + $0x1c] sm:$0xff]
      %v3891 = vld [vmem:[%s3855 + $0x24] sm:$0xff]
      %v3892 = vld [vmem:[%s3855 + $0x34] sm:$0xff]
      %v3893 = vld [vmem:[%s3855 + $0x3c] sm:$0xff]
      %v3894 = vld [vmem:[%s3855 + $0x4c] sm:$0xff]
      %v3895 = vld [vmem:[%s3855 + $0x54] sm:$0xff]
      %v3896 = vld [vmem:[%s3855 + $0x64] sm:$0xff]
      %v3897 = vld [vmem:[%s3855 + $0x6c] sm:$0xff]
      %v3898 = vld [vmem:[%s3855 + $0x7c] sm:$0xff]
      %v3899 = vld [vmem:[%s3855 + $0x84] sm:$0xff]
      %v3900 = vld [vmem:[%s3855 + $0x94] sm:$0xff]
      %v3901 = vld [vmem:[%s3855 + $0x9c] sm:$0xff]
      %v3902 = vld [vmem:[%s3855 + $0xac] sm:$0xff]
      %v3903 = vld [vmem:[%s3855 + $0xb4] sm:$0xff]
      %v3904 = vld [vmem:[%s3855 + $0xc4] sm:$0xff]
      %v3905 = vld [vmem:[%s3855 + $0xcc] sm:$0xff]
      %v3906 = vld [vmem:[%s3855 + $0xdc] sm:$0xff]
      %v3907 = vld [vmem:[%s3855 + $0xe4] sm:$0xff]
      %v3908 = vld [vmem:[%s3855 + $0xf4] sm:$0xff]
      %v3909 = vld [vmem:[%s3855 + $0xfc] sm:$0xff]
      %v3910 = vld [vmem:[%s3855 + $0x10c] sm:$0xff]
      %v3911 = vld [vmem:[%s3855 + $0x114] sm:$0xff]
      %v3912 = vld [vmem:[%s3855 + $0x124] sm:$0xff]
      %v3913 = vld [vmem:[%s3855 + $0x12c] sm:$0xff]
      %v3914 = vld [vmem:[%s3855 + $0x13c] sm:$0xff]
      %v3915 = vld [vmem:[%s3855 + $0x144] sm:$0xff]
      %v3916 = vld [vmem:[%s3855 + $0x154] sm:$0xff]
      %v3917 = vld [vmem:[%s3855 + $0x15c] sm:$0xff]
      %v3918 = vld [vmem:[%s3855 + $0x16c] sm:$0xff]
      %v3919 = vld [vmem:[%s3855 + $0x174] sm:$0xff]
      %v3920 = vld [vmem:[%s3855 + $0x10] sm:$0xff]
      %v3921 = vld [vmem:[%s3855 + $0x28] sm:$0xff]
      %v3922 = vld [vmem:[%s3855 + $0x40] sm:$0xff]
      %v3923 = vld [vmem:[%s3855 + $0x58] sm:$0xff]
      %v3924 = vld [vmem:[%s3855 + $0x70] sm:$0xff]
      %v3925 = vld [vmem:[%s3855 + $0x88] sm:$0xff]
      %v3926 = vld [vmem:[%s3855 + $0xa0] sm:$0xff]
      %v3927 = vld [vmem:[%s3855 + $0xb8] sm:$0xff]
      %v3928 = vld [vmem:[%s3855 + $0xd0] sm:$0xff]
      %v3929 = vld [vmem:[%s3855 + $0xe8] sm:$0xff]
      %v3930 = vld [vmem:[%s3855 + $0x100] sm:$0xff]
      %v3931 = vld [vmem:[%s3855 + $0x118] sm:$0xff]
      %v3932 = vld [vmem:[%s3855 + $0x130] sm:$0xff]
      %v3933 = vld [vmem:[%s3855 + $0x148] sm:$0xff]
      %v3934 = vld [vmem:[%s3855 + $0x160] sm:$0xff]
      %v3935 = vld [vmem:[%s3855 + $0x178] sm:$0xff]
      %v3936 = vld [vmem:[%s296] sm:$0xff]
      %v3937 = vld [vmem:[%s296 + $0x8] sm:$0xff]
      %v3938 = vld [vmem:[%s296 + $0x18] sm:$0xff]
      %v3939 = vld [vmem:[%s296 + $0x20] sm:$0xff]
      %v3940 = vld [vmem:[%s296 + $0x30] sm:$0xff]
      %v3941 = vld [vmem:[%s296 + $0x38] sm:$0xff]
      %v3942 = vld [vmem:[%s296 + $0x48] sm:$0xff]
      %v3943 = vld [vmem:[%s296 + $0x50] sm:$0xff]
      %v3944 = vld [vmem:[%s296 + $0x60] sm:$0xff]
      %v3945 = vld [vmem:[%s296 + $0x68] sm:$0xff]
      %v3946 = vld [vmem:[%s296 + $0x78] sm:$0xff]
      %v3947 = vld [vmem:[%s296 + $0x80] sm:$0xff]
      %v3948 = vld [vmem:[%s296 + $0x90] sm:$0xff]
      %v3949 = vld [vmem:[%s296 + $0x98] sm:$0xff]
      %v3950 = vld [vmem:[%s296 + $0xa8] sm:$0xff]
      %v3951 = vld [vmem:[%s296 + $0xb0] sm:$0xff]
      %v3952 = vld [vmem:[%s296 + $0xc0] sm:$0xff]
      %v3953 = vld [vmem:[%s296 + $0xc8] sm:$0xff]
      %v3954 = vld [vmem:[%s296 + $0xd8] sm:$0xff]
      %v3955 = vld [vmem:[%s296 + $0xe0] sm:$0xff]
      %v3956 = vld [vmem:[%s296 + $0xf0] sm:$0xff]
      %v3957 = vld [vmem:[%s296 + $0xf8] sm:$0xff]
      %v3958 = vld [vmem:[%s296 + $0x108] sm:$0xff]
      %v3959 = vld [vmem:[%s296 + $0x110] sm:$0xff]
      %v3960 = vld [vmem:[%s296 + $0x120] sm:$0xff]
      %v3961 = vld [vmem:[%s296 + $0x128] sm:$0xff]
      %v3962 = vld [vmem:[%s296 + $0x138] sm:$0xff]
      %v3963 = vld [vmem:[%s296 + $0x140] sm:$0xff]
      %v3964 = vld [vmem:[%s296 + $0x150] sm:$0xff]
      %v3965 = vld [vmem:[%s296 + $0x158] sm:$0xff]
      %v3966 = vld [vmem:[%s296 + $0x168] sm:$0xff]
      %v3967 = vld [vmem:[%s296 + $0x170] sm:$0xff]
      %v3968 = vld [vmem:[%s296 + $0x10] sm:$0xff]
      %v3969 = vld [vmem:[%s296 + $0x28] sm:$0xff]
      %v3970 = vld [vmem:[%s296 + $0x40] sm:$0xff]
      %v3971 = vld [vmem:[%s296 + $0x58] sm:$0xff]
      %v3972 = vld [vmem:[%s296 + $0x70] sm:$0xff]
      %v3973 = vld [vmem:[%s296 + $0x88] sm:$0xff]
      %v3974 = vld [vmem:[%s296 + $0xa0] sm:$0xff]
      %v3975 = vld [vmem:[%s296 + $0xb8] sm:$0xff]
      %v3976 = vld [vmem:[%s296 + $0xd0] sm:$0xff]
      %v3977 = vld [vmem:[%s296 + $0xe8] sm:$0xff]
      %v3978 = vld [vmem:[%s296 + $0x100] sm:$0xff]
      %v3979 = vld [vmem:[%s296 + $0x118] sm:$0xff]
      %v3980 = vld [vmem:[%s296 + $0x130] sm:$0xff]
      %v3981 = vld [vmem:[%s296 + $0x148] sm:$0xff]
      %v3982 = vld [vmem:[%s296 + $0x160] sm:$0xff]
      %v3983 = vld [vmem:[%s296 + $0x178] sm:$0xff]
      %s3984 = sadd.s32 %s194, 8
      %s3985 = smul.u32 %s3984, 24
      %s3986 = scalar_lea.vmem %s183, %s3985
      %v3987 = vld [vmem:[%s3986] sm:$0xff]
      %v3988 = vld [vmem:[%s3986 + $0x8] sm:$0xff]
      %v3989 = vld [vmem:[%s3986 + $0x18] sm:$0xff]
      %v3990 = vld [vmem:[%s3986 + $0x20] sm:$0xff]
      %v3991 = vld [vmem:[%s3986 + $0x30] sm:$0xff]
      %v3992 = vld [vmem:[%s3986 + $0x38] sm:$0xff]
      %v3993 = vld [vmem:[%s3986 + $0x48] sm:$0xff]
      %v3994 = vld [vmem:[%s3986 + $0x50] sm:$0xff]
      %v3995 = vld [vmem:[%s3986 + $0x60] sm:$0xff]
      %v3996 = vld [vmem:[%s3986 + $0x68] sm:$0xff]
      %v3997 = vld [vmem:[%s3986 + $0x78] sm:$0xff]
      %v3998 = vld [vmem:[%s3986 + $0x80] sm:$0xff]
      %v3999 = vld [vmem:[%s3986 + $0x90] sm:$0xff]
      %v4000 = vld [vmem:[%s3986 + $0x98] sm:$0xff]
      %v4001 = vld [vmem:[%s3986 + $0xa8] sm:$0xff]
      %v4002 = vld [vmem:[%s3986 + $0xb0] sm:$0xff]
      %v4003 = vld [vmem:[%s3986 + $0xc0] sm:$0xff]
      %v4004 = vld [vmem:[%s3986 + $0xc8] sm:$0xff]
      %v4005 = vld [vmem:[%s3986 + $0xd8] sm:$0xff]
      %v4006 = vld [vmem:[%s3986 + $0xe0] sm:$0xff]
      %v4007 = vld [vmem:[%s3986 + $0xf0] sm:$0xff]
      %v4008 = vld [vmem:[%s3986 + $0xf8] sm:$0xff]
      %v4009 = vld [vmem:[%s3986 + $0x108] sm:$0xff]
      %v4010 = vld [vmem:[%s3986 + $0x110] sm:$0xff]
      %v4011 = vld [vmem:[%s3986 + $0x120] sm:$0xff]
      %v4012 = vld [vmem:[%s3986 + $0x128] sm:$0xff]
      %v4013 = vld [vmem:[%s3986 + $0x138] sm:$0xff]
      %v4014 = vld [vmem:[%s3986 + $0x140] sm:$0xff]
      %v4015 = vld [vmem:[%s3986 + $0x150] sm:$0xff]
      %v4016 = vld [vmem:[%s3986 + $0x158] sm:$0xff]
      %v4017 = vld [vmem:[%s3986 + $0x168] sm:$0xff]
      %v4018 = vld [vmem:[%s3986 + $0x170] sm:$0xff]
      %v4019 = vld [vmem:[%s3986 + $0x4] sm:$0xff]
      %v4020 = vld [vmem:[%s3986 + $0xc] sm:$0xff]
      %v4021 = vld [vmem:[%s3986 + $0x1c] sm:$0xff]
      %v4022 = vld [vmem:[%s3986 + $0x24] sm:$0xff]
      %v4023 = vld [vmem:[%s3986 + $0x34] sm:$0xff]
      %v4024 = vld [vmem:[%s3986 + $0x3c] sm:$0xff]
      %v4025 = vld [vmem:[%s3986 + $0x4c] sm:$0xff]
      %v4026 = vld [vmem:[%s3986 + $0x54] sm:$0xff]
      %v4027 = vld [vmem:[%s3986 + $0x64] sm:$0xff]
      %v4028 = vld [vmem:[%s3986 + $0x6c] sm:$0xff]
      %v4029 = vld [vmem:[%s3986 + $0x7c] sm:$0xff]
      %v4030 = vld [vmem:[%s3986 + $0x84] sm:$0xff]
      %v4031 = vld [vmem:[%s3986 + $0x94] sm:$0xff]
      %v4032 = vld [vmem:[%s3986 + $0x9c] sm:$0xff]
      %v4033 = vld [vmem:[%s3986 + $0xac] sm:$0xff]
      %v4034 = vld [vmem:[%s3986 + $0xb4] sm:$0xff]
      %v4035 = vld [vmem:[%s3986 + $0xc4] sm:$0xff]
      %v4036 = vld [vmem:[%s3986 + $0xcc] sm:$0xff]
      %v4037 = vld [vmem:[%s3986 + $0xdc] sm:$0xff]
      %v4038 = vld [vmem:[%s3986 + $0xe4] sm:$0xff]
      %v4039 = vld [vmem:[%s3986 + $0xf4] sm:$0xff]
      %v4040 = vld [vmem:[%s3986 + $0xfc] sm:$0xff]
      %v4041 = vld [vmem:[%s3986 + $0x10c] sm:$0xff]
      %v4042 = vld [vmem:[%s3986 + $0x114] sm:$0xff]
      %v4043 = vld [vmem:[%s3986 + $0x124] sm:$0xff]
      %v4044 = vld [vmem:[%s3986 + $0x12c] sm:$0xff]
      %v4045 = vld [vmem:[%s3986 + $0x13c] sm:$0xff]
      %v4046 = vld [vmem:[%s3986 + $0x144] sm:$0xff]
      %v4047 = vld [vmem:[%s3986 + $0x154] sm:$0xff]
      %v4048 = vld [vmem:[%s3986 + $0x15c] sm:$0xff]
      %v4049 = vld [vmem:[%s3986 + $0x16c] sm:$0xff]
      %v4050 = vld [vmem:[%s3986 + $0x174] sm:$0xff]
      %v4051 = vld [vmem:[%s3986 + $0x10] sm:$0xff]
      %v4052 = vld [vmem:[%s3986 + $0x28] sm:$0xff]
      %v4053 = vld [vmem:[%s3986 + $0x40] sm:$0xff]
      %v4054 = vld [vmem:[%s3986 + $0x58] sm:$0xff]
      %v4055 = vld [vmem:[%s3986 + $0x70] sm:$0xff]
      %v4056 = vld [vmem:[%s3986 + $0x88] sm:$0xff]
      %v4057 = vld [vmem:[%s3986 + $0xa0] sm:$0xff]
      %v4058 = vld [vmem:[%s3986 + $0xb8] sm:$0xff]
      %v4059 = vld [vmem:[%s3986 + $0xd0] sm:$0xff]
      %v4060 = vld [vmem:[%s3986 + $0xe8] sm:$0xff]
      %v4061 = vld [vmem:[%s3986 + $0x100] sm:$0xff]
      %v4062 = vld [vmem:[%s3986 + $0x118] sm:$0xff]
      %v4063 = vld [vmem:[%s3986 + $0x130] sm:$0xff]
      %v4064 = vld [vmem:[%s3986 + $0x148] sm:$0xff]
      %v4065 = vld [vmem:[%s3986 + $0x160] sm:$0xff]
      %v4066 = vld [vmem:[%s3986 + $0x178] sm:$0xff]
      %4099 = vrot.lane.b32.xlu0 %v3888, 4
      %v4100 = vpop.permute.xlu0 %4099
      %4101 = vrot.lane.b32.xlu0 %v3889, 4
      %v4102 = vpop.permute.xlu0 %4101
      %4103 = vrot.lane.b32.xlu0 %v3890, 4
      %v4104 = vpop.permute.xlu0 %4103
      %4105 = vrot.lane.b32.xlu0 %v3891, 4
      %v4106 = vpop.permute.xlu0 %4105
      %4107 = vrot.lane.b32.xlu0 %v3892, 4
      %v4108 = vpop.permute.xlu0 %4107
      %4109 = vrot.lane.b32.xlu0 %v3893, 4
      %v4110 = vpop.permute.xlu0 %4109
      %4111 = vrot.lane.b32.xlu0 %v3894, 4
      %v4112 = vpop.permute.xlu0 %4111
      %4113 = vrot.lane.b32.xlu0 %v3895, 4
      %v4114 = vpop.permute.xlu0 %4113
      %4115 = vrot.lane.b32.xlu0 %v3896, 4
      %v4116 = vpop.permute.xlu0 %4115
      %4117 = vrot.lane.b32.xlu0 %v3897, 4
      %v4118 = vpop.permute.xlu0 %4117
      %4119 = vrot.lane.b32.xlu0 %v3898, 4
      %v4120 = vpop.permute.xlu0 %4119
      %4121 = vrot.lane.b32.xlu0 %v3899, 4
      %v4122 = vpop.permute.xlu0 %4121
      %4123 = vrot.lane.b32.xlu0 %v3900, 4
      %v4124 = vpop.permute.xlu0 %4123
      %4125 = vrot.lane.b32.xlu0 %v3901, 4
      %v4126 = vpop.permute.xlu0 %4125
      %4127 = vrot.lane.b32.xlu0 %v3902, 4
      %v4128 = vpop.permute.xlu0 %4127
      %4129 = vrot.lane.b32.xlu0 %v3903, 4
      %v4130 = vpop.permute.xlu0 %4129
      %4131 = vrot.lane.b32.xlu0 %v3904, 4
      %v4132 = vpop.permute.xlu0 %4131
      %4133 = vrot.lane.b32.xlu0 %v3905, 4
      %v4134 = vpop.permute.xlu0 %4133
      %4135 = vrot.lane.b32.xlu0 %v3906, 4
      %v4136 = vpop.permute.xlu0 %4135
      %4137 = vrot.lane.b32.xlu0 %v3907, 4
      %v4138 = vpop.permute.xlu0 %4137
      %4139 = vrot.lane.b32.xlu0 %v3908, 4
      %v4140 = vpop.permute.xlu0 %4139
      %4141 = vrot.lane.b32.xlu0 %v3909, 4
      %v4142 = vpop.permute.xlu0 %4141
      %4143 = vrot.lane.b32.xlu0 %v3910, 4
      %v4144 = vpop.permute.xlu0 %4143
      %4145 = vrot.lane.b32.xlu0 %v3911, 4
      %v4146 = vpop.permute.xlu0 %4145
      %4147 = vrot.lane.b32.xlu0 %v3912, 4
      %v4148 = vpop.permute.xlu0 %4147
      %4149 = vrot.lane.b32.xlu0 %v3913, 4
      %v4150 = vpop.permute.xlu0 %4149
      %4151 = vrot.lane.b32.xlu0 %v3914, 4
      %v4152 = vpop.permute.xlu0 %4151
      %4153 = vrot.lane.b32.xlu0 %v3915, 4
      %v4154 = vpop.permute.xlu0 %4153
      %4155 = vrot.lane.b32.xlu0 %v3916, 4
      %v4156 = vpop.permute.xlu0 %4155
      %4157 = vrot.lane.b32.xlu0 %v3917, 4
      %v4158 = vpop.permute.xlu0 %4157
      %4159 = vrot.lane.b32.xlu0 %v3918, 4
      %v4160 = vpop.permute.xlu0 %4159
      %4161 = vrot.lane.b32.xlu0 %v3919, 4
      %v4162 = vpop.permute.xlu0 %4161
      %4227 = vrot.lane.b32.xlu0 %v3857, 8
      %v4228 = vpop.permute.xlu0 %4227
      %4229 = vrot.lane.b32.xlu0 %v3920, 8
      %v4230 = vpop.permute.xlu0 %4229
      %4231 = vrot.lane.b32.xlu0 %v3859, 8
      %v4232 = vpop.permute.xlu0 %4231
      %4233 = vrot.lane.b32.xlu0 %v3921, 8
      %v4234 = vpop.permute.xlu0 %4233
      %4235 = vrot.lane.b32.xlu0 %v3861, 8
      %v4236 = vpop.permute.xlu0 %4235
      %4237 = vrot.lane.b32.xlu0 %v3922, 8
      %v4238 = vpop.permute.xlu0 %4237
      %4239 = vrot.lane.b32.xlu0 %v3863, 8
      %v4240 = vpop.permute.xlu0 %4239
      %4241 = vrot.lane.b32.xlu0 %v3923, 8
      %v4242 = vpop.permute.xlu0 %4241
      %4243 = vrot.lane.b32.xlu0 %v3865, 8
      %v4244 = vpop.permute.xlu0 %4243
      %4245 = vrot.lane.b32.xlu0 %v3924, 8
      %v4246 = vpop.permute.xlu0 %4245
      %4247 = vrot.lane.b32.xlu0 %v3867, 8
      %v4248 = vpop.permute.xlu0 %4247
      %4249 = vrot.lane.b32.xlu0 %v3925, 8
      %v4250 = vpop.permute.xlu0 %4249
      %4251 = vrot.lane.b32.xlu0 %v3869, 8
      %v4252 = vpop.permute.xlu0 %4251
      %4253 = vrot.lane.b32.xlu0 %v3926, 8
      %v4254 = vpop.permute.xlu0 %4253
      %4255 = vrot.lane.b32.xlu0 %v3871, 8
      %v4256 = vpop.permute.xlu0 %4255
      %4257 = vrot.lane.b32.xlu0 %v3927, 8
      %v4258 = vpop.permute.xlu0 %4257
      %4259 = vrot.lane.b32.xlu0 %v3873, 8
      %v4260 = vpop.permute.xlu0 %4259
      %4261 = vrot.lane.b32.xlu0 %v3928, 8
      %v4262 = vpop.permute.xlu0 %4261
      %4263 = vrot.lane.b32.xlu0 %v3875, 8
      %v4264 = vpop.permute.xlu0 %4263
      %4265 = vrot.lane.b32.xlu0 %v3929, 8
      %v4266 = vpop.permute.xlu0 %4265
      %4267 = vrot.lane.b32.xlu0 %v3877, 8
      %v4268 = vpop.permute.xlu0 %4267
      %4269 = vrot.lane.b32.xlu0 %v3930, 8
      %v4270 = vpop.permute.xlu0 %4269
      %4271 = vrot.lane.b32.xlu0 %v3879, 8
      %v4272 = vpop.permute.xlu0 %4271
      %4273 = vrot.lane.b32.xlu0 %v3931, 8
      %v4274 = vpop.permute.xlu0 %4273
      %4275 = vrot.lane.b32.xlu0 %v3881, 8
      %v4276 = vpop.permute.xlu0 %4275
      %4277 = vrot.lane.b32.xlu0 %v3932, 8
      %v4278 = vpop.permute.xlu0 %4277
      %4279 = vrot.lane.b32.xlu0 %v3883, 8
      %v4280 = vpop.permute.xlu0 %4279
      %4281 = vrot.lane.b32.xlu0 %v3933, 8
      %v4282 = vpop.permute.xlu0 %4281
      %4283 = vrot.lane.b32.xlu0 %v3885, 8
      %v4284 = vpop.permute.xlu0 %4283
      %4285 = vrot.lane.b32.xlu0 %v3934, 8
      %v4286 = vpop.permute.xlu0 %4285
      %4287 = vrot.lane.b32.xlu0 %v3887, 8
      %v4288 = vpop.permute.xlu0 %4287
      %4289 = vrot.lane.b32.xlu0 %v3935, 8
      %v4290 = vpop.permute.xlu0 %4289
      %4355 = vrot.lane.b32.xlu0 %v3936, 12
      %v4356 = vpop.permute.xlu0 %4355
      %4357 = vrot.lane.b32.xlu0 %v3937, 12
      %v4358 = vpop.permute.xlu0 %4357
      %4359 = vrot.lane.b32.xlu0 %v3938, 12
      %v4360 = vpop.permute.xlu0 %4359
      %4361 = vrot.lane.b32.xlu0 %v3939, 12
      %v4362 = vpop.permute.xlu0 %4361
      %4363 = vrot.lane.b32.xlu0 %v3940, 12
      %v4364 = vpop.permute.xlu0 %4363
      %4365 = vrot.lane.b32.xlu0 %v3941, 12
      %v4366 = vpop.permute.xlu0 %4365
      %4367 = vrot.lane.b32.xlu0 %v3942, 12
      %v4368 = vpop.permute.xlu0 %4367
      %4369 = vrot.lane.b32.xlu0 %v3943, 12
      %v4370 = vpop.permute.xlu0 %4369
      %4371 = vrot.lane.b32.xlu0 %v3944, 12
      %v4372 = vpop.permute.xlu0 %4371
      %4373 = vrot.lane.b32.xlu0 %v3945, 12
      %v4374 = vpop.permute.xlu0 %4373
      %4375 = vrot.lane.b32.xlu0 %v3946, 12
      %v4376 = vpop.permute.xlu0 %4375
      %4377 = vrot.lane.b32.xlu0 %v3947, 12
      %v4378 = vpop.permute.xlu0 %4377
      %4379 = vrot.lane.b32.xlu0 %v3948, 12
      %v4380 = vpop.permute.xlu0 %4379
      %4381 = vrot.lane.b32.xlu0 %v3949, 12
      %v4382 = vpop.permute.xlu0 %4381
      %4383 = vrot.lane.b32.xlu0 %v3950, 12
      %v4384 = vpop.permute.xlu0 %4383
      %4385 = vrot.lane.b32.xlu0 %v3951, 12
      %v4386 = vpop.permute.xlu0 %4385
      %4387 = vrot.lane.b32.xlu0 %v3952, 12
      %v4388 = vpop.permute.xlu0 %4387
      %4389 = vrot.lane.b32.xlu0 %v3953, 12
      %v4390 = vpop.permute.xlu0 %4389
      %4391 = vrot.lane.b32.xlu0 %v3954, 12
      %v4392 = vpop.permute.xlu0 %4391
      %4393 = vrot.lane.b32.xlu0 %v3955, 12
      %v4394 = vpop.permute.xlu0 %4393
      %4395 = vrot.lane.b32.xlu0 %v3956, 12
      %v4396 = vpop.permute.xlu0 %4395
      %4397 = vrot.lane.b32.xlu0 %v3957, 12
      %v4398 = vpop.permute.xlu0 %4397
      %4399 = vrot.lane.b32.xlu0 %v3958, 12
      %v4400 = vpop.permute.xlu0 %4399
      %4401 = vrot.lane.b32.xlu0 %v3959, 12
      %v4402 = vpop.permute.xlu0 %4401
      %4403 = vrot.lane.b32.xlu0 %v3960, 12
      %v4404 = vpop.permute.xlu0 %4403
      %4405 = vrot.lane.b32.xlu0 %v3961, 12
      %v4406 = vpop.permute.xlu0 %4405
      %4407 = vrot.lane.b32.xlu0 %v3962, 12
      %v4408 = vpop.permute.xlu0 %4407
      %4409 = vrot.lane.b32.xlu0 %v3963, 12
      %v4410 = vpop.permute.xlu0 %4409
      %4411 = vrot.lane.b32.xlu0 %v3964, 12
      %v4412 = vpop.permute.xlu0 %4411
      %4413 = vrot.lane.b32.xlu0 %v3965, 12
      %v4414 = vpop.permute.xlu0 %4413
      %4415 = vrot.lane.b32.xlu0 %v3966, 12
      %v4416 = vpop.permute.xlu0 %4415
      %4417 = vrot.lane.b32.xlu0 %v3967, 12
      %v4418 = vpop.permute.xlu0 %4417
      %4467 = vrot.lane.b32.xlu0 %v3937, 20
      %v4468 = vpop.permute.xlu0 %4467
      %4469 = vrot.lane.b32.xlu0 %v3968, 20
      %v4470 = vpop.permute.xlu0 %4469
      %4471 = vrot.lane.b32.xlu0 %v3939, 20
      %v4472 = vpop.permute.xlu0 %4471
      %4473 = vrot.lane.b32.xlu0 %v3969, 20
      %v4474 = vpop.permute.xlu0 %4473
      %4475 = vrot.lane.b32.xlu0 %v3941, 20
      %v4476 = vpop.permute.xlu0 %4475
      %4477 = vrot.lane.b32.xlu0 %v3970, 20
      %v4478 = vpop.permute.xlu0 %4477
      %4479 = vrot.lane.b32.xlu0 %v3943, 20
      %v4480 = vpop.permute.xlu0 %4479
      %4481 = vrot.lane.b32.xlu0 %v3971, 20
      %v4482 = vpop.permute.xlu0 %4481
      %4483 = vrot.lane.b32.xlu0 %v3945, 20
      %v4484 = vpop.permute.xlu0 %4483
      %4485 = vrot.lane.b32.xlu0 %v3972, 20
      %v4486 = vpop.permute.xlu0 %4485
      %4487 = vrot.lane.b32.xlu0 %v3947, 20
      %v4488 = vpop.permute.xlu0 %4487
      %4489 = vrot.lane.b32.xlu0 %v3973, 20
      %v4490 = vpop.permute.xlu0 %4489
      %4491 = vrot.lane.b32.xlu0 %v3949, 20
      %v4492 = vpop.permute.xlu0 %4491
      %4493 = vrot.lane.b32.xlu0 %v3974, 20
      %v4494 = vpop.permute.xlu0 %4493
      %4495 = vrot.lane.b32.xlu0 %v3951, 20
      %v4496 = vpop.permute.xlu0 %4495
      %4497 = vrot.lane.b32.xlu0 %v3975, 20
      %v4498 = vpop.permute.xlu0 %4497
      %4499 = vrot.lane.b32.xlu0 %v3953, 20
      %v4500 = vpop.permute.xlu0 %4499
      %4501 = vrot.lane.b32.xlu0 %v3976, 20
      %v4502 = vpop.permute.xlu0 %4501
      %4503 = vrot.lane.b32.xlu0 %v3955, 20
      %v4504 = vpop.permute.xlu0 %4503
      %4505 = vrot.lane.b32.xlu0 %v3977, 20
      %v4506 = vpop.permute.xlu0 %4505
      %4507 = vrot.lane.b32.xlu0 %v3957, 20
      %v4508 = vpop.permute.xlu0 %4507
      %4509 = vrot.lane.b32.xlu0 %v3978, 20
      %v4510 = vpop.permute.xlu0 %4509
      %4511 = vrot.lane.b32.xlu0 %v3959, 20
      %v4512 = vpop.permute.xlu0 %4511
      %4513 = vrot.lane.b32.xlu0 %v3979, 20
      %v4514 = vpop.permute.xlu0 %4513
      %4515 = vrot.lane.b32.xlu0 %v3961, 20
      %v4516 = vpop.permute.xlu0 %4515
      %4517 = vrot.lane.b32.xlu0 %v3980, 20
      %v4518 = vpop.permute.xlu0 %4517
      %4519 = vrot.lane.b32.xlu0 %v3963, 20
      %v4520 = vpop.permute.xlu0 %4519
      %4521 = vrot.lane.b32.xlu0 %v3981, 20
      %v4522 = vpop.permute.xlu0 %4521
      %4523 = vrot.lane.b32.xlu0 %v3965, 20
      %v4524 = vpop.permute.xlu0 %4523
      %4525 = vrot.lane.b32.xlu0 %v3982, 20
      %v4526 = vpop.permute.xlu0 %4525
      %4527 = vrot.lane.b32.xlu0 %v3967, 20
      %v4528 = vpop.permute.xlu0 %4527
      %4529 = vrot.lane.b32.xlu0 %v3983, 20
      %v4530 = vpop.permute.xlu0 %4529
      %4595 = vrot.lane.b32.xlu0 %v3987, 24
      %v4596 = vpop.permute.xlu0 %4595
      %4597 = vrot.lane.b32.xlu0 %v3988, 24
      %v4598 = vpop.permute.xlu0 %4597
      %4599 = vrot.lane.b32.xlu0 %v3989, 24
      %v4600 = vpop.permute.xlu0 %4599
      %4601 = vrot.lane.b32.xlu0 %v3990, 24
      %v4602 = vpop.permute.xlu0 %4601
      %4603 = vrot.lane.b32.xlu0 %v3991, 24
      %v4604 = vpop.permute.xlu0 %4603
      %4605 = vrot.lane.b32.xlu0 %v3992, 24
      %v4606 = vpop.permute.xlu0 %4605
      %4607 = vrot.lane.b32.xlu0 %v3993, 24
      %v4608 = vpop.permute.xlu0 %4607
      %4609 = vrot.lane.b32.xlu0 %v3994, 24
      %v4610 = vpop.permute.xlu0 %4609
      %4611 = vrot.lane.b32.xlu0 %v3995, 24
      %v4612 = vpop.permute.xlu0 %4611
      %4613 = vrot.lane.b32.xlu0 %v3996, 24
      %v4614 = vpop.permute.xlu0 %4613
      %4615 = vrot.lane.b32.xlu0 %v3997, 24
      %v4616 = vpop.permute.xlu0 %4615
      %4617 = vrot.lane.b32.xlu0 %v3998, 24
      %v4618 = vpop.permute.xlu0 %4617
      %4619 = vrot.lane.b32.xlu0 %v3999, 24
      %v4620 = vpop.permute.xlu0 %4619
      %4621 = vrot.lane.b32.xlu0 %v4000, 24
      %v4622 = vpop.permute.xlu0 %4621
      %4623 = vrot.lane.b32.xlu0 %v4001, 24
      %v4624 = vpop.permute.xlu0 %4623
      %4625 = vrot.lane.b32.xlu0 %v4002, 24
      %v4626 = vpop.permute.xlu0 %4625
      %4627 = vrot.lane.b32.xlu0 %v4003, 24
      %v4628 = vpop.permute.xlu0 %4627
      %4629 = vrot.lane.b32.xlu0 %v4004, 24
      %v4630 = vpop.permute.xlu0 %4629
      %4631 = vrot.lane.b32.xlu0 %v4005, 24
      %v4632 = vpop.permute.xlu0 %4631
      %4633 = vrot.lane.b32.xlu0 %v4006, 24
      %v4634 = vpop.permute.xlu0 %4633
      %4635 = vrot.lane.b32.xlu0 %v4007, 24
      %v4636 = vpop.permute.xlu0 %4635
      %4637 = vrot.lane.b32.xlu0 %v4008, 24
      %v4638 = vpop.permute.xlu0 %4637
      %4639 = vrot.lane.b32.xlu0 %v4009, 24
      %v4640 = vpop.permute.xlu0 %4639
      %4641 = vrot.lane.b32.xlu0 %v4010, 24
      %v4642 = vpop.permute.xlu0 %4641
      %4643 = vrot.lane.b32.xlu0 %v4011, 24
      %v4644 = vpop.permute.xlu0 %4643
      %4645 = vrot.lane.b32.xlu0 %v4012, 24
      %v4646 = vpop.permute.xlu0 %4645
      %4647 = vrot.lane.b32.xlu0 %v4013, 24
      %v4648 = vpop.permute.xlu0 %4647
      %4649 = vrot.lane.b32.xlu0 %v4014, 24
      %v4650 = vpop.permute.xlu0 %4649
      %4651 = vrot.lane.b32.xlu0 %v4015, 24
      %v4652 = vpop.permute.xlu0 %4651
      %4653 = vrot.lane.b32.xlu0 %v4016, 24
      %v4654 = vpop.permute.xlu0 %4653
      %4655 = vrot.lane.b32.xlu0 %v4017, 24
      %v4656 = vpop.permute.xlu0 %4655
      %4657 = vrot.lane.b32.xlu0 %v4018, 24
      %v4658 = vpop.permute.xlu0 %4657
      %4723 = vrot.lane.b32.xlu0 %v4019, 28
      %v4724 = vpop.permute.xlu0 %4723
      %4725 = vrot.lane.b32.xlu0 %v4020, 28
      %v4726 = vpop.permute.xlu0 %4725
      %4727 = vrot.lane.b32.xlu0 %v4021, 28
      %v4728 = vpop.permute.xlu0 %4727
      %4729 = vrot.lane.b32.xlu0 %v4022, 28
      %v4730 = vpop.permute.xlu0 %4729
      %4731 = vrot.lane.b32.xlu0 %v4023, 28
      %v4732 = vpop.permute.xlu0 %4731
      %4733 = vrot.lane.b32.xlu0 %v4024, 28
      %v4734 = vpop.permute.xlu0 %4733
      %4735 = vrot.lane.b32.xlu0 %v4025, 28
      %v4736 = vpop.permute.xlu0 %4735
      %4737 = vrot.lane.b32.xlu0 %v4026, 28
      %v4738 = vpop.permute.xlu0 %4737
      %4739 = vrot.lane.b32.xlu0 %v4027, 28
      %v4740 = vpop.permute.xlu0 %4739
      %4741 = vrot.lane.b32.xlu0 %v4028, 28
      %v4742 = vpop.permute.xlu0 %4741
      %4743 = vrot.lane.b32.xlu0 %v4029, 28
      %v4744 = vpop.permute.xlu0 %4743
      %4745 = vrot.lane.b32.xlu0 %v4030, 28
      %v4746 = vpop.permute.xlu0 %4745
      %4747 = vrot.lane.b32.xlu0 %v4031, 28
      %v4748 = vpop.permute.xlu0 %4747
      %4749 = vrot.lane.b32.xlu0 %v4032, 28
      %v4750 = vpop.permute.xlu0 %4749
      %4751 = vrot.lane.b32.xlu0 %v4033, 28
      %v4752 = vpop.permute.xlu0 %4751
      %4753 = vrot.lane.b32.xlu0 %v4034, 28
      %v4754 = vpop.permute.xlu0 %4753
      %4755 = vrot.lane.b32.xlu0 %v4035, 28
      %v4756 = vpop.permute.xlu0 %4755
      %4757 = vrot.lane.b32.xlu0 %v4036, 28
      %v4758 = vpop.permute.xlu0 %4757
      %4759 = vrot.lane.b32.xlu0 %v4037, 28
      %v4760 = vpop.permute.xlu0 %4759
      %4761 = vrot.lane.b32.xlu0 %v4038, 28
      %v4762 = vpop.permute.xlu0 %4761
      %4763 = vrot.lane.b32.xlu0 %v4039, 28
      %v4764 = vpop.permute.xlu0 %4763
      %4765 = vrot.lane.b32.xlu0 %v4040, 28
      %v4766 = vpop.permute.xlu0 %4765
      %4767 = vrot.lane.b32.xlu0 %v4041, 28
      %v4768 = vpop.permute.xlu0 %4767
      %4769 = vrot.lane.b32.xlu0 %v4042, 28
      %v4770 = vpop.permute.xlu0 %4769
      %4771 = vrot.lane.b32.xlu0 %v4043, 28
      %v4772 = vpop.permute.xlu0 %4771
      %4773 = vrot.lane.b32.xlu0 %v4044, 28
      %v4774 = vpop.permute.xlu0 %4773
      %4775 = vrot.lane.b32.xlu0 %v4045, 28
      %v4776 = vpop.permute.xlu0 %4775
      %4777 = vrot.lane.b32.xlu0 %v4046, 28
      %v4778 = vpop.permute.xlu0 %4777
      %4779 = vrot.lane.b32.xlu0 %v4047, 28
      %v4780 = vpop.permute.xlu0 %4779
      %4781 = vrot.lane.b32.xlu0 %v4048, 28
      %v4782 = vpop.permute.xlu0 %4781
      %4783 = vrot.lane.b32.xlu0 %v4049, 28
      %v4784 = vpop.permute.xlu0 %4783
      %4785 = vrot.lane.b32.xlu0 %v4050, 28
      %v4786 = vpop.permute.xlu0 %4785
      %4835 = vrot.lane.b32.xlu0 %v3988, 32
      %v4836 = vpop.permute.xlu0 %4835
      %4837 = vrot.lane.b32.xlu0 %v4051, 32
      %v4838 = vpop.permute.xlu0 %4837
      %4839 = vrot.lane.b32.xlu0 %v3990, 32
      %v4840 = vpop.permute.xlu0 %4839
      %4841 = vrot.lane.b32.xlu0 %v4052, 32
      %v4842 = vpop.permute.xlu0 %4841
      %4843 = vrot.lane.b32.xlu0 %v3992, 32
      %v4844 = vpop.permute.xlu0 %4843
      %4845 = vrot.lane.b32.xlu0 %v4053, 32
      %v4846 = vpop.permute.xlu0 %4845
      %4847 = vrot.lane.b32.xlu0 %v3994, 32
      %v4848 = vpop.permute.xlu0 %4847
      %4849 = vrot.lane.b32.xlu0 %v4054, 32
      %v4850 = vpop.permute.xlu0 %4849
      %4851 = vrot.lane.b32.xlu0 %v3996, 32
      %v4852 = vpop.permute.xlu0 %4851
      %4853 = vrot.lane.b32.xlu0 %v4055, 32
      %v4854 = vpop.permute.xlu0 %4853
      %4855 = vrot.lane.b32.xlu0 %v3998, 32
      %v4856 = vpop.permute.xlu0 %4855
      %4857 = vrot.lane.b32.xlu0 %v4056, 32
      %v4858 = vpop.permute.xlu0 %4857
      %4859 = vrot.lane.b32.xlu0 %v4000, 32
      %v4860 = vpop.permute.xlu0 %4859
      %4861 = vrot.lane.b32.xlu0 %v4057, 32
      %v4862 = vpop.permute.xlu0 %4861
      %4863 = vrot.lane.b32.xlu0 %v4002, 32
      %v4864 = vpop.permute.xlu0 %4863
      %4865 = vrot.lane.b32.xlu0 %v4058, 32
      %v4866 = vpop.permute.xlu0 %4865
      %4867 = vrot.lane.b32.xlu0 %v4004, 32
      %v4868 = vpop.permute.xlu0 %4867
      %4869 = vrot.lane.b32.xlu0 %v4059, 32
      %v4870 = vpop.permute.xlu0 %4869
      %4871 = vrot.lane.b32.xlu0 %v4006, 32
      %v4872 = vpop.permute.xlu0 %4871
      %4873 = vrot.lane.b32.xlu0 %v4060, 32
      %v4874 = vpop.permute.xlu0 %4873
      %4875 = vrot.lane.b32.xlu0 %v4008, 32
      %v4876 = vpop.permute.xlu0 %4875
      %4877 = vrot.lane.b32.xlu0 %v4061, 32
      %v4878 = vpop.permute.xlu0 %4877
      %4879 = vrot.lane.b32.xlu0 %v4010, 32
      %v4880 = vpop.permute.xlu0 %4879
      %4881 = vrot.lane.b32.xlu0 %v4062, 32
      %v4882 = vpop.permute.xlu0 %4881
      %4883 = vrot.lane.b32.xlu0 %v4012, 32
      %v4884 = vpop.permute.xlu0 %4883
      %4885 = vrot.lane.b32.xlu0 %v4063, 32
      %v4886 = vpop.permute.xlu0 %4885
      %4887 = vrot.lane.b32.xlu0 %v4014, 32
      %v4888 = vpop.permute.xlu0 %4887
      %4889 = vrot.lane.b32.xlu0 %v4064, 32
      %v4890 = vpop.permute.xlu0 %4889
      %4891 = vrot.lane.b32.xlu0 %v4016, 32
      %v4892 = vpop.permute.xlu0 %4891
      %4893 = vrot.lane.b32.xlu0 %v4065, 32
      %v4894 = vpop.permute.xlu0 %4893
      %4895 = vrot.lane.b32.xlu0 %v4018, 32
      %v4896 = vpop.permute.xlu0 %4895
      %4897 = vrot.lane.b32.xlu0 %v4066, 32
      %v4898 = vpop.permute.xlu0 %4897
      %v4931 = vsel %vm1516, %v3856, %v4100
      %v4932 = vsel %vm1516, %v3857, %v4102
      %v4933 = vsel %vm1516, %v3858, %v4104
      %v4934 = vsel %vm1516, %v3859, %v4106
      %v4935 = vsel %vm1516, %v3860, %v4108
      %v4936 = vsel %vm1516, %v3861, %v4110
      %v4937 = vsel %vm1516, %v3862, %v4112
      %v4938 = vsel %vm1516, %v3863, %v4114
      %v4939 = vsel %vm1516, %v3864, %v4116
      %v4940 = vsel %vm1516, %v3865, %v4118
      %v4941 = vsel %vm1516, %v3866, %v4120
      %v4942 = vsel %vm1516, %v3867, %v4122
      %v4943 = vsel %vm1516, %v3868, %v4124
      %v4944 = vsel %vm1516, %v3869, %v4126
      %v4945 = vsel %vm1516, %v3870, %v4128
      %v4946 = vsel %vm1516, %v3871, %v4130
      %v4947 = vsel %vm1516, %v3872, %v4132
      %v4948 = vsel %vm1516, %v3873, %v4134
      %v4949 = vsel %vm1516, %v3874, %v4136
      %v4950 = vsel %vm1516, %v3875, %v4138
      %v4951 = vsel %vm1516, %v3876, %v4140
      %v4952 = vsel %vm1516, %v3877, %v4142
      %v4953 = vsel %vm1516, %v3878, %v4144
      %v4954 = vsel %vm1516, %v3879, %v4146
      %v4955 = vsel %vm1516, %v3880, %v4148
      %v4956 = vsel %vm1516, %v3881, %v4150
      %v4957 = vsel %vm1516, %v3882, %v4152
      %v4958 = vsel %vm1516, %v3883, %v4154
      %v4959 = vsel %vm1516, %v3884, %v4156
      %v4960 = vsel %vm1516, %v3885, %v4158
      %v4961 = vsel %vm1516, %v3886, %v4160
      %v4962 = vsel %vm1516, %v3887, %v4162
      %v4963 = vsel %vm1549, %v4931, %v4228
      %v4964 = vsel %vm1549, %v4932, %v4230
      %v4965 = vsel %vm1549, %v4933, %v4232
      %v4966 = vsel %vm1549, %v4934, %v4234
      %v4967 = vsel %vm1549, %v4935, %v4236
      %v4968 = vsel %vm1549, %v4936, %v4238
      %v4969 = vsel %vm1549, %v4937, %v4240
      %v4970 = vsel %vm1549, %v4938, %v4242
      %v4971 = vsel %vm1549, %v4939, %v4244
      %v4972 = vsel %vm1549, %v4940, %v4246
      %v4973 = vsel %vm1549, %v4941, %v4248
      %v4974 = vsel %vm1549, %v4942, %v4250
      %v4975 = vsel %vm1549, %v4943, %v4252
      %v4976 = vsel %vm1549, %v4944, %v4254
      %v4977 = vsel %vm1549, %v4945, %v4256
      %v4978 = vsel %vm1549, %v4946, %v4258
      %v4979 = vsel %vm1549, %v4947, %v4260
      %v4980 = vsel %vm1549, %v4948, %v4262
      %v4981 = vsel %vm1549, %v4949, %v4264
      %v4982 = vsel %vm1549, %v4950, %v4266
      %v4983 = vsel %vm1549, %v4951, %v4268
      %v4984 = vsel %vm1549, %v4952, %v4270
      %v4985 = vsel %vm1549, %v4953, %v4272
      %v4986 = vsel %vm1549, %v4954, %v4274
      %v4987 = vsel %vm1549, %v4955, %v4276
      %v4988 = vsel %vm1549, %v4956, %v4278
      %v4989 = vsel %vm1549, %v4957, %v4280
      %v4990 = vsel %vm1549, %v4958, %v4282
      %v4991 = vsel %vm1549, %v4959, %v4284
      %v4992 = vsel %vm1549, %v4960, %v4286
      %v4993 = vsel %vm1549, %v4961, %v4288
      %v4994 = vsel %vm1549, %v4962, %v4290
      %v4995 = vsel %vm1582, %v4963, %v4356
      %v4996 = vsel %vm1582, %v4964, %v4358
      %v4997 = vsel %vm1582, %v4965, %v4360
      %v4998 = vsel %vm1582, %v4966, %v4362
      %v4999 = vsel %vm1582, %v4967, %v4364
      %v5000 = vsel %vm1582, %v4968, %v4366
      %v5001 = vsel %vm1582, %v4969, %v4368
      %v5002 = vsel %vm1582, %v4970, %v4370
      %v5003 = vsel %vm1582, %v4971, %v4372
      %v5004 = vsel %vm1582, %v4972, %v4374
      %v5005 = vsel %vm1582, %v4973, %v4376
      %v5006 = vsel %vm1582, %v4974, %v4378
      %v5007 = vsel %vm1582, %v4975, %v4380
      %v5008 = vsel %vm1582, %v4976, %v4382
      %v5009 = vsel %vm1582, %v4977, %v4384
      %v5010 = vsel %vm1582, %v4978, %v4386
      %v5011 = vsel %vm1582, %v4979, %v4388
      %v5012 = vsel %vm1582, %v4980, %v4390
      %v5013 = vsel %vm1582, %v4981, %v4392
      %v5014 = vsel %vm1582, %v4982, %v4394
      %v5015 = vsel %vm1582, %v4983, %v4396
      %v5016 = vsel %vm1582, %v4984, %v4398
      %v5017 = vsel %vm1582, %v4985, %v4400
      %v5018 = vsel %vm1582, %v4986, %v4402
      %v5019 = vsel %vm1582, %v4987, %v4404
      %v5020 = vsel %vm1582, %v4988, %v4406
      %v5021 = vsel %vm1582, %v4989, %v4408
      %v5022 = vsel %vm1582, %v4990, %v4410
      %v5023 = vsel %vm1582, %v4991, %v4412
      %v5024 = vsel %vm1582, %v4992, %v4414
      %v5025 = vsel %vm1582, %v4993, %v4416
      %v5026 = vsel %vm1582, %v4994, %v4418
      %v5027 = vsel %vm1615, %v4995, %v909
      %v5028 = vsel %vm1615, %v4996, %v911
      %v5029 = vsel %vm1615, %v4997, %v913
      %v5030 = vsel %vm1615, %v4998, %v915
      %v5031 = vsel %vm1615, %v4999, %v917
      %v5032 = vsel %vm1615, %v5000, %v919
      %v5033 = vsel %vm1615, %v5001, %v921
      %v5034 = vsel %vm1615, %v5002, %v923
      %v5035 = vsel %vm1615, %v5003, %v925
      %v5036 = vsel %vm1615, %v5004, %v927
      %v5037 = vsel %vm1615, %v5005, %v929
      %v5038 = vsel %vm1615, %v5006, %v931
      %v5039 = vsel %vm1615, %v5007, %v933
      %v5040 = vsel %vm1615, %v5008, %v935
      %v5041 = vsel %vm1615, %v5009, %v937
      %v5042 = vsel %vm1615, %v5010, %v939
      %v5043 = vsel %vm1615, %v5011, %v941
      %v5044 = vsel %vm1615, %v5012, %v943
      %v5045 = vsel %vm1615, %v5013, %v945
      %v5046 = vsel %vm1615, %v5014, %v947
      %v5047 = vsel %vm1615, %v5015, %v949
      %v5048 = vsel %vm1615, %v5016, %v951
      %v5049 = vsel %vm1615, %v5017, %v953
      %v5050 = vsel %vm1615, %v5018, %v955
      %v5051 = vsel %vm1615, %v5019, %v957
      %v5052 = vsel %vm1615, %v5020, %v959
      %v5053 = vsel %vm1615, %v5021, %v961
      %v5054 = vsel %vm1615, %v5022, %v963
      %v5055 = vsel %vm1615, %v5023, %v965
      %v5056 = vsel %vm1615, %v5024, %v967
      %v5057 = vsel %vm1615, %v5025, %v969
      %v5058 = vsel %vm1615, %v5026, %v971
      %v5059 = vsel %vm1648, %v5027, %v4468
      %v5060 = vsel %vm1648, %v5028, %v4470
      %v5061 = vsel %vm1648, %v5029, %v4472
      %v5062 = vsel %vm1648, %v5030, %v4474
      %v5063 = vsel %vm1648, %v5031, %v4476
      %v5064 = vsel %vm1648, %v5032, %v4478
      %v5065 = vsel %vm1648, %v5033, %v4480
      %v5066 = vsel %vm1648, %v5034, %v4482
      %v5067 = vsel %vm1648, %v5035, %v4484
      %v5068 = vsel %vm1648, %v5036, %v4486
      %v5069 = vsel %vm1648, %v5037, %v4488
      %v5070 = vsel %vm1648, %v5038, %v4490
      %v5071 = vsel %vm1648, %v5039, %v4492
      %v5072 = vsel %vm1648, %v5040, %v4494
      %v5073 = vsel %vm1648, %v5041, %v4496
      %v5074 = vsel %vm1648, %v5042, %v4498
      %v5075 = vsel %vm1648, %v5043, %v4500
      %v5076 = vsel %vm1648, %v5044, %v4502
      %v5077 = vsel %vm1648, %v5045, %v4504
      %v5078 = vsel %vm1648, %v5046, %v4506
      %v5079 = vsel %vm1648, %v5047, %v4508
      %v5080 = vsel %vm1648, %v5048, %v4510
      %v5081 = vsel %vm1648, %v5049, %v4512
      %v5082 = vsel %vm1648, %v5050, %v4514
      %v5083 = vsel %vm1648, %v5051, %v4516
      %v5084 = vsel %vm1648, %v5052, %v4518
      %v5085 = vsel %vm1648, %v5053, %v4520
      %v5086 = vsel %vm1648, %v5054, %v4522
      %v5087 = vsel %vm1648, %v5055, %v4524
      %v5088 = vsel %vm1648, %v5056, %v4526
      %v5089 = vsel %vm1648, %v5057, %v4528
      %v5090 = vsel %vm1648, %v5058, %v4530
      %v5091 = vsel %vm1681, %v5059, %v4596
      %v5092 = vsel %vm1681, %v5060, %v4598
      %v5093 = vsel %vm1681, %v5061, %v4600
      %v5094 = vsel %vm1681, %v5062, %v4602
      %v5095 = vsel %vm1681, %v5063, %v4604
      %v5096 = vsel %vm1681, %v5064, %v4606
      %v5097 = vsel %vm1681, %v5065, %v4608
      %v5098 = vsel %vm1681, %v5066, %v4610
      %v5099 = vsel %vm1681, %v5067, %v4612
      %v5100 = vsel %vm1681, %v5068, %v4614
      %v5101 = vsel %vm1681, %v5069, %v4616
      %v5102 = vsel %vm1681, %v5070, %v4618
      %v5103 = vsel %vm1681, %v5071, %v4620
      %v5104 = vsel %vm1681, %v5072, %v4622
      %v5105 = vsel %vm1681, %v5073, %v4624
      %v5106 = vsel %vm1681, %v5074, %v4626
      %v5107 = vsel %vm1681, %v5075, %v4628
      %v5108 = vsel %vm1681, %v5076, %v4630
      %v5109 = vsel %vm1681, %v5077, %v4632
      %v5110 = vsel %vm1681, %v5078, %v4634
      %v5111 = vsel %vm1681, %v5079, %v4636
      %v5112 = vsel %vm1681, %v5080, %v4638
      %v5113 = vsel %vm1681, %v5081, %v4640
      %v5114 = vsel %vm1681, %v5082, %v4642
      %v5115 = vsel %vm1681, %v5083, %v4644
      %v5116 = vsel %vm1681, %v5084, %v4646
      %v5117 = vsel %vm1681, %v5085, %v4648
      %v5118 = vsel %vm1681, %v5086, %v4650
      %v5119 = vsel %vm1681, %v5087, %v4652
      %v5120 = vsel %vm1681, %v5088, %v4654
      %v5121 = vsel %vm1681, %v5089, %v4656
      %v5122 = vsel %vm1681, %v5090, %v4658
      %v5123 = vsel %vm1714, %v5091, %v4724
      %v5124 = vsel %vm1714, %v5092, %v4726
      %v5125 = vsel %vm1714, %v5093, %v4728
      %v5126 = vsel %vm1714, %v5094, %v4730
      %v5127 = vsel %vm1714, %v5095, %v4732
      %v5128 = vsel %vm1714, %v5096, %v4734
      %v5129 = vsel %vm1714, %v5097, %v4736
      %v5130 = vsel %vm1714, %v5098, %v4738
      %v5131 = vsel %vm1714, %v5099, %v4740
      %v5132 = vsel %vm1714, %v5100, %v4742
      %v5133 = vsel %vm1714, %v5101, %v4744
      %v5134 = vsel %vm1714, %v5102, %v4746
      %v5135 = vsel %vm1714, %v5103, %v4748
      %v5136 = vsel %vm1714, %v5104, %v4750
      %v5137 = vsel %vm1714, %v5105, %v4752
      %v5138 = vsel %vm1714, %v5106, %v4754
      %v5139 = vsel %vm1714, %v5107, %v4756
      %v5140 = vsel %vm1714, %v5108, %v4758
      %v5141 = vsel %vm1714, %v5109, %v4760
      %v5142 = vsel %vm1714, %v5110, %v4762
      %v5143 = vsel %vm1714, %v5111, %v4764
      %v5144 = vsel %vm1714, %v5112, %v4766
      %v5145 = vsel %vm1714, %v5113, %v4768
      %v5146 = vsel %vm1714, %v5114, %v4770
      %v5147 = vsel %vm1714, %v5115, %v4772
      %v5148 = vsel %vm1714, %v5116, %v4774
      %v5149 = vsel %vm1714, %v5117, %v4776
      %v5150 = vsel %vm1714, %v5118, %v4778
      %v5151 = vsel %vm1714, %v5119, %v4780
      %v5152 = vsel %vm1714, %v5120, %v4782
      %v5153 = vsel %vm1714, %v5121, %v4784
      %v5154 = vsel %vm1714, %v5122, %v4786
      %v5155 = vsel %vm1747, %v5123, %v4836
      %v5156 = vsel %vm1747, %v5124, %v4838
      %v5157 = vsel %vm1747, %v5125, %v4840
      %v5158 = vsel %vm1747, %v5126, %v4842
      %v5159 = vsel %vm1747, %v5127, %v4844
      %v5160 = vsel %vm1747, %v5128, %v4846
      %v5161 = vsel %vm1747, %v5129, %v4848
      %v5162 = vsel %vm1747, %v5130, %v4850
      %v5163 = vsel %vm1747, %v5131, %v4852
      %v5164 = vsel %vm1747, %v5132, %v4854
      %v5165 = vsel %vm1747, %v5133, %v4856
      %v5166 = vsel %vm1747, %v5134, %v4858
      %v5167 = vsel %vm1747, %v5135, %v4860
      %v5168 = vsel %vm1747, %v5136, %v4862
      %v5169 = vsel %vm1747, %v5137, %v4864
      %v5170 = vsel %vm1747, %v5138, %v4866
      %v5171 = vsel %vm1747, %v5139, %v4868
      %v5172 = vsel %vm1747, %v5140, %v4870
      %v5173 = vsel %vm1747, %v5141, %v4872
      %v5174 = vsel %vm1747, %v5142, %v4874
      %v5175 = vsel %vm1747, %v5143, %v4876
      %v5176 = vsel %vm1747, %v5144, %v4878
      %v5177 = vsel %vm1747, %v5145, %v4880
      %v5178 = vsel %vm1747, %v5146, %v4882
      %v5179 = vsel %vm1747, %v5147, %v4884
      %v5180 = vsel %vm1747, %v5148, %v4886
      %v5181 = vsel %vm1747, %v5149, %v4888
      %v5182 = vsel %vm1747, %v5150, %v4890
      %v5183 = vsel %vm1747, %v5151, %v4892
      %v5184 = vsel %vm1747, %v5152, %v4894
      %v5185 = vsel %vm1747, %v5153, %v4896
      %v5186 = vsel %vm1747, %v5154, %v4898
      %v5187 = vld [vmem:[%s1 + $0x48] sm:$0xff]
      %v5188 = vld [vmem:[%s1 + $0x50] sm:$0xff]
      %v5189 = vld [vmem:[%s1 + $0x58] sm:$0xff]
      %v5190 = vld [vmem:[%s1 + $0x60] sm:$0xff]
      %v5191 = vld [vmem:[%s1 + $0x68] sm:$0xf]
      %v5193 = vsel %vm3204, %v5155, 0
      %v5196 = vsel %vm3204, %v5156, 0
      %v5199 = vsel %vm3204, %v5157, 0
      %v5202 = vsel %vm3204, %v5158, 0
      %v5205 = vsel %vm3204, %v5159, 0
      %v5208 = vsel %vm3204, %v5160, 0
      %v5211 = vsel %vm3204, %v5161, 0
      %v5214 = vsel %vm3204, %v5162, 0
      %v5217 = vsel %vm3204, %v5163, 0
      %v5220 = vsel %vm3204, %v5164, 0
      %v5223 = vsel %vm3204, %v5165, 0
      %v5226 = vsel %vm3204, %v5166, 0
      %v5229 = vsel %vm3204, %v5167, 0
      %v5232 = vsel %vm3204, %v5168, 0
      %v5235 = vsel %vm3204, %v5169, 0
      %v5238 = vsel %vm3204, %v5170, 0
      %v5241 = vsel %vm3204, %v5171, 0
      %v5244 = vsel %vm3204, %v5172, 0
      %v5247 = vsel %vm3204, %v5173, 0
      %v5250 = vsel %vm3204, %v5174, 0
      %v5253 = vsel %vm3204, %v5175, 0
      %v5256 = vsel %vm3204, %v5176, 0
      %v5259 = vsel %vm3204, %v5177, 0
      %v5262 = vsel %vm3204, %v5178, 0
      %v5265 = vsel %vm3204, %v5179, 0
      %v5268 = vsel %vm3204, %v5180, 0
      %v5271 = vsel %vm3204, %v5181, 0
      %v5274 = vsel %vm3204, %v5182, 0
      %v5277 = vsel %vm3204, %v5183, 0
      %v5280 = vsel %vm3204, %v5184, 0
      %v5283 = vsel %vm3204, %v5185, 0
      %v5286 = vsel %vm3204, %v5186, 0
      %v5289 = vsel %vm3301, %v5191, 0
      %5291 = vmatprep.subr.mxu0 0.0
      %5292 = vmatpush1.msra.mxu0 0.0
      %5293 = vmatprep.subr.mxu0 0.0
      %5294 = vmatpush1.msra.mxu0 0.0
      %5295 = vmatprep.subr.mxu0 0.0
      %5296 = vmatpush1.msra.mxu0 0.0
      %5297 = vmatprep.subr.mxu0 0.0
      %5298 = vmatpush1.msra.mxu0 0.0
      %5299 = vmatprep.subr.mxu0 0.0
      %5300 = vmatpush1.msra.mxu0 0.0
      %5301 = vmatprep.subr.mxu0 0.0
      %5302 = vmatpush1.msra.mxu0 0.0
      %5303 = vmatprep.subr.mxu0 0.0
      %5304 = vmatpush1.msra.mxu0 0.0
      %5305 = vmatprep.subr.mxu0 0.0
      %5306 = vmatpush1.msra.mxu0 0.0
      %5307 = vmatprep.subr.mxu0 0.0
      %5308 = vmatpush1.msra.mxu0 0.0
      %5309 = vmatprep.subr.mxu0 0.0
      %5310 = vmatpush1.msra.mxu0 0.0
      %5311 = vmatprep.subr.mxu0 0.0
      %5312 = vmatpush1.msra.mxu0 0.0
      %5313 = vmatprep.subr.mxu0 0.0
      %5314 = vmatpush1.msra.mxu0 %v5289
      %5315 = vmatprep.subr.mxu0 0.0
      %5316 = vmatpush1.msra.mxu0 %v5190
      %5317 = vmatprep.subr.mxu0 0.0
      %5318 = vmatpush1.msra.mxu0 %v5189
      %5319 = vmatprep.subr.mxu0 0.0
      %5320 = vmatpush1.msra.mxu0 %v5188
      %5321 = vmatprep.subr.mxu0 0.0
      %5322 = vmatpush1.msra.mxu0 %v5187
      %5323 = vmatprep.subr.mxu0 0.0
      %5324 = vmatpush2.msra.mxu0 0.0
      %5325 = vmatprep.subr.mxu0 0.0
      %5326 = vmatpush2.msra.mxu0 0.0
      %5327 = vmatprep.subr.mxu0 0.0
      %5328 = vmatpush2.msra.mxu0 0.0
      %5329 = vmatprep.subr.mxu0 0.0
      %5330 = vmatpush2.msra.mxu0 0.0
      %5331 = vmatprep.subr.mxu0 0.0
      %5332 = vmatpush2.msra.mxu0 0.0
      %5333 = vmatprep.subr.mxu0 0.0
      %5334 = vmatpush2.msra.mxu0 0.0
      %5335 = vmatprep.subr.mxu0 0.0
      %5336 = vmatpush2.msra.mxu0 0.0
      %5337 = vmatprep.subr.mxu0 0.0
      %5338 = vmatpush2.msra.mxu0 0.0
      %5339 = vmatprep.subr.mxu0 0.0
      %5340 = vmatpush2.msra.mxu0 0.0
      %5341 = vmatprep.subr.mxu0 0.0
      %5342 = vmatpush2.msra.mxu0 0.0
      %5343 = vmatprep.subr.mxu0 0.0
      %5344 = vmatpush2.msra.mxu0 0.0
      %5345 = vmatprep.subr.mxu0 0.0
      %5346 = vmatpush2.msra.mxu0 0.0
      %5347 = vmatprep.subr.mxu0 0.0
      %5348 = vmatpush2.msra.mxu0 0.0
      %5349 = vmatprep.subr.mxu0 0.0
      %5350 = vmatpush2.msra.mxu0 0.0
      %5351 = vmatprep.subr.mxu0 0.0
      %5352 = vmatpush2.msra.mxu0 0.0
      %5353 = vmatprep.subr.mxu0 0.0
      %5354 = vmatpush2.msra.mxu0 0.0
      %5355 = vmatprep.mubr.f32.mxu0 0.0
      %5356 = vmatmul.mubr.f32.gmra.mxu0 %v5193
      %v5357 = vpop.f32.mrf.mxu0
      %v5358 = vadd.f32 0.0, %v5357
      %v5359 = vpop.f32.mrf.mxu0
      %5360 = vmatprep.mubr.f32.mxu0 0.0
      %5361 = vmatmul.mubr.f32.gmra.mxu0 %v5196
      %v5362 = vpop.f32.mrf.mxu0
      %v5363 = vadd.f32 0.0, %v5362
      %v5364 = vpop.f32.mrf.mxu0
      %5365 = vmatprep.mubr.f32.mxu0 0.0
      %5366 = vmatmul.mubr.f32.gmra.mxu0 %v5199
      %v5367 = vpop.f32.mrf.mxu0
      %v5368 = vadd.f32 0.0, %v5367
      %v5369 = vpop.f32.mrf.mxu0
      %5370 = vmatprep.mubr.f32.mxu0 0.0
      %5371 = vmatmul.mubr.f32.gmra.mxu0 %v5202
      %v5372 = vpop.f32.mrf.mxu0
      %v5373 = vadd.f32 0.0, %v5372
      %v5374 = vpop.f32.mrf.mxu0
      %5375 = vmatprep.mubr.f32.mxu0 0.0
      %5376 = vmatmul.mubr.f32.gmra.mxu0 %v5205
      %v5377 = vpop.f32.mrf.mxu0
      %v5378 = vadd.f32 0.0, %v5377
      %v5379 = vpop.f32.mrf.mxu0
      %5380 = vmatprep.mubr.f32.mxu0 0.0
      %5381 = vmatmul.mubr.f32.gmra.mxu0 %v5208
      %v5382 = vpop.f32.mrf.mxu0
      %v5383 = vadd.f32 0.0, %v5382
      %v5384 = vpop.f32.mrf.mxu0
      %5385 = vmatprep.mubr.f32.mxu0 0.0
      %5386 = vmatmul.mubr.f32.gmra.mxu0 %v5211
      %v5387 = vpop.f32.mrf.mxu0
      %v5388 = vadd.f32 0.0, %v5387
      %v5389 = vpop.f32.mrf.mxu0
      %5390 = vmatprep.mubr.f32.mxu0 0.0
      %5391 = vmatmul.mubr.f32.gmra.mxu0 %v5214
      %v5392 = vpop.f32.mrf.mxu0
      %v5393 = vadd.f32 0.0, %v5392
      %v5394 = vpop.f32.mrf.mxu0
      %5395 = vmatprep.mubr.f32.mxu0 0.0
      %5396 = vmatmul.mubr.f32.gmra.mxu0 %v5217
      %v5397 = vpop.f32.mrf.mxu0
      %v5398 = vadd.f32 0.0, %v5397
      %v5399 = vpop.f32.mrf.mxu0
      %5400 = vmatprep.mubr.f32.mxu0 0.0
      %5401 = vmatmul.mubr.f32.gmra.mxu0 %v5220
      %v5402 = vpop.f32.mrf.mxu0
      %v5403 = vadd.f32 0.0, %v5402
      %v5404 = vpop.f32.mrf.mxu0
      %5405 = vmatprep.mubr.f32.mxu0 0.0
      %5406 = vmatmul.mubr.f32.gmra.mxu0 %v5223
      %v5407 = vpop.f32.mrf.mxu0
      %v5408 = vadd.f32 0.0, %v5407
      %v5409 = vpop.f32.mrf.mxu0
      %5410 = vmatprep.mubr.f32.mxu0 0.0
      %5411 = vmatmul.mubr.f32.gmra.mxu0 %v5226
      %v5412 = vpop.f32.mrf.mxu0
      %v5413 = vadd.f32 0.0, %v5412
      %v5414 = vpop.f32.mrf.mxu0
      %5415 = vmatprep.mubr.f32.mxu0 0.0
      %5416 = vmatmul.mubr.f32.gmra.mxu0 %v5229
      %v5417 = vpop.f32.mrf.mxu0
      %v5418 = vadd.f32 0.0, %v5417
      %v5419 = vpop.f32.mrf.mxu0
      %5420 = vmatprep.mubr.f32.mxu0 0.0
      %5421 = vmatmul.mubr.f32.gmra.mxu0 %v5232
      %v5422 = vpop.f32.mrf.mxu0
      %v5423 = vadd.f32 0.0, %v5422
      %v5424 = vpop.f32.mrf.mxu0
      %5425 = vmatprep.mubr.f32.mxu0 0.0
      %5426 = vmatmul.mubr.f32.gmra.mxu0 %v5235
      %v5427 = vpop.f32.mrf.mxu0
      %v5428 = vadd.f32 0.0, %v5427
      %v5429 = vpop.f32.mrf.mxu0
      %5430 = vmatprep.mubr.f32.mxu0 0.0
      %5431 = vmatmul.mubr.f32.gmra.mxu0 %v5238
      %v5432 = vpop.f32.mrf.mxu0
      %v5433 = vadd.f32 0.0, %v5432
      %v5434 = vpop.f32.mrf.mxu0
      %5435 = vmatprep.mubr.f32.mxu0 0.0
      %5436 = vmatmul.mubr.f32.gmra.mxu0 %v5241
      %v5437 = vpop.f32.mrf.mxu0
      %v5438 = vadd.f32 0.0, %v5437
      %v5439 = vpop.f32.mrf.mxu0
      %5440 = vmatprep.mubr.f32.mxu0 0.0
      %5441 = vmatmul.mubr.f32.gmra.mxu0 %v5244
      %v5442 = vpop.f32.mrf.mxu0
      %v5443 = vadd.f32 0.0, %v5442
      %v5444 = vpop.f32.mrf.mxu0
      %5445 = vmatprep.mubr.f32.mxu0 0.0
      %5446 = vmatmul.mubr.f32.gmra.mxu0 %v5247
      %v5447 = vpop.f32.mrf.mxu0
      %v5448 = vadd.f32 0.0, %v5447
      %v5449 = vpop.f32.mrf.mxu0
      %5450 = vmatprep.mubr.f32.mxu0 0.0
      %5451 = vmatmul.mubr.f32.gmra.mxu0 %v5250
      %v5452 = vpop.f32.mrf.mxu0
      %v5453 = vadd.f32 0.0, %v5452
      %v5454 = vpop.f32.mrf.mxu0
      %5455 = vmatprep.mubr.f32.mxu0 0.0
      %5456 = vmatmul.mubr.f32.gmra.mxu0 %v5253
      %v5457 = vpop.f32.mrf.mxu0
      %v5458 = vadd.f32 0.0, %v5457
      %v5459 = vpop.f32.mrf.mxu0
      %5460 = vmatprep.mubr.f32.mxu0 0.0
      %5461 = vmatmul.mubr.f32.gmra.mxu0 %v5256
      %v5462 = vpop.f32.mrf.mxu0
      %v5463 = vadd.f32 0.0, %v5462
      %v5464 = vpop.f32.mrf.mxu0
      %5465 = vmatprep.mubr.f32.mxu0 0.0
      %5466 = vmatmul.mubr.f32.gmra.mxu0 %v5259
      %v5467 = vpop.f32.mrf.mxu0
      %v5468 = vadd.f32 0.0, %v5467
      %v5469 = vpop.f32.mrf.mxu0
      %5470 = vmatprep.mubr.f32.mxu0 0.0
      %5471 = vmatmul.mubr.f32.gmra.mxu0 %v5262
      %v5472 = vpop.f32.mrf.mxu0
      %v5473 = vadd.f32 0.0, %v5472
      %v5474 = vpop.f32.mrf.mxu0
      %5475 = vmatprep.mubr.f32.mxu0 0.0
      %5476 = vmatmul.mubr.f32.gmra.mxu0 %v5265
      %v5477 = vpop.f32.mrf.mxu0
      %v5478 = vadd.f32 0.0, %v5477
      %v5479 = vpop.f32.mrf.mxu0
      %5480 = vmatprep.mubr.f32.mxu0 0.0
      %5481 = vmatmul.mubr.f32.gmra.mxu0 %v5268
      %v5482 = vpop.f32.mrf.mxu0
      %v5483 = vadd.f32 0.0, %v5482
      %v5484 = vpop.f32.mrf.mxu0
      %5485 = vmatprep.mubr.f32.mxu0 0.0
      %5486 = vmatmul.mubr.f32.gmra.mxu0 %v5271
      %v5487 = vpop.f32.mrf.mxu0
      %v5488 = vadd.f32 0.0, %v5487
      %v5489 = vpop.f32.mrf.mxu0
      %5490 = vmatprep.mubr.f32.mxu0 0.0
      %5491 = vmatmul.mubr.f32.gmra.mxu0 %v5274
      %v5492 = vpop.f32.mrf.mxu0
      %v5493 = vadd.f32 0.0, %v5492
      %v5494 = vpop.f32.mrf.mxu0
      %5495 = vmatprep.mubr.f32.mxu0 0.0
      %5496 = vmatmul.mubr.f32.gmra.mxu0 %v5277
      %v5497 = vpop.f32.mrf.mxu0
      %v5498 = vadd.f32 0.0, %v5497
      %v5499 = vpop.f32.mrf.mxu0
      %5500 = vmatprep.mubr.f32.mxu0 0.0
      %5501 = vmatmul.mubr.f32.gmra.mxu0 %v5280
      %v5502 = vpop.f32.mrf.mxu0
      %v5503 = vadd.f32 0.0, %v5502
      %v5504 = vpop.f32.mrf.mxu0
      %5505 = vmatprep.mubr.f32.mxu0 0.0
      %5506 = vmatmul.mubr.f32.gmra.mxu0 %v5283
      %v5507 = vpop.f32.mrf.mxu0
      %v5508 = vadd.f32 0.0, %v5507
      %v5509 = vpop.f32.mrf.mxu0
      %5510 = vmatprep.mubr.f32.mxu0 0.0
      %5511 = vmatmul.mubr.f32.gmra.mxu0 %v5286
      %v5512 = vpop.f32.mrf.mxu0
      %v5513 = vadd.f32 0.0, %v5512
      %v5514 = vpop.f32.mrf.mxu0
      %5515 = vdwg.mxu0
      %v5516 = vadd.f32 %v3696, %v5358
      %v5517 = vadd.f32 %v3701, %v5363
      %v5518 = vadd.f32 %v3706, %v5368
      %v5519 = vadd.f32 %v3711, %v5373
      %v5520 = vadd.f32 %v3716, %v5378
      %v5521 = vadd.f32 %v3721, %v5383
      %v5522 = vadd.f32 %v3726, %v5388
      %v5523 = vadd.f32 %v3731, %v5393
      %v5524 = vadd.f32 %v3736, %v5398
      %v5525 = vadd.f32 %v3741, %v5403
      %v5526 = vadd.f32 %v3746, %v5408
      %v5527 = vadd.f32 %v3751, %v5413
      %v5528 = vadd.f32 %v3756, %v5418
      %v5529 = vadd.f32 %v3761, %v5423
      %v5530 = vadd.f32 %v3766, %v5428
      %v5531 = vadd.f32 %v3771, %v5433
      %v5532 = vadd.f32 %v3776, %v5438
      %v5533 = vadd.f32 %v3781, %v5443
      %v5534 = vadd.f32 %v3786, %v5448
      %v5535 = vadd.f32 %v3791, %v5453
      %v5536 = vadd.f32 %v3796, %v5458
      %v5537 = vadd.f32 %v3801, %v5463
      %v5538 = vadd.f32 %v3806, %v5468
      %v5539 = vadd.f32 %v3811, %v5473
      %v5540 = vadd.f32 %v3816, %v5478
      %v5541 = vadd.f32 %v3821, %v5483
      %v5542 = vadd.f32 %v3826, %v5488
      %v5543 = vadd.f32 %v3831, %v5493
      %v5544 = vadd.f32 %v3836, %v5498
      %v5545 = vadd.f32 %v3841, %v5503
      %v5546 = vadd.f32 %v3846, %v5508
      %v5547 = vadd.f32 %v3851, %v5513
      %v5548 = vld [vmem:[%s2] sm:$0x1]
      %v5550 = vlaneseq
      %v5551 = vshrl.u32 %v5550, 7
      %v5552 = vsub.s32 0, %v5551
      %v5553 = vrot.slane %v5548, %v5552
      %v5555 = vadd.f32 %v5516, %v5553
      %v5556 = vadd.f32 %v5517, %v5553
      %v5557 = vadd.f32 %v5518, %v5553
      %v5558 = vadd.f32 %v5519, %v5553
      %v5559 = vadd.f32 %v5520, %v5553
      %v5560 = vadd.f32 %v5521, %v5553
      %v5561 = vadd.f32 %v5522, %v5553
      %v5562 = vadd.f32 %v5523, %v5553
      %v5563 = vadd.f32 %v5524, %v5553
      %v5564 = vadd.f32 %v5525, %v5553
      %v5565 = vadd.f32 %v5526, %v5553
      %v5566 = vadd.f32 %v5527, %v5553
      %v5567 = vadd.f32 %v5528, %v5553
      %v5568 = vadd.f32 %v5529, %v5553
      %v5569 = vadd.f32 %v5530, %v5553
      %v5570 = vadd.f32 %v5531, %v5553
      %v5571 = vadd.f32 %v5532, %v5553
      %v5572 = vadd.f32 %v5533, %v5553
      %v5573 = vadd.f32 %v5534, %v5553
      %v5574 = vadd.f32 %v5535, %v5553
      %v5575 = vadd.f32 %v5536, %v5553
      %v5576 = vadd.f32 %v5537, %v5553
      %v5577 = vadd.f32 %v5538, %v5553
      %v5578 = vadd.f32 %v5539, %v5553
      %v5579 = vadd.f32 %v5540, %v5553
      %v5580 = vadd.f32 %v5541, %v5553
      %v5581 = vadd.f32 %v5542, %v5553
      %v5582 = vadd.f32 %v5543, %v5553
      %v5583 = vadd.f32 %v5544, %v5553
      %v5584 = vadd.f32 %v5545, %v5553
      %v5585 = vadd.f32 %v5546, %v5553
      %v5586 = vadd.f32 %v5547, %v5553
      %5587 = vst.msk [vmem:[%s192] sm:$0xff] %vm1549, %v5555
      %5588 = vst.msk [vmem:[%s192 + $0x8] sm:$0xff] %vm1549, %v5556
      %5589 = vst.msk [vmem:[%s192 + $0x10] sm:$0xff] %vm1549, %v5557
      %5590 = vst.msk [vmem:[%s192 + $0x18] sm:$0xff] %vm1549, %v5558
      %5591 = vst.msk [vmem:[%s192 + $0x20] sm:$0xff] %vm1549, %v5559
      %5592 = vst.msk [vmem:[%s192 + $0x28] sm:$0xff] %vm1549, %v5560
      %5593 = vst.msk [vmem:[%s192 + $0x30] sm:$0xff] %vm1549, %v5561
      %5594 = vst.msk [vmem:[%s192 + $0x38] sm:$0xff] %vm1549, %v5562
      %5595 = vst.msk [vmem:[%s192 + $0x40] sm:$0xff] %vm1549, %v5563
      %5596 = vst.msk [vmem:[%s192 + $0x48] sm:$0xff] %vm1549, %v5564
      %5597 = vst.msk [vmem:[%s192 + $0x50] sm:$0xff] %vm1549, %v5565
      %5598 = vst.msk [vmem:[%s192 + $0x58] sm:$0xff] %vm1549, %v5566
      %5599 = vst.msk [vmem:[%s192 + $0x60] sm:$0xff] %vm1549, %v5567
      %5600 = vst.msk [vmem:[%s192 + $0x68] sm:$0xff] %vm1549, %v5568
      %5601 = vst.msk [vmem:[%s192 + $0x70] sm:$0xff] %vm1549, %v5569
      %5602 = vst.msk [vmem:[%s192 + $0x78] sm:$0xff] %vm1549, %v5570
      %5603 = vst.msk [vmem:[%s192 + $0x80] sm:$0xff] %vm1549, %v5571
      %5604 = vst.msk [vmem:[%s192 + $0x88] sm:$0xff] %vm1549, %v5572
      %5605 = vst.msk [vmem:[%s192 + $0x90] sm:$0xff] %vm1549, %v5573
      %5606 = vst.msk [vmem:[%s192 + $0x98] sm:$0xff] %vm1549, %v5574
      %5607 = vst.msk [vmem:[%s192 + $0xa0] sm:$0xff] %vm1549, %v5575
      %5608 = vst.msk [vmem:[%s192 + $0xa8] sm:$0xff] %vm1549, %v5576
      %5609 = vst.msk [vmem:[%s192 + $0xb0] sm:$0xff] %vm1549, %v5577
      %5610 = vst.msk [vmem:[%s192 + $0xb8] sm:$0xff] %vm1549, %v5578
      %5611 = vst.msk [vmem:[%s192 + $0xc0] sm:$0xff] %vm1549, %v5579
      %5612 = vst.msk [vmem:[%s192 + $0xc8] sm:$0xff] %vm1549, %v5580
      %5613 = vst.msk [vmem:[%s192 + $0xd0] sm:$0xff] %vm1549, %v5581
      %5614 = vst.msk [vmem:[%s192 + $0xd8] sm:$0xff] %vm1549, %v5582
      %5615 = vst.msk [vmem:[%s192 + $0xe0] sm:$0xff] %vm1549, %v5583
      %5616 = vst.msk [vmem:[%s192 + $0xe8] sm:$0xff] %vm1549, %v5584
      %5617 = vst.msk [vmem:[%s192 + $0xf0] sm:$0xff] %vm1549, %v5585
      %5618 = vst.msk [vmem:[%s192 + $0xf8] sm:$0xff] %vm1549, %v5586
      %s5619 = smul.u32 32, %s19
      %p5620 = scmp.lt.s32.totalorder %s18, 1
      %s5621 = scalar_select %p5620, %s18, 1
      %p5622 = scmp.lt.s32.totalorder %s5619, 31
      %s5623 = scalar_select %p5622, %s5619, 31
      %s5624 = smul.addr %s5621, 32
      %s5625 = sadd.s32 %s5623, %s5624
      %s5626 = smul.addr %s5625, 8
      %s5627 = scalar_lea.vmem %s3, %s5626
      // Predicated region
      $region33: #{tpu_custom_call.1} parent=31 // pred_check
        %p5628 = pneg %p114
      $region34: #{tpu_custom_call.1} parent=31 // pred_check_branch
        %5630 = sbr.rel (%p5628) target = $region36
      $region35: #{tpu_custom_call.1} parent=31 // pred_region
        %s5631 = smul.u32 32, %s19
      $region36: #{tpu_custom_call.1} parent=31 // pred_fallthru
        _
    $region32: #{tpu_custom_call.1} parent=5 // pred_fallthru
      _
    %p5632 = scmp.le.s32.totalorder 2, %s9
    // Predicated region
    $region37: #{tpu_custom_call.1} parent=5 // pred_check
      %p5633 = pneg %p5632
    $region38: #{tpu_custom_call.1} parent=5 // pred_check_branch
      %5635 = sbr.rel (%p5633) target = $region40
    $region39: #{tpu_custom_call.1} parent=5 // pred_region
      %s5636 = ssub.s32 %s9, 2
      // Predicated region
      $region41: #{tpu_custom_call.1} parent=39 // pred_check
        %p5637 = pneg %p120
      $region42: #{tpu_custom_call.1} parent=39 // pred_check_branch
        %5639 = sbr.rel (%p5637) target = $region44
      $region43: #{tpu_custom_call.1} parent=39 // pred_region
        %s5640 = smul.u32 32, %s21
        %p5641 = scmp.lt.s32.totalorder %s20, 1
        %s5642 = scalar_select %p5641, %s20, 1
        %p5643 = scmp.lt.s32.totalorder %s5640, 31
        %s5644 = scalar_select %p5643, %s5640, 31
        %s5645 = smul.addr %s5642, 32
        %s5646 = sadd.s32 %s5644, %s5645
        %s5647 = smul.addr %s5646, 8
        %s5648 = scalar_lea.vmem %s3, %s5647
      $region44: #{tpu_custom_call.1} parent=39 // pred_fallthru
        _
    $region40: #{tpu_custom_call.1} parent=5 // pred_fallthru
      _
  $region6: #{tpu_custom_call.1} parent=0 // loop_footer
    %s13 = sadd.s32 1, %s9
  $region7: #{tpu_custom_call.1} parent=0 // loop_footer_branch
    %8 = sbr.rel target = $region3
  $region8: #{tpu_custom_call.1} parent=0 // loop_exit
    _

</llo_original>
